<compile_context>
chip_gen: v7x
topology: tpu7x:2x2x1
jax: 0.10.0
libtpu: 0.0.40
codegen_flags: <defaults>
</compile_context>

<pallas_src>
import functools

import jax
import jax.numpy as jnp
from jax import lax
from jax.experimental import pallas as pl
from jax.experimental.pallas import tpu as pltpu

# ----------------------------- config (small, synthetic) --------------------
B = 2            # batch
C = 4            # image channels
IMG = 16         # image spatial size
PATCH = 8        # patch size
STRIDE = 4       # stride_size < PATCH  -> overlapping patches ("Overlap")
D = 32           # hidden size (shared by ViT / BERT here)
HEADS = 4
DH = D // HEADS
MLP = 64
LAYERS = 2
VOCAB = 100
S_TXT = 8
MAX_POS = 32


# ----------------------------- in-kernel helpers -----------------------------
def _ln(x, g, b, eps):
    """Row-wise layer norm.  x:(S,D)  g,b:(1,D)."""
    mu = jnp.mean(x, axis=-1, keepdims=True)
    var = jnp.mean((x - mu) ** 2, axis=-1, keepdims=True)
    return (x - mu) * lax.rsqrt(var + eps) * g + b


def _mha_proj(qkv, w_o, b_o, heads, mask_add):
    """Multi-head self-attention fused with the output projection.

    qkv:(S,3D) fused projections, w_o:(D,D), b_o:(1,D),
    mask_add: None or (1,S) additive key mask.  Returns (S,D).
    The head merge is folded into the output projection:
        concat_h(o_h) @ W_o == sum_h o_h @ W_o[h*dh:(h+1)*dh, :]
    so no lane concatenation / transpose is needed.
    """
    s, three = qkv.shape
    d = three // 3
    dh = d // heads
    scale = 1.0 / (dh ** 0.5)
    q = qkv[:, :d] * scale          # fold 1/sqrt(dh) into q
    k = qkv[:, d:2 * d]
    v = qkv[:, 2 * d:]

    acc = None
    for h in range(heads):
        sl = slice(h * dh, (h + 1) * dh)
        # (S, dh) x (S, dh)^T -> (S, S)   (NT contraction, MXU)
        sc = lax.dot_general(q[:, sl], k[:, sl], (((1,), (1,)), ((), ())),
                             preferred_element_type=jnp.float32)
        if mask_add is not None:
            sc = sc + mask_add                       # broadcast (1,S) over rows
        sc = sc - jnp.max(sc, axis=-1, keepdims=True)
        p = jnp.exp(sc)
        p = p * pl.reciprocal(jnp.sum(p, axis=-1, keepdims=True), approx=True)
        o_h = jnp.dot(p, v[:, sl], preferred_element_type=jnp.float32)  # (S,dh)
        contrib = jnp.dot(o_h, w_o[sl, :],
                          preferred_element_type=jnp.float32)           # (S,D)
        acc = contrib if acc is None else acc + contrib
    return acc + b_o


# ----------------------------- fused ViT kernel ------------------------------
def _vit_kernel(patches_ref, patch_w, patch_b, cls_ref, pos_ref,
                ln1_g, ln1_b, qkv_w, qkv_b, proj_w, proj_b, ln2_g, ln2_b,
                fc1_w, fc1_b, fc2_w, fc2_b, lnf_g, lnf_b, o_ref,
                *, layers, heads, eps):
    s, d = o_ref.shape
    # Patch embedding (row 0 of patches is a zero row reserved for CLS).
    xe = jnp.dot(patches_ref[...], patch_w[...],
                 preferred_element_type=jnp.float32) + patch_b[...]
    is_cls = lax.broadcasted_iota(jnp.int32, (s, 1), 0) == 0
    x = jnp.where(is_cls, cls_ref[...], xe) + pos_ref[...]

    for l in range(layers):                    # static unrolled (LAYERS=2)
        h = _ln(x, ln1_g[l], ln1_b[l], eps)
        qkv = jnp.dot(h, qkv_w[l], preferred_element_type=jnp.float32) + qkv_b[l]
        x = x + _mha_proj(qkv, proj_w[l], proj_b[l], heads, None)
        h = _ln(x, ln2_g[l], ln2_b[l], eps)
        # TODO(synk): PyTorch nn.GELU defaults to exact (erf); tanh approx used.
        h = jax.nn.gelu(jnp.dot(h, fc1_w[l], preferred_element_type=jnp.float32)
                        + fc1_b[l], approximate=True)
        x = x + jnp.dot(h, fc2_w[l], preferred_element_type=jnp.float32) + fc2_b[l]

    o_ref[...] = _ln(x, lnf_g[...], lnf_b[...], eps).astype(o_ref.dtype)


# ----------------------------- fused BERT kernel -----------------------------
def _bert_kernel(emb_ref, mask_ref, eln_g, eln_b,
                 qkv_w, qkv_b, ao_w, ao_b, ln1_g, ln1_b,
                 fc1_w, fc1_b, fc2_w, fc2_b, ln2_g, ln2_b,
                 pool_w, pool_b, o_ref, *, layers, heads, eps):
    x = _ln(emb_ref[...], eln_g[...], eln_b[...], eps)
    mask_add = mask_ref[...]                               # (1, S) additive

    for l in range(layers):                                # static unrolled
        qkv = jnp.dot(x, qkv_w[l], preferred_element_type=jnp.float32) + qkv_b[l]
        ao = _mha_proj(qkv, ao_w[l], ao_b[l], heads, mask_add)
        x = _ln(x + ao, ln1_g[l], ln1_b[l], eps)
        h = jax.nn.gelu(jnp.dot(x, fc1_w[l], preferred_element_type=jnp.float32)
                        + fc1_b[l], approximate=True)
        h = jnp.dot(h, fc2_w[l], preferred_element_type=jnp.float32) + fc2_b[l]
        x = _ln(x + h, ln2_g[l], ln2_b[l], eps)

    pooled = jnp.tanh(jnp.dot(x[0:1, :], pool_w[...],
                              preferred_element_type=jnp.float32) + pool_b[...])
    o_ref[...] = pooled.astype(o_ref.dtype)


# ----------------------------- wrappers --------------------------------------
def _rep_spec(shape):
    """Full-array block replicated across the batch grid axis."""
    n = len(shape)
    return pl.BlockSpec(shape, lambda i, _n=n: (0,) * _n)


def vit_forward(p, img):
    b = img.shape[0]
    patches = lax.conv_general_dilated_patches(
        img, filter_shape=(PATCH, PATCH), window_strides=(STRIDE, STRIDE),
        padding="VALID")                                   # (B, C*P*P, Hp, Wp)
    _, ck, hp, wp = patches.shape
    patches = patches.transpose(0, 2, 3, 1).reshape(b, hp * wp, ck)
    s = hp * wp + 1
    # Reserve token slot 0 for CLS (zero patch row; kernel overwrites with cls).
    patches = jnp.concatenate([jnp.zeros((b, 1, ck), jnp.float32), patches],
                              axis=1)                      # (B, S, CK)

    out = pl.pallas_call(
        functools.partial(_vit_kernel, layers=LAYERS, heads=HEADS, eps=1e-6),
        out_shape=jax.ShapeDtypeStruct((b, s, D), jnp.float32),
        grid=(b,),
        in_specs=[
            pl.BlockSpec((None, s, ck), lambda i: (i, 0, 0)),      # patches
            _rep_spec((ck, D)), _rep_spec((1, D)),                 # patch w,b
            _rep_spec((1, D)), _rep_spec((s, D)),                  # cls, pos
            _rep_spec((LAYERS, 1, D)), _rep_spec((LAYERS, 1, D)),  # ln1 g,b
            _rep_spec((LAYERS, D, 3 * D)), _rep_spec((LAYERS, 1, 3 * D)),  # qkv
            _rep_spec((LAYERS, D, D)), _rep_spec((LAYERS, 1, D)),  # proj
            _rep_spec((LAYERS, 1, D)), _rep_spec((LAYERS, 1, D)),  # ln2 g,b
            _rep_spec((LAYERS, D, MLP)), _rep_spec((LAYERS, 1, MLP)),  # fc1
            _rep_spec((LAYERS, MLP, D)), _rep_spec((LAYERS, 1, D)),    # fc2
            _rep_spec((1, D)), _rep_spec((1, D)),                  # final ln
        ],
        out_specs=pl.BlockSpec((None, s, D), lambda i: (i, 0, 0)),
        compiler_params=pltpu.CompilerParams(
            dimension_semantics=("parallel",)),
    )(patches, p["patch_w"], p["patch_b"], p["cls"], p["pos_emb"],
      p["ln1_g"], p["ln1_b"], p["qkv_w"], p["qkv_b"],
      p["proj_w"], p["proj_b"], p["ln2_g"], p["ln2_b"],
      p["fc1_w"], p["fc1_b"], p["fc2_w"], p["fc2_b"],
      p["ln_g"], p["ln_b"])
    return out                                             # (B, Np+1, D)


def bert_forward(p, txt, mask):
    b, s = txt.shape
    # Embedding gather + additive-mask construction stay in JAX glue.
    emb = (p["word_emb"][txt]
           + p["pos_emb"][:s][None, :, :]
           + p["type_emb"][0][None, None, :])              # (B, S, D)
    add_mask = (1.0 - mask.astype(jnp.float32))[:, None, :] * -1e9   # (B,1,S)

    pooled = pl.pallas_call(
        functools.partial(_bert_kernel, layers=LAYERS, heads=HEADS, eps=1e-12),
        out_shape=jax.ShapeDtypeStruct((b, 1, D), jnp.float32),
        grid=(b,),
        in_specs=[
            pl.BlockSpec((None, s, D), lambda i: (i, 0, 0)),       # embeddings
            pl.BlockSpec((None, 1, s), lambda i: (i, 0, 0)),       # add mask
            _rep_spec((1, D)), _rep_spec((1, D)),                  # emb ln
            _rep_spec((LAYERS, D, 3 * D)), _rep_spec((LAYERS, 1, 3 * D)),  # qkv
            _rep_spec((LAYERS, D, D)), _rep_spec((LAYERS, 1, D)),  # attn out
            _rep_spec((LAYERS, 1, D)), _rep_spec((LAYERS, 1, D)),  # ln1 g,b
            _rep_spec((LAYERS, D, MLP)), _rep_spec((LAYERS, 1, MLP)),  # fc1
            _rep_spec((LAYERS, MLP, D)), _rep_spec((LAYERS, 1, D)),    # fc2
            _rep_spec((LAYERS, 1, D)), _rep_spec((LAYERS, 1, D)),  # ln2 g,b
            _rep_spec((D, D)), _rep_spec((1, D)),                  # pooler
        ],
        out_specs=pl.BlockSpec((None, 1, D), lambda i: (i, 0, 0)),
        compiler_params=pltpu.CompilerParams(
            dimension_semantics=("parallel",)),
    )(emb, add_mask, p["emb_ln_g"], p["emb_ln_b"],
      p["qkv_w"], p["qkv_b"], p["ao_w"], p["ao_b"],
      p["ln1_g"], p["ln1_b"], p["fc1_w"], p["fc1_b"],
      p["fc2_w"], p["fc2_b"], p["ln2_g"], p["ln2_b"],
      p["pool_w"], p["pool_b"])
    return pooled.reshape(b, D)


def vit_bert_overlap(params, img, txt, mask):
    img_f4 = vit_forward(params["vit"], img)
    txt_pooled = bert_forward(params["bert"], txt, mask)
    return img_f4, txt_pooled       # matches (img_f4, txt_f4[1])


# ----------------------------- deterministic param init ---------------------
def _w(key, shape, scale=0.02):
    return scale * jax.random.normal(key, shape, dtype=jnp.float32)


def init_params(key):
    keys = iter(jax.random.split(key, 64))
    nk = lambda: next(keys)
    np_patches = ((IMG - PATCH) // STRIDE + 1) ** 2
    s_img = np_patches + 1

    vit = dict(
        patch_w=_w(nk(), (C * PATCH * PATCH, D)), patch_b=jnp.zeros((1, D)),
        cls=_w(nk(), (1, D)),
        pos_emb=_w(nk(), (s_img, D)),
        ln1_g=jnp.ones((LAYERS, 1, D)), ln1_b=jnp.zeros((LAYERS, 1, D)),
        qkv_w=_w(nk(), (LAYERS, D, 3 * D)), qkv_b=jnp.zeros((LAYERS, 1, 3 * D)),
        proj_w=_w(nk(), (LAYERS, D, D)), proj_b=jnp.zeros((LAYERS, 1, D)),
        ln2_g=jnp.ones((LAYERS, 1, D)), ln2_b=jnp.zeros((LAYERS, 1, D)),
        fc1_w=_w(nk(), (LAYERS, D, MLP)), fc1_b=jnp.zeros((LAYERS, 1, MLP)),
        fc2_w=_w(nk(), (LAYERS, MLP, D)), fc2_b=jnp.zeros((LAYERS, 1, D)),
        ln_g=jnp.ones((1, D)), ln_b=jnp.zeros((1, D)),
    )
    bert = dict(
        word_emb=_w(nk(), (VOCAB, D)),
        pos_emb=_w(nk(), (MAX_POS, D)),
        type_emb=_w(nk(), (2, D)),
        emb_ln_g=jnp.ones((1, D)), emb_ln_b=jnp.zeros((1, D)),
        qkv_w=_w(nk(), (LAYERS, D, 3 * D)), qkv_b=jnp.zeros((LAYERS, 1, 3 * D)),
        ao_w=_w(nk(), (LAYERS, D, D)), ao_b=jnp.zeros((LAYERS, 1, D)),
        ln1_g=jnp.ones((LAYERS, 1, D)), ln1_b=jnp.zeros((LAYERS, 1, D)),
        fc1_w=_w(nk(), (LAYERS, D, MLP)), fc1_b=jnp.zeros((LAYERS, 1, MLP)),
        fc2_w=_w(nk(), (LAYERS, MLP, D)), fc2_b=jnp.zeros((LAYERS, 1, D)),
        ln2_g=jnp.ones((LAYERS, 1, D)), ln2_b=jnp.zeros((LAYERS, 1, D)),
        pool_w=_w(nk(), (D, D)), pool_b=jnp.zeros((1, D)),
    )
    return dict(vit=vit, bert=bert)


# ----------------------------- main ------------------------------------------
if __name__ == "__main__":
    root = jax.random.PRNGKey(0)
    k_params, k_img, k_txt = jax.random.split(root, 3)

    params = init_params(k_params)
    img = jax.random.normal(k_img, (B, C, IMG, IMG), dtype=jnp.float32)   # NCHW
    txt = jax.random.randint(k_txt, (B, S_TXT), 0, VOCAB, dtype=jnp.int32)
    mask = jnp.concatenate(
        [jnp.ones((B, S_TXT - 2), jnp.int32), jnp.zeros((B, 2), jnp.int32)], axis=1)

    fwd = jax.jit(vit_bert_overlap)
    img_f4, txt_pooled = fwd(params, img, txt, mask)
    jax.block_until_ready((img_f4, txt_pooled))

    n_tok = ((IMG - PATCH) // STRIDE + 1) ** 2 + 1
    assert img_f4.shape == (B, n_tok, D)
    assert txt_pooled.shape == (B, D)
    assert jnp.all(jnp.isfinite(img_f4)) and jnp.all(jnp.isfinite(txt_pooled))
    print("KERNEL_OK")
</pallas_src>

<mosaic_0001>
module attributes {stable_mosaic.version = 11 : i64} {
  func.func @_vit_kernel(%arg0: i32, %arg1: memref<1x10x256xf32, #tpu.memory_space<vmem>>, %arg2: memref<256x32xf32, #tpu.memory_space<vmem>>, %arg3: memref<1x32xf32, #tpu.memory_space<vmem>>, %arg4: memref<1x32xf32, #tpu.memory_space<vmem>>, %arg5: memref<10x32xf32, #tpu.memory_space<vmem>>, %arg6: memref<2x1x32xf32, #tpu.memory_space<vmem>>, %arg7: memref<2x1x32xf32, #tpu.memory_space<vmem>>, %arg8: memref<2x32x96xf32, #tpu.memory_space<vmem>>, %arg9: memref<2x1x96xf32, #tpu.memory_space<vmem>>, %arg10: memref<2x32x32xf32, #tpu.memory_space<vmem>>, %arg11: memref<2x1x32xf32, #tpu.memory_space<vmem>>, %arg12: memref<2x1x32xf32, #tpu.memory_space<vmem>>, %arg13: memref<2x1x32xf32, #tpu.memory_space<vmem>>, %arg14: memref<2x32x64xf32, #tpu.memory_space<vmem>>, %arg15: memref<2x1x64xf32, #tpu.memory_space<vmem>>, %arg16: memref<2x64x32xf32, #tpu.memory_space<vmem>>, %arg17: memref<2x1x32xf32, #tpu.memory_space<vmem>>, %arg18: memref<1x32xf32, #tpu.memory_space<vmem>>, %arg19: memref<1x32xf32, #tpu.memory_space<vmem>>, %arg20: memref<1x10x32xf32, #tpu.memory_space<vmem>>) attributes {dimension_semantics = [#tpu.dimension_semantics<parallel>], iteration_bounds = array<i64: 2>, scalar_prefetch = 0 : i64, scratch_operands = 0 : i64, tpu.core_type = #tpu.core_type<tc>, window_params = [{transform_indices = @transform_0, window_bounds = array<i64: 1, 10, 256>}, {pipeline_mode = #tpu.pipeline_mode<synchronous>, transform_indices = @transform_1, window_bounds = array<i64: 256, 32>}, {pipeline_mode = #tpu.pipeline_mode<synchronous>, transform_indices = @transform_2, window_bounds = array<i64: 1, 32>}, {pipeline_mode = #tpu.pipeline_mode<synchronous>, transform_indices = @transform_3, window_bounds = array<i64: 1, 32>}, {pipeline_mode = #tpu.pipeline_mode<synchronous>, transform_indices = @transform_4, window_bounds = array<i64: 10, 32>}, {pipeline_mode = #tpu.pipeline_mode<synchronous>, transform_indices = @transform_5, window_bounds = array<i64: 2, 1, 32>}, {pipeline_mode = #tpu.pipeline_mode<synchronous>, transform_indices = @transform_6, window_bounds = array<i64: 2, 1, 32>}, {pipeline_mode = #tpu.pipeline_mode<synchronous>, transform_indices = @transform_7, window_bounds = array<i64: 2, 32, 96>}, {pipeline_mode = #tpu.pipeline_mode<synchronous>, transform_indices = @transform_8, window_bounds = array<i64: 2, 1, 96>}, {pipeline_mode = #tpu.pipeline_mode<synchronous>, transform_indices = @transform_9, window_bounds = array<i64: 2, 32, 32>}, {pipeline_mode = #tpu.pipeline_mode<synchronous>, transform_indices = @transform_10, window_bounds = array<i64: 2, 1, 32>}, {pipeline_mode = #tpu.pipeline_mode<synchronous>, transform_indices = @transform_11, window_bounds = array<i64: 2, 1, 32>}, {pipeline_mode = #tpu.pipeline_mode<synchronous>, transform_indices = @transform_12, window_bounds = array<i64: 2, 1, 32>}, {pipeline_mode = #tpu.pipeline_mode<synchronous>, transform_indices = @transform_13, window_bounds = array<i64: 2, 32, 64>}, {pipeline_mode = #tpu.pipeline_mode<synchronous>, transform_indices = @transform_14, window_bounds = array<i64: 2, 1, 64>}, {pipeline_mode = #tpu.pipeline_mode<synchronous>, transform_indices = @transform_15, window_bounds = array<i64: 2, 64, 32>}, {pipeline_mode = #tpu.pipeline_mode<synchronous>, transform_indices = @transform_16, window_bounds = array<i64: 2, 1, 32>}, {pipeline_mode = #tpu.pipeline_mode<synchronous>, transform_indices = @transform_17, window_bounds = array<i64: 1, 32>}, {pipeline_mode = #tpu.pipeline_mode<synchronous>, transform_indices = @transform_18, window_bounds = array<i64: 1, 32>}, {transform_indices = @transform_19, window_bounds = array<i64: 1, 10, 32>}]} {
    %c0 = arith.constant 0 : index
    %c0_0 = arith.constant 0 : index
    %c0_1 = arith.constant 0 : index
    %0 = vector.load %arg1[%c0, %c0_0, %c0_1] : memref<1x10x256xf32, #tpu.memory_space<vmem>>, vector<1x10x256xf32>
    %1 = vector.shape_cast %0 : vector<1x10x256xf32> to vector<10x256xf32>
    %c0_2 = arith.constant 0 : index
    %c0_3 = arith.constant 0 : index
    %2 = vector.load %arg2[%c0_2, %c0_3] : memref<256x32xf32, #tpu.memory_space<vmem>>, vector<256x32xf32>
    %cst = arith.constant dense<0.000000e+00> : vector<10x32xf32>
    %3 = tpu.matmul %1, %2, %cst {dimension_numbers = #tpu.dot_dimension_numbers<[1], [0], [0], [1], [0, 0, 1, 1], [], []>} : vector<10x256xf32>, vector<256x32xf32>, vector<10x32xf32> -> vector<10x32xf32>
    %c0_4 = arith.constant 0 : index
    %c0_5 = arith.constant 0 : index
    %4 = vector.load %arg3[%c0_4, %c0_5] : memref<1x32xf32, #tpu.memory_space<vmem>>, vector<1x32xf32>
    %5 = vector.broadcast %4 : vector<1x32xf32> to vector<10x32xf32>
    %6 = arith.addf %3, %5 : vector<10x32xf32>
    %7 = tpu.iota {dimensions = array<i32: 0>} : vector<10x1xi32>
    %c0_i32 = arith.constant 0 : i32
    %8 = vector.broadcast %c0_i32 : i32 to vector<10x1xi32>
    %9 = arith.cmpi eq, %7, %8 : vector<10x1xi32>
    %c0_6 = arith.constant 0 : index
    %c0_7 = arith.constant 0 : index
    %10 = vector.load %arg4[%c0_6, %c0_7] : memref<1x32xf32, #tpu.memory_space<vmem>>, vector<1x32xf32>
    %11 = vector.shape_cast %9 : vector<10x1xi1> to vector<10x1xi1>
    %12 = vector.broadcast %11 : vector<10x1xi1> to vector<10x32xi1>
    %13 = vector.shape_cast %10 : vector<1x32xf32> to vector<1x32xf32>
    %14 = vector.broadcast %13 : vector<1x32xf32> to vector<10x32xf32>
    %15 = arith.select %12, %14, %6 : vector<10x32xi1>, vector<10x32xf32>
    %c0_8 = arith.constant 0 : index
    %c0_9 = arith.constant 0 : index
    %16 = vector.load %arg5[%c0_8, %c0_9] : memref<10x32xf32, #tpu.memory_space<vmem>>, vector<10x32xf32>
    %17 = arith.addf %15, %16 : vector<10x32xf32>
    %c0_10 = arith.constant 0 : index
    %c0_11 = arith.constant 0 : index
    %c0_12 = arith.constant 0 : index
    %18 = vector.load %arg6[%c0_10, %c0_11, %c0_12] : memref<2x1x32xf32, #tpu.memory_space<vmem>>, vector<1x1x32xf32>
    %19 = vector.shape_cast %18 : vector<1x1x32xf32> to vector<1x32xf32>
    %c0_13 = arith.constant 0 : index
    %c0_14 = arith.constant 0 : index
    %c0_15 = arith.constant 0 : index
    %20 = vector.load %arg7[%c0_13, %c0_14, %c0_15] : memref<2x1x32xf32, #tpu.memory_space<vmem>>, vector<1x1x32xf32>
    %21 = vector.shape_cast %20 : vector<1x1x32xf32> to vector<1x32xf32>
    %cst_16 = arith.constant dense<0.000000e+00> : vector<10xf32>
    %22 = vector.multi_reduction <add>, %17, %cst_16 [1] : vector<10x32xf32> to vector<10xf32>
    %23 = vector.shape_cast %22 : vector<10xf32> to vector<10x1xf32>
    %cst_17 = arith.constant 3.200000e+01 : f32
    %24 = vector.broadcast %cst_17 : f32 to vector<10x1xf32>
    %25 = arith.divf %23, %24 : vector<10x1xf32>
    %26 = vector.broadcast %25 : vector<10x1xf32> to vector<10x32xf32>
    %27 = arith.subf %17, %26 : vector<10x32xf32>
    %28 = arith.mulf %27, %27 : vector<10x32xf32>
    %cst_18 = arith.constant dense<0.000000e+00> : vector<10xf32>
    %29 = vector.multi_reduction <add>, %28, %cst_18 [1] : vector<10x32xf32> to vector<10xf32>
    %30 = vector.shape_cast %29 : vector<10xf32> to vector<10x1xf32>
    %cst_19 = arith.constant 3.200000e+01 : f32
    %31 = vector.broadcast %cst_19 : f32 to vector<10x1xf32>
    %32 = arith.divf %30, %31 : vector<10x1xf32>
    %33 = vector.broadcast %25 : vector<10x1xf32> to vector<10x32xf32>
    %34 = arith.subf %17, %33 : vector<10x32xf32>
    %cst_20 = arith.constant 9.99999997E-7 : f32
    %35 = vector.broadcast %cst_20 : f32 to vector<10x1xf32>
    %36 = arith.addf %32, %35 : vector<10x1xf32>
    %37 = math.rsqrt %36 : vector<10x1xf32>
    %38 = vector.broadcast %37 : vector<10x1xf32> to vector<10x32xf32>
    %39 = arith.mulf %34, %38 : vector<10x32xf32>
    %40 = vector.broadcast %19 : vector<1x32xf32> to vector<10x32xf32>
    %41 = arith.mulf %39, %40 : vector<10x32xf32>
    %42 = vector.broadcast %21 : vector<1x32xf32> to vector<10x32xf32>
    %43 = arith.addf %41, %42 : vector<10x32xf32>
    %c0_21 = arith.constant 0 : index
    %c0_22 = arith.constant 0 : index
    %c0_23 = arith.constant 0 : index
    %44 = vector.load %arg8[%c0_21, %c0_22, %c0_23] : memref<2x32x96xf32, #tpu.memory_space<vmem>>, vector<1x32x96xf32>
    %45 = vector.shape_cast %44 : vector<1x32x96xf32> to vector<32x96xf32>
    %cst_24 = arith.constant dense<0.000000e+00> : vector<10x96xf32>
    %46 = tpu.matmul %43, %45, %cst_24 {dimension_numbers = #tpu.dot_dimension_numbers<[1], [0], [0], [1], [0, 0, 1, 1], [], []>} : vector<10x32xf32>, vector<32x96xf32>, vector<10x96xf32> -> vector<10x96xf32>
    %c0_25 = arith.constant 0 : index
    %c0_26 = arith.constant 0 : index
    %c0_27 = arith.constant 0 : index
    %47 = vector.load %arg9[%c0_25, %c0_26, %c0_27] : memref<2x1x96xf32, #tpu.memory_space<vmem>>, vector<1x1x96xf32>
    %48 = vector.shape_cast %47 : vector<1x1x96xf32> to vector<1x96xf32>
    %49 = vector.broadcast %48 : vector<1x96xf32> to vector<10x96xf32>
    %50 = arith.addf %46, %49 : vector<10x96xf32>
    %c0_28 = arith.constant 0 : index
    %c0_29 = arith.constant 0 : index
    %c0_30 = arith.constant 0 : index
    %51 = vector.load %arg10[%c0_28, %c0_29, %c0_30] : memref<2x32x32xf32, #tpu.memory_space<vmem>>, vector<1x32x32xf32>
    %52 = vector.shape_cast %51 : vector<1x32x32xf32> to vector<32x32xf32>
    %c0_31 = arith.constant 0 : index
    %c0_32 = arith.constant 0 : index
    %c0_33 = arith.constant 0 : index
    %53 = vector.load %arg11[%c0_31, %c0_32, %c0_33] : memref<2x1x32xf32, #tpu.memory_space<vmem>>, vector<1x1x32xf32>
    %54 = vector.shape_cast %53 : vector<1x1x32xf32> to vector<1x32xf32>
    %55 = vector.extract_strided_slice %50 {offsets = [0, 0], sizes = [10, 32], strides = [1, 1]} : vector<10x96xf32> to vector<10x32xf32>
    %cst_34 = arith.constant 0.353553385 : f32
    %56 = vector.broadcast %cst_34 : f32 to vector<10x32xf32>
    %57 = arith.mulf %55, %56 : vector<10x32xf32>
    %58 = vector.extract_strided_slice %50 {offsets = [0, 32], sizes = [10, 32], strides = [1, 1]} : vector<10x96xf32> to vector<10x32xf32>
    %59 = vector.extract_strided_slice %50 {offsets = [0, 64], sizes = [10, 32], strides = [1, 1]} : vector<10x96xf32> to vector<10x32xf32>
    %60 = vector.extract_strided_slice %57 {offsets = [0, 0], sizes = [10, 8], strides = [1, 1]} : vector<10x32xf32> to vector<10x8xf32>
    %61 = vector.extract_strided_slice %58 {offsets = [0, 0], sizes = [10, 8], strides = [1, 1]} : vector<10x32xf32> to vector<10x8xf32>
    %cst_35 = arith.constant dense<0.000000e+00> : vector<10x10xf32>
    %62 = tpu.matmul %60, %61, %cst_35 {dimension_numbers = #tpu.dot_dimension_numbers<[1], [1], [0], [0], [0, 0, 1, 0], [], []>} : vector<10x8xf32>, vector<10x8xf32>, vector<10x10xf32> -> vector<10x10xf32>
    %cst_36 = arith.constant dense<0xFF800000> : vector<10xf32>
    %63 = vector.multi_reduction <maximumf>, %62, %cst_36 [1] : vector<10x10xf32> to vector<10xf32>
    %64 = vector.shape_cast %63 : vector<10xf32> to vector<10x1xf32>
    %65 = vector.broadcast %64 : vector<10x1xf32> to vector<10x10xf32>
    %66 = arith.subf %62, %65 : vector<10x10xf32>
    %67 = math.exp %66 : vector<10x10xf32>
    %cst_37 = arith.constant dense<0.000000e+00> : vector<10xf32>
    %68 = vector.multi_reduction <add>, %67, %cst_37 [1] : vector<10x10xf32> to vector<10xf32>
    %69 = vector.shape_cast %68 : vector<10xf32> to vector<10x1xf32>
    %70 = tpu.reciprocal %69 {approx = true} : vector<10x1xf32> -> vector<10x1xf32>
    %71 = vector.broadcast %70 : vector<10x1xf32> to vector<10x10xf32>
    %72 = arith.mulf %67, %71 : vector<10x10xf32>
    %73 = vector.extract_strided_slice %59 {offsets = [0, 0], sizes = [10, 8], strides = [1, 1]} : vector<10x32xf32> to vector<10x8xf32>
    %cst_38 = arith.constant dense<0.000000e+00> : vector<10x8xf32>
    %74 = tpu.matmul %72, %73, %cst_38 {dimension_numbers = #tpu.dot_dimension_numbers<[1], [0], [0], [1], [0, 0, 1, 1], [], []>} : vector<10x10xf32>, vector<10x8xf32>, vector<10x8xf32> -> vector<10x8xf32>
    %75 = vector.extract_strided_slice %52 {offsets = [0, 0], sizes = [8, 32], strides = [1, 1]} : vector<32x32xf32> to vector<8x32xf32>
    %cst_39 = arith.constant dense<0.000000e+00> : vector<10x32xf32>
    %76 = tpu.matmul %74, %75, %cst_39 {dimension_numbers = #tpu.dot_dimension_numbers<[1], [0], [0], [1], [0, 0, 1, 1], [], []>} : vector<10x8xf32>, vector<8x32xf32>, vector<10x32xf32> -> vector<10x32xf32>
    %77 = vector.extract_strided_slice %57 {offsets = [0, 8], sizes = [10, 8], strides = [1, 1]} : vector<10x32xf32> to vector<10x8xf32>
    %78 = vector.extract_strided_slice %58 {offsets = [0, 8], sizes = [10, 8], strides = [1, 1]} : vector<10x32xf32> to vector<10x8xf32>
    %cst_40 = arith.constant dense<0.000000e+00> : vector<10x10xf32>
    %79 = tpu.matmul %77, %78, %cst_40 {dimension_numbers = #tpu.dot_dimension_numbers<[1], [1], [0], [0], [0, 0, 1, 0], [], []>} : vector<10x8xf32>, vector<10x8xf32>, vector<10x10xf32> -> vector<10x10xf32>
    %cst_41 = arith.constant dense<0xFF800000> : vector<10xf32>
    %80 = vector.multi_reduction <maximumf>, %79, %cst_41 [1] : vector<10x10xf32> to vector<10xf32>
    %81 = vector.shape_cast %80 : vector<10xf32> to vector<10x1xf32>
    %82 = vector.broadcast %81 : vector<10x1xf32> to vector<10x10xf32>
    %83 = arith.subf %79, %82 : vector<10x10xf32>
    %84 = math.exp %83 : vector<10x10xf32>
    %cst_42 = arith.constant dense<0.000000e+00> : vector<10xf32>
    %85 = vector.multi_reduction <add>, %84, %cst_42 [1] : vector<10x10xf32> to vector<10xf32>
    %86 = vector.shape_cast %85 : vector<10xf32> to vector<10x1xf32>
    %87 = tpu.reciprocal %86 {approx = true} : vector<10x1xf32> -> vector<10x1xf32>
    %88 = vector.broadcast %87 : vector<10x1xf32> to vector<10x10xf32>
    %89 = arith.mulf %84, %88 : vector<10x10xf32>
    %90 = vector.extract_strided_slice %59 {offsets = [0, 8], sizes = [10, 8], strides = [1, 1]} : vector<10x32xf32> to vector<10x8xf32>
    %cst_43 = arith.constant dense<0.000000e+00> : vector<10x8xf32>
    %91 = tpu.matmul %89, %90, %cst_43 {dimension_numbers = #tpu.dot_dimension_numbers<[1], [0], [0], [1], [0, 0, 1, 1], [], []>} : vector<10x10xf32>, vector<10x8xf32>, vector<10x8xf32> -> vector<10x8xf32>
    %92 = vector.extract_strided_slice %52 {offsets = [8, 0], sizes = [8, 32], strides = [1, 1]} : vector<32x32xf32> to vector<8x32xf32>
    %cst_44 = arith.constant dense<0.000000e+00> : vector<10x32xf32>
    %93 = tpu.matmul %91, %92, %cst_44 {dimension_numbers = #tpu.dot_dimension_numbers<[1], [0], [0], [1], [0, 0, 1, 1], [], []>} : vector<10x8xf32>, vector<8x32xf32>, vector<10x32xf32> -> vector<10x32xf32>
    %94 = arith.addf %76, %93 : vector<10x32xf32>
    %95 = vector.extract_strided_slice %57 {offsets = [0, 16], sizes = [10, 8], strides = [1, 1]} : vector<10x32xf32> to vector<10x8xf32>
    %96 = vector.extract_strided_slice %58 {offsets = [0, 16], sizes = [10, 8], strides = [1, 1]} : vector<10x32xf32> to vector<10x8xf32>
    %cst_45 = arith.constant dense<0.000000e+00> : vector<10x10xf32>
    %97 = tpu.matmul %95, %96, %cst_45 {dimension_numbers = #tpu.dot_dimension_numbers<[1], [1], [0], [0], [0, 0, 1, 0], [], []>} : vector<10x8xf32>, vector<10x8xf32>, vector<10x10xf32> -> vector<10x10xf32>
    %cst_46 = arith.constant dense<0xFF800000> : vector<10xf32>
    %98 = vector.multi_reduction <maximumf>, %97, %cst_46 [1] : vector<10x10xf32> to vector<10xf32>
    %99 = vector.shape_cast %98 : vector<10xf32> to vector<10x1xf32>
    %100 = vector.broadcast %99 : vector<10x1xf32> to vector<10x10xf32>
    %101 = arith.subf %97, %100 : vector<10x10xf32>
    %102 = math.exp %101 : vector<10x10xf32>
    %cst_47 = arith.constant dense<0.000000e+00> : vector<10xf32>
    %103 = vector.multi_reduction <add>, %102, %cst_47 [1] : vector<10x10xf32> to vector<10xf32>
    %104 = vector.shape_cast %103 : vector<10xf32> to vector<10x1xf32>
    %105 = tpu.reciprocal %104 {approx = true} : vector<10x1xf32> -> vector<10x1xf32>
    %106 = vector.broadcast %105 : vector<10x1xf32> to vector<10x10xf32>
    %107 = arith.mulf %102, %106 : vector<10x10xf32>
    %108 = vector.extract_strided_slice %59 {offsets = [0, 16], sizes = [10, 8], strides = [1, 1]} : vector<10x32xf32> to vector<10x8xf32>
    %cst_48 = arith.constant dense<0.000000e+00> : vector<10x8xf32>
    %109 = tpu.matmul %107, %108, %cst_48 {dimension_numbers = #tpu.dot_dimension_numbers<[1], [0], [0], [1], [0, 0, 1, 1], [], []>} : vector<10x10xf32>, vector<10x8xf32>, vector<10x8xf32> -> vector<10x8xf32>
    %110 = vector.extract_strided_slice %52 {offsets = [16, 0], sizes = [8, 32], strides = [1, 1]} : vector<32x32xf32> to vector<8x32xf32>
    %cst_49 = arith.constant dense<0.000000e+00> : vector<10x32xf32>
    %111 = tpu.matmul %109, %110, %cst_49 {dimension_numbers = #tpu.dot_dimension_numbers<[1], [0], [0], [1], [0, 0, 1, 1], [], []>} : vector<10x8xf32>, vector<8x32xf32>, vector<10x32xf32> -> vector<10x32xf32>
    %112 = arith.addf %94, %111 : vector<10x32xf32>
    %113 = vector.extract_strided_slice %57 {offsets = [0, 24], sizes = [10, 8], strides = [1, 1]} : vector<10x32xf32> to vector<10x8xf32>
    %114 = vector.extract_strided_slice %58 {offsets = [0, 24], sizes = [10, 8], strides = [1, 1]} : vector<10x32xf32> to vector<10x8xf32>
    %cst_50 = arith.constant dense<0.000000e+00> : vector<10x10xf32>
    %115 = tpu.matmul %113, %114, %cst_50 {dimension_numbers = #tpu.dot_dimension_numbers<[1], [1], [0], [0], [0, 0, 1, 0], [], []>} : vector<10x8xf32>, vector<10x8xf32>, vector<10x10xf32> -> vector<10x10xf32>
    %cst_51 = arith.constant dense<0xFF800000> : vector<10xf32>
    %116 = vector.multi_reduction <maximumf>, %115, %cst_51 [1] : vector<10x10xf32> to vector<10xf32>
    %117 = vector.shape_cast %116 : vector<10xf32> to vector<10x1xf32>
    %118 = vector.broadcast %117 : vector<10x1xf32> to vector<10x10xf32>
    %119 = arith.subf %115, %118 : vector<10x10xf32>
    %120 = math.exp %119 : vector<10x10xf32>
    %cst_52 = arith.constant dense<0.000000e+00> : vector<10xf32>
    %121 = vector.multi_reduction <add>, %120, %cst_52 [1] : vector<10x10xf32> to vector<10xf32>
    %122 = vector.shape_cast %121 : vector<10xf32> to vector<10x1xf32>
    %123 = tpu.reciprocal %122 {approx = true} : vector<10x1xf32> -> vector<10x1xf32>
    %124 = vector.broadcast %123 : vector<10x1xf32> to vector<10x10xf32>
    %125 = arith.mulf %120, %124 : vector<10x10xf32>
    %126 = vector.extract_strided_slice %59 {offsets = [0, 24], sizes = [10, 8], strides = [1, 1]} : vector<10x32xf32> to vector<10x8xf32>
    %cst_53 = arith.constant dense<0.000000e+00> : vector<10x8xf32>
    %127 = tpu.matmul %125, %126, %cst_53 {dimension_numbers = #tpu.dot_dimension_numbers<[1], [0], [0], [1], [0, 0, 1, 1], [], []>} : vector<10x10xf32>, vector<10x8xf32>, vector<10x8xf32> -> vector<10x8xf32>
    %128 = vector.extract_strided_slice %52 {offsets = [24, 0], sizes = [8, 32], strides = [1, 1]} : vector<32x32xf32> to vector<8x32xf32>
    %cst_54 = arith.constant dense<0.000000e+00> : vector<10x32xf32>
    %129 = tpu.matmul %127, %128, %cst_54 {dimension_numbers = #tpu.dot_dimension_numbers<[1], [0], [0], [1], [0, 0, 1, 1], [], []>} : vector<10x8xf32>, vector<8x32xf32>, vector<10x32xf32> -> vector<10x32xf32>
    %130 = arith.addf %112, %129 : vector<10x32xf32>
    %131 = vector.broadcast %54 : vector<1x32xf32> to vector<10x32xf32>
    %132 = arith.addf %130, %131 : vector<10x32xf32>
    %133 = arith.addf %17, %132 : vector<10x32xf32>
    %c0_55 = arith.constant 0 : index
    %c0_56 = arith.constant 0 : index
    %c0_57 = arith.constant 0 : index
    %134 = vector.load %arg12[%c0_55, %c0_56, %c0_57] : memref<2x1x32xf32, #tpu.memory_space<vmem>>, vector<1x1x32xf32>
    %135 = vector.shape_cast %134 : vector<1x1x32xf32> to vector<1x32xf32>
    %c0_58 = arith.constant 0 : index
    %c0_59 = arith.constant 0 : index
    %c0_60 = arith.constant 0 : index
    %136 = vector.load %arg13[%c0_58, %c0_59, %c0_60] : memref<2x1x32xf32, #tpu.memory_space<vmem>>, vector<1x1x32xf32>
    %137 = vector.shape_cast %136 : vector<1x1x32xf32> to vector<1x32xf32>
    %cst_61 = arith.constant dense<0.000000e+00> : vector<10xf32>
    %138 = vector.multi_reduction <add>, %133, %cst_61 [1] : vector<10x32xf32> to vector<10xf32>
    %139 = vector.shape_cast %138 : vector<10xf32> to vector<10x1xf32>
    %cst_62 = arith.constant 3.200000e+01 : f32
    %140 = vector.broadcast %cst_62 : f32 to vector<10x1xf32>
    %141 = arith.divf %139, %140 : vector<10x1xf32>
    %142 = vector.broadcast %141 : vector<10x1xf32> to vector<10x32xf32>
    %143 = arith.subf %133, %142 : vector<10x32xf32>
    %144 = arith.mulf %143, %143 : vector<10x32xf32>
    %cst_63 = arith.constant dense<0.000000e+00> : vector<10xf32>
    %145 = vector.multi_reduction <add>, %144, %cst_63 [1] : vector<10x32xf32> to vector<10xf32>
    %146 = vector.shape_cast %145 : vector<10xf32> to vector<10x1xf32>
    %cst_64 = arith.constant 3.200000e+01 : f32
    %147 = vector.broadcast %cst_64 : f32 to vector<10x1xf32>
    %148 = arith.divf %146, %147 : vector<10x1xf32>
    %149 = vector.broadcast %141 : vector<10x1xf32> to vector<10x32xf32>
    %150 = arith.subf %133, %149 : vector<10x32xf32>
    %cst_65 = arith.constant 9.99999997E-7 : f32
    %151 = vector.broadcast %cst_65 : f32 to vector<10x1xf32>
    %152 = arith.addf %148, %151 : vector<10x1xf32>
    %153 = math.rsqrt %152 : vector<10x1xf32>
    %154 = vector.broadcast %153 : vector<10x1xf32> to vector<10x32xf32>
    %155 = arith.mulf %150, %154 : vector<10x32xf32>
    %156 = vector.broadcast %135 : vector<1x32xf32> to vector<10x32xf32>
    %157 = arith.mulf %155, %156 : vector<10x32xf32>
    %158 = vector.broadcast %137 : vector<1x32xf32> to vector<10x32xf32>
    %159 = arith.addf %157, %158 : vector<10x32xf32>
    %c0_66 = arith.constant 0 : index
    %c0_67 = arith.constant 0 : index
    %c0_68 = arith.constant 0 : index
    %160 = vector.load %arg14[%c0_66, %c0_67, %c0_68] : memref<2x32x64xf32, #tpu.memory_space<vmem>>, vector<1x32x64xf32>
    %161 = vector.shape_cast %160 : vector<1x32x64xf32> to vector<32x64xf32>
    %cst_69 = arith.constant dense<0.000000e+00> : vector<10x64xf32>
    %162 = tpu.matmul %159, %161, %cst_69 {dimension_numbers = #tpu.dot_dimension_numbers<[1], [0], [0], [1], [0, 0, 1, 1], [], []>} : vector<10x32xf32>, vector<32x64xf32>, vector<10x64xf32> -> vector<10x64xf32>
    %c0_70 = arith.constant 0 : index
    %c0_71 = arith.constant 0 : index
    %c0_72 = arith.constant 0 : index
    %163 = vector.load %arg15[%c0_70, %c0_71, %c0_72] : memref<2x1x64xf32, #tpu.memory_space<vmem>>, vector<1x1x64xf32>
    %164 = vector.shape_cast %163 : vector<1x1x64xf32> to vector<1x64xf32>
    %165 = vector.broadcast %164 : vector<1x64xf32> to vector<10x64xf32>
    %166 = arith.addf %162, %165 : vector<10x64xf32>
    %167 = arith.mulf %166, %166 : vector<10x64xf32>
    %168 = arith.mulf %166, %167 : vector<10x64xf32>
    %cst_73 = arith.constant 4.471500e-02 : f32
    %169 = vector.broadcast %cst_73 : f32 to vector<10x64xf32>
    %170 = arith.mulf %169, %168 : vector<10x64xf32>
    %171 = arith.addf %166, %170 : vector<10x64xf32>
    %cst_74 = arith.constant 0.797884583 : f32
    %172 = vector.broadcast %cst_74 : f32 to vector<10x64xf32>
    %173 = arith.mulf %172, %171 : vector<10x64xf32>
    %174 = math.tanh %173 : vector<10x64xf32>
    %cst_75 = arith.constant 1.000000e+00 : f32
    %175 = vector.broadcast %cst_75 : f32 to vector<10x64xf32>
    %176 = arith.addf %175, %174 : vector<10x64xf32>
    %cst_76 = arith.constant 5.000000e-01 : f32
    %177 = vector.broadcast %cst_76 : f32 to vector<10x64xf32>
    %178 = arith.mulf %177, %176 : vector<10x64xf32>
    %179 = arith.mulf %166, %178 : vector<10x64xf32>
    %c0_77 = arith.constant 0 : index
    %c0_78 = arith.constant 0 : index
    %c0_79 = arith.constant 0 : index
    %180 = vector.load %arg16[%c0_77, %c0_78, %c0_79] : memref<2x64x32xf32, #tpu.memory_space<vmem>>, vector<1x64x32xf32>
    %181 = vector.shape_cast %180 : vector<1x64x32xf32> to vector<64x32xf32>
    %cst_80 = arith.constant dense<0.000000e+00> : vector<10x32xf32>
    %182 = tpu.matmul %179, %181, %cst_80 {dimension_numbers = #tpu.dot_dimension_numbers<[1], [0], [0], [1], [0, 0, 1, 1], [], []>} : vector<10x64xf32>, vector<64x32xf32>, vector<10x32xf32> -> vector<10x32xf32>
    %183 = arith.addf %133, %182 : vector<10x32xf32>
    %c0_81 = arith.constant 0 : index
    %c0_82 = arith.constant 0 : index
    %c0_83 = arith.constant 0 : index
    %184 = vector.load %arg17[%c0_81, %c0_82, %c0_83] : memref<2x1x32xf32, #tpu.memory_space<vmem>>, vector<1x1x32xf32>
    %185 = vector.shape_cast %184 : vector<1x1x32xf32> to vector<1x32xf32>
    %186 = vector.broadcast %185 : vector<1x32xf32> to vector<10x32xf32>
    %187 = arith.addf %183, %186 : vector<10x32xf32>
    %c1 = arith.constant 1 : index
    %c0_84 = arith.constant 0 : index
    %c0_85 = arith.constant 0 : index
    %188 = vector.load %arg6[%c1, %c0_84, %c0_85] : memref<2x1x32xf32, #tpu.memory_space<vmem>>, vector<1x1x32xf32>
    %189 = vector.shape_cast %188 : vector<1x1x32xf32> to vector<1x32xf32>
    %c1_86 = arith.constant 1 : index
    %c0_87 = arith.constant 0 : index
    %c0_88 = arith.constant 0 : index
    %190 = vector.load %arg7[%c1_86, %c0_87, %c0_88] : memref<2x1x32xf32, #tpu.memory_space<vmem>>, vector<1x1x32xf32>
    %191 = vector.shape_cast %190 : vector<1x1x32xf32> to vector<1x32xf32>
    %cst_89 = arith.constant dense<0.000000e+00> : vector<10xf32>
    %192 = vector.multi_reduction <add>, %187, %cst_89 [1] : vector<10x32xf32> to vector<10xf32>
    %193 = vector.shape_cast %192 : vector<10xf32> to vector<10x1xf32>
    %cst_90 = arith.constant 3.200000e+01 : f32
    %194 = vector.broadcast %cst_90 : f32 to vector<10x1xf32>
    %195 = arith.divf %193, %194 : vector<10x1xf32>
    %196 = vector.broadcast %195 : vector<10x1xf32> to vector<10x32xf32>
    %197 = arith.subf %187, %196 : vector<10x32xf32>
    %198 = arith.mulf %197, %197 : vector<10x32xf32>
    %cst_91 = arith.constant dense<0.000000e+00> : vector<10xf32>
    %199 = vector.multi_reduction <add>, %198, %cst_91 [1] : vector<10x32xf32> to vector<10xf32>
    %200 = vector.shape_cast %199 : vector<10xf32> to vector<10x1xf32>
    %cst_92 = arith.constant 3.200000e+01 : f32
    %201 = vector.broadcast %cst_92 : f32 to vector<10x1xf32>
    %202 = arith.divf %200, %201 : vector<10x1xf32>
    %203 = vector.broadcast %195 : vector<10x1xf32> to vector<10x32xf32>
    %204 = arith.subf %187, %203 : vector<10x32xf32>
    %cst_93 = arith.constant 9.99999997E-7 : f32
    %205 = vector.broadcast %cst_93 : f32 to vector<10x1xf32>
    %206 = arith.addf %202, %205 : vector<10x1xf32>
    %207 = math.rsqrt %206 : vector<10x1xf32>
    %208 = vector.broadcast %207 : vector<10x1xf32> to vector<10x32xf32>
    %209 = arith.mulf %204, %208 : vector<10x32xf32>
    %210 = vector.broadcast %189 : vector<1x32xf32> to vector<10x32xf32>
    %211 = arith.mulf %209, %210 : vector<10x32xf32>
    %212 = vector.broadcast %191 : vector<1x32xf32> to vector<10x32xf32>
    %213 = arith.addf %211, %212 : vector<10x32xf32>
    %c1_94 = arith.constant 1 : index
    %c0_95 = arith.constant 0 : index
    %c0_96 = arith.constant 0 : index
    %214 = vector.load %arg8[%c1_94, %c0_95, %c0_96] : memref<2x32x96xf32, #tpu.memory_space<vmem>>, vector<1x32x96xf32>
    %215 = vector.shape_cast %214 : vector<1x32x96xf32> to vector<32x96xf32>
    %cst_97 = arith.constant dense<0.000000e+00> : vector<10x96xf32>
    %216 = tpu.matmul %213, %215, %cst_97 {dimension_numbers = #tpu.dot_dimension_numbers<[1], [0], [0], [1], [0, 0, 1, 1], [], []>} : vector<10x32xf32>, vector<32x96xf32>, vector<10x96xf32> -> vector<10x96xf32>
    %c1_98 = arith.constant 1 : index
    %c0_99 = arith.constant 0 : index
    %c0_100 = arith.constant 0 : index
    %217 = vector.load %arg9[%c1_98, %c0_99, %c0_100] : memref<2x1x96xf32, #tpu.memory_space<vmem>>, vector<1x1x96xf32>
    %218 = vector.shape_cast %217 : vector<1x1x96xf32> to vector<1x96xf32>
    %219 = vector.broadcast %218 : vector<1x96xf32> to vector<10x96xf32>
    %220 = arith.addf %216, %219 : vector<10x96xf32>
    %c1_101 = arith.constant 1 : index
    %c0_102 = arith.constant 0 : index
    %c0_103 = arith.constant 0 : index
    %221 = vector.load %arg10[%c1_101, %c0_102, %c0_103] : memref<2x32x32xf32, #tpu.memory_space<vmem>>, vector<1x32x32xf32>
    %222 = vector.shape_cast %221 : vector<1x32x32xf32> to vector<32x32xf32>
    %c1_104 = arith.constant 1 : index
    %c0_105 = arith.constant 0 : index
    %c0_106 = arith.constant 0 : index
    %223 = vector.load %arg11[%c1_104, %c0_105, %c0_106] : memref<2x1x32xf32, #tpu.memory_space<vmem>>, vector<1x1x32xf32>
    %224 = vector.shape_cast %223 : vector<1x1x32xf32> to vector<1x32xf32>
    %225 = vector.extract_strided_slice %220 {offsets = [0, 0], sizes = [10, 32], strides = [1, 1]} : vector<10x96xf32> to vector<10x32xf32>
    %cst_107 = arith.constant 0.353553385 : f32
    %226 = vector.broadcast %cst_107 : f32 to vector<10x32xf32>
    %227 = arith.mulf %225, %226 : vector<10x32xf32>
    %228 = vector.extract_strided_slice %220 {offsets = [0, 32], sizes = [10, 32], strides = [1, 1]} : vector<10x96xf32> to vector<10x32xf32>
    %229 = vector.extract_strided_slice %220 {offsets = [0, 64], sizes = [10, 32], strides = [1, 1]} : vector<10x96xf32> to vector<10x32xf32>
    %230 = vector.extract_strided_slice %227 {offsets = [0, 0], sizes = [10, 8], strides = [1, 1]} : vector<10x32xf32> to vector<10x8xf32>
    %231 = vector.extract_strided_slice %228 {offsets = [0, 0], sizes = [10, 8], strides = [1, 1]} : vector<10x32xf32> to vector<10x8xf32>
    %cst_108 = arith.constant dense<0.000000e+00> : vector<10x10xf32>
    %232 = tpu.matmul %230, %231, %cst_108 {dimension_numbers = #tpu.dot_dimension_numbers<[1], [1], [0], [0], [0, 0, 1, 0], [], []>} : vector<10x8xf32>, vector<10x8xf32>, vector<10x10xf32> -> vector<10x10xf32>
    %cst_109 = arith.constant dense<0xFF800000> : vector<10xf32>
    %233 = vector.multi_reduction <maximumf>, %232, %cst_109 [1] : vector<10x10xf32> to vector<10xf32>
    %234 = vector.shape_cast %233 : vector<10xf32> to vector<10x1xf32>
    %235 = vector.broadcast %234 : vector<10x1xf32> to vector<10x10xf32>
    %236 = arith.subf %232, %235 : vector<10x10xf32>
    %237 = math.exp %236 : vector<10x10xf32>
    %cst_110 = arith.constant dense<0.000000e+00> : vector<10xf32>
    %238 = vector.multi_reduction <add>, %237, %cst_110 [1] : vector<10x10xf32> to vector<10xf32>
    %239 = vector.shape_cast %238 : vector<10xf32> to vector<10x1xf32>
    %240 = tpu.reciprocal %239 {approx = true} : vector<10x1xf32> -> vector<10x1xf32>
    %241 = vector.broadcast %240 : vector<10x1xf32> to vector<10x10xf32>
    %242 = arith.mulf %237, %241 : vector<10x10xf32>
    %243 = vector.extract_strided_slice %229 {offsets = [0, 0], sizes = [10, 8], strides = [1, 1]} : vector<10x32xf32> to vector<10x8xf32>
    %cst_111 = arith.constant dense<0.000000e+00> : vector<10x8xf32>
    %244 = tpu.matmul %242, %243, %cst_111 {dimension_numbers = #tpu.dot_dimension_numbers<[1], [0], [0], [1], [0, 0, 1, 1], [], []>} : vector<10x10xf32>, vector<10x8xf32>, vector<10x8xf32> -> vector<10x8xf32>
    %245 = vector.extract_strided_slice %222 {offsets = [0, 0], sizes = [8, 32], strides = [1, 1]} : vector<32x32xf32> to vector<8x32xf32>
    %cst_112 = arith.constant dense<0.000000e+00> : vector<10x32xf32>
    %246 = tpu.matmul %244, %245, %cst_112 {dimension_numbers = #tpu.dot_dimension_numbers<[1], [0], [0], [1], [0, 0, 1, 1], [], []>} : vector<10x8xf32>, vector<8x32xf32>, vector<10x32xf32> -> vector<10x32xf32>
    %247 = vector.extract_strided_slice %227 {offsets = [0, 8], sizes = [10, 8], strides = [1, 1]} : vector<10x32xf32> to vector<10x8xf32>
    %248 = vector.extract_strided_slice %228 {offsets = [0, 8], sizes = [10, 8], strides = [1, 1]} : vector<10x32xf32> to vector<10x8xf32>
    %cst_113 = arith.constant dense<0.000000e+00> : vector<10x10xf32>
    %249 = tpu.matmul %247, %248, %cst_113 {dimension_numbers = #tpu.dot_dimension_numbers<[1], [1], [0], [0], [0, 0, 1, 0], [], []>} : vector<10x8xf32>, vector<10x8xf32>, vector<10x10xf32> -> vector<10x10xf32>
    %cst_114 = arith.constant dense<0xFF800000> : vector<10xf32>
    %250 = vector.multi_reduction <maximumf>, %249, %cst_114 [1] : vector<10x10xf32> to vector<10xf32>
    %251 = vector.shape_cast %250 : vector<10xf32> to vector<10x1xf32>
    %252 = vector.broadcast %251 : vector<10x1xf32> to vector<10x10xf32>
    %253 = arith.subf %249, %252 : vector<10x10xf32>
    %254 = math.exp %253 : vector<10x10xf32>
    %cst_115 = arith.constant dense<0.000000e+00> : vector<10xf32>
    %255 = vector.multi_reduction <add>, %254, %cst_115 [1] : vector<10x10xf32> to vector<10xf32>
    %256 = vector.shape_cast %255 : vector<10xf32> to vector<10x1xf32>
    %257 = tpu.reciprocal %256 {approx = true} : vector<10x1xf32> -> vector<10x1xf32>
    %258 = vector.broadcast %257 : vector<10x1xf32> to vector<10x10xf32>
    %259 = arith.mulf %254, %258 : vector<10x10xf32>
    %260 = vector.extract_strided_slice %229 {offsets = [0, 8], sizes = [10, 8], strides = [1, 1]} : vector<10x32xf32> to vector<10x8xf32>
    %cst_116 = arith.constant dense<0.000000e+00> : vector<10x8xf32>
    %261 = tpu.matmul %259, %260, %cst_116 {dimension_numbers = #tpu.dot_dimension_numbers<[1], [0], [0], [1], [0, 0, 1, 1], [], []>} : vector<10x10xf32>, vector<10x8xf32>, vector<10x8xf32> -> vector<10x8xf32>
    %262 = vector.extract_strided_slice %222 {offsets = [8, 0], sizes = [8, 32], strides = [1, 1]} : vector<32x32xf32> to vector<8x32xf32>
    %cst_117 = arith.constant dense<0.000000e+00> : vector<10x32xf32>
    %263 = tpu.matmul %261, %262, %cst_117 {dimension_numbers = #tpu.dot_dimension_numbers<[1], [0], [0], [1], [0, 0, 1, 1], [], []>} : vector<10x8xf32>, vector<8x32xf32>, vector<10x32xf32> -> vector<10x32xf32>
    %264 = arith.addf %246, %263 : vector<10x32xf32>
    %265 = vector.extract_strided_slice %227 {offsets = [0, 16], sizes = [10, 8], strides = [1, 1]} : vector<10x32xf32> to vector<10x8xf32>
    %266 = vector.extract_strided_slice %228 {offsets = [0, 16], sizes = [10, 8], strides = [1, 1]} : vector<10x32xf32> to vector<10x8xf32>
    %cst_118 = arith.constant dense<0.000000e+00> : vector<10x10xf32>
    %267 = tpu.matmul %265, %266, %cst_118 {dimension_numbers = #tpu.dot_dimension_numbers<[1], [1], [0], [0], [0, 0, 1, 0], [], []>} : vector<10x8xf32>, vector<10x8xf32>, vector<10x10xf32> -> vector<10x10xf32>
    %cst_119 = arith.constant dense<0xFF800000> : vector<10xf32>
    %268 = vector.multi_reduction <maximumf>, %267, %cst_119 [1] : vector<10x10xf32> to vector<10xf32>
    %269 = vector.shape_cast %268 : vector<10xf32> to vector<10x1xf32>
    %270 = vector.broadcast %269 : vector<10x1xf32> to vector<10x10xf32>
    %271 = arith.subf %267, %270 : vector<10x10xf32>
    %272 = math.exp %271 : vector<10x10xf32>
    %cst_120 = arith.constant dense<0.000000e+00> : vector<10xf32>
    %273 = vector.multi_reduction <add>, %272, %cst_120 [1] : vector<10x10xf32> to vector<10xf32>
    %274 = vector.shape_cast %273 : vector<10xf32> to vector<10x1xf32>
    %275 = tpu.reciprocal %274 {approx = true} : vector<10x1xf32> -> vector<10x1xf32>
    %276 = vector.broadcast %275 : vector<10x1xf32> to vector<10x10xf32>
    %277 = arith.mulf %272, %276 : vector<10x10xf32>
    %278 = vector.extract_strided_slice %229 {offsets = [0, 16], sizes = [10, 8], strides = [1, 1]} : vector<10x32xf32> to vector<10x8xf32>
    %cst_121 = arith.constant dense<0.000000e+00> : vector<10x8xf32>
    %279 = tpu.matmul %277, %278, %cst_121 {dimension_numbers = #tpu.dot_dimension_numbers<[1], [0], [0], [1], [0, 0, 1, 1], [], []>} : vector<10x10xf32>, vector<10x8xf32>, vector<10x8xf32> -> vector<10x8xf32>
    %280 = vector.extract_strided_slice %222 {offsets = [16, 0], sizes = [8, 32], strides = [1, 1]} : vector<32x32xf32> to vector<8x32xf32>
    %cst_122 = arith.constant dense<0.000000e+00> : vector<10x32xf32>
    %281 = tpu.matmul %279, %280, %cst_122 {dimension_numbers = #tpu.dot_dimension_numbers<[1], [0], [0], [1], [0, 0, 1, 1], [], []>} : vector<10x8xf32>, vector<8x32xf32>, vector<10x32xf32> -> vector<10x32xf32>
    %282 = arith.addf %264, %281 : vector<10x32xf32>
    %283 = vector.extract_strided_slice %227 {offsets = [0, 24], sizes = [10, 8], strides = [1, 1]} : vector<10x32xf32> to vector<10x8xf32>
    %284 = vector.extract_strided_slice %228 {offsets = [0, 24], sizes = [10, 8], strides = [1, 1]} : vector<10x32xf32> to vector<10x8xf32>
    %cst_123 = arith.constant dense<0.000000e+00> : vector<10x10xf32>
    %285 = tpu.matmul %283, %284, %cst_123 {dimension_numbers = #tpu.dot_dimension_numbers<[1], [1], [0], [0], [0, 0, 1, 0], [], []>} : vector<10x8xf32>, vector<10x8xf32>, vector<10x10xf32> -> vector<10x10xf32>
    %cst_124 = arith.constant dense<0xFF800000> : vector<10xf32>
    %286 = vector.multi_reduction <maximumf>, %285, %cst_124 [1] : vector<10x10xf32> to vector<10xf32>
    %287 = vector.shape_cast %286 : vector<10xf32> to vector<10x1xf32>
    %288 = vector.broadcast %287 : vector<10x1xf32> to vector<10x10xf32>
    %289 = arith.subf %285, %288 : vector<10x10xf32>
    %290 = math.exp %289 : vector<10x10xf32>
    %cst_125 = arith.constant dense<0.000000e+00> : vector<10xf32>
    %291 = vector.multi_reduction <add>, %290, %cst_125 [1] : vector<10x10xf32> to vector<10xf32>
    %292 = vector.shape_cast %291 : vector<10xf32> to vector<10x1xf32>
    %293 = tpu.reciprocal %292 {approx = true} : vector<10x1xf32> -> vector<10x1xf32>
    %294 = vector.broadcast %293 : vector<10x1xf32> to vector<10x10xf32>
    %295 = arith.mulf %290, %294 : vector<10x10xf32>
    %296 = vector.extract_strided_slice %229 {offsets = [0, 24], sizes = [10, 8], strides = [1, 1]} : vector<10x32xf32> to vector<10x8xf32>
    %cst_126 = arith.constant dense<0.000000e+00> : vector<10x8xf32>
    %297 = tpu.matmul %295, %296, %cst_126 {dimension_numbers = #tpu.dot_dimension_numbers<[1], [0], [0], [1], [0, 0, 1, 1], [], []>} : vector<10x10xf32>, vector<10x8xf32>, vector<10x8xf32> -> vector<10x8xf32>
    %298 = vector.extract_strided_slice %222 {offsets = [24, 0], sizes = [8, 32], strides = [1, 1]} : vector<32x32xf32> to vector<8x32xf32>
    %cst_127 = arith.constant dense<0.000000e+00> : vector<10x32xf32>
    %299 = tpu.matmul %297, %298, %cst_127 {dimension_numbers = #tpu.dot_dimension_numbers<[1], [0], [0], [1], [0, 0, 1, 1], [], []>} : vector<10x8xf32>, vector<8x32xf32>, vector<10x32xf32> -> vector<10x32xf32>
    %300 = arith.addf %282, %299 : vector<10x32xf32>
    %301 = vector.broadcast %224 : vector<1x32xf32> to vector<10x32xf32>
    %302 = arith.addf %300, %301 : vector<10x32xf32>
    %303 = arith.addf %187, %302 : vector<10x32xf32>
    %c1_128 = arith.constant 1 : index
    %c0_129 = arith.constant 0 : index
    %c0_130 = arith.constant 0 : index
    %304 = vector.load %arg12[%c1_128, %c0_129, %c0_130] : memref<2x1x32xf32, #tpu.memory_space<vmem>>, vector<1x1x32xf32>
    %305 = vector.shape_cast %304 : vector<1x1x32xf32> to vector<1x32xf32>
    %c1_131 = arith.constant 1 : index
    %c0_132 = arith.constant 0 : index
    %c0_133 = arith.constant 0 : index
    %306 = vector.load %arg13[%c1_131, %c0_132, %c0_133] : memref<2x1x32xf32, #tpu.memory_space<vmem>>, vector<1x1x32xf32>
    %307 = vector.shape_cast %306 : vector<1x1x32xf32> to vector<1x32xf32>
    %cst_134 = arith.constant dense<0.000000e+00> : vector<10xf32>
    %308 = vector.multi_reduction <add>, %303, %cst_134 [1] : vector<10x32xf32> to vector<10xf32>
    %309 = vector.shape_cast %308 : vector<10xf32> to vector<10x1xf32>
    %cst_135 = arith.constant 3.200000e+01 : f32
    %310 = vector.broadcast %cst_135 : f32 to vector<10x1xf32>
    %311 = arith.divf %309, %310 : vector<10x1xf32>
    %312 = vector.broadcast %311 : vector<10x1xf32> to vector<10x32xf32>
    %313 = arith.subf %303, %312 : vector<10x32xf32>
    %314 = arith.mulf %313, %313 : vector<10x32xf32>
    %cst_136 = arith.constant dense<0.000000e+00> : vector<10xf32>
    %315 = vector.multi_reduction <add>, %314, %cst_136 [1] : vector<10x32xf32> to vector<10xf32>
    %316 = vector.shape_cast %315 : vector<10xf32> to vector<10x1xf32>
    %cst_137 = arith.constant 3.200000e+01 : f32
    %317 = vector.broadcast %cst_137 : f32 to vector<10x1xf32>
    %318 = arith.divf %316, %317 : vector<10x1xf32>
    %319 = vector.broadcast %311 : vector<10x1xf32> to vector<10x32xf32>
    %320 = arith.subf %303, %319 : vector<10x32xf32>
    %cst_138 = arith.constant 9.99999997E-7 : f32
    %321 = vector.broadcast %cst_138 : f32 to vector<10x1xf32>
    %322 = arith.addf %318, %321 : vector<10x1xf32>
    %323 = math.rsqrt %322 : vector<10x1xf32>
    %324 = vector.broadcast %323 : vector<10x1xf32> to vector<10x32xf32>
    %325 = arith.mulf %320, %324 : vector<10x32xf32>
    %326 = vector.broadcast %305 : vector<1x32xf32> to vector<10x32xf32>
    %327 = arith.mulf %325, %326 : vector<10x32xf32>
    %328 = vector.broadcast %307 : vector<1x32xf32> to vector<10x32xf32>
    %329 = arith.addf %327, %328 : vector<10x32xf32>
    %c1_139 = arith.constant 1 : index
    %c0_140 = arith.constant 0 : index
    %c0_141 = arith.constant 0 : index
    %330 = vector.load %arg14[%c1_139, %c0_140, %c0_141] : memref<2x32x64xf32, #tpu.memory_space<vmem>>, vector<1x32x64xf32>
    %331 = vector.shape_cast %330 : vector<1x32x64xf32> to vector<32x64xf32>
    %cst_142 = arith.constant dense<0.000000e+00> : vector<10x64xf32>
    %332 = tpu.matmul %329, %331, %cst_142 {dimension_numbers = #tpu.dot_dimension_numbers<[1], [0], [0], [1], [0, 0, 1, 1], [], []>} : vector<10x32xf32>, vector<32x64xf32>, vector<10x64xf32> -> vector<10x64xf32>
    %c1_143 = arith.constant 1 : index
    %c0_144 = arith.constant 0 : index
    %c0_145 = arith.constant 0 : index
    %333 = vector.load %arg15[%c1_143, %c0_144, %c0_145] : memref<2x1x64xf32, #tpu.memory_space<vmem>>, vector<1x1x64xf32>
    %334 = vector.shape_cast %333 : vector<1x1x64xf32> to vector<1x64xf32>
    %335 = vector.broadcast %334 : vector<1x64xf32> to vector<10x64xf32>
    %336 = arith.addf %332, %335 : vector<10x64xf32>
    %337 = arith.mulf %336, %336 : vector<10x64xf32>
    %338 = arith.mulf %336, %337 : vector<10x64xf32>
    %cst_146 = arith.constant 4.471500e-02 : f32
    %339 = vector.broadcast %cst_146 : f32 to vector<10x64xf32>
    %340 = arith.mulf %339, %338 : vector<10x64xf32>
    %341 = arith.addf %336, %340 : vector<10x64xf32>
    %cst_147 = arith.constant 0.797884583 : f32
    %342 = vector.broadcast %cst_147 : f32 to vector<10x64xf32>
    %343 = arith.mulf %342, %341 : vector<10x64xf32>
    %344 = math.tanh %343 : vector<10x64xf32>
    %cst_148 = arith.constant 1.000000e+00 : f32
    %345 = vector.broadcast %cst_148 : f32 to vector<10x64xf32>
    %346 = arith.addf %345, %344 : vector<10x64xf32>
    %cst_149 = arith.constant 5.000000e-01 : f32
    %347 = vector.broadcast %cst_149 : f32 to vector<10x64xf32>
    %348 = arith.mulf %347, %346 : vector<10x64xf32>
    %349 = arith.mulf %336, %348 : vector<10x64xf32>
    %c1_150 = arith.constant 1 : index
    %c0_151 = arith.constant 0 : index
    %c0_152 = arith.constant 0 : index
    %350 = vector.load %arg16[%c1_150, %c0_151, %c0_152] : memref<2x64x32xf32, #tpu.memory_space<vmem>>, vector<1x64x32xf32>
    %351 = vector.shape_cast %350 : vector<1x64x32xf32> to vector<64x32xf32>
    %cst_153 = arith.constant dense<0.000000e+00> : vector<10x32xf32>
    %352 = tpu.matmul %349, %351, %cst_153 {dimension_numbers = #tpu.dot_dimension_numbers<[1], [0], [0], [1], [0, 0, 1, 1], [], []>} : vector<10x64xf32>, vector<64x32xf32>, vector<10x32xf32> -> vector<10x32xf32>
    %353 = arith.addf %303, %352 : vector<10x32xf32>
    %c1_154 = arith.constant 1 : index
    %c0_155 = arith.constant 0 : index
    %c0_156 = arith.constant 0 : index
    %354 = vector.load %arg17[%c1_154, %c0_155, %c0_156] : memref<2x1x32xf32, #tpu.memory_space<vmem>>, vector<1x1x32xf32>
    %355 = vector.shape_cast %354 : vector<1x1x32xf32> to vector<1x32xf32>
    %356 = vector.broadcast %355 : vector<1x32xf32> to vector<10x32xf32>
    %357 = arith.addf %353, %356 : vector<10x32xf32>
    %c0_157 = arith.constant 0 : index
    %c0_158 = arith.constant 0 : index
    %358 = vector.load %arg18[%c0_157, %c0_158] : memref<1x32xf32, #tpu.memory_space<vmem>>, vector<1x32xf32>
    %c0_159 = arith.constant 0 : index
    %c0_160 = arith.constant 0 : index
    %359 = vector.load %arg19[%c0_159, %c0_160] : memref<1x32xf32, #tpu.memory_space<vmem>>, vector<1x32xf32>
    %cst_161 = arith.constant dense<0.000000e+00> : vector<10xf32>
    %360 = vector.multi_reduction <add>, %357, %cst_161 [1] : vector<10x32xf32> to vector<10xf32>
    %361 = vector.shape_cast %360 : vector<10xf32> to vector<10x1xf32>
    %cst_162 = arith.constant 3.200000e+01 : f32
    %362 = vector.broadcast %cst_162 : f32 to vector<10x1xf32>
    %363 = arith.divf %361, %362 : vector<10x1xf32>
    %364 = vector.broadcast %363 : vector<10x1xf32> to vector<10x32xf32>
    %365 = arith.subf %357, %364 : vector<10x32xf32>
    %366 = arith.mulf %365, %365 : vector<10x32xf32>
    %cst_163 = arith.constant dense<0.000000e+00> : vector<10xf32>
    %367 = vector.multi_reduction <add>, %366, %cst_163 [1] : vector<10x32xf32> to vector<10xf32>
    %368 = vector.shape_cast %367 : vector<10xf32> to vector<10x1xf32>
    %cst_164 = arith.constant 3.200000e+01 : f32
    %369 = vector.broadcast %cst_164 : f32 to vector<10x1xf32>
    %370 = arith.divf %368, %369 : vector<10x1xf32>
    %371 = vector.broadcast %363 : vector<10x1xf32> to vector<10x32xf32>
    %372 = arith.subf %357, %371 : vector<10x32xf32>
    %cst_165 = arith.constant 9.99999997E-7 : f32
    %373 = vector.broadcast %cst_165 : f32 to vector<10x1xf32>
    %374 = arith.addf %370, %373 : vector<10x1xf32>
    %375 = math.rsqrt %374 : vector<10x1xf32>
    %376 = vector.broadcast %375 : vector<10x1xf32> to vector<10x32xf32>
    %377 = arith.mulf %372, %376 : vector<10x32xf32>
    %378 = vector.broadcast %358 : vector<1x32xf32> to vector<10x32xf32>
    %379 = arith.mulf %377, %378 : vector<10x32xf32>
    %380 = vector.broadcast %359 : vector<1x32xf32> to vector<10x32xf32>
    %381 = arith.addf %379, %380 : vector<10x32xf32>
    %c0_166 = arith.constant 0 : index
    %c0_167 = arith.constant 0 : index
    %c0_168 = arith.constant 0 : index
    %382 = vector.load %arg20[%c0_166, %c0_167, %c0_168] : memref<1x10x32xf32, #tpu.memory_space<vmem>>, vector<1x10x32xf32>
    %383 = vector.shape_cast %382 : vector<1x10x32xf32> to vector<10x32xf32>
    %384 = vector.shape_cast %381 : vector<10x32xf32> to vector<1x10x32xf32>
    tpu.vector_store %arg20[%c0_166, %c0_167, %c0_168], %384 {strides = array<i32>} : memref<1x10x32xf32, #tpu.memory_space<vmem>>, vector<1x10x32xf32>,
    return
  }
  func.func @transform_0(%arg0: i32) -> (i32, i32, i32) {
    %c0_i32 = arith.constant 0 : i32
    %c0_i32_0 = arith.constant 0 : i32
    %c0_i32_1 = arith.constant 0 : i32
    return %arg0, %c0_i32, %c0_i32_0 : i32, i32, i32
  }
  func.func @transform_1(%arg0: i32) -> (i32, i32) {
    %c0_i32 = arith.constant 0 : i32
    %c0_i32_0 = arith.constant 0 : i32
    %c0_i32_1 = arith.constant 0 : i32
    return %c0_i32, %c0_i32_0 : i32, i32
  }
  func.func @transform_2(%arg0: i32) -> (i32, i32) {
    %c0_i32 = arith.constant 0 : i32
    %c0_i32_0 = arith.constant 0 : i32
    %c0_i32_1 = arith.constant 0 : i32
    return %c0_i32, %c0_i32_0 : i32, i32
  }
  func.func @transform_3(%arg0: i32) -> (i32, i32) {
    %c0_i32 = arith.constant 0 : i32
    %c0_i32_0 = arith.constant 0 : i32
    %c0_i32_1 = arith.constant 0 : i32
    return %c0_i32, %c0_i32_0 : i32, i32
  }
  func.func @transform_4(%arg0: i32) -> (i32, i32) {
    %c0_i32 = arith.constant 0 : i32
    %c0_i32_0 = arith.constant 0 : i32
    %c0_i32_1 = arith.constant 0 : i32
    return %c0_i32, %c0_i32_0 : i32, i32
  }
  func.func @transform_5(%arg0: i32) -> (i32, i32, i32) {
    %c0_i32 = arith.constant 0 : i32
    %c0_i32_0 = arith.constant 0 : i32
    %c0_i32_1 = arith.constant 0 : i32
    %c0_i32_2 = arith.constant 0 : i32
    return %c0_i32, %c0_i32_0, %c0_i32_1 : i32, i32, i32
  }
  func.func @transform_6(%arg0: i32) -> (i32, i32, i32) {
    %c0_i32 = arith.constant 0 : i32
    %c0_i32_0 = arith.constant 0 : i32
    %c0_i32_1 = arith.constant 0 : i32
    %c0_i32_2 = arith.constant 0 : i32
    return %c0_i32, %c0_i32_0, %c0_i32_1 : i32, i32, i32
  }
  func.func @transform_7(%arg0: i32) -> (i32, i32, i32) {
    %c0_i32 = arith.constant 0 : i32
    %c0_i32_0 = arith.constant 0 : i32
    %c0_i32_1 = arith.constant 0 : i32
    %c0_i32_2 = arith.constant 0 : i32
    return %c0_i32, %c0_i32_0, %c0_i32_1 : i32, i32, i32
  }
  func.func @transform_8(%arg0: i32) -> (i32, i32, i32) {
    %c0_i32 = arith.constant 0 : i32
    %c0_i32_0 = arith.constant 0 : i32
    %c0_i32_1 = arith.constant 0 : i32
    %c0_i32_2 = arith.constant 0 : i32
    return %c0_i32, %c0_i32_0, %c0_i32_1 : i32, i32, i32
  }
  func.func @transform_9(%arg0: i32) -> (i32, i32, i32) {
    %c0_i32 = arith.constant 0 : i32
    %c0_i32_0 = arith.constant 0 : i32
    %c0_i32_1 = arith.constant 0 : i32
    %c0_i32_2 = arith.constant 0 : i32
    return %c0_i32, %c0_i32_0, %c0_i32_1 : i32, i32, i32
  }
  func.func @transform_10(%arg0: i32) -> (i32, i32, i32) {
    %c0_i32 = arith.constant 0 : i32
    %c0_i32_0 = arith.constant 0 : i32
    %c0_i32_1 = arith.constant 0 : i32
    %c0_i32_2 = arith.constant 0 : i32
    return %c0_i32, %c0_i32_0, %c0_i32_1 : i32, i32, i32
  }
  func.func @transform_11(%arg0: i32) -> (i32, i32, i32) {
    %c0_i32 = arith.constant 0 : i32
    %c0_i32_0 = arith.constant 0 : i32
    %c0_i32_1 = arith.constant 0 : i32
    %c0_i32_2 = arith.constant 0 : i32
    return %c0_i32, %c0_i32_0, %c0_i32_1 : i32, i32, i32
  }
  func.func @transform_12(%arg0: i32) -> (i32, i32, i32) {
    %c0_i32 = arith.constant 0 : i32
    %c0_i32_0 = arith.constant 0 : i32
    %c0_i32_1 = arith.constant 0 : i32
    %c0_i32_2 = arith.constant 0 : i32
    return %c0_i32, %c0_i32_0, %c0_i32_1 : i32, i32, i32
  }
  func.func @transform_13(%arg0: i32) -> (i32, i32, i32) {
    %c0_i32 = arith.constant 0 : i32
    %c0_i32_0 = arith.constant 0 : i32
    %c0_i32_1 = arith.constant 0 : i32
    %c0_i32_2 = arith.constant 0 : i32
    return %c0_i32, %c0_i32_0, %c0_i32_1 : i32, i32, i32
  }
  func.func @transform_14(%arg0: i32) -> (i32, i32, i32) {
    %c0_i32 = arith.constant 0 : i32
    %c0_i32_0 = arith.constant 0 : i32
    %c0_i32_1 = arith.constant 0 : i32
    %c0_i32_2 = arith.constant 0 : i32
    return %c0_i32, %c0_i32_0, %c0_i32_1 : i32, i32, i32
  }
  func.func @transform_15(%arg0: i32) -> (i32, i32, i32) {
    %c0_i32 = arith.constant 0 : i32
    %c0_i32_0 = arith.constant 0 : i32
    %c0_i32_1 = arith.constant 0 : i32
    %c0_i32_2 = arith.constant 0 : i32
    return %c0_i32, %c0_i32_0, %c0_i32_1 : i32, i32, i32
  }
  func.func @transform_16(%arg0: i32) -> (i32, i32, i32) {
    %c0_i32 = arith.constant 0 : i32
    %c0_i32_0 = arith.constant 0 : i32
    %c0_i32_1 = arith.constant 0 : i32
    %c0_i32_2 = arith.constant 0 : i32
    return %c0_i32, %c0_i32_0, %c0_i32_1 : i32, i32, i32
  }
  func.func @transform_17(%arg0: i32) -> (i32, i32) {
    %c0_i32 = arith.constant 0 : i32
    %c0_i32_0 = arith.constant 0 : i32
    %c0_i32_1 = arith.constant 0 : i32
    return %c0_i32, %c0_i32_0 : i32, i32
  }
  func.func @transform_18(%arg0: i32) -> (i32, i32) {
    %c0_i32 = arith.constant 0 : i32
    %c0_i32_0 = arith.constant 0 : i32
    %c0_i32_1 = arith.constant 0 : i32
    return %c0_i32, %c0_i32_0 : i32, i32
  }
  func.func @transform_19(%arg0: i32) -> (i32, i32, i32) {
    %c0_i32 = arith.constant 0 : i32
    %c0_i32_0 = arith.constant 0 : i32
    %c0_i32_1 = arith.constant 0 : i32
    return %arg0, %c0_i32, %c0_i32_0 : i32, i32, i32
  }
}

module attributes {stable_mosaic.version = 11 : i64} {
  func.func @_bert_kernel(%arg0: i32, %arg1: memref<1x8x32xf32, #tpu.memory_space<vmem>>, %arg2: memref<1x1x8xf32, #tpu.memory_space<vmem>>, %arg3: memref<1x32xf32, #tpu.memory_space<vmem>>, %arg4: memref<1x32xf32, #tpu.memory_space<vmem>>, %arg5: memref<2x32x96xf32, #tpu.memory_space<vmem>>, %arg6: memref<2x1x96xf32, #tpu.memory_space<vmem>>, %arg7: memref<2x32x32xf32, #tpu.memory_space<vmem>>, %arg8: memref<2x1x32xf32, #tpu.memory_space<vmem>>, %arg9: memref<2x1x32xf32, #tpu.memory_space<vmem>>, %arg10: memref<2x1x32xf32, #tpu.memory_space<vmem>>, %arg11: memref<2x32x64xf32, #tpu.memory_space<vmem>>, %arg12: memref<2x1x64xf32, #tpu.memory_space<vmem>>, %arg13: memref<2x64x32xf32, #tpu.memory_space<vmem>>, %arg14: memref<2x1x32xf32, #tpu.memory_space<vmem>>, %arg15: memref<2x1x32xf32, #tpu.memory_space<vmem>>, %arg16: memref<2x1x32xf32, #tpu.memory_space<vmem>>, %arg17: memref<32x32xf32, #tpu.memory_space<vmem>>, %arg18: memref<1x32xf32, #tpu.memory_space<vmem>>, %arg19: memref<1x1x32xf32, #tpu.memory_space<vmem>>) attributes {dimension_semantics = [#tpu.dimension_semantics<parallel>], iteration_bounds = array<i64: 2>, scalar_prefetch = 0 : i64, scratch_operands = 0 : i64, tpu.core_type = #tpu.core_type<tc>, window_params = [{transform_indices = @transform_0, window_bounds = array<i64: 1, 8, 32>}, {transform_indices = @transform_1, window_bounds = array<i64: 1, 1, 8>}, {pipeline_mode = #tpu.pipeline_mode<synchronous>, transform_indices = @transform_2, window_bounds = array<i64: 1, 32>}, {pipeline_mode = #tpu.pipeline_mode<synchronous>, transform_indices = @transform_3, window_bounds = array<i64: 1, 32>}, {pipeline_mode = #tpu.pipeline_mode<synchronous>, transform_indices = @transform_4, window_bounds = array<i64: 2, 32, 96>}, {pipeline_mode = #tpu.pipeline_mode<synchronous>, transform_indices = @transform_5, window_bounds = array<i64: 2, 1, 96>}, {pipeline_mode = #tpu.pipeline_mode<synchronous>, transform_indices = @transform_6, window_bounds = array<i64: 2, 32, 32>}, {pipeline_mode = #tpu.pipeline_mode<synchronous>, transform_indices = @transform_7, window_bounds = array<i64: 2, 1, 32>}, {pipeline_mode = #tpu.pipeline_mode<synchronous>, transform_indices = @transform_8, window_bounds = array<i64: 2, 1, 32>}, {pipeline_mode = #tpu.pipeline_mode<synchronous>, transform_indices = @transform_9, window_bounds = array<i64: 2, 1, 32>}, {pipeline_mode = #tpu.pipeline_mode<synchronous>, transform_indices = @transform_10, window_bounds = array<i64: 2, 32, 64>}, {pipeline_mode = #tpu.pipeline_mode<synchronous>, transform_indices = @transform_11, window_bounds = array<i64: 2, 1, 64>}, {pipeline_mode = #tpu.pipeline_mode<synchronous>, transform_indices = @transform_12, window_bounds = array<i64: 2, 64, 32>}, {pipeline_mode = #tpu.pipeline_mode<synchronous>, transform_indices = @transform_13, window_bounds = array<i64: 2, 1, 32>}, {pipeline_mode = #tpu.pipeline_mode<synchronous>, transform_indices = @transform_14, window_bounds = array<i64: 2, 1, 32>}, {pipeline_mode = #tpu.pipeline_mode<synchronous>, transform_indices = @transform_15, window_bounds = array<i64: 2, 1, 32>}, {pipeline_mode = #tpu.pipeline_mode<synchronous>, transform_indices = @transform_16, window_bounds = array<i64: 32, 32>}, {pipeline_mode = #tpu.pipeline_mode<synchronous>, transform_indices = @transform_17, window_bounds = array<i64: 1, 32>}, {transform_indices = @transform_18, window_bounds = array<i64: 1, 1, 32>}]} {
    %c0 = arith.constant 0 : index
    %c0_0 = arith.constant 0 : index
    %c0_1 = arith.constant 0 : index
    %0 = vector.load %arg1[%c0, %c0_0, %c0_1] : memref<1x8x32xf32, #tpu.memory_space<vmem>>, vector<1x8x32xf32>
    %1 = vector.shape_cast %0 : vector<1x8x32xf32> to vector<8x32xf32>
    %c0_2 = arith.constant 0 : index
    %c0_3 = arith.constant 0 : index
    %2 = vector.load %arg3[%c0_2, %c0_3] : memref<1x32xf32, #tpu.memory_space<vmem>>, vector<1x32xf32>
    %c0_4 = arith.constant 0 : index
    %c0_5 = arith.constant 0 : index
    %3 = vector.load %arg4[%c0_4, %c0_5] : memref<1x32xf32, #tpu.memory_space<vmem>>, vector<1x32xf32>
    %cst = arith.constant dense<0.000000e+00> : vector<8xf32>
    %4 = vector.multi_reduction <add>, %1, %cst [1] : vector<8x32xf32> to vector<8xf32>
    %5 = vector.shape_cast %4 : vector<8xf32> to vector<8x1xf32>
    %cst_6 = arith.constant 3.200000e+01 : f32
    %6 = vector.broadcast %cst_6 : f32 to vector<8x1xf32>
    %7 = arith.divf %5, %6 : vector<8x1xf32>
    %8 = vector.broadcast %7 : vector<8x1xf32> to vector<8x32xf32>
    %9 = arith.subf %1, %8 : vector<8x32xf32>
    %10 = arith.mulf %9, %9 : vector<8x32xf32>
    %cst_7 = arith.constant dense<0.000000e+00> : vector<8xf32>
    %11 = vector.multi_reduction <add>, %10, %cst_7 [1] : vector<8x32xf32> to vector<8xf32>
    %12 = vector.shape_cast %11 : vector<8xf32> to vector<8x1xf32>
    %cst_8 = arith.constant 3.200000e+01 : f32
    %13 = vector.broadcast %cst_8 : f32 to vector<8x1xf32>
    %14 = arith.divf %12, %13 : vector<8x1xf32>
    %15 = vector.broadcast %7 : vector<8x1xf32> to vector<8x32xf32>
    %16 = arith.subf %1, %15 : vector<8x32xf32>
    %cst_9 = arith.constant 9.99999996E-13 : f32
    %17 = vector.broadcast %cst_9 : f32 to vector<8x1xf32>
    %18 = arith.addf %14, %17 : vector<8x1xf32>
    %19 = math.rsqrt %18 : vector<8x1xf32>
    %20 = vector.broadcast %19 : vector<8x1xf32> to vector<8x32xf32>
    %21 = arith.mulf %16, %20 : vector<8x32xf32>
    %22 = vector.broadcast %2 : vector<1x32xf32> to vector<8x32xf32>
    %23 = arith.mulf %21, %22 : vector<8x32xf32>
    %24 = vector.broadcast %3 : vector<1x32xf32> to vector<8x32xf32>
    %25 = arith.addf %23, %24 : vector<8x32xf32>
    %c0_10 = arith.constant 0 : index
    %c0_11 = arith.constant 0 : index
    %c0_12 = arith.constant 0 : index
    %26 = vector.load %arg2[%c0_10, %c0_11, %c0_12] : memref<1x1x8xf32, #tpu.memory_space<vmem>>, vector<1x1x8xf32>
    %27 = vector.shape_cast %26 : vector<1x1x8xf32> to vector<1x8xf32>
    %c0_13 = arith.constant 0 : index
    %c0_14 = arith.constant 0 : index
    %c0_15 = arith.constant 0 : index
    %28 = vector.load %arg5[%c0_13, %c0_14, %c0_15] : memref<2x32x96xf32, #tpu.memory_space<vmem>>, vector<1x32x96xf32>
    %29 = vector.shape_cast %28 : vector<1x32x96xf32> to vector<32x96xf32>
    %cst_16 = arith.constant dense<0.000000e+00> : vector<8x96xf32>
    %30 = tpu.matmul %25, %29, %cst_16 {dimension_numbers = #tpu.dot_dimension_numbers<[1], [0], [0], [1], [0, 0, 1, 1], [], []>} : vector<8x32xf32>, vector<32x96xf32>, vector<8x96xf32> -> vector<8x96xf32>
    %c0_17 = arith.constant 0 : index
    %c0_18 = arith.constant 0 : index
    %c0_19 = arith.constant 0 : index
    %31 = vector.load %arg6[%c0_17, %c0_18, %c0_19] : memref<2x1x96xf32, #tpu.memory_space<vmem>>, vector<1x1x96xf32>
    %32 = vector.shape_cast %31 : vector<1x1x96xf32> to vector<1x96xf32>
    %33 = vector.broadcast %32 : vector<1x96xf32> to vector<8x96xf32>
    %34 = arith.addf %30, %33 : vector<8x96xf32>
    %c0_20 = arith.constant 0 : index
    %c0_21 = arith.constant 0 : index
    %c0_22 = arith.constant 0 : index
    %35 = vector.load %arg7[%c0_20, %c0_21, %c0_22] : memref<2x32x32xf32, #tpu.memory_space<vmem>>, vector<1x32x32xf32>
    %36 = vector.shape_cast %35 : vector<1x32x32xf32> to vector<32x32xf32>
    %c0_23 = arith.constant 0 : index
    %c0_24 = arith.constant 0 : index
    %c0_25 = arith.constant 0 : index
    %37 = vector.load %arg8[%c0_23, %c0_24, %c0_25] : memref<2x1x32xf32, #tpu.memory_space<vmem>>, vector<1x1x32xf32>
    %38 = vector.shape_cast %37 : vector<1x1x32xf32> to vector<1x32xf32>
    %39 = vector.extract_strided_slice %34 {offsets = [0, 0], sizes = [8, 32], strides = [1, 1]} : vector<8x96xf32> to vector<8x32xf32>
    %cst_26 = arith.constant 0.353553385 : f32
    %40 = vector.broadcast %cst_26 : f32 to vector<8x32xf32>
    %41 = arith.mulf %39, %40 : vector<8x32xf32>
    %42 = vector.extract_strided_slice %34 {offsets = [0, 32], sizes = [8, 32], strides = [1, 1]} : vector<8x96xf32> to vector<8x32xf32>
    %43 = vector.extract_strided_slice %34 {offsets = [0, 64], sizes = [8, 32], strides = [1, 1]} : vector<8x96xf32> to vector<8x32xf32>
    %44 = vector.extract_strided_slice %41 {offsets = [0, 0], sizes = [8, 8], strides = [1, 1]} : vector<8x32xf32> to vector<8x8xf32>
    %45 = vector.extract_strided_slice %42 {offsets = [0, 0], sizes = [8, 8], strides = [1, 1]} : vector<8x32xf32> to vector<8x8xf32>
    %cst_27 = arith.constant dense<0.000000e+00> : vector<8x8xf32>
    %46 = tpu.matmul %44, %45, %cst_27 {dimension_numbers = #tpu.dot_dimension_numbers<[1], [1], [0], [0], [0, 0, 1, 0], [], []>} : vector<8x8xf32>, vector<8x8xf32>, vector<8x8xf32> -> vector<8x8xf32>
    %47 = vector.broadcast %27 : vector<1x8xf32> to vector<8x8xf32>
    %48 = arith.addf %46, %47 : vector<8x8xf32>
    %cst_28 = arith.constant dense<0xFF800000> : vector<8xf32>
    %49 = vector.multi_reduction <maximumf>, %48, %cst_28 [1] : vector<8x8xf32> to vector<8xf32>
    %50 = vector.shape_cast %49 : vector<8xf32> to vector<8x1xf32>
    %51 = vector.broadcast %50 : vector<8x1xf32> to vector<8x8xf32>
    %52 = arith.subf %48, %51 : vector<8x8xf32>
    %53 = math.exp %52 : vector<8x8xf32>
    %cst_29 = arith.constant dense<0.000000e+00> : vector<8xf32>
    %54 = vector.multi_reduction <add>, %53, %cst_29 [1] : vector<8x8xf32> to vector<8xf32>
    %55 = vector.shape_cast %54 : vector<8xf32> to vector<8x1xf32>
    %56 = tpu.reciprocal %55 {approx = true} : vector<8x1xf32> -> vector<8x1xf32>
    %57 = vector.broadcast %56 : vector<8x1xf32> to vector<8x8xf32>
    %58 = arith.mulf %53, %57 : vector<8x8xf32>
    %59 = vector.extract_strided_slice %43 {offsets = [0, 0], sizes = [8, 8], strides = [1, 1]} : vector<8x32xf32> to vector<8x8xf32>
    %cst_30 = arith.constant dense<0.000000e+00> : vector<8x8xf32>
    %60 = tpu.matmul %58, %59, %cst_30 {dimension_numbers = #tpu.dot_dimension_numbers<[1], [0], [0], [1], [0, 0, 1, 1], [], []>} : vector<8x8xf32>, vector<8x8xf32>, vector<8x8xf32> -> vector<8x8xf32>
    %61 = vector.extract_strided_slice %36 {offsets = [0, 0], sizes = [8, 32], strides = [1, 1]} : vector<32x32xf32> to vector<8x32xf32>
    %cst_31 = arith.constant dense<0.000000e+00> : vector<8x32xf32>
    %62 = tpu.matmul %60, %61, %cst_31 {dimension_numbers = #tpu.dot_dimension_numbers<[1], [0], [0], [1], [0, 0, 1, 1], [], []>} : vector<8x8xf32>, vector<8x32xf32>, vector<8x32xf32> -> vector<8x32xf32>
    %63 = vector.extract_strided_slice %41 {offsets = [0, 8], sizes = [8, 8], strides = [1, 1]} : vector<8x32xf32> to vector<8x8xf32>
    %64 = vector.extract_strided_slice %42 {offsets = [0, 8], sizes = [8, 8], strides = [1, 1]} : vector<8x32xf32> to vector<8x8xf32>
    %cst_32 = arith.constant dense<0.000000e+00> : vector<8x8xf32>
    %65 = tpu.matmul %63, %64, %cst_32 {dimension_numbers = #tpu.dot_dimension_numbers<[1], [1], [0], [0], [0, 0, 1, 0], [], []>} : vector<8x8xf32>, vector<8x8xf32>, vector<8x8xf32> -> vector<8x8xf32>
    %66 = vector.broadcast %27 : vector<1x8xf32> to vector<8x8xf32>
    %67 = arith.addf %65, %66 : vector<8x8xf32>
    %cst_33 = arith.constant dense<0xFF800000> : vector<8xf32>
    %68 = vector.multi_reduction <maximumf>, %67, %cst_33 [1] : vector<8x8xf32> to vector<8xf32>
    %69 = vector.shape_cast %68 : vector<8xf32> to vector<8x1xf32>
    %70 = vector.broadcast %69 : vector<8x1xf32> to vector<8x8xf32>
    %71 = arith.subf %67, %70 : vector<8x8xf32>
    %72 = math.exp %71 : vector<8x8xf32>
    %cst_34 = arith.constant dense<0.000000e+00> : vector<8xf32>
    %73 = vector.multi_reduction <add>, %72, %cst_34 [1] : vector<8x8xf32> to vector<8xf32>
    %74 = vector.shape_cast %73 : vector<8xf32> to vector<8x1xf32>
    %75 = tpu.reciprocal %74 {approx = true} : vector<8x1xf32> -> vector<8x1xf32>
    %76 = vector.broadcast %75 : vector<8x1xf32> to vector<8x8xf32>
    %77 = arith.mulf %72, %76 : vector<8x8xf32>
    %78 = vector.extract_strided_slice %43 {offsets = [0, 8], sizes = [8, 8], strides = [1, 1]} : vector<8x32xf32> to vector<8x8xf32>
    %cst_35 = arith.constant dense<0.000000e+00> : vector<8x8xf32>
    %79 = tpu.matmul %77, %78, %cst_35 {dimension_numbers = #tpu.dot_dimension_numbers<[1], [0], [0], [1], [0, 0, 1, 1], [], []>} : vector<8x8xf32>, vector<8x8xf32>, vector<8x8xf32> -> vector<8x8xf32>
    %80 = vector.extract_strided_slice %36 {offsets = [8, 0], sizes = [8, 32], strides = [1, 1]} : vector<32x32xf32> to vector<8x32xf32>
    %cst_36 = arith.constant dense<0.000000e+00> : vector<8x32xf32>
    %81 = tpu.matmul %79, %80, %cst_36 {dimension_numbers = #tpu.dot_dimension_numbers<[1], [0], [0], [1], [0, 0, 1, 1], [], []>} : vector<8x8xf32>, vector<8x32xf32>, vector<8x32xf32> -> vector<8x32xf32>
    %82 = arith.addf %62, %81 : vector<8x32xf32>
    %83 = vector.extract_strided_slice %41 {offsets = [0, 16], sizes = [8, 8], strides = [1, 1]} : vector<8x32xf32> to vector<8x8xf32>
    %84 = vector.extract_strided_slice %42 {offsets = [0, 16], sizes = [8, 8], strides = [1, 1]} : vector<8x32xf32> to vector<8x8xf32>
    %cst_37 = arith.constant dense<0.000000e+00> : vector<8x8xf32>
    %85 = tpu.matmul %83, %84, %cst_37 {dimension_numbers = #tpu.dot_dimension_numbers<[1], [1], [0], [0], [0, 0, 1, 0], [], []>} : vector<8x8xf32>, vector<8x8xf32>, vector<8x8xf32> -> vector<8x8xf32>
    %86 = vector.broadcast %27 : vector<1x8xf32> to vector<8x8xf32>
    %87 = arith.addf %85, %86 : vector<8x8xf32>
    %cst_38 = arith.constant dense<0xFF800000> : vector<8xf32>
    %88 = vector.multi_reduction <maximumf>, %87, %cst_38 [1] : vector<8x8xf32> to vector<8xf32>
    %89 = vector.shape_cast %88 : vector<8xf32> to vector<8x1xf32>
    %90 = vector.broadcast %89 : vector<8x1xf32> to vector<8x8xf32>
    %91 = arith.subf %87, %90 : vector<8x8xf32>
    %92 = math.exp %91 : vector<8x8xf32>
    %cst_39 = arith.constant dense<0.000000e+00> : vector<8xf32>
    %93 = vector.multi_reduction <add>, %92, %cst_39 [1] : vector<8x8xf32> to vector<8xf32>
    %94 = vector.shape_cast %93 : vector<8xf32> to vector<8x1xf32>
    %95 = tpu.reciprocal %94 {approx = true} : vector<8x1xf32> -> vector<8x1xf32>
    %96 = vector.broadcast %95 : vector<8x1xf32> to vector<8x8xf32>
    %97 = arith.mulf %92, %96 : vector<8x8xf32>
    %98 = vector.extract_strided_slice %43 {offsets = [0, 16], sizes = [8, 8], strides = [1, 1]} : vector<8x32xf32> to vector<8x8xf32>
    %cst_40 = arith.constant dense<0.000000e+00> : vector<8x8xf32>
    %99 = tpu.matmul %97, %98, %cst_40 {dimension_numbers = #tpu.dot_dimension_numbers<[1], [0], [0], [1], [0, 0, 1, 1], [], []>} : vector<8x8xf32>, vector<8x8xf32>, vector<8x8xf32> -> vector<8x8xf32>
    %100 = vector.extract_strided_slice %36 {offsets = [16, 0], sizes = [8, 32], strides = [1, 1]} : vector<32x32xf32> to vector<8x32xf32>
    %cst_41 = arith.constant dense<0.000000e+00> : vector<8x32xf32>
    %101 = tpu.matmul %99, %100, %cst_41 {dimension_numbers = #tpu.dot_dimension_numbers<[1], [0], [0], [1], [0, 0, 1, 1], [], []>} : vector<8x8xf32>, vector<8x32xf32>, vector<8x32xf32> -> vector<8x32xf32>
    %102 = arith.addf %82, %101 : vector<8x32xf32>
    %103 = vector.extract_strided_slice %41 {offsets = [0, 24], sizes = [8, 8], strides = [1, 1]} : vector<8x32xf32> to vector<8x8xf32>
    %104 = vector.extract_strided_slice %42 {offsets = [0, 24], sizes = [8, 8], strides = [1, 1]} : vector<8x32xf32> to vector<8x8xf32>
    %cst_42 = arith.constant dense<0.000000e+00> : vector<8x8xf32>
    %105 = tpu.matmul %103, %104, %cst_42 {dimension_numbers = #tpu.dot_dimension_numbers<[1], [1], [0], [0], [0, 0, 1, 0], [], []>} : vector<8x8xf32>, vector<8x8xf32>, vector<8x8xf32> -> vector<8x8xf32>
    %106 = vector.broadcast %27 : vector<1x8xf32> to vector<8x8xf32>
    %107 = arith.addf %105, %106 : vector<8x8xf32>
    %cst_43 = arith.constant dense<0xFF800000> : vector<8xf32>
    %108 = vector.multi_reduction <maximumf>, %107, %cst_43 [1] : vector<8x8xf32> to vector<8xf32>
    %109 = vector.shape_cast %108 : vector<8xf32> to vector<8x1xf32>
    %110 = vector.broadcast %109 : vector<8x1xf32> to vector<8x8xf32>
    %111 = arith.subf %107, %110 : vector<8x8xf32>
    %112 = math.exp %111 : vector<8x8xf32>
    %cst_44 = arith.constant dense<0.000000e+00> : vector<8xf32>
    %113 = vector.multi_reduction <add>, %112, %cst_44 [1] : vector<8x8xf32> to vector<8xf32>
    %114 = vector.shape_cast %113 : vector<8xf32> to vector<8x1xf32>
    %115 = tpu.reciprocal %114 {approx = true} : vector<8x1xf32> -> vector<8x1xf32>
    %116 = vector.broadcast %115 : vector<8x1xf32> to vector<8x8xf32>
    %117 = arith.mulf %112, %116 : vector<8x8xf32>
    %118 = vector.extract_strided_slice %43 {offsets = [0, 24], sizes = [8, 8], strides = [1, 1]} : vector<8x32xf32> to vector<8x8xf32>
    %cst_45 = arith.constant dense<0.000000e+00> : vector<8x8xf32>
    %119 = tpu.matmul %117, %118, %cst_45 {dimension_numbers = #tpu.dot_dimension_numbers<[1], [0], [0], [1], [0, 0, 1, 1], [], []>} : vector<8x8xf32>, vector<8x8xf32>, vector<8x8xf32> -> vector<8x8xf32>
    %120 = vector.extract_strided_slice %36 {offsets = [24, 0], sizes = [8, 32], strides = [1, 1]} : vector<32x32xf32> to vector<8x32xf32>
    %cst_46 = arith.constant dense<0.000000e+00> : vector<8x32xf32>
    %121 = tpu.matmul %119, %120, %cst_46 {dimension_numbers = #tpu.dot_dimension_numbers<[1], [0], [0], [1], [0, 0, 1, 1], [], []>} : vector<8x8xf32>, vector<8x32xf32>, vector<8x32xf32> -> vector<8x32xf32>
    %122 = arith.addf %102, %121 : vector<8x32xf32>
    %123 = vector.broadcast %38 : vector<1x32xf32> to vector<8x32xf32>
    %124 = arith.addf %122, %123 : vector<8x32xf32>
    %125 = arith.addf %25, %124 : vector<8x32xf32>
    %c0_47 = arith.constant 0 : index
    %c0_48 = arith.constant 0 : index
    %c0_49 = arith.constant 0 : index
    %126 = vector.load %arg9[%c0_47, %c0_48, %c0_49] : memref<2x1x32xf32, #tpu.memory_space<vmem>>, vector<1x1x32xf32>
    %127 = vector.shape_cast %126 : vector<1x1x32xf32> to vector<1x32xf32>
    %c0_50 = arith.constant 0 : index
    %c0_51 = arith.constant 0 : index
    %c0_52 = arith.constant 0 : index
    %128 = vector.load %arg10[%c0_50, %c0_51, %c0_52] : memref<2x1x32xf32, #tpu.memory_space<vmem>>, vector<1x1x32xf32>
    %129 = vector.shape_cast %128 : vector<1x1x32xf32> to vector<1x32xf32>
    %cst_53 = arith.constant dense<0.000000e+00> : vector<8xf32>
    %130 = vector.multi_reduction <add>, %125, %cst_53 [1] : vector<8x32xf32> to vector<8xf32>
    %131 = vector.shape_cast %130 : vector<8xf32> to vector<8x1xf32>
    %cst_54 = arith.constant 3.200000e+01 : f32
    %132 = vector.broadcast %cst_54 : f32 to vector<8x1xf32>
    %133 = arith.divf %131, %132 : vector<8x1xf32>
    %134 = vector.broadcast %133 : vector<8x1xf32> to vector<8x32xf32>
    %135 = arith.subf %125, %134 : vector<8x32xf32>
    %136 = arith.mulf %135, %135 : vector<8x32xf32>
    %cst_55 = arith.constant dense<0.000000e+00> : vector<8xf32>
    %137 = vector.multi_reduction <add>, %136, %cst_55 [1] : vector<8x32xf32> to vector<8xf32>
    %138 = vector.shape_cast %137 : vector<8xf32> to vector<8x1xf32>
    %cst_56 = arith.constant 3.200000e+01 : f32
    %139 = vector.broadcast %cst_56 : f32 to vector<8x1xf32>
    %140 = arith.divf %138, %139 : vector<8x1xf32>
    %141 = vector.broadcast %133 : vector<8x1xf32> to vector<8x32xf32>
    %142 = arith.subf %125, %141 : vector<8x32xf32>
    %cst_57 = arith.constant 9.99999996E-13 : f32
    %143 = vector.broadcast %cst_57 : f32 to vector<8x1xf32>
    %144 = arith.addf %140, %143 : vector<8x1xf32>
    %145 = math.rsqrt %144 : vector<8x1xf32>
    %146 = vector.broadcast %145 : vector<8x1xf32> to vector<8x32xf32>
    %147 = arith.mulf %142, %146 : vector<8x32xf32>
    %148 = vector.broadcast %127 : vector<1x32xf32> to vector<8x32xf32>
    %149 = arith.mulf %147, %148 : vector<8x32xf32>
    %150 = vector.broadcast %129 : vector<1x32xf32> to vector<8x32xf32>
    %151 = arith.addf %149, %150 : vector<8x32xf32>
    %c0_58 = arith.constant 0 : index
    %c0_59 = arith.constant 0 : index
    %c0_60 = arith.constant 0 : index
    %152 = vector.load %arg11[%c0_58, %c0_59, %c0_60] : memref<2x32x64xf32, #tpu.memory_space<vmem>>, vector<1x32x64xf32>
    %153 = vector.shape_cast %152 : vector<1x32x64xf32> to vector<32x64xf32>
    %cst_61 = arith.constant dense<0.000000e+00> : vector<8x64xf32>
    %154 = tpu.matmul %151, %153, %cst_61 {dimension_numbers = #tpu.dot_dimension_numbers<[1], [0], [0], [1], [0, 0, 1, 1], [], []>} : vector<8x32xf32>, vector<32x64xf32>, vector<8x64xf32> -> vector<8x64xf32>
    %c0_62 = arith.constant 0 : index
    %c0_63 = arith.constant 0 : index
    %c0_64 = arith.constant 0 : index
    %155 = vector.load %arg12[%c0_62, %c0_63, %c0_64] : memref<2x1x64xf32, #tpu.memory_space<vmem>>, vector<1x1x64xf32>
    %156 = vector.shape_cast %155 : vector<1x1x64xf32> to vector<1x64xf32>
    %157 = vector.broadcast %156 : vector<1x64xf32> to vector<8x64xf32>
    %158 = arith.addf %154, %157 : vector<8x64xf32>
    %159 = arith.mulf %158, %158 : vector<8x64xf32>
    %160 = arith.mulf %158, %159 : vector<8x64xf32>
    %cst_65 = arith.constant 4.471500e-02 : f32
    %161 = vector.broadcast %cst_65 : f32 to vector<8x64xf32>
    %162 = arith.mulf %161, %160 : vector<8x64xf32>
    %163 = arith.addf %158, %162 : vector<8x64xf32>
    %cst_66 = arith.constant 0.797884583 : f32
    %164 = vector.broadcast %cst_66 : f32 to vector<8x64xf32>
    %165 = arith.mulf %164, %163 : vector<8x64xf32>
    %166 = math.tanh %165 : vector<8x64xf32>
    %cst_67 = arith.constant 1.000000e+00 : f32
    %167 = vector.broadcast %cst_67 : f32 to vector<8x64xf32>
    %168 = arith.addf %167, %166 : vector<8x64xf32>
    %cst_68 = arith.constant 5.000000e-01 : f32
    %169 = vector.broadcast %cst_68 : f32 to vector<8x64xf32>
    %170 = arith.mulf %169, %168 : vector<8x64xf32>
    %171 = arith.mulf %158, %170 : vector<8x64xf32>
    %c0_69 = arith.constant 0 : index
    %c0_70 = arith.constant 0 : index
    %c0_71 = arith.constant 0 : index
    %172 = vector.load %arg13[%c0_69, %c0_70, %c0_71] : memref<2x64x32xf32, #tpu.memory_space<vmem>>, vector<1x64x32xf32>
    %173 = vector.shape_cast %172 : vector<1x64x32xf32> to vector<64x32xf32>
    %cst_72 = arith.constant dense<0.000000e+00> : vector<8x32xf32>
    %174 = tpu.matmul %171, %173, %cst_72 {dimension_numbers = #tpu.dot_dimension_numbers<[1], [0], [0], [1], [0, 0, 1, 1], [], []>} : vector<8x64xf32>, vector<64x32xf32>, vector<8x32xf32> -> vector<8x32xf32>
    %c0_73 = arith.constant 0 : index
    %c0_74 = arith.constant 0 : index
    %c0_75 = arith.constant 0 : index
    %175 = vector.load %arg14[%c0_73, %c0_74, %c0_75] : memref<2x1x32xf32, #tpu.memory_space<vmem>>, vector<1x1x32xf32>
    %176 = vector.shape_cast %175 : vector<1x1x32xf32> to vector<1x32xf32>
    %177 = vector.broadcast %176 : vector<1x32xf32> to vector<8x32xf32>
    %178 = arith.addf %174, %177 : vector<8x32xf32>
    %179 = arith.addf %151, %178 : vector<8x32xf32>
    %c0_76 = arith.constant 0 : index
    %c0_77 = arith.constant 0 : index
    %c0_78 = arith.constant 0 : index
    %180 = vector.load %arg15[%c0_76, %c0_77, %c0_78] : memref<2x1x32xf32, #tpu.memory_space<vmem>>, vector<1x1x32xf32>
    %181 = vector.shape_cast %180 : vector<1x1x32xf32> to vector<1x32xf32>
    %c0_79 = arith.constant 0 : index
    %c0_80 = arith.constant 0 : index
    %c0_81 = arith.constant 0 : index
    %182 = vector.load %arg16[%c0_79, %c0_80, %c0_81] : memref<2x1x32xf32, #tpu.memory_space<vmem>>, vector<1x1x32xf32>
    %183 = vector.shape_cast %182 : vector<1x1x32xf32> to vector<1x32xf32>
    %cst_82 = arith.constant dense<0.000000e+00> : vector<8xf32>
    %184 = vector.multi_reduction <add>, %179, %cst_82 [1] : vector<8x32xf32> to vector<8xf32>
    %185 = vector.shape_cast %184 : vector<8xf32> to vector<8x1xf32>
    %cst_83 = arith.constant 3.200000e+01 : f32
    %186 = vector.broadcast %cst_83 : f32 to vector<8x1xf32>
    %187 = arith.divf %185, %186 : vector<8x1xf32>
    %188 = vector.broadcast %187 : vector<8x1xf32> to vector<8x32xf32>
    %189 = arith.subf %179, %188 : vector<8x32xf32>
    %190 = arith.mulf %189, %189 : vector<8x32xf32>
    %cst_84 = arith.constant dense<0.000000e+00> : vector<8xf32>
    %191 = vector.multi_reduction <add>, %190, %cst_84 [1] : vector<8x32xf32> to vector<8xf32>
    %192 = vector.shape_cast %191 : vector<8xf32> to vector<8x1xf32>
    %cst_85 = arith.constant 3.200000e+01 : f32
    %193 = vector.broadcast %cst_85 : f32 to vector<8x1xf32>
    %194 = arith.divf %192, %193 : vector<8x1xf32>
    %195 = vector.broadcast %187 : vector<8x1xf32> to vector<8x32xf32>
    %196 = arith.subf %179, %195 : vector<8x32xf32>
    %cst_86 = arith.constant 9.99999996E-13 : f32
    %197 = vector.broadcast %cst_86 : f32 to vector<8x1xf32>
    %198 = arith.addf %194, %197 : vector<8x1xf32>
    %199 = math.rsqrt %198 : vector<8x1xf32>
    %200 = vector.broadcast %199 : vector<8x1xf32> to vector<8x32xf32>
    %201 = arith.mulf %196, %200 : vector<8x32xf32>
    %202 = vector.broadcast %181 : vector<1x32xf32> to vector<8x32xf32>
    %203 = arith.mulf %201, %202 : vector<8x32xf32>
    %204 = vector.broadcast %183 : vector<1x32xf32> to vector<8x32xf32>
    %205 = arith.addf %203, %204 : vector<8x32xf32>
    %c1 = arith.constant 1 : index
    %c0_87 = arith.constant 0 : index
    %c0_88 = arith.constant 0 : index
    %206 = vector.load %arg5[%c1, %c0_87, %c0_88] : memref<2x32x96xf32, #tpu.memory_space<vmem>>, vector<1x32x96xf32>
    %207 = vector.shape_cast %206 : vector<1x32x96xf32> to vector<32x96xf32>
    %cst_89 = arith.constant dense<0.000000e+00> : vector<8x96xf32>
    %208 = tpu.matmul %205, %207, %cst_89 {dimension_numbers = #tpu.dot_dimension_numbers<[1], [0], [0], [1], [0, 0, 1, 1], [], []>} : vector<8x32xf32>, vector<32x96xf32>, vector<8x96xf32> -> vector<8x96xf32>
    %c1_90 = arith.constant 1 : index
    %c0_91 = arith.constant 0 : index
    %c0_92 = arith.constant 0 : index
    %209 = vector.load %arg6[%c1_90, %c0_91, %c0_92] : memref<2x1x96xf32, #tpu.memory_space<vmem>>, vector<1x1x96xf32>
    %210 = vector.shape_cast %209 : vector<1x1x96xf32> to vector<1x96xf32>
    %211 = vector.broadcast %210 : vector<1x96xf32> to vector<8x96xf32>
    %212 = arith.addf %208, %211 : vector<8x96xf32>
    %c1_93 = arith.constant 1 : index
    %c0_94 = arith.constant 0 : index
    %c0_95 = arith.constant 0 : index
    %213 = vector.load %arg7[%c1_93, %c0_94, %c0_95] : memref<2x32x32xf32, #tpu.memory_space<vmem>>, vector<1x32x32xf32>
    %214 = vector.shape_cast %213 : vector<1x32x32xf32> to vector<32x32xf32>
    %c1_96 = arith.constant 1 : index
    %c0_97 = arith.constant 0 : index
    %c0_98 = arith.constant 0 : index
    %215 = vector.load %arg8[%c1_96, %c0_97, %c0_98] : memref<2x1x32xf32, #tpu.memory_space<vmem>>, vector<1x1x32xf32>
    %216 = vector.shape_cast %215 : vector<1x1x32xf32> to vector<1x32xf32>
    %217 = vector.extract_strided_slice %212 {offsets = [0, 0], sizes = [8, 32], strides = [1, 1]} : vector<8x96xf32> to vector<8x32xf32>
    %cst_99 = arith.constant 0.353553385 : f32
    %218 = vector.broadcast %cst_99 : f32 to vector<8x32xf32>
    %219 = arith.mulf %217, %218 : vector<8x32xf32>
    %220 = vector.extract_strided_slice %212 {offsets = [0, 32], sizes = [8, 32], strides = [1, 1]} : vector<8x96xf32> to vector<8x32xf32>
    %221 = vector.extract_strided_slice %212 {offsets = [0, 64], sizes = [8, 32], strides = [1, 1]} : vector<8x96xf32> to vector<8x32xf32>
    %222 = vector.extract_strided_slice %219 {offsets = [0, 0], sizes = [8, 8], strides = [1, 1]} : vector<8x32xf32> to vector<8x8xf32>
    %223 = vector.extract_strided_slice %220 {offsets = [0, 0], sizes = [8, 8], strides = [1, 1]} : vector<8x32xf32> to vector<8x8xf32>
    %cst_100 = arith.constant dense<0.000000e+00> : vector<8x8xf32>
    %224 = tpu.matmul %222, %223, %cst_100 {dimension_numbers = #tpu.dot_dimension_numbers<[1], [1], [0], [0], [0, 0, 1, 0], [], []>} : vector<8x8xf32>, vector<8x8xf32>, vector<8x8xf32> -> vector<8x8xf32>
    %225 = vector.broadcast %27 : vector<1x8xf32> to vector<8x8xf32>
    %226 = arith.addf %224, %225 : vector<8x8xf32>
    %cst_101 = arith.constant dense<0xFF800000> : vector<8xf32>
    %227 = vector.multi_reduction <maximumf>, %226, %cst_101 [1] : vector<8x8xf32> to vector<8xf32>
    %228 = vector.shape_cast %227 : vector<8xf32> to vector<8x1xf32>
    %229 = vector.broadcast %228 : vector<8x1xf32> to vector<8x8xf32>
    %230 = arith.subf %226, %229 : vector<8x8xf32>
    %231 = math.exp %230 : vector<8x8xf32>
    %cst_102 = arith.constant dense<0.000000e+00> : vector<8xf32>
    %232 = vector.multi_reduction <add>, %231, %cst_102 [1] : vector<8x8xf32> to vector<8xf32>
    %233 = vector.shape_cast %232 : vector<8xf32> to vector<8x1xf32>
    %234 = tpu.reciprocal %233 {approx = true} : vector<8x1xf32> -> vector<8x1xf32>
    %235 = vector.broadcast %234 : vector<8x1xf32> to vector<8x8xf32>
    %236 = arith.mulf %231, %235 : vector<8x8xf32>
    %237 = vector.extract_strided_slice %221 {offsets = [0, 0], sizes = [8, 8], strides = [1, 1]} : vector<8x32xf32> to vector<8x8xf32>
    %cst_103 = arith.constant dense<0.000000e+00> : vector<8x8xf32>
    %238 = tpu.matmul %236, %237, %cst_103 {dimension_numbers = #tpu.dot_dimension_numbers<[1], [0], [0], [1], [0, 0, 1, 1], [], []>} : vector<8x8xf32>, vector<8x8xf32>, vector<8x8xf32> -> vector<8x8xf32>
    %239 = vector.extract_strided_slice %214 {offsets = [0, 0], sizes = [8, 32], strides = [1, 1]} : vector<32x32xf32> to vector<8x32xf32>
    %cst_104 = arith.constant dense<0.000000e+00> : vector<8x32xf32>
    %240 = tpu.matmul %238, %239, %cst_104 {dimension_numbers = #tpu.dot_dimension_numbers<[1], [0], [0], [1], [0, 0, 1, 1], [], []>} : vector<8x8xf32>, vector<8x32xf32>, vector<8x32xf32> -> vector<8x32xf32>
    %241 = vector.extract_strided_slice %219 {offsets = [0, 8], sizes = [8, 8], strides = [1, 1]} : vector<8x32xf32> to vector<8x8xf32>
    %242 = vector.extract_strided_slice %220 {offsets = [0, 8], sizes = [8, 8], strides = [1, 1]} : vector<8x32xf32> to vector<8x8xf32>
    %cst_105 = arith.constant dense<0.000000e+00> : vector<8x8xf32>
    %243 = tpu.matmul %241, %242, %cst_105 {dimension_numbers = #tpu.dot_dimension_numbers<[1], [1], [0], [0], [0, 0, 1, 0], [], []>} : vector<8x8xf32>, vector<8x8xf32>, vector<8x8xf32> -> vector<8x8xf32>
    %244 = vector.broadcast %27 : vector<1x8xf32> to vector<8x8xf32>
    %245 = arith.addf %243, %244 : vector<8x8xf32>
    %cst_106 = arith.constant dense<0xFF800000> : vector<8xf32>
    %246 = vector.multi_reduction <maximumf>, %245, %cst_106 [1] : vector<8x8xf32> to vector<8xf32>
    %247 = vector.shape_cast %246 : vector<8xf32> to vector<8x1xf32>
    %248 = vector.broadcast %247 : vector<8x1xf32> to vector<8x8xf32>
    %249 = arith.subf %245, %248 : vector<8x8xf32>
    %250 = math.exp %249 : vector<8x8xf32>
    %cst_107 = arith.constant dense<0.000000e+00> : vector<8xf32>
    %251 = vector.multi_reduction <add>, %250, %cst_107 [1] : vector<8x8xf32> to vector<8xf32>
    %252 = vector.shape_cast %251 : vector<8xf32> to vector<8x1xf32>
    %253 = tpu.reciprocal %252 {approx = true} : vector<8x1xf32> -> vector<8x1xf32>
    %254 = vector.broadcast %253 : vector<8x1xf32> to vector<8x8xf32>
    %255 = arith.mulf %250, %254 : vector<8x8xf32>
    %256 = vector.extract_strided_slice %221 {offsets = [0, 8], sizes = [8, 8], strides = [1, 1]} : vector<8x32xf32> to vector<8x8xf32>
    %cst_108 = arith.constant dense<0.000000e+00> : vector<8x8xf32>
    %257 = tpu.matmul %255, %256, %cst_108 {dimension_numbers = #tpu.dot_dimension_numbers<[1], [0], [0], [1], [0, 0, 1, 1], [], []>} : vector<8x8xf32>, vector<8x8xf32>, vector<8x8xf32> -> vector<8x8xf32>
    %258 = vector.extract_strided_slice %214 {offsets = [8, 0], sizes = [8, 32], strides = [1, 1]} : vector<32x32xf32> to vector<8x32xf32>
    %cst_109 = arith.constant dense<0.000000e+00> : vector<8x32xf32>
    %259 = tpu.matmul %257, %258, %cst_109 {dimension_numbers = #tpu.dot_dimension_numbers<[1], [0], [0], [1], [0, 0, 1, 1], [], []>} : vector<8x8xf32>, vector<8x32xf32>, vector<8x32xf32> -> vector<8x32xf32>
    %260 = arith.addf %240, %259 : vector<8x32xf32>
    %261 = vector.extract_strided_slice %219 {offsets = [0, 16], sizes = [8, 8], strides = [1, 1]} : vector<8x32xf32> to vector<8x8xf32>
    %262 = vector.extract_strided_slice %220 {offsets = [0, 16], sizes = [8, 8], strides = [1, 1]} : vector<8x32xf32> to vector<8x8xf32>
    %cst_110 = arith.constant dense<0.000000e+00> : vector<8x8xf32>
    %263 = tpu.matmul %261, %262, %cst_110 {dimension_numbers = #tpu.dot_dimension_numbers<[1], [1], [0], [0], [0, 0, 1, 0], [], []>} : vector<8x8xf32>, vector<8x8xf32>, vector<8x8xf32> -> vector<8x8xf32>
    %264 = vector.broadcast %27 : vector<1x8xf32> to vector<8x8xf32>
    %265 = arith.addf %263, %264 : vector<8x8xf32>
    %cst_111 = arith.constant dense<0xFF800000> : vector<8xf32>
    %266 = vector.multi_reduction <maximumf>, %265, %cst_111 [1] : vector<8x8xf32> to vector<8xf32>
    %267 = vector.shape_cast %266 : vector<8xf32> to vector<8x1xf32>
    %268 = vector.broadcast %267 : vector<8x1xf32> to vector<8x8xf32>
    %269 = arith.subf %265, %268 : vector<8x8xf32>
    %270 = math.exp %269 : vector<8x8xf32>
    %cst_112 = arith.constant dense<0.000000e+00> : vector<8xf32>
    %271 = vector.multi_reduction <add>, %270, %cst_112 [1] : vector<8x8xf32> to vector<8xf32>
    %272 = vector.shape_cast %271 : vector<8xf32> to vector<8x1xf32>
    %273 = tpu.reciprocal %272 {approx = true} : vector<8x1xf32> -> vector<8x1xf32>
    %274 = vector.broadcast %273 : vector<8x1xf32> to vector<8x8xf32>
    %275 = arith.mulf %270, %274 : vector<8x8xf32>
    %276 = vector.extract_strided_slice %221 {offsets = [0, 16], sizes = [8, 8], strides = [1, 1]} : vector<8x32xf32> to vector<8x8xf32>
    %cst_113 = arith.constant dense<0.000000e+00> : vector<8x8xf32>
    %277 = tpu.matmul %275, %276, %cst_113 {dimension_numbers = #tpu.dot_dimension_numbers<[1], [0], [0], [1], [0, 0, 1, 1], [], []>} : vector<8x8xf32>, vector<8x8xf32>, vector<8x8xf32> -> vector<8x8xf32>
    %278 = vector.extract_strided_slice %214 {offsets = [16, 0], sizes = [8, 32], strides = [1, 1]} : vector<32x32xf32> to vector<8x32xf32>
    %cst_114 = arith.constant dense<0.000000e+00> : vector<8x32xf32>
    %279 = tpu.matmul %277, %278, %cst_114 {dimension_numbers = #tpu.dot_dimension_numbers<[1], [0], [0], [1], [0, 0, 1, 1], [], []>} : vector<8x8xf32>, vector<8x32xf32>, vector<8x32xf32> -> vector<8x32xf32>
    %280 = arith.addf %260, %279 : vector<8x32xf32>
    %281 = vector.extract_strided_slice %219 {offsets = [0, 24], sizes = [8, 8], strides = [1, 1]} : vector<8x32xf32> to vector<8x8xf32>
    %282 = vector.extract_strided_slice %220 {offsets = [0, 24], sizes = [8, 8], strides = [1, 1]} : vector<8x32xf32> to vector<8x8xf32>
    %cst_115 = arith.constant dense<0.000000e+00> : vector<8x8xf32>
    %283 = tpu.matmul %281, %282, %cst_115 {dimension_numbers = #tpu.dot_dimension_numbers<[1], [1], [0], [0], [0, 0, 1, 0], [], []>} : vector<8x8xf32>, vector<8x8xf32>, vector<8x8xf32> -> vector<8x8xf32>
    %284 = vector.broadcast %27 : vector<1x8xf32> to vector<8x8xf32>
    %285 = arith.addf %283, %284 : vector<8x8xf32>
    %cst_116 = arith.constant dense<0xFF800000> : vector<8xf32>
    %286 = vector.multi_reduction <maximumf>, %285, %cst_116 [1] : vector<8x8xf32> to vector<8xf32>
    %287 = vector.shape_cast %286 : vector<8xf32> to vector<8x1xf32>
    %288 = vector.broadcast %287 : vector<8x1xf32> to vector<8x8xf32>
    %289 = arith.subf %285, %288 : vector<8x8xf32>
    %290 = math.exp %289 : vector<8x8xf32>
    %cst_117 = arith.constant dense<0.000000e+00> : vector<8xf32>
    %291 = vector.multi_reduction <add>, %290, %cst_117 [1] : vector<8x8xf32> to vector<8xf32>
    %292 = vector.shape_cast %291 : vector<8xf32> to vector<8x1xf32>
    %293 = tpu.reciprocal %292 {approx = true} : vector<8x1xf32> -> vector<8x1xf32>
    %294 = vector.broadcast %293 : vector<8x1xf32> to vector<8x8xf32>
    %295 = arith.mulf %290, %294 : vector<8x8xf32>
    %296 = vector.extract_strided_slice %221 {offsets = [0, 24], sizes = [8, 8], strides = [1, 1]} : vector<8x32xf32> to vector<8x8xf32>
    %cst_118 = arith.constant dense<0.000000e+00> : vector<8x8xf32>
    %297 = tpu.matmul %295, %296, %cst_118 {dimension_numbers = #tpu.dot_dimension_numbers<[1], [0], [0], [1], [0, 0, 1, 1], [], []>} : vector<8x8xf32>, vector<8x8xf32>, vector<8x8xf32> -> vector<8x8xf32>
    %298 = vector.extract_strided_slice %214 {offsets = [24, 0], sizes = [8, 32], strides = [1, 1]} : vector<32x32xf32> to vector<8x32xf32>
    %cst_119 = arith.constant dense<0.000000e+00> : vector<8x32xf32>
    %299 = tpu.matmul %297, %298, %cst_119 {dimension_numbers = #tpu.dot_dimension_numbers<[1], [0], [0], [1], [0, 0, 1, 1], [], []>} : vector<8x8xf32>, vector<8x32xf32>, vector<8x32xf32> -> vector<8x32xf32>
    %300 = arith.addf %280, %299 : vector<8x32xf32>
    %301 = vector.broadcast %216 : vector<1x32xf32> to vector<8x32xf32>
    %302 = arith.addf %300, %301 : vector<8x32xf32>
    %303 = arith.addf %205, %302 : vector<8x32xf32>
    %c1_120 = arith.constant 1 : index
    %c0_121 = arith.constant 0 : index
    %c0_122 = arith.constant 0 : index
    %304 = vector.load %arg9[%c1_120, %c0_121, %c0_122] : memref<2x1x32xf32, #tpu.memory_space<vmem>>, vector<1x1x32xf32>
    %305 = vector.shape_cast %304 : vector<1x1x32xf32> to vector<1x32xf32>
    %c1_123 = arith.constant 1 : index
    %c0_124 = arith.constant 0 : index
    %c0_125 = arith.constant 0 : index
    %306 = vector.load %arg10[%c1_123, %c0_124, %c0_125] : memref<2x1x32xf32, #tpu.memory_space<vmem>>, vector<1x1x32xf32>
    %307 = vector.shape_cast %306 : vector<1x1x32xf32> to vector<1x32xf32>
    %cst_126 = arith.constant dense<0.000000e+00> : vector<8xf32>
    %308 = vector.multi_reduction <add>, %303, %cst_126 [1] : vector<8x32xf32> to vector<8xf32>
    %309 = vector.shape_cast %308 : vector<8xf32> to vector<8x1xf32>
    %cst_127 = arith.constant 3.200000e+01 : f32
    %310 = vector.broadcast %cst_127 : f32 to vector<8x1xf32>
    %311 = arith.divf %309, %310 : vector<8x1xf32>
    %312 = vector.broadcast %311 : vector<8x1xf32> to vector<8x32xf32>
    %313 = arith.subf %303, %312 : vector<8x32xf32>
    %314 = arith.mulf %313, %313 : vector<8x32xf32>
    %cst_128 = arith.constant dense<0.000000e+00> : vector<8xf32>
    %315 = vector.multi_reduction <add>, %314, %cst_128 [1] : vector<8x32xf32> to vector<8xf32>
    %316 = vector.shape_cast %315 : vector<8xf32> to vector<8x1xf32>
    %cst_129 = arith.constant 3.200000e+01 : f32
    %317 = vector.broadcast %cst_129 : f32 to vector<8x1xf32>
    %318 = arith.divf %316, %317 : vector<8x1xf32>
    %319 = vector.broadcast %311 : vector<8x1xf32> to vector<8x32xf32>
    %320 = arith.subf %303, %319 : vector<8x32xf32>
    %cst_130 = arith.constant 9.99999996E-13 : f32
    %321 = vector.broadcast %cst_130 : f32 to vector<8x1xf32>
    %322 = arith.addf %318, %321 : vector<8x1xf32>
    %323 = math.rsqrt %322 : vector<8x1xf32>
    %324 = vector.broadcast %323 : vector<8x1xf32> to vector<8x32xf32>
    %325 = arith.mulf %320, %324 : vector<8x32xf32>
    %326 = vector.broadcast %305 : vector<1x32xf32> to vector<8x32xf32>
    %327 = arith.mulf %325, %326 : vector<8x32xf32>
    %328 = vector.broadcast %307 : vector<1x32xf32> to vector<8x32xf32>
    %329 = arith.addf %327, %328 : vector<8x32xf32>
    %c1_131 = arith.constant 1 : index
    %c0_132 = arith.constant 0 : index
    %c0_133 = arith.constant 0 : index
    %330 = vector.load %arg11[%c1_131, %c0_132, %c0_133] : memref<2x32x64xf32, #tpu.memory_space<vmem>>, vector<1x32x64xf32>
    %331 = vector.shape_cast %330 : vector<1x32x64xf32> to vector<32x64xf32>
    %cst_134 = arith.constant dense<0.000000e+00> : vector<8x64xf32>
    %332 = tpu.matmul %329, %331, %cst_134 {dimension_numbers = #tpu.dot_dimension_numbers<[1], [0], [0], [1], [0, 0, 1, 1], [], []>} : vector<8x32xf32>, vector<32x64xf32>, vector<8x64xf32> -> vector<8x64xf32>
    %c1_135 = arith.constant 1 : index
    %c0_136 = arith.constant 0 : index
    %c0_137 = arith.constant 0 : index
    %333 = vector.load %arg12[%c1_135, %c0_136, %c0_137] : memref<2x1x64xf32, #tpu.memory_space<vmem>>, vector<1x1x64xf32>
    %334 = vector.shape_cast %333 : vector<1x1x64xf32> to vector<1x64xf32>
    %335 = vector.broadcast %334 : vector<1x64xf32> to vector<8x64xf32>
    %336 = arith.addf %332, %335 : vector<8x64xf32>
    %337 = arith.mulf %336, %336 : vector<8x64xf32>
    %338 = arith.mulf %336, %337 : vector<8x64xf32>
    %cst_138 = arith.constant 4.471500e-02 : f32
    %339 = vector.broadcast %cst_138 : f32 to vector<8x64xf32>
    %340 = arith.mulf %339, %338 : vector<8x64xf32>
    %341 = arith.addf %336, %340 : vector<8x64xf32>
    %cst_139 = arith.constant 0.797884583 : f32
    %342 = vector.broadcast %cst_139 : f32 to vector<8x64xf32>
    %343 = arith.mulf %342, %341 : vector<8x64xf32>
    %344 = math.tanh %343 : vector<8x64xf32>
    %cst_140 = arith.constant 1.000000e+00 : f32
    %345 = vector.broadcast %cst_140 : f32 to vector<8x64xf32>
    %346 = arith.addf %345, %344 : vector<8x64xf32>
    %cst_141 = arith.constant 5.000000e-01 : f32
    %347 = vector.broadcast %cst_141 : f32 to vector<8x64xf32>
    %348 = arith.mulf %347, %346 : vector<8x64xf32>
    %349 = arith.mulf %336, %348 : vector<8x64xf32>
    %c1_142 = arith.constant 1 : index
    %c0_143 = arith.constant 0 : index
    %c0_144 = arith.constant 0 : index
    %350 = vector.load %arg13[%c1_142, %c0_143, %c0_144] : memref<2x64x32xf32, #tpu.memory_space<vmem>>, vector<1x64x32xf32>
    %351 = vector.shape_cast %350 : vector<1x64x32xf32> to vector<64x32xf32>
    %cst_145 = arith.constant dense<0.000000e+00> : vector<8x32xf32>
    %352 = tpu.matmul %349, %351, %cst_145 {dimension_numbers = #tpu.dot_dimension_numbers<[1], [0], [0], [1], [0, 0, 1, 1], [], []>} : vector<8x64xf32>, vector<64x32xf32>, vector<8x32xf32> -> vector<8x32xf32>
    %c1_146 = arith.constant 1 : index
    %c0_147 = arith.constant 0 : index
    %c0_148 = arith.constant 0 : index
    %353 = vector.load %arg14[%c1_146, %c0_147, %c0_148] : memref<2x1x32xf32, #tpu.memory_space<vmem>>, vector<1x1x32xf32>
    %354 = vector.shape_cast %353 : vector<1x1x32xf32> to vector<1x32xf32>
    %355 = vector.broadcast %354 : vector<1x32xf32> to vector<8x32xf32>
    %356 = arith.addf %352, %355 : vector<8x32xf32>
    %357 = arith.addf %329, %356 : vector<8x32xf32>
    %c1_149 = arith.constant 1 : index
    %c0_150 = arith.constant 0 : index
    %c0_151 = arith.constant 0 : index
    %358 = vector.load %arg15[%c1_149, %c0_150, %c0_151] : memref<2x1x32xf32, #tpu.memory_space<vmem>>, vector<1x1x32xf32>
    %359 = vector.shape_cast %358 : vector<1x1x32xf32> to vector<1x32xf32>
    %c1_152 = arith.constant 1 : index
    %c0_153 = arith.constant 0 : index
    %c0_154 = arith.constant 0 : index
    %360 = vector.load %arg16[%c1_152, %c0_153, %c0_154] : memref<2x1x32xf32, #tpu.memory_space<vmem>>, vector<1x1x32xf32>
    %361 = vector.shape_cast %360 : vector<1x1x32xf32> to vector<1x32xf32>
    %cst_155 = arith.constant dense<0.000000e+00> : vector<8xf32>
    %362 = vector.multi_reduction <add>, %357, %cst_155 [1] : vector<8x32xf32> to vector<8xf32>
    %363 = vector.shape_cast %362 : vector<8xf32> to vector<8x1xf32>
    %cst_156 = arith.constant 3.200000e+01 : f32
    %364 = vector.broadcast %cst_156 : f32 to vector<8x1xf32>
    %365 = arith.divf %363, %364 : vector<8x1xf32>
    %366 = vector.broadcast %365 : vector<8x1xf32> to vector<8x32xf32>
    %367 = arith.subf %357, %366 : vector<8x32xf32>
    %368 = arith.mulf %367, %367 : vector<8x32xf32>
    %cst_157 = arith.constant dense<0.000000e+00> : vector<8xf32>
    %369 = vector.multi_reduction <add>, %368, %cst_157 [1] : vector<8x32xf32> to vector<8xf32>
    %370 = vector.shape_cast %369 : vector<8xf32> to vector<8x1xf32>
    %cst_158 = arith.constant 3.200000e+01 : f32
    %371 = vector.broadcast %cst_158 : f32 to vector<8x1xf32>
    %372 = arith.divf %370, %371 : vector<8x1xf32>
    %373 = vector.broadcast %365 : vector<8x1xf32> to vector<8x32xf32>
    %374 = arith.subf %357, %373 : vector<8x32xf32>
    %cst_159 = arith.constant 9.99999996E-13 : f32
    %375 = vector.broadcast %cst_159 : f32 to vector<8x1xf32>
    %376 = arith.addf %372, %375 : vector<8x1xf32>
    %377 = math.rsqrt %376 : vector<8x1xf32>
    %378 = vector.broadcast %377 : vector<8x1xf32> to vector<8x32xf32>
    %379 = arith.mulf %374, %378 : vector<8x32xf32>
    %380 = vector.broadcast %359 : vector<1x32xf32> to vector<8x32xf32>
    %381 = arith.mulf %379, %380 : vector<8x32xf32>
    %382 = vector.broadcast %361 : vector<1x32xf32> to vector<8x32xf32>
    %383 = arith.addf %381, %382 : vector<8x32xf32>
    %384 = vector.extract_strided_slice %383 {offsets = [0, 0], sizes = [1, 32], strides = [1, 1]} : vector<8x32xf32> to vector<1x32xf32>
    %c0_160 = arith.constant 0 : index
    %c0_161 = arith.constant 0 : index
    %385 = vector.load %arg17[%c0_160, %c0_161] : memref<32x32xf32, #tpu.memory_space<vmem>>, vector<32x32xf32>
    %cst_162 = arith.constant dense<0.000000e+00> : vector<1x32xf32>
    %386 = tpu.matmul %384, %385, %cst_162 {dimension_numbers = #tpu.dot_dimension_numbers<[1], [0], [0], [1], [0, 0, 1, 1], [], []>} : vector<1x32xf32>, vector<32x32xf32>, vector<1x32xf32> -> vector<1x32xf32>
    %c0_163 = arith.constant 0 : index
    %c0_164 = arith.constant 0 : index
    %387 = vector.load %arg18[%c0_163, %c0_164] : memref<1x32xf32, #tpu.memory_space<vmem>>, vector<1x32xf32>
    %388 = arith.addf %386, %387 : vector<1x32xf32>
    %389 = math.tanh %388 : vector<1x32xf32>
    %c0_165 = arith.constant 0 : index
    %c0_166 = arith.constant 0 : index
    %c0_167 = arith.constant 0 : index
    %390 = vector.load %arg19[%c0_165, %c0_166, %c0_167] : memref<1x1x32xf32, #tpu.memory_space<vmem>>, vector<1x1x32xf32>
    %391 = vector.shape_cast %390 : vector<1x1x32xf32> to vector<1x32xf32>
    %392 = vector.shape_cast %389 : vector<1x32xf32> to vector<1x1x32xf32>
    tpu.vector_store %arg19[%c0_165, %c0_166, %c0_167], %392 {strides = array<i32>} : memref<1x1x32xf32, #tpu.memory_space<vmem>>, vector<1x1x32xf32>,
    return
  }
  func.func @transform_0(%arg0: i32) -> (i32, i32, i32) {
    %c0_i32 = arith.constant 0 : i32
    %c0_i32_0 = arith.constant 0 : i32
    %c0_i32_1 = arith.constant 0 : i32
    return %arg0, %c0_i32, %c0_i32_0 : i32, i32, i32
  }
  func.func @transform_1(%arg0: i32) -> (i32, i32, i32) {
    %c0_i32 = arith.constant 0 : i32
    %c0_i32_0 = arith.constant 0 : i32
    %c0_i32_1 = arith.constant 0 : i32
    return %arg0, %c0_i32, %c0_i32_0 : i32, i32, i32
  }
  func.func @transform_2(%arg0: i32) -> (i32, i32) {
    %c0_i32 = arith.constant 0 : i32
    %c0_i32_0 = arith.constant 0 : i32
    %c0_i32_1 = arith.constant 0 : i32
    return %c0_i32, %c0_i32_0 : i32, i32
  }
  func.func @transform_3(%arg0: i32) -> (i32, i32) {
    %c0_i32 = arith.constant 0 : i32
    %c0_i32_0 = arith.constant 0 : i32
    %c0_i32_1 = arith.constant 0 : i32
    return %c0_i32, %c0_i32_0 : i32, i32
  }
  func.func @transform_4(%arg0: i32) -> (i32, i32, i32) {
    %c0_i32 = arith.constant 0 : i32
    %c0_i32_0 = arith.constant 0 : i32
    %c0_i32_1 = arith.constant 0 : i32
    %c0_i32_2 = arith.constant 0 : i32
    return %c0_i32, %c0_i32_0, %c0_i32_1 : i32, i32, i32
  }
  func.func @transform_5(%arg0: i32) -> (i32, i32, i32) {
    %c0_i32 = arith.constant 0 : i32
    %c0_i32_0 = arith.constant 0 : i32
    %c0_i32_1 = arith.constant 0 : i32
    %c0_i32_2 = arith.constant 0 : i32
    return %c0_i32, %c0_i32_0, %c0_i32_1 : i32, i32, i32
  }
  func.func @transform_6(%arg0: i32) -> (i32, i32, i32) {
    %c0_i32 = arith.constant 0 : i32
    %c0_i32_0 = arith.constant 0 : i32
    %c0_i32_1 = arith.constant 0 : i32
    %c0_i32_2 = arith.constant 0 : i32
    return %c0_i32, %c0_i32_0, %c0_i32_1 : i32, i32, i32
  }
  func.func @transform_7(%arg0: i32) -> (i32, i32, i32) {
    %c0_i32 = arith.constant 0 : i32
    %c0_i32_0 = arith.constant 0 : i32
    %c0_i32_1 = arith.constant 0 : i32
    %c0_i32_2 = arith.constant 0 : i32
    return %c0_i32, %c0_i32_0, %c0_i32_1 : i32, i32, i32
  }
  func.func @transform_8(%arg0: i32) -> (i32, i32, i32) {
    %c0_i32 = arith.constant 0 : i32
    %c0_i32_0 = arith.constant 0 : i32
    %c0_i32_1 = arith.constant 0 : i32
    %c0_i32_2 = arith.constant 0 : i32
    return %c0_i32, %c0_i32_0, %c0_i32_1 : i32, i32, i32
  }
  func.func @transform_9(%arg0: i32) -> (i32, i32, i32) {
    %c0_i32 = arith.constant 0 : i32
    %c0_i32_0 = arith.constant 0 : i32
    %c0_i32_1 = arith.constant 0 : i32
    %c0_i32_2 = arith.constant 0 : i32
    return %c0_i32, %c0_i32_0, %c0_i32_1 : i32, i32, i32
  }
  func.func @transform_10(%arg0: i32) -> (i32, i32, i32) {
    %c0_i32 = arith.constant 0 : i32
    %c0_i32_0 = arith.constant 0 : i32
    %c0_i32_1 = arith.constant 0 : i32
    %c0_i32_2 = arith.constant 0 : i32
    return %c0_i32, %c0_i32_0, %c0_i32_1 : i32, i32, i32
  }
  func.func @transform_11(%arg0: i32) -> (i32, i32, i32) {
    %c0_i32 = arith.constant 0 : i32
    %c0_i32_0 = arith.constant 0 : i32
    %c0_i32_1 = arith.constant 0 : i32
    %c0_i32_2 = arith.constant 0 : i32
    return %c0_i32, %c0_i32_0, %c0_i32_1 : i32, i32, i32
  }
  func.func @transform_12(%arg0: i32) -> (i32, i32, i32) {
    %c0_i32 = arith.constant 0 : i32
    %c0_i32_0 = arith.constant 0 : i32
    %c0_i32_1 = arith.constant 0 : i32
    %c0_i32_2 = arith.constant 0 : i32
    return %c0_i32, %c0_i32_0, %c0_i32_1 : i32, i32, i32
  }
  func.func @transform_13(%arg0: i32) -> (i32, i32, i32) {
    %c0_i32 = arith.constant 0 : i32
    %c0_i32_0 = arith.constant 0 : i32
    %c0_i32_1 = arith.constant 0 : i32
    %c0_i32_2 = arith.constant 0 : i32
    return %c0_i32, %c0_i32_0, %c0_i32_1 : i32, i32, i32
  }
  func.func @transform_14(%arg0: i32) -> (i32, i32, i32) {
    %c0_i32 = arith.constant 0 : i32
    %c0_i32_0 = arith.constant 0 : i32
    %c0_i32_1 = arith.constant 0 : i32
    %c0_i32_2 = arith.constant 0 : i32
    return %c0_i32, %c0_i32_0, %c0_i32_1 : i32, i32, i32
  }
  func.func @transform_15(%arg0: i32) -> (i32, i32, i32) {
    %c0_i32 = arith.constant 0 : i32
    %c0_i32_0 = arith.constant 0 : i32
    %c0_i32_1 = arith.constant 0 : i32
    %c0_i32_2 = arith.constant 0 : i32
    return %c0_i32, %c0_i32_0, %c0_i32_1 : i32, i32, i32
  }
  func.func @transform_16(%arg0: i32) -> (i32, i32) {
    %c0_i32 = arith.constant 0 : i32
    %c0_i32_0 = arith.constant 0 : i32
    %c0_i32_1 = arith.constant 0 : i32
    return %c0_i32, %c0_i32_0 : i32, i32
  }
  func.func @transform_17(%arg0: i32) -> (i32, i32) {
    %c0_i32 = arith.constant 0 : i32
    %c0_i32_0 = arith.constant 0 : i32
    %c0_i32_1 = arith.constant 0 : i32
    return %c0_i32, %c0_i32_0 : i32, i32
  }
  func.func @transform_18(%arg0: i32) -> (i32, i32, i32) {
    %c0_i32 = arith.constant 0 : i32
    %c0_i32_0 = arith.constant 0 : i32
    %c0_i32_1 = arith.constant 0 : i32
    return %arg0, %c0_i32, %c0_i32_0 : i32, i32, i32
  }
}

</mosaic_0001>

<llo_original>
// kernel: vit_bert_overlap.3
$region0: #{vit_bert_overlap.3}
  #allocation0 [shape = 'u32[]', space=smem, size = 0x4, offset = 0x4, fixed_abs, tag = 'smem constant byte address 0x4 - core index']
  #allocation1 [shape = 'u32[144,128]{1,0:T(1,128)}', space=vmem, size = 0x12000, scoped, tag = 'internal scratch']
  %s0 = inlined_call_operand.vmem [shape: f32[2,8,32], index: 0, kind: input, shape index: {}]
  %s1 = inlined_call_operand.vmem [shape: f32[2,1,8], index: 1, kind: input, shape index: {}]
  %s2 = inlined_call_operand.vmem [shape: f32[1,32], index: 2, kind: input, shape index: {}]
  %s3 = inlined_call_operand.vmem [shape: f32[1,32], index: 3, kind: input, shape index: {}]
  %s4 = inlined_call_operand.vmem [shape: f32[2,32,96], index: 4, kind: input, shape index: {}]
  %s5 = inlined_call_operand.vmem [shape: f32[2,1,96], index: 5, kind: input, shape index: {}]
  %s6 = inlined_call_operand.vmem [shape: f32[2,32,32], index: 6, kind: input, shape index: {}]
  %s7 = inlined_call_operand.vmem [shape: f32[2,1,32], index: 7, kind: input, shape index: {}]
  %s8 = inlined_call_operand.vmem [shape: f32[2,1,32], index: 8, kind: input, shape index: {}]
  %s9 = inlined_call_operand.vmem [shape: f32[2,1,32], index: 9, kind: input, shape index: {}]
  %s10 = inlined_call_operand.vmem [shape: f32[2,32,64], index: 10, kind: input, shape index: {}]
  %s11 = inlined_call_operand.vmem [shape: f32[2,1,64], index: 11, kind: input, shape index: {}]
  %s12 = inlined_call_operand.vmem [shape: f32[2,64,32], index: 12, kind: input, shape index: {}]
  %s13 = inlined_call_operand.vmem [shape: f32[2,1,32], index: 13, kind: input, shape index: {}]
  %s14 = inlined_call_operand.vmem [shape: f32[2,1,32], index: 14, kind: input, shape index: {}]
  %s15 = inlined_call_operand.vmem [shape: f32[2,1,32], index: 15, kind: input, shape index: {}]
  %s16 = inlined_call_operand.vmem [shape: f32[32,32], index: 16, kind: input, shape index: {}]
  %s17 = inlined_call_operand.vmem [shape: f32[1,32], index: 17, kind: input, shape index: {}]
  %s18 = inlined_call_operand.hbm [shape: f32[2,1,32], index: 18, kind: output, shape index: {}]
  %s19 = sld [smem:[#allocation0]]
  $region105: #{vit_bert_overlap.3} parent=0
    _
  %s21 = ssub.s32 1, %s19
  %s22 = scalar_select 0, %s21, %s19
  $region1: #{vit_bert_overlap.3} parent=0
    #allocation2 [shape = 'u8[1024]{0}', space=vmem, size = 0x400, scoped, tag = 'output window, operand 0']
    #allocation3 [shape = 's32[2]{0}', space=sflag, size = 0x8, scoped, tag = 'scoped memory for vit_bert_overlap.3']
    %23 = vsyncpa [#allocation3], 0
    %s24 = scalar_lea.sflag [#allocation3], 1
    %25 = vsyncpa %s24, 0
    loop: start=0, step=1, limit=4
    $region2: #{vit_bert_overlap.3} parent=1 // loop_pre_header
      _
    $region3: #{vit_bert_overlap.3} parent=1 // loop_header
      %s27 = sphi 0, %s31
      %p28 = scmp.ge.s32.totalorder %s27, 4
      %s37 = sphi 0, %s39
      %s40 = sphi 0, %s37
      %s41 = sphi 0, %s40
      %s57 = sphi 0, %s41
      %s63 = sphi 0, %s65
      %s66 = sphi 0, %s63
      %s67 = sphi 0, %s66
      %s83 = sphi 0, %s67
      %s87 = sphi 0, %s87
      %s89 = sphi 0, %s87
      %s90 = sphi 0, %s89
      %s104 = sphi 0, %s90
      %s108 = sphi 0, %s108
      %s110 = sphi 0, %s108
      %s111 = sphi 0, %s110
      %s125 = sphi 0, %s111
      %s129 = sphi 0, %s129
      %s131 = sphi 0, %s129
      %s132 = sphi 0, %s131
      %s146 = sphi 0, %s132
      %s150 = sphi 0, %s150
      %s152 = sphi 0, %s150
      %s153 = sphi 0, %s152
      %s167 = sphi 0, %s153
      %s171 = sphi 0, %s171
      %s173 = sphi 0, %s171
      %s174 = sphi 0, %s173
      %s188 = sphi 0, %s174
      %s192 = sphi 0, %s192
      %s194 = sphi 0, %s192
      %s195 = sphi 0, %s194
      %s209 = sphi 0, %s195
      %s213 = sphi 0, %s213
      %s215 = sphi 0, %s213
      %s216 = sphi 0, %s215
      %s230 = sphi 0, %s216
      %s234 = sphi 0, %s234
      %s236 = sphi 0, %s234
      %s237 = sphi 0, %s236
      %s251 = sphi 0, %s237
      %s255 = sphi 0, %s255
      %s257 = sphi 0, %s255
      %s258 = sphi 0, %s257
      %s272 = sphi 0, %s258
      %s276 = sphi 0, %s276
      %s278 = sphi 0, %s276
      %s279 = sphi 0, %s278
      %s293 = sphi 0, %s279
      %s297 = sphi 0, %s297
      %s299 = sphi 0, %s297
      %s300 = sphi 0, %s299
      %s314 = sphi 0, %s300
      %s318 = sphi 0, %s318
      %s320 = sphi 0, %s318
      %s321 = sphi 0, %s320
      %s335 = sphi 0, %s321
      %s339 = sphi 0, %s339
      %s341 = sphi 0, %s339
      %s342 = sphi 0, %s341
      %s356 = sphi 0, %s342
      %s360 = sphi 0, %s360
      %s362 = sphi 0, %s360
      %s363 = sphi 0, %s362
      %s377 = sphi 0, %s363
      %s381 = sphi 0, %s381
      %s383 = sphi 0, %s381
      %s384 = sphi 0, %s383
      %s398 = sphi 0, %s384
      %s402 = sphi 0, %s402
      %s404 = sphi 0, %s402
      %s405 = sphi 0, %s404
      %s419 = sphi 0, %s405
      %s425 = sphi 0, %s427
      %s428 = sphi 0, %s425
      %s429 = sphi 0, %s428
      %s445 = sphi 0, %s429
    $region4: #{vit_bert_overlap.3} parent=1 // loop_header_branch
      %30 = sbr.rel (%p28) target = $region8
    $region5: #{vit_bert_overlap.3} parent=1 // loop_body
      %s32 = ssub.s32 %s27, 1
      %s33 = ssub.s32 %s27, 2
      %s34 = sadd.s32 %s27, 1
      %s35 = ssub.s32 %s27, %s34
      %p36 = scmp.eq.s32.totalorder %s35, 0
      %s38 = sadd.s32 %s37, 1
      %s39 = scalar_select %p36, %s37, %s38
      %p42 = pneg %p36
      %p43 = scmp.eq.s32.totalorder %s27, 1
      %p44 = por %p42, %p43
      %p45 = scmp.ne.s32.totalorder %s37, %s40
      %p46 = scmp.eq.s32.totalorder %s27, 0
      %p47 = por %p45, %p46
      %p48 = scmp.ne.s32.totalorder %s37, %s40
      %p49 = scmp.eq.s32.totalorder %s32, 1
      %p50 = por %p48, %p49
      %p51 = scmp.ne.s32.totalorder %s40, %s41
      %p52 = scmp.eq.s32.totalorder %s32, 0
      %p53 = por %p51, %p52
      %p54 = scmp.ne.s32.totalorder %s40, %s41
      %p55 = scmp.eq.s32.totalorder %s33, 1
      %p56 = por %p54, %p55
      %p58 = scmp.ne.s32.totalorder %s41, %s57
      %p59 = scmp.eq.s32.totalorder %s33, 0
      %p60 = por %p58, %p59
      %s61 = ssub.s32 %s27, %s34
      %p62 = scmp.eq.s32.totalorder %s61, 0
      %s64 = sadd.s32 %s63, 1
      %s65 = scalar_select %p62, %s63, %s64
      %p68 = pneg %p62
      %p69 = scmp.eq.s32.totalorder %s27, 1
      %p70 = por %p68, %p69
      %p71 = scmp.ne.s32.totalorder %s63, %s66
      %p72 = scmp.eq.s32.totalorder %s27, 0
      %p73 = por %p71, %p72
      %p74 = scmp.ne.s32.totalorder %s63, %s66
      %p75 = scmp.eq.s32.totalorder %s32, 1
      %p76 = por %p74, %p75
      %p77 = scmp.ne.s32.totalorder %s66, %s67
      %p78 = scmp.eq.s32.totalorder %s32, 0
      %p79 = por %p77, %p78
      %p80 = scmp.ne.s32.totalorder %s66, %s67
      %p81 = scmp.eq.s32.totalorder %s33, 1
      %p82 = por %p80, %p81
      %p84 = scmp.ne.s32.totalorder %s67, %s83
      %p85 = scmp.eq.s32.totalorder %s33, 0
      %p86 = por %p84, %p85
      %s88 = sadd.s32 %s87, 1
      %p91 = scmp.eq.s32.totalorder %s27, 1
      %p92 = scmp.ne.s32.totalorder %s87, %s89
      %p93 = scmp.eq.s32.totalorder %s27, 0
      %p94 = por %p92, %p93
      %p95 = scmp.ne.s32.totalorder %s87, %s89
      %p96 = scmp.eq.s32.totalorder %s32, 1
      %p97 = por %p95, %p96
      %p98 = scmp.ne.s32.totalorder %s89, %s90
      %p99 = scmp.eq.s32.totalorder %s32, 0
      %p100 = por %p98, %p99
      %p101 = scmp.ne.s32.totalorder %s89, %s90
      %p102 = scmp.eq.s32.totalorder %s33, 1
      %p103 = por %p101, %p102
      %p105 = scmp.ne.s32.totalorder %s90, %s104
      %p106 = scmp.eq.s32.totalorder %s33, 0
      %p107 = por %p105, %p106
      %s109 = sadd.s32 %s108, 1
      %p112 = scmp.eq.s32.totalorder %s27, 1
      %p113 = scmp.ne.s32.totalorder %s108, %s110
      %p114 = scmp.eq.s32.totalorder %s27, 0
      %p115 = por %p113, %p114
      %p116 = scmp.ne.s32.totalorder %s108, %s110
      %p117 = scmp.eq.s32.totalorder %s32, 1
      %p118 = por %p116, %p117
      %p119 = scmp.ne.s32.totalorder %s110, %s111
      %p120 = scmp.eq.s32.totalorder %s32, 0
      %p121 = por %p119, %p120
      %p122 = scmp.ne.s32.totalorder %s110, %s111
      %p123 = scmp.eq.s32.totalorder %s33, 1
      %p124 = por %p122, %p123
      %p126 = scmp.ne.s32.totalorder %s111, %s125
      %p127 = scmp.eq.s32.totalorder %s33, 0
      %p128 = por %p126, %p127
      %s130 = sadd.s32 %s129, 1
      %p133 = scmp.eq.s32.totalorder %s27, 1
      %p134 = scmp.ne.s32.totalorder %s129, %s131
      %p135 = scmp.eq.s32.totalorder %s27, 0
      %p136 = por %p134, %p135
      %p137 = scmp.ne.s32.totalorder %s129, %s131
      %p138 = scmp.eq.s32.totalorder %s32, 1
      %p139 = por %p137, %p138
      %p140 = scmp.ne.s32.totalorder %s131, %s132
      %p141 = scmp.eq.s32.totalorder %s32, 0
      %p142 = por %p140, %p141
      %p143 = scmp.ne.s32.totalorder %s131, %s132
      %p144 = scmp.eq.s32.totalorder %s33, 1
      %p145 = por %p143, %p144
      %p147 = scmp.ne.s32.totalorder %s132, %s146
      %p148 = scmp.eq.s32.totalorder %s33, 0
      %p149 = por %p147, %p148
      %s151 = sadd.s32 %s150, 1
      %p154 = scmp.eq.s32.totalorder %s27, 1
      %p155 = scmp.ne.s32.totalorder %s150, %s152
      %p156 = scmp.eq.s32.totalorder %s27, 0
      %p157 = por %p155, %p156
      %p158 = scmp.ne.s32.totalorder %s150, %s152
      %p159 = scmp.eq.s32.totalorder %s32, 1
      %p160 = por %p158, %p159
      %p161 = scmp.ne.s32.totalorder %s152, %s153
      %p162 = scmp.eq.s32.totalorder %s32, 0
      %p163 = por %p161, %p162
      %p164 = scmp.ne.s32.totalorder %s152, %s153
      %p165 = scmp.eq.s32.totalorder %s33, 1
      %p166 = por %p164, %p165
      %p168 = scmp.ne.s32.totalorder %s153, %s167
      %p169 = scmp.eq.s32.totalorder %s33, 0
      %p170 = por %p168, %p169
      %s172 = sadd.s32 %s171, 1
      %p175 = scmp.eq.s32.totalorder %s27, 1
      %p176 = scmp.ne.s32.totalorder %s171, %s173
      %p177 = scmp.eq.s32.totalorder %s27, 0
      %p178 = por %p176, %p177
      %p179 = scmp.ne.s32.totalorder %s171, %s173
      %p180 = scmp.eq.s32.totalorder %s32, 1
      %p181 = por %p179, %p180
      %p182 = scmp.ne.s32.totalorder %s173, %s174
      %p183 = scmp.eq.s32.totalorder %s32, 0
      %p184 = por %p182, %p183
      %p185 = scmp.ne.s32.totalorder %s173, %s174
      %p186 = scmp.eq.s32.totalorder %s33, 1
      %p187 = por %p185, %p186
      %p189 = scmp.ne.s32.totalorder %s174, %s188
      %p190 = scmp.eq.s32.totalorder %s33, 0
      %p191 = por %p189, %p190
      %s193 = sadd.s32 %s192, 1
      %p196 = scmp.eq.s32.totalorder %s27, 1
      %p197 = scmp.ne.s32.totalorder %s192, %s194
      %p198 = scmp.eq.s32.totalorder %s27, 0
      %p199 = por %p197, %p198
      %p200 = scmp.ne.s32.totalorder %s192, %s194
      %p201 = scmp.eq.s32.totalorder %s32, 1
      %p202 = por %p200, %p201
      %p203 = scmp.ne.s32.totalorder %s194, %s195
      %p204 = scmp.eq.s32.totalorder %s32, 0
      %p205 = por %p203, %p204
      %p206 = scmp.ne.s32.totalorder %s194, %s195
      %p207 = scmp.eq.s32.totalorder %s33, 1
      %p208 = por %p206, %p207
      %p210 = scmp.ne.s32.totalorder %s195, %s209
      %p211 = scmp.eq.s32.totalorder %s33, 0
      %p212 = por %p210, %p211
      %s214 = sadd.s32 %s213, 1
      %p217 = scmp.eq.s32.totalorder %s27, 1
      %p218 = scmp.ne.s32.totalorder %s213, %s215
      %p219 = scmp.eq.s32.totalorder %s27, 0
      %p220 = por %p218, %p219
      %p221 = scmp.ne.s32.totalorder %s213, %s215
      %p222 = scmp.eq.s32.totalorder %s32, 1
      %p223 = por %p221, %p222
      %p224 = scmp.ne.s32.totalorder %s215, %s216
      %p225 = scmp.eq.s32.totalorder %s32, 0
      %p226 = por %p224, %p225
      %p227 = scmp.ne.s32.totalorder %s215, %s216
      %p228 = scmp.eq.s32.totalorder %s33, 1
      %p229 = por %p227, %p228
      %p231 = scmp.ne.s32.totalorder %s216, %s230
      %p232 = scmp.eq.s32.totalorder %s33, 0
      %p233 = por %p231, %p232
      %s235 = sadd.s32 %s234, 1
      %p238 = scmp.eq.s32.totalorder %s27, 1
      %p239 = scmp.ne.s32.totalorder %s234, %s236
      %p240 = scmp.eq.s32.totalorder %s27, 0
      %p241 = por %p239, %p240
      %p242 = scmp.ne.s32.totalorder %s234, %s236
      %p243 = scmp.eq.s32.totalorder %s32, 1
      %p244 = por %p242, %p243
      %p245 = scmp.ne.s32.totalorder %s236, %s237
      %p246 = scmp.eq.s32.totalorder %s32, 0
      %p247 = por %p245, %p246
      %p248 = scmp.ne.s32.totalorder %s236, %s237
      %p249 = scmp.eq.s32.totalorder %s33, 1
      %p250 = por %p248, %p249
      %p252 = scmp.ne.s32.totalorder %s237, %s251
      %p253 = scmp.eq.s32.totalorder %s33, 0
      %p254 = por %p252, %p253
      %s256 = sadd.s32 %s255, 1
      %p259 = scmp.eq.s32.totalorder %s27, 1
      %p260 = scmp.ne.s32.totalorder %s255, %s257
      %p261 = scmp.eq.s32.totalorder %s27, 0
      %p262 = por %p260, %p261
      %p263 = scmp.ne.s32.totalorder %s255, %s257
      %p264 = scmp.eq.s32.totalorder %s32, 1
      %p265 = por %p263, %p264
      %p266 = scmp.ne.s32.totalorder %s257, %s258
      %p267 = scmp.eq.s32.totalorder %s32, 0
      %p268 = por %p266, %p267
      %p269 = scmp.ne.s32.totalorder %s257, %s258
      %p270 = scmp.eq.s32.totalorder %s33, 1
      %p271 = por %p269, %p270
      %p273 = scmp.ne.s32.totalorder %s258, %s272
      %p274 = scmp.eq.s32.totalorder %s33, 0
      %p275 = por %p273, %p274
      %s277 = sadd.s32 %s276, 1
      %p280 = scmp.eq.s32.totalorder %s27, 1
      %p281 = scmp.ne.s32.totalorder %s276, %s278
      %p282 = scmp.eq.s32.totalorder %s27, 0
      %p283 = por %p281, %p282
      %p284 = scmp.ne.s32.totalorder %s276, %s278
      %p285 = scmp.eq.s32.totalorder %s32, 1
      %p286 = por %p284, %p285
      %p287 = scmp.ne.s32.totalorder %s278, %s279
      %p288 = scmp.eq.s32.totalorder %s32, 0
      %p289 = por %p287, %p288
      %p290 = scmp.ne.s32.totalorder %s278, %s279
      %p291 = scmp.eq.s32.totalorder %s33, 1
      %p292 = por %p290, %p291
      %p294 = scmp.ne.s32.totalorder %s279, %s293
      %p295 = scmp.eq.s32.totalorder %s33, 0
      %p296 = por %p294, %p295
      %s298 = sadd.s32 %s297, 1
      %p301 = scmp.eq.s32.totalorder %s27, 1
      %p302 = scmp.ne.s32.totalorder %s297, %s299
      %p303 = scmp.eq.s32.totalorder %s27, 0
      %p304 = por %p302, %p303
      %p305 = scmp.ne.s32.totalorder %s297, %s299
      %p306 = scmp.eq.s32.totalorder %s32, 1
      %p307 = por %p305, %p306
      %p308 = scmp.ne.s32.totalorder %s299, %s300
      %p309 = scmp.eq.s32.totalorder %s32, 0
      %p310 = por %p308, %p309
      %p311 = scmp.ne.s32.totalorder %s299, %s300
      %p312 = scmp.eq.s32.totalorder %s33, 1
      %p313 = por %p311, %p312
      %p315 = scmp.ne.s32.totalorder %s300, %s314
      %p316 = scmp.eq.s32.totalorder %s33, 0
      %p317 = por %p315, %p316
      %s319 = sadd.s32 %s318, 1
      %p322 = scmp.eq.s32.totalorder %s27, 1
      %p323 = scmp.ne.s32.totalorder %s318, %s320
      %p324 = scmp.eq.s32.totalorder %s27, 0
      %p325 = por %p323, %p324
      %p326 = scmp.ne.s32.totalorder %s318, %s320
      %p327 = scmp.eq.s32.totalorder %s32, 1
      %p328 = por %p326, %p327
      %p329 = scmp.ne.s32.totalorder %s320, %s321
      %p330 = scmp.eq.s32.totalorder %s32, 0
      %p331 = por %p329, %p330
      %p332 = scmp.ne.s32.totalorder %s320, %s321
      %p333 = scmp.eq.s32.totalorder %s33, 1
      %p334 = por %p332, %p333
      %p336 = scmp.ne.s32.totalorder %s321, %s335
      %p337 = scmp.eq.s32.totalorder %s33, 0
      %p338 = por %p336, %p337
      %s340 = sadd.s32 %s339, 1
      %p343 = scmp.eq.s32.totalorder %s27, 1
      %p344 = scmp.ne.s32.totalorder %s339, %s341
      %p345 = scmp.eq.s32.totalorder %s27, 0
      %p346 = por %p344, %p345
      %p347 = scmp.ne.s32.totalorder %s339, %s341
      %p348 = scmp.eq.s32.totalorder %s32, 1
      %p349 = por %p347, %p348
      %p350 = scmp.ne.s32.totalorder %s341, %s342
      %p351 = scmp.eq.s32.totalorder %s32, 0
      %p352 = por %p350, %p351
      %p353 = scmp.ne.s32.totalorder %s341, %s342
      %p354 = scmp.eq.s32.totalorder %s33, 1
      %p355 = por %p353, %p354
      %p357 = scmp.ne.s32.totalorder %s342, %s356
      %p358 = scmp.eq.s32.totalorder %s33, 0
      %p359 = por %p357, %p358
      %s361 = sadd.s32 %s360, 1
      %p364 = scmp.eq.s32.totalorder %s27, 1
      %p365 = scmp.ne.s32.totalorder %s360, %s362
      %p366 = scmp.eq.s32.totalorder %s27, 0
      %p367 = por %p365, %p366
      %p368 = scmp.ne.s32.totalorder %s360, %s362
      %p369 = scmp.eq.s32.totalorder %s32, 1
      %p370 = por %p368, %p369
      %p371 = scmp.ne.s32.totalorder %s362, %s363
      %p372 = scmp.eq.s32.totalorder %s32, 0
      %p373 = por %p371, %p372
      %p374 = scmp.ne.s32.totalorder %s362, %s363
      %p375 = scmp.eq.s32.totalorder %s33, 1
      %p376 = por %p374, %p375
      %p378 = scmp.ne.s32.totalorder %s363, %s377
      %p379 = scmp.eq.s32.totalorder %s33, 0
      %p380 = por %p378, %p379
      %s382 = sadd.s32 %s381, 1
      %p385 = scmp.eq.s32.totalorder %s27, 1
      %p386 = scmp.ne.s32.totalorder %s381, %s383
      %p387 = scmp.eq.s32.totalorder %s27, 0
      %p388 = por %p386, %p387
      %p389 = scmp.ne.s32.totalorder %s381, %s383
      %p390 = scmp.eq.s32.totalorder %s32, 1
      %p391 = por %p389, %p390
      %p392 = scmp.ne.s32.totalorder %s383, %s384
      %p393 = scmp.eq.s32.totalorder %s32, 0
      %p394 = por %p392, %p393
      %p395 = scmp.ne.s32.totalorder %s383, %s384
      %p396 = scmp.eq.s32.totalorder %s33, 1
      %p397 = por %p395, %p396
      %p399 = scmp.ne.s32.totalorder %s384, %s398
      %p400 = scmp.eq.s32.totalorder %s33, 0
      %p401 = por %p399, %p400
      %s403 = sadd.s32 %s402, 1
      %p406 = scmp.eq.s32.totalorder %s27, 1
      %p407 = scmp.ne.s32.totalorder %s402, %s404
      %p408 = scmp.eq.s32.totalorder %s27, 0
      %p409 = por %p407, %p408
      %p410 = scmp.ne.s32.totalorder %s402, %s404
      %p411 = scmp.eq.s32.totalorder %s32, 1
      %p412 = por %p410, %p411
      %p413 = scmp.ne.s32.totalorder %s404, %s405
      %p414 = scmp.eq.s32.totalorder %s32, 0
      %p415 = por %p413, %p414
      %p416 = scmp.ne.s32.totalorder %s404, %s405
      %p417 = scmp.eq.s32.totalorder %s33, 1
      %p418 = por %p416, %p417
      %p420 = scmp.ne.s32.totalorder %s405, %s419
      %p421 = scmp.eq.s32.totalorder %s33, 0
      %p422 = por %p420, %p421
      %s423 = ssub.s32 %s27, %s34
      %p424 = scmp.eq.s32.totalorder %s423, 0
      %s426 = sadd.s32 %s425, 1
      %s427 = scalar_select %p424, %s425, %s426
      %p430 = pneg %p424
      %p431 = scmp.eq.s32.totalorder %s27, 1
      %p432 = por %p430, %p431
      %p433 = scmp.ne.s32.totalorder %s425, %s428
      %p434 = scmp.eq.s32.totalorder %s27, 0
      %p435 = por %p433, %p434
      %p436 = scmp.ne.s32.totalorder %s425, %s428
      %p437 = scmp.eq.s32.totalorder %s32, 1
      %p438 = por %p436, %p437
      %p439 = scmp.ne.s32.totalorder %s428, %s429
      %p440 = scmp.eq.s32.totalorder %s32, 0
      %p441 = por %p439, %p440
      %p442 = scmp.ne.s32.totalorder %s428, %s429
      %p443 = scmp.eq.s32.totalorder %s33, 1
      %p444 = por %p442, %p443
      %p446 = scmp.ne.s32.totalorder %s429, %s445
      %p447 = scmp.eq.s32.totalorder %s33, 0
      %p448 = por %p446, %p447
      %p449 = scmp.le.s32.totalorder 1, %s27
      %p450 = scmp.lt.s32.totalorder %s27, 3
      %p451 = pnand %p449, %p450
      %p452 = pneg %p451
      // Predicated region
      $region9: #{vit_bert_overlap.3} parent=5 // pred_check
        _
      $region10: #{vit_bert_overlap.3} parent=5 // pred_check_branch
        %454 = sbr.rel (%p451) target = $region12
      $region11: #{vit_bert_overlap.3} parent=5 // pred_region
        %s455 = ssub.s32 %s27, 1
        // Predicated region
        $region13: #{vit_bert_overlap.3} parent=11 // pred_check
          %p456 = pneg %p100
        $region14: #{vit_bert_overlap.3} parent=11 // pred_check_branch
          %458 = sbr.rel (%p456) target = $region16
        $region15: #{vit_bert_overlap.3} parent=11 // pred_region
          _
        $region16: #{vit_bert_overlap.3} parent=11 // pred_fallthru
          _
        // Predicated region
        $region17: #{vit_bert_overlap.3} parent=11 // pred_check
          %p459 = pneg %p121
        $region18: #{vit_bert_overlap.3} parent=11 // pred_check_branch
          %461 = sbr.rel (%p459) target = $region20
        $region19: #{vit_bert_overlap.3} parent=11 // pred_region
          _
        $region20: #{vit_bert_overlap.3} parent=11 // pred_fallthru
          _
        // Predicated region
        $region21: #{vit_bert_overlap.3} parent=11 // pred_check
          %p462 = pneg %p142
        $region22: #{vit_bert_overlap.3} parent=11 // pred_check_branch
          %464 = sbr.rel (%p462) target = $region24
        $region23: #{vit_bert_overlap.3} parent=11 // pred_region
          _
        $region24: #{vit_bert_overlap.3} parent=11 // pred_fallthru
          _
        // Predicated region
        $region25: #{vit_bert_overlap.3} parent=11 // pred_check
          %p465 = pneg %p163
        $region26: #{vit_bert_overlap.3} parent=11 // pred_check_branch
          %467 = sbr.rel (%p465) target = $region28
        $region27: #{vit_bert_overlap.3} parent=11 // pred_region
          _
        $region28: #{vit_bert_overlap.3} parent=11 // pred_fallthru
          _
        // Predicated region
        $region29: #{vit_bert_overlap.3} parent=11 // pred_check
          %p468 = pneg %p184
        $region30: #{vit_bert_overlap.3} parent=11 // pred_check_branch
          %470 = sbr.rel (%p468) target = $region32
        $region31: #{vit_bert_overlap.3} parent=11 // pred_region
          _
        $region32: #{vit_bert_overlap.3} parent=11 // pred_fallthru
          _
        // Predicated region
        $region33: #{vit_bert_overlap.3} parent=11 // pred_check
          %p471 = pneg %p205
        $region34: #{vit_bert_overlap.3} parent=11 // pred_check_branch
          %473 = sbr.rel (%p471) target = $region36
        $region35: #{vit_bert_overlap.3} parent=11 // pred_region
          _
        $region36: #{vit_bert_overlap.3} parent=11 // pred_fallthru
          _
        // Predicated region
        $region37: #{vit_bert_overlap.3} parent=11 // pred_check
          %p474 = pneg %p226
        $region38: #{vit_bert_overlap.3} parent=11 // pred_check_branch
          %476 = sbr.rel (%p474) target = $region40
        $region39: #{vit_bert_overlap.3} parent=11 // pred_region
          _
        $region40: #{vit_bert_overlap.3} parent=11 // pred_fallthru
          _
        // Predicated region
        $region41: #{vit_bert_overlap.3} parent=11 // pred_check
          %p477 = pneg %p247
        $region42: #{vit_bert_overlap.3} parent=11 // pred_check_branch
          %479 = sbr.rel (%p477) target = $region44
        $region43: #{vit_bert_overlap.3} parent=11 // pred_region
          _
        $region44: #{vit_bert_overlap.3} parent=11 // pred_fallthru
          _
        // Predicated region
        $region45: #{vit_bert_overlap.3} parent=11 // pred_check
          %p480 = pneg %p268
        $region46: #{vit_bert_overlap.3} parent=11 // pred_check_branch
          %482 = sbr.rel (%p480) target = $region48
        $region47: #{vit_bert_overlap.3} parent=11 // pred_region
          _
        $region48: #{vit_bert_overlap.3} parent=11 // pred_fallthru
          _
        // Predicated region
        $region49: #{vit_bert_overlap.3} parent=11 // pred_check
          %p483 = pneg %p289
        $region50: #{vit_bert_overlap.3} parent=11 // pred_check_branch
          %485 = sbr.rel (%p483) target = $region52
        $region51: #{vit_bert_overlap.3} parent=11 // pred_region
          _
        $region52: #{vit_bert_overlap.3} parent=11 // pred_fallthru
          _
        // Predicated region
        $region53: #{vit_bert_overlap.3} parent=11 // pred_check
          %p486 = pneg %p310
        $region54: #{vit_bert_overlap.3} parent=11 // pred_check_branch
          %488 = sbr.rel (%p486) target = $region56
        $region55: #{vit_bert_overlap.3} parent=11 // pred_region
          _
        $region56: #{vit_bert_overlap.3} parent=11 // pred_fallthru
          _
        // Predicated region
        $region57: #{vit_bert_overlap.3} parent=11 // pred_check
          %p489 = pneg %p331
        $region58: #{vit_bert_overlap.3} parent=11 // pred_check_branch
          %491 = sbr.rel (%p489) target = $region60
        $region59: #{vit_bert_overlap.3} parent=11 // pred_region
          _
        $region60: #{vit_bert_overlap.3} parent=11 // pred_fallthru
          _
        // Predicated region
        $region61: #{vit_bert_overlap.3} parent=11 // pred_check
          %p492 = pneg %p352
        $region62: #{vit_bert_overlap.3} parent=11 // pred_check_branch
          %494 = sbr.rel (%p492) target = $region64
        $region63: #{vit_bert_overlap.3} parent=11 // pred_region
          _
        $region64: #{vit_bert_overlap.3} parent=11 // pred_fallthru
          _
        // Predicated region
        $region65: #{vit_bert_overlap.3} parent=11 // pred_check
          %p495 = pneg %p373
        $region66: #{vit_bert_overlap.3} parent=11 // pred_check_branch
          %497 = sbr.rel (%p495) target = $region68
        $region67: #{vit_bert_overlap.3} parent=11 // pred_region
          _
        $region68: #{vit_bert_overlap.3} parent=11 // pred_fallthru
          _
        // Predicated region
        $region69: #{vit_bert_overlap.3} parent=11 // pred_check
          %p498 = pneg %p394
        $region70: #{vit_bert_overlap.3} parent=11 // pred_check_branch
          %500 = sbr.rel (%p498) target = $region72
        $region71: #{vit_bert_overlap.3} parent=11 // pred_region
          _
        $region72: #{vit_bert_overlap.3} parent=11 // pred_fallthru
          _
        // Predicated region
        $region73: #{vit_bert_overlap.3} parent=11 // pred_check
          %p501 = pneg %p415
        $region74: #{vit_bert_overlap.3} parent=11 // pred_check_branch
          %503 = sbr.rel (%p501) target = $region76
        $region75: #{vit_bert_overlap.3} parent=11 // pred_region
          _
        $region76: #{vit_bert_overlap.3} parent=11 // pred_fallthru
          _
      $region12: #{vit_bert_overlap.3} parent=5 // pred_fallthru
        _
      %p504 = scmp.lt.s32.totalorder %s27, 2
      // Predicated region
      $region77: #{vit_bert_overlap.3} parent=5 // pred_check
        %p505 = pneg %p504
      $region78: #{vit_bert_overlap.3} parent=5 // pred_check_branch
        %507 = sbr.rel (%p505) target = $region80
      $region79: #{vit_bert_overlap.3} parent=5 // pred_region
        // Predicated region
        $region81: #{vit_bert_overlap.3} parent=79 // pred_check
          %p508 = pneg %p47
        $region82: #{vit_bert_overlap.3} parent=79 // pred_check_branch
          %510 = sbr.rel (%p508) target = $region84
        $region83: #{vit_bert_overlap.3} parent=79 // pred_region
          %p511 = scmp.lt.s32.totalorder %s27, 1
          %s512 = scalar_select %p511, %s27, 1
          %s513 = smul.addr %s512, 8
          %s514 = scalar_lea.vmem %s0, %s513
        $region84: #{vit_bert_overlap.3} parent=79 // pred_fallthru
          _
        // Predicated region
        $region85: #{vit_bert_overlap.3} parent=79 // pred_check
          %p515 = pneg %p73
        $region86: #{vit_bert_overlap.3} parent=79 // pred_check_branch
          %517 = sbr.rel (%p515) target = $region88
        $region87: #{vit_bert_overlap.3} parent=79 // pred_region
          %p518 = scmp.lt.s32.totalorder %s27, 1
          %s519 = scalar_select %p518, %s27, 1
          %s520 = scalar_lea.vmem %s1, %s519
        $region88: #{vit_bert_overlap.3} parent=79 // pred_fallthru
          _
      $region80: #{vit_bert_overlap.3} parent=5 // pred_fallthru
        _
      %p521 = scmp.le.s32.totalorder 1, %s27
      %p522 = scmp.lt.s32.totalorder %s27, 3
      %p523 = pnand %p521, %p522
      %p524 = pneg %p523
      // Predicated region
      $region89: #{vit_bert_overlap.3} parent=5 // pred_check
        _
      $region90: #{vit_bert_overlap.3} parent=5 // pred_check_branch
        %526 = sbr.rel (%p523) target = $region92
      $region91: #{vit_bert_overlap.3} parent=5 // pred_region
        %s527 = ssub.s32 %s27, 1
        %p528 = scmp.lt.s32.totalorder %s32, 1
        %s529 = scalar_select %p528, %s32, 1
        %s530 = smul.addr %s529, 8
        %s531 = scalar_lea.vmem %s0, %s530
        %p532 = pneg %p53
        %p533 = pneg %p50
        %p534 = scmp.lt.s32.totalorder %s32, 1
        %s535 = scalar_select %p534, %s32, 1
        %s536 = scalar_lea.vmem %s1, %s535
        %p537 = pneg %p79
        %p538 = pneg %p76
        %p539 = pneg %p100
        %p540 = pneg %p97
        %p541 = pneg %p121
        %p542 = pneg %p118
        %p543 = pneg %p142
        %p544 = pneg %p139
        %p545 = pneg %p163
        %p546 = pneg %p160
        %p547 = pneg %p184
        %p548 = pneg %p181
        %p549 = pneg %p205
        %p550 = pneg %p202
        %p551 = pneg %p226
        %p552 = pneg %p223
        %p553 = pneg %p247
        %p554 = pneg %p244
        %p555 = pneg %p268
        %p556 = pneg %p265
        %p557 = pneg %p289
        %p558 = pneg %p286
        %p559 = pneg %p310
        %p560 = pneg %p307
        %p561 = pneg %p331
        %p562 = pneg %p328
        %p563 = pneg %p352
        %p564 = pneg %p349
        %p565 = pneg %p373
        %p566 = pneg %p370
        %p567 = pneg %p394
        %p568 = pneg %p391
        %p569 = pneg %p415
        %p570 = pneg %p412
        %p571 = pneg %p441
        %p572 = pneg %p438
        %s573 = sand.u32 %s428, 1
        %s574 = scalar_lea.sflag [#allocation3], %s573
        %s575 = sand.u32 %s428, 1
        %s576 = scalar_lea.vmem [#allocation2], %s575
        %p577 = scmp.lt.s32.totalorder %s32, 1
        %s578 = scalar_select %p577, %s32, 1
        %s579 = smul.addr %s578, 8
        %s580 = scalar_lea.vmem %s0, %s579
        %p581 = scmp.lt.s32.totalorder %s32, 1
        %s582 = scalar_select %p581, %s32, 1
        %s583 = scalar_lea.vmem %s1, %s582
        %v584 = vld [vmem:[%s580] sm:$0xff]
        %v585 = vld [vmem:[%s2] sm:$0x1]
        %v586 = vld [vmem:[%s3] sm:$0x1]
        %vm587 = vcmask 261120
        %v588 = vsel %vm587, %v584, 0.0
        %589 = vadd.xlane.f32.xlu0 %v588
        %v590 = vpop.xlane.xlu0 %589
        %v591 = vrcp.pop 32.0
        %v592 = vmul.f32 %v590, %v591
        %v593 = vsub.f32 %v584, %v592
        %v594 = vmul.f32 %v593, %v593
        %v595 = vsel %vm587, %v594, 0.0
        %596 = vadd.xlane.f32.xlu0 %v595
        %v597 = vpop.xlane.xlu0 %596
        %v598 = vmul.f32 %v597, %v591
        %v599 = vadd.f32 %v598, 1e-12
        %v600 = vrsqrt.pop %v599
        %v601 = vmul.f32 %v593, %v600
        %v603 = vlaneseq
        %v604 = vshrl.u32 %v603, 7
        %v605 = vsub.s32 0, %v604
        %v606 = vrot.slane %v585, %v605
        %v608 = vmul.f32 %v601, %v606
        %v610 = vlaneseq
        %v611 = vshrl.u32 %v610, 7
        %v612 = vsub.s32 0, %v611
        %v613 = vrot.slane %v586, %v612
        %v615 = vadd.f32 %v608, %v613
        %v616 = vld [vmem:[%s583] sm:$0x1]
        %v617 = vld [vmem:[%s4] sm:$0xff]
        %v618 = vld [vmem:[%s4 + $0x8] sm:$0xff]
        %v619 = vld [vmem:[%s4 + $0x10] sm:$0xff]
        %v620 = vld [vmem:[%s4 + $0x18] sm:$0xff]
        %v621 = vld [vmem:[%s5] sm:$0x1]
        %v623 = vlaneseq
        %v624 = vshrl.u32 %v623, 7
        %v625 = vsub.s32 0, %v624
        %v626 = vrot.slane %v621, %v625
        %v629 = vsel %vm587, %v615, 0
        %631 = vmatprep.subr.mxu0 0.0
        %632 = vmatpush1.msra.mxu0 %v617
        %633 = vmatprep.subr.mxu0 0.0
        %634 = vmatpush1.msra.mxu0 %v618
        %635 = vmatprep.subr.mxu0 0.0
        %636 = vmatpush1.msra.mxu0 %v619
        %637 = vmatprep.subr.mxu0 0.0
        %638 = vmatpush1.msra.mxu0 %v620
        %639 = vmatprep.subr.mxu0 0.0
        %640 = vmatpush1.msra.mxu0 0.0
        %641 = vmatprep.subr.mxu0 0.0
        %642 = vmatpush1.msra.mxu0 0.0
        %643 = vmatprep.subr.mxu0 0.0
        %644 = vmatpush1.msra.mxu0 0.0
        %645 = vmatprep.subr.mxu0 0.0
        %646 = vmatpush1.msra.mxu0 0.0
        %647 = vmatprep.subr.mxu0 0.0
        %648 = vmatpush1.msra.mxu0 0.0
        %649 = vmatprep.subr.mxu0 0.0
        %650 = vmatpush1.msra.mxu0 0.0
        %651 = vmatprep.subr.mxu0 0.0
        %652 = vmatpush1.msra.mxu0 0.0
        %653 = vmatprep.subr.mxu0 0.0
        %654 = vmatpush1.msra.mxu0 0.0
        %655 = vmatprep.subr.mxu0 0.0
        %656 = vmatpush1.msra.mxu0 0.0
        %657 = vmatprep.subr.mxu0 0.0
        %658 = vmatpush1.msra.mxu0 0.0
        %659 = vmatprep.subr.mxu0 0.0
        %660 = vmatpush1.msra.mxu0 0.0
        %661 = vmatprep.subr.mxu0 0.0
        %662 = vmatpush1.msra.mxu0 0.0
        %663 = vmatprep.subr.mxu0 0.0
        %664 = vmatpush1.msra.mxu0 0.0
        %665 = vmatprep.subr.mxu0 0.0
        %666 = vmatpush1.msra.mxu0 0.0
        %667 = vmatprep.subr.mxu0 0.0
        %668 = vmatpush1.msra.mxu0 0.0
        %669 = vmatprep.subr.mxu0 0.0
        %670 = vmatpush1.msra.mxu0 0.0
        %671 = vmatprep.subr.mxu0 0.0
        %672 = vmatpush1.msra.mxu0 0.0
        %673 = vmatprep.subr.mxu0 0.0
        %674 = vmatpush1.msra.mxu0 0.0
        %675 = vmatprep.subr.mxu0 0.0
        %676 = vmatpush1.msra.mxu0 0.0
        %677 = vmatprep.subr.mxu0 0.0
        %678 = vmatpush1.msra.mxu0 0.0
        %679 = vmatprep.subr.mxu0 0.0
        %680 = vmatpush1.msra.mxu0 0.0
        %681 = vmatprep.subr.mxu0 0.0
        %682 = vmatpush1.msra.mxu0 0.0
        %683 = vmatprep.subr.mxu0 0.0
        %684 = vmatpush1.msra.mxu0 0.0
        %685 = vmatprep.subr.mxu0 0.0
        %686 = vmatpush1.msra.mxu0 0.0
        %687 = vmatprep.subr.mxu0 0.0
        %688 = vmatpush1.msra.mxu0 0.0
        %689 = vmatprep.subr.mxu0 0.0
        %690 = vmatpush1.msra.mxu0 0.0
        %691 = vmatprep.subr.mxu0 0.0
        %692 = vmatpush1.msra.mxu0 0.0
        %693 = vmatprep.subr.mxu0 0.0
        %694 = vmatpush1.msra.mxu0 0.0
        %695 = vmatprep.mubr.f32.mxu0 0.0
        %696 = vmatmul.mubr.f32.gmra.mrb[0].mxu0 %v629
        %v697 = vpop.f32.mrb[0].mxu0
        %v698 = vadd.f32 %v626, %v697
        %v699 = vpop.f32.mrb[0].mxu0
        %700 = vdwg.mxu0
        %v701 = vld [vmem:[%s6] sm:$0xff]
        %v702 = vld [vmem:[%s6 + $0x8] sm:$0xff]
        %v703 = vld [vmem:[%s6 + $0x10] sm:$0xff]
        %v704 = vld [vmem:[%s6 + $0x18] sm:$0xff]
        %v705 = vld [vmem:[%s7] sm:$0x1]
        %v706 = vmul.f32 %v698, 0.35355338
        %v708 = vlaneseq
        %v709 = vshrl.u32 %v708, 7
        %v710 = vsub.s32 0, %v709
        %v711 = vrot.slane %v616, %v710
        %714 = vrot.lane.b32.xlu0 %v698, 96
        %v715 = vpop.permute.xlu0 %714
        %vm716 = vcmask 64512
        %v718 = vsel %vm716, %v706, 0
        %v720 = vsel %vm716, %v715, 0
        %722 = vmatprep.subr.mxu0 0.0
        %723 = vmatpush1.xpose.msra.mxu0 %v720
        %724 = vmatprep.subr.mxu0 0.0
        %725 = vmatpush1.xpose.msra.mxu0 0.0
        %726 = vmatprep.subr.mxu0 0.0
        %727 = vmatpush1.xpose.msra.mxu0 0.0
        %728 = vmatprep.subr.mxu0 0.0
        %729 = vmatpush1.xpose.msra.mxu0 0.0
        %730 = vmatprep.subr.mxu0 0.0
        %731 = vmatpush1.xpose.msra.mxu0 0.0
        %732 = vmatprep.subr.mxu0 0.0
        %733 = vmatpush1.xpose.msra.mxu0 0.0
        %734 = vmatprep.subr.mxu0 0.0
        %735 = vmatpush1.xpose.msra.mxu0 0.0
        %736 = vmatprep.subr.mxu0 0.0
        %737 = vmatpush1.xpose.msra.mxu0 0.0
        %738 = vmatprep.subr.mxu0 0.0
        %739 = vmatpush1.xpose.msra.mxu0 0.0
        %740 = vmatprep.subr.mxu0 0.0
        %741 = vmatpush1.xpose.msra.mxu0 0.0
        %742 = vmatprep.subr.mxu0 0.0
        %743 = vmatpush1.xpose.msra.mxu0 0.0
        %744 = vmatprep.subr.mxu0 0.0
        %745 = vmatpush1.xpose.msra.mxu0 0.0
        %746 = vmatprep.subr.mxu0 0.0
        %747 = vmatpush1.xpose.msra.mxu0 0.0
        %748 = vmatprep.subr.mxu0 0.0
        %749 = vmatpush1.xpose.msra.mxu0 0.0
        %750 = vmatprep.subr.mxu0 0.0
        %751 = vmatpush1.xpose.msra.mxu0 0.0
        %752 = vmatprep.subr.mxu0 0.0
        %753 = vmatpush1.xpose.msra.mxu0 0.0
        %754 = vmatprep.subr.mxu0 0.0
        %755 = vmatpush1.xpose.msra.mxu0 0.0
        %756 = vmatprep.subr.mxu0 0.0
        %757 = vmatpush1.xpose.msra.mxu0 0.0
        %758 = vmatprep.subr.mxu0 0.0
        %759 = vmatpush1.xpose.msra.mxu0 0.0
        %760 = vmatprep.subr.mxu0 0.0
        %761 = vmatpush1.xpose.msra.mxu0 0.0
        %762 = vmatprep.subr.mxu0 0.0
        %763 = vmatpush1.xpose.msra.mxu0 0.0
        %764 = vmatprep.subr.mxu0 0.0
        %765 = vmatpush1.xpose.msra.mxu0 0.0
        %766 = vmatprep.subr.mxu0 0.0
        %767 = vmatpush1.xpose.msra.mxu0 0.0
        %768 = vmatprep.subr.mxu0 0.0
        %769 = vmatpush1.xpose.msra.mxu0 0.0
        %770 = vmatprep.subr.mxu0 0.0
        %771 = vmatpush1.xpose.msra.mxu0 0.0
        %772 = vmatprep.subr.mxu0 0.0
        %773 = vmatpush1.xpose.msra.mxu0 0.0
        %774 = vmatprep.subr.mxu0 0.0
        %775 = vmatpush1.xpose.msra.mxu0 0.0
        %776 = vmatprep.subr.mxu0 0.0
        %777 = vmatpush1.xpose.msra.mxu0 0.0
        %778 = vmatprep.subr.mxu0 0.0
        %779 = vmatpush1.xpose.msra.mxu0 0.0
        %780 = vmatprep.subr.mxu0 0.0
        %781 = vmatpush1.xpose.msra.mxu0 0.0
        %782 = vmatprep.subr.mxu0 0.0
        %783 = vmatpush1.xpose.msra.mxu0 0.0
        %784 = vmatprep.subr.mxu0 0.0
        %785 = vmatpush1.xpose.msra.mxu0 0.0
        %786 = vmatprep.mubr.f32.mxu0 0.0
        %787 = vmatmul.mubr.f32.gmra.mrb[0].mxu0 %v718
        %v788 = vpop.f32.mrb[0].mxu0
        %v789 = vadd.f32 %v711, %v788
        %v790 = vpop.f32.mrb[0].mxu0
        %791 = vdwg.mxu0
        %v792 = vsel %vm716, %v789, -inf
        %793 = vmax.xlane.f32.xlu0 %v792
        %v794 = vpop.xlane.xlu0 %793
        %v795 = vsub.f32 %v789, %v794
        %v796 = vmul.f32 %v795, 1.442695
        %v797 = vpow.pop %v796
        %v798 = vsel %vm716, %v797, 0.0
        %799 = vadd.xlane.f32.xlu0 %v798
        %v800 = vpop.xlane.xlu0 %799
        %v801 = vrcp.pop %v800
        %v802 = vmul.f32 %v797, %v801
        %803 = vrot.lane.b32.xlu0 %v698, 64
        %v804 = vpop.permute.xlu0 %803
        %v807 = vsel %vm716, %v802, 0
        %809 = vmatprep.subr.mxu0 0.0
        %810 = vmatpush1.msra.mxu0 %v804
        %811 = vmatprep.subr.mxu0 0.0
        %812 = vmatpush1.msra.mxu0 0.0
        %813 = vmatprep.subr.mxu0 0.0
        %814 = vmatpush1.msra.mxu0 0.0
        %815 = vmatprep.subr.mxu0 0.0
        %816 = vmatpush1.msra.mxu0 0.0
        %817 = vmatprep.subr.mxu0 0.0
        %818 = vmatpush1.msra.mxu0 0.0
        %819 = vmatprep.subr.mxu0 0.0
        %820 = vmatpush1.msra.mxu0 0.0
        %821 = vmatprep.subr.mxu0 0.0
        %822 = vmatpush1.msra.mxu0 0.0
        %823 = vmatprep.subr.mxu0 0.0
        %824 = vmatpush1.msra.mxu0 0.0
        %825 = vmatprep.subr.mxu0 0.0
        %826 = vmatpush1.msra.mxu0 0.0
        %827 = vmatprep.subr.mxu0 0.0
        %828 = vmatpush1.msra.mxu0 0.0
        %829 = vmatprep.subr.mxu0 0.0
        %830 = vmatpush1.msra.mxu0 0.0
        %831 = vmatprep.subr.mxu0 0.0
        %832 = vmatpush1.msra.mxu0 0.0
        %833 = vmatprep.subr.mxu0 0.0
        %834 = vmatpush1.msra.mxu0 0.0
        %835 = vmatprep.subr.mxu0 0.0
        %836 = vmatpush1.msra.mxu0 0.0
        %837 = vmatprep.subr.mxu0 0.0
        %838 = vmatpush1.msra.mxu0 0.0
        %839 = vmatprep.subr.mxu0 0.0
        %840 = vmatpush1.msra.mxu0 0.0
        %841 = vmatprep.subr.mxu0 0.0
        %842 = vmatpush1.msra.mxu0 0.0
        %843 = vmatprep.subr.mxu0 0.0
        %844 = vmatpush1.msra.mxu0 0.0
        %845 = vmatprep.subr.mxu0 0.0
        %846 = vmatpush1.msra.mxu0 0.0
        %847 = vmatprep.subr.mxu0 0.0
        %848 = vmatpush1.msra.mxu0 0.0
        %849 = vmatprep.subr.mxu0 0.0
        %850 = vmatpush1.msra.mxu0 0.0
        %851 = vmatprep.subr.mxu0 0.0
        %852 = vmatpush1.msra.mxu0 0.0
        %853 = vmatprep.subr.mxu0 0.0
        %854 = vmatpush1.msra.mxu0 0.0
        %855 = vmatprep.subr.mxu0 0.0
        %856 = vmatpush1.msra.mxu0 0.0
        %857 = vmatprep.subr.mxu0 0.0
        %858 = vmatpush1.msra.mxu0 0.0
        %859 = vmatprep.subr.mxu0 0.0
        %860 = vmatpush1.msra.mxu0 0.0
        %861 = vmatprep.subr.mxu0 0.0
        %862 = vmatpush1.msra.mxu0 0.0
        %863 = vmatprep.subr.mxu0 0.0
        %864 = vmatpush1.msra.mxu0 0.0
        %865 = vmatprep.subr.mxu0 0.0
        %866 = vmatpush1.msra.mxu0 0.0
        %867 = vmatprep.subr.mxu0 0.0
        %868 = vmatpush1.msra.mxu0 0.0
        %869 = vmatprep.subr.mxu0 0.0
        %870 = vmatpush1.msra.mxu0 0.0
        %871 = vmatprep.subr.mxu0 0.0
        %872 = vmatpush1.msra.mxu0 0.0
        %873 = vmatprep.mubr.f32.mxu0 0.0
        %874 = vmatmul.mubr.f32.gmra.mrb[0].mxu0 %v807
        %v875 = vpop.f32.mrb[0].mxu0
        %v876 = vadd.f32 0.0, %v875
        %v877 = vpop.f32.mrb[0].mxu0
        %878 = vdwg.mxu0
        %879 = vrot.lane.b32.xlu0 %v706, 120
        %v880 = vpop.permute.xlu0 %879
        %881 = vrot.lane.b32.xlu0 %v698, 88
        %v882 = vpop.permute.xlu0 %881
        %v883 = vsel %vm716, %v880, 0
        %v885 = vsel %vm716, %v882, 0
        %887 = vmatprep.subr.mxu0 0.0
        %888 = vmatpush1.xpose.msra.mxu0 %v885
        %889 = vmatprep.subr.mxu0 0.0
        %890 = vmatpush1.xpose.msra.mxu0 0.0
        %891 = vmatprep.subr.mxu0 0.0
        %892 = vmatpush1.xpose.msra.mxu0 0.0
        %893 = vmatprep.subr.mxu0 0.0
        %894 = vmatpush1.xpose.msra.mxu0 0.0
        %895 = vmatprep.subr.mxu0 0.0
        %896 = vmatpush1.xpose.msra.mxu0 0.0
        %897 = vmatprep.subr.mxu0 0.0
        %898 = vmatpush1.xpose.msra.mxu0 0.0
        %899 = vmatprep.subr.mxu0 0.0
        %900 = vmatpush1.xpose.msra.mxu0 0.0
        %901 = vmatprep.subr.mxu0 0.0
        %902 = vmatpush1.xpose.msra.mxu0 0.0
        %903 = vmatprep.subr.mxu0 0.0
        %904 = vmatpush1.xpose.msra.mxu0 0.0
        %905 = vmatprep.subr.mxu0 0.0
        %906 = vmatpush1.xpose.msra.mxu0 0.0
        %907 = vmatprep.subr.mxu0 0.0
        %908 = vmatpush1.xpose.msra.mxu0 0.0
        %909 = vmatprep.subr.mxu0 0.0
        %910 = vmatpush1.xpose.msra.mxu0 0.0
        %911 = vmatprep.subr.mxu0 0.0
        %912 = vmatpush1.xpose.msra.mxu0 0.0
        %913 = vmatprep.subr.mxu0 0.0
        %914 = vmatpush1.xpose.msra.mxu0 0.0
        %915 = vmatprep.subr.mxu0 0.0
        %916 = vmatpush1.xpose.msra.mxu0 0.0
        %917 = vmatprep.subr.mxu0 0.0
        %918 = vmatpush1.xpose.msra.mxu0 0.0
        %919 = vmatprep.subr.mxu0 0.0
        %920 = vmatpush1.xpose.msra.mxu0 0.0
        %921 = vmatprep.subr.mxu0 0.0
        %922 = vmatpush1.xpose.msra.mxu0 0.0
        %923 = vmatprep.subr.mxu0 0.0
        %924 = vmatpush1.xpose.msra.mxu0 0.0
        %925 = vmatprep.subr.mxu0 0.0
        %926 = vmatpush1.xpose.msra.mxu0 0.0
        %927 = vmatprep.subr.mxu0 0.0
        %928 = vmatpush1.xpose.msra.mxu0 0.0
        %929 = vmatprep.subr.mxu0 0.0
        %930 = vmatpush1.xpose.msra.mxu0 0.0
        %931 = vmatprep.subr.mxu0 0.0
        %932 = vmatpush1.xpose.msra.mxu0 0.0
        %933 = vmatprep.subr.mxu0 0.0
        %934 = vmatpush1.xpose.msra.mxu0 0.0
        %935 = vmatprep.subr.mxu0 0.0
        %936 = vmatpush1.xpose.msra.mxu0 0.0
        %937 = vmatprep.subr.mxu0 0.0
        %938 = vmatpush1.xpose.msra.mxu0 0.0
        %939 = vmatprep.subr.mxu0 0.0
        %940 = vmatpush1.xpose.msra.mxu0 0.0
        %941 = vmatprep.subr.mxu0 0.0
        %942 = vmatpush1.xpose.msra.mxu0 0.0
        %943 = vmatprep.subr.mxu0 0.0
        %944 = vmatpush1.xpose.msra.mxu0 0.0
        %945 = vmatprep.subr.mxu0 0.0
        %946 = vmatpush1.xpose.msra.mxu0 0.0
        %947 = vmatprep.subr.mxu0 0.0
        %948 = vmatpush1.xpose.msra.mxu0 0.0
        %949 = vmatprep.subr.mxu0 0.0
        %950 = vmatpush1.xpose.msra.mxu0 0.0
        %951 = vmatprep.mubr.f32.mxu0 0.0
        %952 = vmatmul.mubr.f32.gmra.mrb[0].mxu0 %v883
        %v953 = vpop.f32.mrb[0].mxu0
        %v954 = vadd.f32 %v711, %v953
        %v955 = vpop.f32.mrb[0].mxu0
        %956 = vdwg.mxu0
        %v957 = vsel %vm716, %v954, -inf
        %958 = vmax.xlane.f32.xlu0 %v957
        %v959 = vpop.xlane.xlu0 %958
        %v960 = vsub.f32 %v954, %v959
        %v961 = vmul.f32 %v960, 1.442695
        %v962 = vpow.pop %v961
        %v963 = vsel %vm716, %v962, 0.0
        %964 = vadd.xlane.f32.xlu0 %v963
        %v965 = vpop.xlane.xlu0 %964
        %v966 = vrcp.pop %v965
        %v967 = vmul.f32 %v962, %v966
        %968 = vrot.lane.b32.xlu0 %v698, 56
        %v969 = vpop.permute.xlu0 %968
        %v972 = vsel %vm716, %v967, 0
        %974 = vmatprep.subr.mxu0 0.0
        %975 = vmatpush1.msra.mxu0 %v969
        %976 = vmatprep.subr.mxu0 0.0
        %977 = vmatpush1.msra.mxu0 0.0
        %978 = vmatprep.subr.mxu0 0.0
        %979 = vmatpush1.msra.mxu0 0.0
        %980 = vmatprep.subr.mxu0 0.0
        %981 = vmatpush1.msra.mxu0 0.0
        %982 = vmatprep.subr.mxu0 0.0
        %983 = vmatpush1.msra.mxu0 0.0
        %984 = vmatprep.subr.mxu0 0.0
        %985 = vmatpush1.msra.mxu0 0.0
        %986 = vmatprep.subr.mxu0 0.0
        %987 = vmatpush1.msra.mxu0 0.0
        %988 = vmatprep.subr.mxu0 0.0
        %989 = vmatpush1.msra.mxu0 0.0
        %990 = vmatprep.subr.mxu0 0.0
        %991 = vmatpush1.msra.mxu0 0.0
        %992 = vmatprep.subr.mxu0 0.0
        %993 = vmatpush1.msra.mxu0 0.0
        %994 = vmatprep.subr.mxu0 0.0
        %995 = vmatpush1.msra.mxu0 0.0
        %996 = vmatprep.subr.mxu0 0.0
        %997 = vmatpush1.msra.mxu0 0.0
        %998 = vmatprep.subr.mxu0 0.0
        %999 = vmatpush1.msra.mxu0 0.0
        %1000 = vmatprep.subr.mxu0 0.0
        %1001 = vmatpush1.msra.mxu0 0.0
        %1002 = vmatprep.subr.mxu0 0.0
        %1003 = vmatpush1.msra.mxu0 0.0
        %1004 = vmatprep.subr.mxu0 0.0
        %1005 = vmatpush1.msra.mxu0 0.0
        %1006 = vmatprep.subr.mxu0 0.0
        %1007 = vmatpush1.msra.mxu0 0.0
        %1008 = vmatprep.subr.mxu0 0.0
        %1009 = vmatpush1.msra.mxu0 0.0
        %1010 = vmatprep.subr.mxu0 0.0
        %1011 = vmatpush1.msra.mxu0 0.0
        %1012 = vmatprep.subr.mxu0 0.0
        %1013 = vmatpush1.msra.mxu0 0.0
        %1014 = vmatprep.subr.mxu0 0.0
        %1015 = vmatpush1.msra.mxu0 0.0
        %1016 = vmatprep.subr.mxu0 0.0
        %1017 = vmatpush1.msra.mxu0 0.0
        %1018 = vmatprep.subr.mxu0 0.0
        %1019 = vmatpush1.msra.mxu0 0.0
        %1020 = vmatprep.subr.mxu0 0.0
        %1021 = vmatpush1.msra.mxu0 0.0
        %1022 = vmatprep.subr.mxu0 0.0
        %1023 = vmatpush1.msra.mxu0 0.0
        %1024 = vmatprep.subr.mxu0 0.0
        %1025 = vmatpush1.msra.mxu0 0.0
        %1026 = vmatprep.subr.mxu0 0.0
        %1027 = vmatpush1.msra.mxu0 0.0
        %1028 = vmatprep.subr.mxu0 0.0
        %1029 = vmatpush1.msra.mxu0 0.0
        %1030 = vmatprep.subr.mxu0 0.0
        %1031 = vmatpush1.msra.mxu0 0.0
        %1032 = vmatprep.subr.mxu0 0.0
        %1033 = vmatpush1.msra.mxu0 0.0
        %1034 = vmatprep.subr.mxu0 0.0
        %1035 = vmatpush1.msra.mxu0 0.0
        %1036 = vmatprep.subr.mxu0 0.0
        %1037 = vmatpush1.msra.mxu0 0.0
        %1038 = vmatprep.mubr.f32.mxu0 0.0
        %1039 = vmatmul.mubr.f32.gmra.mrb[0].mxu0 %v972
        %v1040 = vpop.f32.mrb[0].mxu0
        %v1041 = vadd.f32 0.0, %v1040
        %v1042 = vpop.f32.mrb[0].mxu0
        %1043 = vdwg.mxu0
        %v1045 = vsel %vm716, %v1041, 0
        %1047 = vmatprep.subr.mxu0 0.0
        %1048 = vmatpush1.msra.mxu0 %v702
        %1049 = vmatprep.subr.mxu0 0.0
        %1050 = vmatpush1.msra.mxu0 0.0
        %1051 = vmatprep.subr.mxu0 0.0
        %1052 = vmatpush1.msra.mxu0 0.0
        %1053 = vmatprep.subr.mxu0 0.0
        %1054 = vmatpush1.msra.mxu0 0.0
        %1055 = vmatprep.subr.mxu0 0.0
        %1056 = vmatpush1.msra.mxu0 0.0
        %1057 = vmatprep.subr.mxu0 0.0
        %1058 = vmatpush1.msra.mxu0 0.0
        %1059 = vmatprep.subr.mxu0 0.0
        %1060 = vmatpush1.msra.mxu0 0.0
        %1061 = vmatprep.subr.mxu0 0.0
        %1062 = vmatpush1.msra.mxu0 0.0
        %1063 = vmatprep.subr.mxu0 0.0
        %1064 = vmatpush1.msra.mxu0 0.0
        %1065 = vmatprep.subr.mxu0 0.0
        %1066 = vmatpush1.msra.mxu0 0.0
        %1067 = vmatprep.subr.mxu0 0.0
        %1068 = vmatpush1.msra.mxu0 0.0
        %1069 = vmatprep.subr.mxu0 0.0
        %1070 = vmatpush1.msra.mxu0 0.0
        %1071 = vmatprep.subr.mxu0 0.0
        %1072 = vmatpush1.msra.mxu0 0.0
        %1073 = vmatprep.subr.mxu0 0.0
        %1074 = vmatpush1.msra.mxu0 0.0
        %1075 = vmatprep.subr.mxu0 0.0
        %1076 = vmatpush1.msra.mxu0 0.0
        %1077 = vmatprep.subr.mxu0 0.0
        %1078 = vmatpush1.msra.mxu0 0.0
        %1079 = vmatprep.subr.mxu0 0.0
        %1080 = vmatpush1.msra.mxu0 0.0
        %1081 = vmatprep.subr.mxu0 0.0
        %1082 = vmatpush1.msra.mxu0 0.0
        %1083 = vmatprep.subr.mxu0 0.0
        %1084 = vmatpush1.msra.mxu0 0.0
        %1085 = vmatprep.subr.mxu0 0.0
        %1086 = vmatpush1.msra.mxu0 0.0
        %1087 = vmatprep.subr.mxu0 0.0
        %1088 = vmatpush1.msra.mxu0 0.0
        %1089 = vmatprep.subr.mxu0 0.0
        %1090 = vmatpush1.msra.mxu0 0.0
        %1091 = vmatprep.subr.mxu0 0.0
        %1092 = vmatpush1.msra.mxu0 0.0
        %1093 = vmatprep.subr.mxu0 0.0
        %1094 = vmatpush1.msra.mxu0 0.0
        %1095 = vmatprep.subr.mxu0 0.0
        %1096 = vmatpush1.msra.mxu0 0.0
        %1097 = vmatprep.subr.mxu0 0.0
        %1098 = vmatpush1.msra.mxu0 0.0
        %1099 = vmatprep.subr.mxu0 0.0
        %1100 = vmatpush1.msra.mxu0 0.0
        %1101 = vmatprep.subr.mxu0 0.0
        %1102 = vmatpush1.msra.mxu0 0.0
        %1103 = vmatprep.subr.mxu0 0.0
        %1104 = vmatpush1.msra.mxu0 0.0
        %1105 = vmatprep.subr.mxu0 0.0
        %1106 = vmatpush1.msra.mxu0 0.0
        %1107 = vmatprep.subr.mxu0 0.0
        %1108 = vmatpush1.msra.mxu0 0.0
        %1109 = vmatprep.subr.mxu0 0.0
        %1110 = vmatpush1.msra.mxu0 0.0
        %1111 = vmatprep.mubr.f32.mxu0 0.0
        %1112 = vmatmul.mubr.f32.gmra.mrb[0].mxu0 %v1045
        %v1113 = vpop.f32.mrb[0].mxu0
        %v1114 = vadd.f32 0.0, %v1113
        %v1115 = vpop.f32.mrb[0].mxu0
        %1116 = vdwg.mxu0
        %v1118 = vsel %vm716, %v876, 0
        %1120 = vmatprep.subr.mxu0 0.0
        %1121 = vmatpush1.msra.mxu0 %v701
        %1122 = vmatprep.subr.mxu0 0.0
        %1123 = vmatpush1.msra.mxu0 0.0
        %1124 = vmatprep.subr.mxu0 0.0
        %1125 = vmatpush1.msra.mxu0 0.0
        %1126 = vmatprep.subr.mxu0 0.0
        %1127 = vmatpush1.msra.mxu0 0.0
        %1128 = vmatprep.subr.mxu0 0.0
        %1129 = vmatpush1.msra.mxu0 0.0
        %1130 = vmatprep.subr.mxu0 0.0
        %1131 = vmatpush1.msra.mxu0 0.0
        %1132 = vmatprep.subr.mxu0 0.0
        %1133 = vmatpush1.msra.mxu0 0.0
        %1134 = vmatprep.subr.mxu0 0.0
        %1135 = vmatpush1.msra.mxu0 0.0
        %1136 = vmatprep.subr.mxu0 0.0
        %1137 = vmatpush1.msra.mxu0 0.0
        %1138 = vmatprep.subr.mxu0 0.0
        %1139 = vmatpush1.msra.mxu0 0.0
        %1140 = vmatprep.subr.mxu0 0.0
        %1141 = vmatpush1.msra.mxu0 0.0
        %1142 = vmatprep.subr.mxu0 0.0
        %1143 = vmatpush1.msra.mxu0 0.0
        %1144 = vmatprep.subr.mxu0 0.0
        %1145 = vmatpush1.msra.mxu0 0.0
        %1146 = vmatprep.subr.mxu0 0.0
        %1147 = vmatpush1.msra.mxu0 0.0
        %1148 = vmatprep.subr.mxu0 0.0
        %1149 = vmatpush1.msra.mxu0 0.0
        %1150 = vmatprep.subr.mxu0 0.0
        %1151 = vmatpush1.msra.mxu0 0.0
        %1152 = vmatprep.subr.mxu0 0.0
        %1153 = vmatpush1.msra.mxu0 0.0
        %1154 = vmatprep.subr.mxu0 0.0
        %1155 = vmatpush1.msra.mxu0 0.0
        %1156 = vmatprep.subr.mxu0 0.0
        %1157 = vmatpush1.msra.mxu0 0.0
        %1158 = vmatprep.subr.mxu0 0.0
        %1159 = vmatpush1.msra.mxu0 0.0
        %1160 = vmatprep.subr.mxu0 0.0
        %1161 = vmatpush1.msra.mxu0 0.0
        %1162 = vmatprep.subr.mxu0 0.0
        %1163 = vmatpush1.msra.mxu0 0.0
        %1164 = vmatprep.subr.mxu0 0.0
        %1165 = vmatpush1.msra.mxu0 0.0
        %1166 = vmatprep.subr.mxu0 0.0
        %1167 = vmatpush1.msra.mxu0 0.0
        %1168 = vmatprep.subr.mxu0 0.0
        %1169 = vmatpush1.msra.mxu0 0.0
        %1170 = vmatprep.subr.mxu0 0.0
        %1171 = vmatpush1.msra.mxu0 0.0
        %1172 = vmatprep.subr.mxu0 0.0
        %1173 = vmatpush1.msra.mxu0 0.0
        %1174 = vmatprep.subr.mxu0 0.0
        %1175 = vmatpush1.msra.mxu0 0.0
        %1176 = vmatprep.subr.mxu0 0.0
        %1177 = vmatpush1.msra.mxu0 0.0
        %1178 = vmatprep.subr.mxu0 0.0
        %1179 = vmatpush1.msra.mxu0 0.0
        %1180 = vmatprep.subr.mxu0 0.0
        %1181 = vmatpush1.msra.mxu0 0.0
        %1182 = vmatprep.subr.mxu0 0.0
        %1183 = vmatpush1.msra.mxu0 0.0
        %1184 = vmatprep.mubr.f32.mxu0 0.0
        %1185 = vmatmul.mubr.f32.gmra.mrb[0].mxu0 %v1118
        %v1186 = vpop.f32.mrb[0].mxu0
        %v1187 = vadd.f32 %v1114, %v1186
        %v1188 = vpop.f32.mrb[0].mxu0
        %1189 = vdwg.mxu0
        %1190 = vrot.lane.b32.xlu0 %v706, 112
        %v1191 = vpop.permute.xlu0 %1190
        %1192 = vrot.lane.b32.xlu0 %v698, 80
        %v1193 = vpop.permute.xlu0 %1192
        %v1194 = vsel %vm716, %v1191, 0
        %v1196 = vsel %vm716, %v1193, 0
        %1198 = vmatprep.subr.mxu0 0.0
        %1199 = vmatpush1.xpose.msra.mxu0 %v1196
        %1200 = vmatprep.subr.mxu0 0.0
        %1201 = vmatpush1.xpose.msra.mxu0 0.0
        %1202 = vmatprep.subr.mxu0 0.0
        %1203 = vmatpush1.xpose.msra.mxu0 0.0
        %1204 = vmatprep.subr.mxu0 0.0
        %1205 = vmatpush1.xpose.msra.mxu0 0.0
        %1206 = vmatprep.subr.mxu0 0.0
        %1207 = vmatpush1.xpose.msra.mxu0 0.0
        %1208 = vmatprep.subr.mxu0 0.0
        %1209 = vmatpush1.xpose.msra.mxu0 0.0
        %1210 = vmatprep.subr.mxu0 0.0
        %1211 = vmatpush1.xpose.msra.mxu0 0.0
        %1212 = vmatprep.subr.mxu0 0.0
        %1213 = vmatpush1.xpose.msra.mxu0 0.0
        %1214 = vmatprep.subr.mxu0 0.0
        %1215 = vmatpush1.xpose.msra.mxu0 0.0
        %1216 = vmatprep.subr.mxu0 0.0
        %1217 = vmatpush1.xpose.msra.mxu0 0.0
        %1218 = vmatprep.subr.mxu0 0.0
        %1219 = vmatpush1.xpose.msra.mxu0 0.0
        %1220 = vmatprep.subr.mxu0 0.0
        %1221 = vmatpush1.xpose.msra.mxu0 0.0
        %1222 = vmatprep.subr.mxu0 0.0
        %1223 = vmatpush1.xpose.msra.mxu0 0.0
        %1224 = vmatprep.subr.mxu0 0.0
        %1225 = vmatpush1.xpose.msra.mxu0 0.0
        %1226 = vmatprep.subr.mxu0 0.0
        %1227 = vmatpush1.xpose.msra.mxu0 0.0
        %1228 = vmatprep.subr.mxu0 0.0
        %1229 = vmatpush1.xpose.msra.mxu0 0.0
        %1230 = vmatprep.subr.mxu0 0.0
        %1231 = vmatpush1.xpose.msra.mxu0 0.0
        %1232 = vmatprep.subr.mxu0 0.0
        %1233 = vmatpush1.xpose.msra.mxu0 0.0
        %1234 = vmatprep.subr.mxu0 0.0
        %1235 = vmatpush1.xpose.msra.mxu0 0.0
        %1236 = vmatprep.subr.mxu0 0.0
        %1237 = vmatpush1.xpose.msra.mxu0 0.0
        %1238 = vmatprep.subr.mxu0 0.0
        %1239 = vmatpush1.xpose.msra.mxu0 0.0
        %1240 = vmatprep.subr.mxu0 0.0
        %1241 = vmatpush1.xpose.msra.mxu0 0.0
        %1242 = vmatprep.subr.mxu0 0.0
        %1243 = vmatpush1.xpose.msra.mxu0 0.0
        %1244 = vmatprep.subr.mxu0 0.0
        %1245 = vmatpush1.xpose.msra.mxu0 0.0
        %1246 = vmatprep.subr.mxu0 0.0
        %1247 = vmatpush1.xpose.msra.mxu0 0.0
        %1248 = vmatprep.subr.mxu0 0.0
        %1249 = vmatpush1.xpose.msra.mxu0 0.0
        %1250 = vmatprep.subr.mxu0 0.0
        %1251 = vmatpush1.xpose.msra.mxu0 0.0
        %1252 = vmatprep.subr.mxu0 0.0
        %1253 = vmatpush1.xpose.msra.mxu0 0.0
        %1254 = vmatprep.subr.mxu0 0.0
        %1255 = vmatpush1.xpose.msra.mxu0 0.0
        %1256 = vmatprep.subr.mxu0 0.0
        %1257 = vmatpush1.xpose.msra.mxu0 0.0
        %1258 = vmatprep.subr.mxu0 0.0
        %1259 = vmatpush1.xpose.msra.mxu0 0.0
        %1260 = vmatprep.subr.mxu0 0.0
        %1261 = vmatpush1.xpose.msra.mxu0 0.0
        %1262 = vmatprep.mubr.f32.mxu0 0.0
        %1263 = vmatmul.mubr.f32.gmra.mrb[0].mxu0 %v1194
        %v1264 = vpop.f32.mrb[0].mxu0
        %v1265 = vadd.f32 %v711, %v1264
        %v1266 = vpop.f32.mrb[0].mxu0
        %1267 = vdwg.mxu0
        %v1268 = vsel %vm716, %v1265, -inf
        %1269 = vmax.xlane.f32.xlu0 %v1268
        %v1270 = vpop.xlane.xlu0 %1269
        %v1271 = vsub.f32 %v1265, %v1270
        %v1272 = vmul.f32 %v1271, 1.442695
        %v1273 = vpow.pop %v1272
        %v1274 = vsel %vm716, %v1273, 0.0
        %1275 = vadd.xlane.f32.xlu0 %v1274
        %v1276 = vpop.xlane.xlu0 %1275
        %v1277 = vrcp.pop %v1276
        %v1278 = vmul.f32 %v1273, %v1277
        %1279 = vrot.lane.b32.xlu0 %v698, 48
        %v1280 = vpop.permute.xlu0 %1279
        %v1283 = vsel %vm716, %v1278, 0
        %1285 = vmatprep.subr.mxu0 0.0
        %1286 = vmatpush1.msra.mxu0 %v1280
        %1287 = vmatprep.subr.mxu0 0.0
        %1288 = vmatpush1.msra.mxu0 0.0
        %1289 = vmatprep.subr.mxu0 0.0
        %1290 = vmatpush1.msra.mxu0 0.0
        %1291 = vmatprep.subr.mxu0 0.0
        %1292 = vmatpush1.msra.mxu0 0.0
        %1293 = vmatprep.subr.mxu0 0.0
        %1294 = vmatpush1.msra.mxu0 0.0
        %1295 = vmatprep.subr.mxu0 0.0
        %1296 = vmatpush1.msra.mxu0 0.0
        %1297 = vmatprep.subr.mxu0 0.0
        %1298 = vmatpush1.msra.mxu0 0.0
        %1299 = vmatprep.subr.mxu0 0.0
        %1300 = vmatpush1.msra.mxu0 0.0
        %1301 = vmatprep.subr.mxu0 0.0
        %1302 = vmatpush1.msra.mxu0 0.0
        %1303 = vmatprep.subr.mxu0 0.0
        %1304 = vmatpush1.msra.mxu0 0.0
        %1305 = vmatprep.subr.mxu0 0.0
        %1306 = vmatpush1.msra.mxu0 0.0
        %1307 = vmatprep.subr.mxu0 0.0
        %1308 = vmatpush1.msra.mxu0 0.0
        %1309 = vmatprep.subr.mxu0 0.0
        %1310 = vmatpush1.msra.mxu0 0.0
        %1311 = vmatprep.subr.mxu0 0.0
        %1312 = vmatpush1.msra.mxu0 0.0
        %1313 = vmatprep.subr.mxu0 0.0
        %1314 = vmatpush1.msra.mxu0 0.0
        %1315 = vmatprep.subr.mxu0 0.0
        %1316 = vmatpush1.msra.mxu0 0.0
        %1317 = vmatprep.subr.mxu0 0.0
        %1318 = vmatpush1.msra.mxu0 0.0
        %1319 = vmatprep.subr.mxu0 0.0
        %1320 = vmatpush1.msra.mxu0 0.0
        %1321 = vmatprep.subr.mxu0 0.0
        %1322 = vmatpush1.msra.mxu0 0.0
        %1323 = vmatprep.subr.mxu0 0.0
        %1324 = vmatpush1.msra.mxu0 0.0
        %1325 = vmatprep.subr.mxu0 0.0
        %1326 = vmatpush1.msra.mxu0 0.0
        %1327 = vmatprep.subr.mxu0 0.0
        %1328 = vmatpush1.msra.mxu0 0.0
        %1329 = vmatprep.subr.mxu0 0.0
        %1330 = vmatpush1.msra.mxu0 0.0
        %1331 = vmatprep.subr.mxu0 0.0
        %1332 = vmatpush1.msra.mxu0 0.0
        %1333 = vmatprep.subr.mxu0 0.0
        %1334 = vmatpush1.msra.mxu0 0.0
        %1335 = vmatprep.subr.mxu0 0.0
        %1336 = vmatpush1.msra.mxu0 0.0
        %1337 = vmatprep.subr.mxu0 0.0
        %1338 = vmatpush1.msra.mxu0 0.0
        %1339 = vmatprep.subr.mxu0 0.0
        %1340 = vmatpush1.msra.mxu0 0.0
        %1341 = vmatprep.subr.mxu0 0.0
        %1342 = vmatpush1.msra.mxu0 0.0
        %1343 = vmatprep.subr.mxu0 0.0
        %1344 = vmatpush1.msra.mxu0 0.0
        %1345 = vmatprep.subr.mxu0 0.0
        %1346 = vmatpush1.msra.mxu0 0.0
        %1347 = vmatprep.subr.mxu0 0.0
        %1348 = vmatpush1.msra.mxu0 0.0
        %1349 = vmatprep.mubr.f32.mxu0 0.0
        %1350 = vmatmul.mubr.f32.gmra.mrb[0].mxu0 %v1283
        %v1351 = vpop.f32.mrb[0].mxu0
        %v1352 = vadd.f32 0.0, %v1351
        %v1353 = vpop.f32.mrb[0].mxu0
        %1354 = vdwg.mxu0
        %v1356 = vsel %vm716, %v1352, 0
        %1358 = vmatprep.subr.mxu0 0.0
        %1359 = vmatpush1.msra.mxu0 %v703
        %1360 = vmatprep.subr.mxu0 0.0
        %1361 = vmatpush1.msra.mxu0 0.0
        %1362 = vmatprep.subr.mxu0 0.0
        %1363 = vmatpush1.msra.mxu0 0.0
        %1364 = vmatprep.subr.mxu0 0.0
        %1365 = vmatpush1.msra.mxu0 0.0
        %1366 = vmatprep.subr.mxu0 0.0
        %1367 = vmatpush1.msra.mxu0 0.0
        %1368 = vmatprep.subr.mxu0 0.0
        %1369 = vmatpush1.msra.mxu0 0.0
        %1370 = vmatprep.subr.mxu0 0.0
        %1371 = vmatpush1.msra.mxu0 0.0
        %1372 = vmatprep.subr.mxu0 0.0
        %1373 = vmatpush1.msra.mxu0 0.0
        %1374 = vmatprep.subr.mxu0 0.0
        %1375 = vmatpush1.msra.mxu0 0.0
        %1376 = vmatprep.subr.mxu0 0.0
        %1377 = vmatpush1.msra.mxu0 0.0
        %1378 = vmatprep.subr.mxu0 0.0
        %1379 = vmatpush1.msra.mxu0 0.0
        %1380 = vmatprep.subr.mxu0 0.0
        %1381 = vmatpush1.msra.mxu0 0.0
        %1382 = vmatprep.subr.mxu0 0.0
        %1383 = vmatpush1.msra.mxu0 0.0
        %1384 = vmatprep.subr.mxu0 0.0
        %1385 = vmatpush1.msra.mxu0 0.0
        %1386 = vmatprep.subr.mxu0 0.0
        %1387 = vmatpush1.msra.mxu0 0.0
        %1388 = vmatprep.subr.mxu0 0.0
        %1389 = vmatpush1.msra.mxu0 0.0
        %1390 = vmatprep.subr.mxu0 0.0
        %1391 = vmatpush1.msra.mxu0 0.0
        %1392 = vmatprep.subr.mxu0 0.0
        %1393 = vmatpush1.msra.mxu0 0.0
        %1394 = vmatprep.subr.mxu0 0.0
        %1395 = vmatpush1.msra.mxu0 0.0
        %1396 = vmatprep.subr.mxu0 0.0
        %1397 = vmatpush1.msra.mxu0 0.0
        %1398 = vmatprep.subr.mxu0 0.0
        %1399 = vmatpush1.msra.mxu0 0.0
        %1400 = vmatprep.subr.mxu0 0.0
        %1401 = vmatpush1.msra.mxu0 0.0
        %1402 = vmatprep.subr.mxu0 0.0
        %1403 = vmatpush1.msra.mxu0 0.0
        %1404 = vmatprep.subr.mxu0 0.0
        %1405 = vmatpush1.msra.mxu0 0.0
        %1406 = vmatprep.subr.mxu0 0.0
        %1407 = vmatpush1.msra.mxu0 0.0
        %1408 = vmatprep.subr.mxu0 0.0
        %1409 = vmatpush1.msra.mxu0 0.0
        %1410 = vmatprep.subr.mxu0 0.0
        %1411 = vmatpush1.msra.mxu0 0.0
        %1412 = vmatprep.subr.mxu0 0.0
        %1413 = vmatpush1.msra.mxu0 0.0
        %1414 = vmatprep.subr.mxu0 0.0
        %1415 = vmatpush1.msra.mxu0 0.0
        %1416 = vmatprep.subr.mxu0 0.0
        %1417 = vmatpush1.msra.mxu0 0.0
        %1418 = vmatprep.subr.mxu0 0.0
        %1419 = vmatpush1.msra.mxu0 0.0
        %1420 = vmatprep.subr.mxu0 0.0
        %1421 = vmatpush1.msra.mxu0 0.0
        %1422 = vmatprep.mubr.f32.mxu0 0.0
        %1423 = vmatmul.mubr.f32.gmra.mrb[0].mxu0 %v1356
        %v1424 = vpop.f32.mrb[0].mxu0
        %v1425 = vadd.f32 0.0, %v1424
        %v1426 = vpop.f32.mrb[0].mxu0
        %1427 = vdwg.mxu0
        %v1428 = vadd.f32 %v1187, %v1425
        %1429 = vrot.lane.b32.xlu0 %v706, 104
        %v1430 = vpop.permute.xlu0 %1429
        %1431 = vrot.lane.b32.xlu0 %v698, 72
        %v1432 = vpop.permute.xlu0 %1431
        %v1433 = vsel %vm716, %v1430, 0
        %v1435 = vsel %vm716, %v1432, 0
        %1437 = vmatprep.subr.mxu0 0.0
        %1438 = vmatpush1.xpose.msra.mxu0 %v1435
        %1439 = vmatprep.subr.mxu0 0.0
        %1440 = vmatpush1.xpose.msra.mxu0 0.0
        %1441 = vmatprep.subr.mxu0 0.0
        %1442 = vmatpush1.xpose.msra.mxu0 0.0
        %1443 = vmatprep.subr.mxu0 0.0
        %1444 = vmatpush1.xpose.msra.mxu0 0.0
        %1445 = vmatprep.subr.mxu0 0.0
        %1446 = vmatpush1.xpose.msra.mxu0 0.0
        %1447 = vmatprep.subr.mxu0 0.0
        %1448 = vmatpush1.xpose.msra.mxu0 0.0
        %1449 = vmatprep.subr.mxu0 0.0
        %1450 = vmatpush1.xpose.msra.mxu0 0.0
        %1451 = vmatprep.subr.mxu0 0.0
        %1452 = vmatpush1.xpose.msra.mxu0 0.0
        %1453 = vmatprep.subr.mxu0 0.0
        %1454 = vmatpush1.xpose.msra.mxu0 0.0
        %1455 = vmatprep.subr.mxu0 0.0
        %1456 = vmatpush1.xpose.msra.mxu0 0.0
        %1457 = vmatprep.subr.mxu0 0.0
        %1458 = vmatpush1.xpose.msra.mxu0 0.0
        %1459 = vmatprep.subr.mxu0 0.0
        %1460 = vmatpush1.xpose.msra.mxu0 0.0
        %1461 = vmatprep.subr.mxu0 0.0
        %1462 = vmatpush1.xpose.msra.mxu0 0.0
        %1463 = vmatprep.subr.mxu0 0.0
        %1464 = vmatpush1.xpose.msra.mxu0 0.0
        %1465 = vmatprep.subr.mxu0 0.0
        %1466 = vmatpush1.xpose.msra.mxu0 0.0
        %1467 = vmatprep.subr.mxu0 0.0
        %1468 = vmatpush1.xpose.msra.mxu0 0.0
        %1469 = vmatprep.subr.mxu0 0.0
        %1470 = vmatpush1.xpose.msra.mxu0 0.0
        %1471 = vmatprep.subr.mxu0 0.0
        %1472 = vmatpush1.xpose.msra.mxu0 0.0
        %1473 = vmatprep.subr.mxu0 0.0
        %1474 = vmatpush1.xpose.msra.mxu0 0.0
        %1475 = vmatprep.subr.mxu0 0.0
        %1476 = vmatpush1.xpose.msra.mxu0 0.0
        %1477 = vmatprep.subr.mxu0 0.0
        %1478 = vmatpush1.xpose.msra.mxu0 0.0
        %1479 = vmatprep.subr.mxu0 0.0
        %1480 = vmatpush1.xpose.msra.mxu0 0.0
        %1481 = vmatprep.subr.mxu0 0.0
        %1482 = vmatpush1.xpose.msra.mxu0 0.0
        %1483 = vmatprep.subr.mxu0 0.0
        %1484 = vmatpush1.xpose.msra.mxu0 0.0
        %1485 = vmatprep.subr.mxu0 0.0
        %1486 = vmatpush1.xpose.msra.mxu0 0.0
        %1487 = vmatprep.subr.mxu0 0.0
        %1488 = vmatpush1.xpose.msra.mxu0 0.0
        %1489 = vmatprep.subr.mxu0 0.0
        %1490 = vmatpush1.xpose.msra.mxu0 0.0
        %1491 = vmatprep.subr.mxu0 0.0
        %1492 = vmatpush1.xpose.msra.mxu0 0.0
        %1493 = vmatprep.subr.mxu0 0.0
        %1494 = vmatpush1.xpose.msra.mxu0 0.0
        %1495 = vmatprep.subr.mxu0 0.0
        %1496 = vmatpush1.xpose.msra.mxu0 0.0
        %1497 = vmatprep.subr.mxu0 0.0
        %1498 = vmatpush1.xpose.msra.mxu0 0.0
        %1499 = vmatprep.subr.mxu0 0.0
        %1500 = vmatpush1.xpose.msra.mxu0 0.0
        %1501 = vmatprep.mubr.f32.mxu0 0.0
        %1502 = vmatmul.mubr.f32.gmra.mrb[0].mxu0 %v1433
        %v1503 = vpop.f32.mrb[0].mxu0
        %v1504 = vadd.f32 %v711, %v1503
        %v1505 = vpop.f32.mrb[0].mxu0
        %1506 = vdwg.mxu0
        %v1507 = vsel %vm716, %v1504, -inf
        %1508 = vmax.xlane.f32.xlu0 %v1507
        %v1509 = vpop.xlane.xlu0 %1508
        %v1510 = vsub.f32 %v1504, %v1509
        %v1511 = vmul.f32 %v1510, 1.442695
        %v1512 = vpow.pop %v1511
        %v1513 = vsel %vm716, %v1512, 0.0
        %1514 = vadd.xlane.f32.xlu0 %v1513
        %v1515 = vpop.xlane.xlu0 %1514
        %v1516 = vrcp.pop %v1515
        %v1517 = vmul.f32 %v1512, %v1516
        %1518 = vrot.lane.b32.xlu0 %v698, 40
        %v1519 = vpop.permute.xlu0 %1518
        %v1522 = vsel %vm716, %v1517, 0
        %1524 = vmatprep.subr.mxu0 0.0
        %1525 = vmatpush1.msra.mxu0 %v1519
        %1526 = vmatprep.subr.mxu0 0.0
        %1527 = vmatpush1.msra.mxu0 0.0
        %1528 = vmatprep.subr.mxu0 0.0
        %1529 = vmatpush1.msra.mxu0 0.0
        %1530 = vmatprep.subr.mxu0 0.0
        %1531 = vmatpush1.msra.mxu0 0.0
        %1532 = vmatprep.subr.mxu0 0.0
        %1533 = vmatpush1.msra.mxu0 0.0
        %1534 = vmatprep.subr.mxu0 0.0
        %1535 = vmatpush1.msra.mxu0 0.0
        %1536 = vmatprep.subr.mxu0 0.0
        %1537 = vmatpush1.msra.mxu0 0.0
        %1538 = vmatprep.subr.mxu0 0.0
        %1539 = vmatpush1.msra.mxu0 0.0
        %1540 = vmatprep.subr.mxu0 0.0
        %1541 = vmatpush1.msra.mxu0 0.0
        %1542 = vmatprep.subr.mxu0 0.0
        %1543 = vmatpush1.msra.mxu0 0.0
        %1544 = vmatprep.subr.mxu0 0.0
        %1545 = vmatpush1.msra.mxu0 0.0
        %1546 = vmatprep.subr.mxu0 0.0
        %1547 = vmatpush1.msra.mxu0 0.0
        %1548 = vmatprep.subr.mxu0 0.0
        %1549 = vmatpush1.msra.mxu0 0.0
        %1550 = vmatprep.subr.mxu0 0.0
        %1551 = vmatpush1.msra.mxu0 0.0
        %1552 = vmatprep.subr.mxu0 0.0
        %1553 = vmatpush1.msra.mxu0 0.0
        %1554 = vmatprep.subr.mxu0 0.0
        %1555 = vmatpush1.msra.mxu0 0.0
        %1556 = vmatprep.subr.mxu0 0.0
        %1557 = vmatpush1.msra.mxu0 0.0
        %1558 = vmatprep.subr.mxu0 0.0
        %1559 = vmatpush1.msra.mxu0 0.0
        %1560 = vmatprep.subr.mxu0 0.0
        %1561 = vmatpush1.msra.mxu0 0.0
        %1562 = vmatprep.subr.mxu0 0.0
        %1563 = vmatpush1.msra.mxu0 0.0
        %1564 = vmatprep.subr.mxu0 0.0
        %1565 = vmatpush1.msra.mxu0 0.0
        %1566 = vmatprep.subr.mxu0 0.0
        %1567 = vmatpush1.msra.mxu0 0.0
        %1568 = vmatprep.subr.mxu0 0.0
        %1569 = vmatpush1.msra.mxu0 0.0
        %1570 = vmatprep.subr.mxu0 0.0
        %1571 = vmatpush1.msra.mxu0 0.0
        %1572 = vmatprep.subr.mxu0 0.0
        %1573 = vmatpush1.msra.mxu0 0.0
        %1574 = vmatprep.subr.mxu0 0.0
        %1575 = vmatpush1.msra.mxu0 0.0
        %1576 = vmatprep.subr.mxu0 0.0
        %1577 = vmatpush1.msra.mxu0 0.0
        %1578 = vmatprep.subr.mxu0 0.0
        %1579 = vmatpush1.msra.mxu0 0.0
        %1580 = vmatprep.subr.mxu0 0.0
        %1581 = vmatpush1.msra.mxu0 0.0
        %1582 = vmatprep.subr.mxu0 0.0
        %1583 = vmatpush1.msra.mxu0 0.0
        %1584 = vmatprep.subr.mxu0 0.0
        %1585 = vmatpush1.msra.mxu0 0.0
        %1586 = vmatprep.subr.mxu0 0.0
        %1587 = vmatpush1.msra.mxu0 0.0
        %1588 = vmatprep.mubr.f32.mxu0 0.0
        %1589 = vmatmul.mubr.f32.gmra.mrb[0].mxu0 %v1522
        %v1590 = vpop.f32.mrb[0].mxu0
        %v1591 = vadd.f32 0.0, %v1590
        %v1592 = vpop.f32.mrb[0].mxu0
        %1593 = vdwg.mxu0
        %v1595 = vsel %vm716, %v1591, 0
        %1597 = vmatprep.subr.mxu0 0.0
        %1598 = vmatpush1.msra.mxu0 %v704
        %1599 = vmatprep.subr.mxu0 0.0
        %1600 = vmatpush1.msra.mxu0 0.0
        %1601 = vmatprep.subr.mxu0 0.0
        %1602 = vmatpush1.msra.mxu0 0.0
        %1603 = vmatprep.subr.mxu0 0.0
        %1604 = vmatpush1.msra.mxu0 0.0
        %1605 = vmatprep.subr.mxu0 0.0
        %1606 = vmatpush1.msra.mxu0 0.0
        %1607 = vmatprep.subr.mxu0 0.0
        %1608 = vmatpush1.msra.mxu0 0.0
        %1609 = vmatprep.subr.mxu0 0.0
        %1610 = vmatpush1.msra.mxu0 0.0
        %1611 = vmatprep.subr.mxu0 0.0
        %1612 = vmatpush1.msra.mxu0 0.0
        %1613 = vmatprep.subr.mxu0 0.0
        %1614 = vmatpush1.msra.mxu0 0.0
        %1615 = vmatprep.subr.mxu0 0.0
        %1616 = vmatpush1.msra.mxu0 0.0
        %1617 = vmatprep.subr.mxu0 0.0
        %1618 = vmatpush1.msra.mxu0 0.0
        %1619 = vmatprep.subr.mxu0 0.0
        %1620 = vmatpush1.msra.mxu0 0.0
        %1621 = vmatprep.subr.mxu0 0.0
        %1622 = vmatpush1.msra.mxu0 0.0
        %1623 = vmatprep.subr.mxu0 0.0
        %1624 = vmatpush1.msra.mxu0 0.0
        %1625 = vmatprep.subr.mxu0 0.0
        %1626 = vmatpush1.msra.mxu0 0.0
        %1627 = vmatprep.subr.mxu0 0.0
        %1628 = vmatpush1.msra.mxu0 0.0
        %1629 = vmatprep.subr.mxu0 0.0
        %1630 = vmatpush1.msra.mxu0 0.0
        %1631 = vmatprep.subr.mxu0 0.0
        %1632 = vmatpush1.msra.mxu0 0.0
        %1633 = vmatprep.subr.mxu0 0.0
        %1634 = vmatpush1.msra.mxu0 0.0
        %1635 = vmatprep.subr.mxu0 0.0
        %1636 = vmatpush1.msra.mxu0 0.0
        %1637 = vmatprep.subr.mxu0 0.0
        %1638 = vmatpush1.msra.mxu0 0.0
        %1639 = vmatprep.subr.mxu0 0.0
        %1640 = vmatpush1.msra.mxu0 0.0
        %1641 = vmatprep.subr.mxu0 0.0
        %1642 = vmatpush1.msra.mxu0 0.0
        %1643 = vmatprep.subr.mxu0 0.0
        %1644 = vmatpush1.msra.mxu0 0.0
        %1645 = vmatprep.subr.mxu0 0.0
        %1646 = vmatpush1.msra.mxu0 0.0
        %1647 = vmatprep.subr.mxu0 0.0
        %1648 = vmatpush1.msra.mxu0 0.0
        %1649 = vmatprep.subr.mxu0 0.0
        %1650 = vmatpush1.msra.mxu0 0.0
        %1651 = vmatprep.subr.mxu0 0.0
        %1652 = vmatpush1.msra.mxu0 0.0
        %1653 = vmatprep.subr.mxu0 0.0
        %1654 = vmatpush1.msra.mxu0 0.0
        %1655 = vmatprep.subr.mxu0 0.0
        %1656 = vmatpush1.msra.mxu0 0.0
        %1657 = vmatprep.subr.mxu0 0.0
        %1658 = vmatpush1.msra.mxu0 0.0
        %1659 = vmatprep.subr.mxu0 0.0
        %1660 = vmatpush1.msra.mxu0 0.0
        %1661 = vmatprep.mubr.f32.mxu0 0.0
        %1662 = vmatmul.mubr.f32.gmra.mrb[0].mxu0 %v1595
        %v1663 = vpop.f32.mrb[0].mxu0
        %v1664 = vadd.f32 0.0, %v1663
        %v1665 = vpop.f32.mrb[0].mxu0
        %1666 = vdwg.mxu0
        %v1667 = vadd.f32 %v1428, %v1664
        %v1669 = vlaneseq
        %v1670 = vshrl.u32 %v1669, 7
        %v1671 = vsub.s32 0, %v1670
        %v1672 = vrot.slane %v705, %v1671
        %v1674 = vadd.f32 %v1667, %v1672
        %v1675 = vadd.f32 %v615, %v1674
        %v1676 = vld [vmem:[%s8] sm:$0x1]
        %v1677 = vld [vmem:[%s9] sm:$0x1]
        %v1678 = vsel %vm587, %v1675, 0.0
        %1679 = vadd.xlane.f32.xlu0 %v1678
        %v1680 = vpop.xlane.xlu0 %1679
        %v1681 = vmul.f32 %v1680, %v591
        %v1682 = vsub.f32 %v1675, %v1681
        %v1683 = vmul.f32 %v1682, %v1682
        %v1684 = vsel %vm587, %v1683, 0.0
        %1685 = vadd.xlane.f32.xlu0 %v1684
        %v1686 = vpop.xlane.xlu0 %1685
        %v1687 = vmul.f32 %v1686, %v591
        %v1688 = vadd.f32 %v1687, 1e-12
        %v1689 = vrsqrt.pop %v1688
        %v1690 = vmul.f32 %v1682, %v1689
        %v1692 = vlaneseq
        %v1693 = vshrl.u32 %v1692, 7
        %v1694 = vsub.s32 0, %v1693
        %v1695 = vrot.slane %v1676, %v1694
        %v1697 = vmul.f32 %v1690, %v1695
        %v1699 = vlaneseq
        %v1700 = vshrl.u32 %v1699, 7
        %v1701 = vsub.s32 0, %v1700
        %v1702 = vrot.slane %v1677, %v1701
        %v1704 = vadd.f32 %v1697, %v1702
        %v1705 = vld [vmem:[%s10] sm:$0xff]
        %v1706 = vld [vmem:[%s10 + $0x8] sm:$0xff]
        %v1707 = vld [vmem:[%s10 + $0x10] sm:$0xff]
        %v1708 = vld [vmem:[%s10 + $0x18] sm:$0xff]
        %v1709 = vld [vmem:[%s11] sm:$0x1]
        %v1711 = vlaneseq
        %v1712 = vshrl.u32 %v1711, 7
        %v1713 = vsub.s32 0, %v1712
        %v1714 = vrot.slane %v1709, %v1713
        %v1717 = vsel %vm587, %v1704, 0
        %1719 = vmatprep.subr.mxu0 0.0
        %1720 = vmatpush1.msra.mxu0 %v1705
        %1721 = vmatprep.subr.mxu0 0.0
        %1722 = vmatpush1.msra.mxu0 %v1706
        %1723 = vmatprep.subr.mxu0 0.0
        %1724 = vmatpush1.msra.mxu0 %v1707
        %1725 = vmatprep.subr.mxu0 0.0
        %1726 = vmatpush1.msra.mxu0 %v1708
        %1727 = vmatprep.subr.mxu0 0.0
        %1728 = vmatpush1.msra.mxu0 0.0
        %1729 = vmatprep.subr.mxu0 0.0
        %1730 = vmatpush1.msra.mxu0 0.0
        %1731 = vmatprep.subr.mxu0 0.0
        %1732 = vmatpush1.msra.mxu0 0.0
        %1733 = vmatprep.subr.mxu0 0.0
        %1734 = vmatpush1.msra.mxu0 0.0
        %1735 = vmatprep.subr.mxu0 0.0
        %1736 = vmatpush1.msra.mxu0 0.0
        %1737 = vmatprep.subr.mxu0 0.0
        %1738 = vmatpush1.msra.mxu0 0.0
        %1739 = vmatprep.subr.mxu0 0.0
        %1740 = vmatpush1.msra.mxu0 0.0
        %1741 = vmatprep.subr.mxu0 0.0
        %1742 = vmatpush1.msra.mxu0 0.0
        %1743 = vmatprep.subr.mxu0 0.0
        %1744 = vmatpush1.msra.mxu0 0.0
        %1745 = vmatprep.subr.mxu0 0.0
        %1746 = vmatpush1.msra.mxu0 0.0
        %1747 = vmatprep.subr.mxu0 0.0
        %1748 = vmatpush1.msra.mxu0 0.0
        %1749 = vmatprep.subr.mxu0 0.0
        %1750 = vmatpush1.msra.mxu0 0.0
        %1751 = vmatprep.subr.mxu0 0.0
        %1752 = vmatpush1.msra.mxu0 0.0
        %1753 = vmatprep.subr.mxu0 0.0
        %1754 = vmatpush1.msra.mxu0 0.0
        %1755 = vmatprep.subr.mxu0 0.0
        %1756 = vmatpush1.msra.mxu0 0.0
        %1757 = vmatprep.subr.mxu0 0.0
        %1758 = vmatpush1.msra.mxu0 0.0
        %1759 = vmatprep.subr.mxu0 0.0
        %1760 = vmatpush1.msra.mxu0 0.0
        %1761 = vmatprep.subr.mxu0 0.0
        %1762 = vmatpush1.msra.mxu0 0.0
        %1763 = vmatprep.subr.mxu0 0.0
        %1764 = vmatpush1.msra.mxu0 0.0
        %1765 = vmatprep.subr.mxu0 0.0
        %1766 = vmatpush1.msra.mxu0 0.0
        %1767 = vmatprep.subr.mxu0 0.0
        %1768 = vmatpush1.msra.mxu0 0.0
        %1769 = vmatprep.subr.mxu0 0.0
        %1770 = vmatpush1.msra.mxu0 0.0
        %1771 = vmatprep.subr.mxu0 0.0
        %1772 = vmatpush1.msra.mxu0 0.0
        %1773 = vmatprep.subr.mxu0 0.0
        %1774 = vmatpush1.msra.mxu0 0.0
        %1775 = vmatprep.subr.mxu0 0.0
        %1776 = vmatpush1.msra.mxu0 0.0
        %1777 = vmatprep.subr.mxu0 0.0
        %1778 = vmatpush1.msra.mxu0 0.0
        %1779 = vmatprep.subr.mxu0 0.0
        %1780 = vmatpush1.msra.mxu0 0.0
        %1781 = vmatprep.subr.mxu0 0.0
        %1782 = vmatpush1.msra.mxu0 0.0
        %1783 = vmatprep.mubr.f32.mxu0 0.0
        %1784 = vmatmul.mubr.f32.gmra.mrb[0].mxu0 %v1717
        %v1785 = vpop.f32.mrb[0].mxu0
        %v1786 = vadd.f32 %v1714, %v1785
        %v1787 = vpop.f32.mrb[0].mxu0
        %1788 = vdwg.mxu0
        %v1789 = vmul.f32 %v1786, %v1786
        %v1790 = vmul.f32 %v1786, %v1789
        %v1791 = vmul.f32 %v1790, 0.044715
        %v1792 = vadd.f32 %v1786, %v1791
        %v1793 = vmul.f32 %v1792, 0.7978846
        %v1794 = vtanh.pop %v1793
        %v1795 = vadd.f32 %v1794, 1.0
        %v1796 = vmul.f32 %v1795, 0.5
        %v1797 = vmul.f32 %v1786, %v1796
        %v1798 = vld [vmem:[%s12] sm:$0xff]
        %v1799 = vld [vmem:[%s12 + $0x8] sm:$0xff]
        %v1800 = vld [vmem:[%s12 + $0x10] sm:$0xff]
        %v1801 = vld [vmem:[%s12 + $0x18] sm:$0xff]
        %v1802 = vld [vmem:[%s12 + $0x20] sm:$0xff]
        %v1803 = vld [vmem:[%s12 + $0x28] sm:$0xff]
        %v1804 = vld [vmem:[%s12 + $0x30] sm:$0xff]
        %v1805 = vld [vmem:[%s12 + $0x38] sm:$0xff]
        %v1806 = vld [vmem:[%s13] sm:$0x1]
        %v1808 = vlaneseq
        %v1809 = vshrl.u32 %v1808, 7
        %v1810 = vsub.s32 0, %v1809
        %v1811 = vrot.slane %v1806, %v1810
        %vm1813 = vcmask 523264
        %v1815 = vsel %vm1813, %v1797, 0
        %1817 = vmatprep.subr.mxu0 0.0
        %1818 = vmatpush1.msra.mxu0 %v1798
        %1819 = vmatprep.subr.mxu0 0.0
        %1820 = vmatpush1.msra.mxu0 %v1799
        %1821 = vmatprep.subr.mxu0 0.0
        %1822 = vmatpush1.msra.mxu0 %v1800
        %1823 = vmatprep.subr.mxu0 0.0
        %1824 = vmatpush1.msra.mxu0 %v1801
        %1825 = vmatprep.subr.mxu0 0.0
        %1826 = vmatpush1.msra.mxu0 %v1802
        %1827 = vmatprep.subr.mxu0 0.0
        %1828 = vmatpush1.msra.mxu0 %v1803
        %1829 = vmatprep.subr.mxu0 0.0
        %1830 = vmatpush1.msra.mxu0 %v1804
        %1831 = vmatprep.subr.mxu0 0.0
        %1832 = vmatpush1.msra.mxu0 %v1805
        %1833 = vmatprep.subr.mxu0 0.0
        %1834 = vmatpush1.msra.mxu0 0.0
        %1835 = vmatprep.subr.mxu0 0.0
        %1836 = vmatpush1.msra.mxu0 0.0
        %1837 = vmatprep.subr.mxu0 0.0
        %1838 = vmatpush1.msra.mxu0 0.0
        %1839 = vmatprep.subr.mxu0 0.0
        %1840 = vmatpush1.msra.mxu0 0.0
        %1841 = vmatprep.subr.mxu0 0.0
        %1842 = vmatpush1.msra.mxu0 0.0
        %1843 = vmatprep.subr.mxu0 0.0
        %1844 = vmatpush1.msra.mxu0 0.0
        %1845 = vmatprep.subr.mxu0 0.0
        %1846 = vmatpush1.msra.mxu0 0.0
        %1847 = vmatprep.subr.mxu0 0.0
        %1848 = vmatpush1.msra.mxu0 0.0
        %1849 = vmatprep.subr.mxu0 0.0
        %1850 = vmatpush1.msra.mxu0 0.0
        %1851 = vmatprep.subr.mxu0 0.0
        %1852 = vmatpush1.msra.mxu0 0.0
        %1853 = vmatprep.subr.mxu0 0.0
        %1854 = vmatpush1.msra.mxu0 0.0
        %1855 = vmatprep.subr.mxu0 0.0
        %1856 = vmatpush1.msra.mxu0 0.0
        %1857 = vmatprep.subr.mxu0 0.0
        %1858 = vmatpush1.msra.mxu0 0.0
        %1859 = vmatprep.subr.mxu0 0.0
        %1860 = vmatpush1.msra.mxu0 0.0
        %1861 = vmatprep.subr.mxu0 0.0
        %1862 = vmatpush1.msra.mxu0 0.0
        %1863 = vmatprep.subr.mxu0 0.0
        %1864 = vmatpush1.msra.mxu0 0.0
        %1865 = vmatprep.subr.mxu0 0.0
        %1866 = vmatpush1.msra.mxu0 0.0
        %1867 = vmatprep.subr.mxu0 0.0
        %1868 = vmatpush1.msra.mxu0 0.0
        %1869 = vmatprep.subr.mxu0 0.0
        %1870 = vmatpush1.msra.mxu0 0.0
        %1871 = vmatprep.subr.mxu0 0.0
        %1872 = vmatpush1.msra.mxu0 0.0
        %1873 = vmatprep.subr.mxu0 0.0
        %1874 = vmatpush1.msra.mxu0 0.0
        %1875 = vmatprep.subr.mxu0 0.0
        %1876 = vmatpush1.msra.mxu0 0.0
        %1877 = vmatprep.subr.mxu0 0.0
        %1878 = vmatpush1.msra.mxu0 0.0
        %1879 = vmatprep.subr.mxu0 0.0
        %1880 = vmatpush1.msra.mxu0 0.0
        %1881 = vmatprep.mubr.f32.mxu0 0.0
        %1882 = vmatmul.mubr.f32.gmra.mrb[0].mxu0 %v1815
        %v1883 = vpop.f32.mrb[0].mxu0
        %v1884 = vadd.f32 %v1811, %v1883
        %v1885 = vpop.f32.mrb[0].mxu0
        %1886 = vdwg.mxu0
        %v1887 = vadd.f32 %v1704, %v1884
        %v1888 = vld [vmem:[%s14] sm:$0x1]
        %v1889 = vld [vmem:[%s15] sm:$0x1]
        %v1890 = vsel %vm587, %v1887, 0.0
        %1891 = vadd.xlane.f32.xlu0 %v1890
        %v1892 = vpop.xlane.xlu0 %1891
        %v1893 = vmul.f32 %v1892, %v591
        %v1894 = vsub.f32 %v1887, %v1893
        %v1895 = vmul.f32 %v1894, %v1894
        %v1896 = vsel %vm587, %v1895, 0.0
        %1897 = vadd.xlane.f32.xlu0 %v1896
        %v1898 = vpop.xlane.xlu0 %1897
        %v1899 = vmul.f32 %v1898, %v591
        %v1900 = vadd.f32 %v1899, 1e-12
        %v1901 = vrsqrt.pop %v1900
        %v1902 = vmul.f32 %v1894, %v1901
        %v1904 = vlaneseq
        %v1905 = vshrl.u32 %v1904, 7
        %v1906 = vsub.s32 0, %v1905
        %v1907 = vrot.slane %v1888, %v1906
        %v1909 = vmul.f32 %v1902, %v1907
        %v1911 = vlaneseq
        %v1912 = vshrl.u32 %v1911, 7
        %v1913 = vsub.s32 0, %v1912
        %v1914 = vrot.slane %v1889, %v1913
        %v1916 = vadd.f32 %v1909, %v1914
        %s1917 = scalar_lea.vmem %s4, 32
        %v1918 = vld [vmem:[%s1917] sm:$0xff]
        %v1919 = vld [vmem:[%s1917 + $0x8] sm:$0xff]
        %v1920 = vld [vmem:[%s1917 + $0x10] sm:$0xff]
        %v1921 = vld [vmem:[%s1917 + $0x18] sm:$0xff]
        %s1922 = scalar_lea.vmem %s5, 1
        %v1923 = vld [vmem:[%s1922] sm:$0x1]
        %v1925 = vlaneseq
        %v1926 = vshrl.u32 %v1925, 7
        %v1927 = vsub.s32 0, %v1926
        %v1928 = vrot.slane %v1923, %v1927
        %v1931 = vsel %vm587, %v1916, 0
        %1933 = vmatprep.subr.mxu0 0.0
        %1934 = vmatpush1.msra.mxu0 %v1918
        %1935 = vmatprep.subr.mxu0 0.0
        %1936 = vmatpush1.msra.mxu0 %v1919
        %1937 = vmatprep.subr.mxu0 0.0
        %1938 = vmatpush1.msra.mxu0 %v1920
        %1939 = vmatprep.subr.mxu0 0.0
        %1940 = vmatpush1.msra.mxu0 %v1921
        %1941 = vmatprep.subr.mxu0 0.0
        %1942 = vmatpush1.msra.mxu0 0.0
        %1943 = vmatprep.subr.mxu0 0.0
        %1944 = vmatpush1.msra.mxu0 0.0
        %1945 = vmatprep.subr.mxu0 0.0
        %1946 = vmatpush1.msra.mxu0 0.0
        %1947 = vmatprep.subr.mxu0 0.0
        %1948 = vmatpush1.msra.mxu0 0.0
        %1949 = vmatprep.subr.mxu0 0.0
        %1950 = vmatpush1.msra.mxu0 0.0
        %1951 = vmatprep.subr.mxu0 0.0
        %1952 = vmatpush1.msra.mxu0 0.0
        %1953 = vmatprep.subr.mxu0 0.0
        %1954 = vmatpush1.msra.mxu0 0.0
        %1955 = vmatprep.subr.mxu0 0.0
        %1956 = vmatpush1.msra.mxu0 0.0
        %1957 = vmatprep.subr.mxu0 0.0
        %1958 = vmatpush1.msra.mxu0 0.0
        %1959 = vmatprep.subr.mxu0 0.0
        %1960 = vmatpush1.msra.mxu0 0.0
        %1961 = vmatprep.subr.mxu0 0.0
        %1962 = vmatpush1.msra.mxu0 0.0
        %1963 = vmatprep.subr.mxu0 0.0
        %1964 = vmatpush1.msra.mxu0 0.0
        %1965 = vmatprep.subr.mxu0 0.0
        %1966 = vmatpush1.msra.mxu0 0.0
        %1967 = vmatprep.subr.mxu0 0.0
        %1968 = vmatpush1.msra.mxu0 0.0
        %1969 = vmatprep.subr.mxu0 0.0
        %1970 = vmatpush1.msra.mxu0 0.0
        %1971 = vmatprep.subr.mxu0 0.0
        %1972 = vmatpush1.msra.mxu0 0.0
        %1973 = vmatprep.subr.mxu0 0.0
        %1974 = vmatpush1.msra.mxu0 0.0
        %1975 = vmatprep.subr.mxu0 0.0
        %1976 = vmatpush1.msra.mxu0 0.0
        %1977 = vmatprep.subr.mxu0 0.0
        %1978 = vmatpush1.msra.mxu0 0.0
        %1979 = vmatprep.subr.mxu0 0.0
        %1980 = vmatpush1.msra.mxu0 0.0
        %1981 = vmatprep.subr.mxu0 0.0
        %1982 = vmatpush1.msra.mxu0 0.0
        %1983 = vmatprep.subr.mxu0 0.0
        %1984 = vmatpush1.msra.mxu0 0.0
        %1985 = vmatprep.subr.mxu0 0.0
        %1986 = vmatpush1.msra.mxu0 0.0
        %1987 = vmatprep.subr.mxu0 0.0
        %1988 = vmatpush1.msra.mxu0 0.0
        %1989 = vmatprep.subr.mxu0 0.0
        %1990 = vmatpush1.msra.mxu0 0.0
        %1991 = vmatprep.subr.mxu0 0.0
        %1992 = vmatpush1.msra.mxu0 0.0
        %1993 = vmatprep.subr.mxu0 0.0
        %1994 = vmatpush1.msra.mxu0 0.0
        %1995 = vmatprep.subr.mxu0 0.0
        %1996 = vmatpush1.msra.mxu0 0.0
        %1997 = vmatprep.mubr.f32.mxu0 0.0
        %1998 = vmatmul.mubr.f32.gmra.mrb[0].mxu0 %v1931
        %v1999 = vpop.f32.mrb[0].mxu0
        %v2000 = vadd.f32 %v1928, %v1999
        %v2001 = vpop.f32.mrb[0].mxu0
        %2002 = vdwg.mxu0
        %s2003 = scalar_lea.vmem %s6, 32
        %v2004 = vld [vmem:[%s2003] sm:$0xff]
        %v2005 = vld [vmem:[%s2003 + $0x8] sm:$0xff]
        %v2006 = vld [vmem:[%s2003 + $0x10] sm:$0xff]
        %v2007 = vld [vmem:[%s2003 + $0x18] sm:$0xff]
        %s2008 = scalar_lea.vmem %s7, 1
        %v2009 = vld [vmem:[%s2008] sm:$0x1]
        %v2010 = vmul.f32 %v2000, 0.35355338
        %2012 = vrot.lane.b32.xlu0 %v2000, 96
        %v2013 = vpop.permute.xlu0 %2012
        %v2015 = vsel %vm716, %v2010, 0
        %v2017 = vsel %vm716, %v2013, 0
        %2019 = vmatprep.subr.mxu0 0.0
        %2020 = vmatpush1.xpose.msra.mxu0 %v2017
        %2021 = vmatprep.subr.mxu0 0.0
        %2022 = vmatpush1.xpose.msra.mxu0 0.0
        %2023 = vmatprep.subr.mxu0 0.0
        %2024 = vmatpush1.xpose.msra.mxu0 0.0
        %2025 = vmatprep.subr.mxu0 0.0
        %2026 = vmatpush1.xpose.msra.mxu0 0.0
        %2027 = vmatprep.subr.mxu0 0.0
        %2028 = vmatpush1.xpose.msra.mxu0 0.0
        %2029 = vmatprep.subr.mxu0 0.0
        %2030 = vmatpush1.xpose.msra.mxu0 0.0
        %2031 = vmatprep.subr.mxu0 0.0
        %2032 = vmatpush1.xpose.msra.mxu0 0.0
        %2033 = vmatprep.subr.mxu0 0.0
        %2034 = vmatpush1.xpose.msra.mxu0 0.0
        %2035 = vmatprep.subr.mxu0 0.0
        %2036 = vmatpush1.xpose.msra.mxu0 0.0
        %2037 = vmatprep.subr.mxu0 0.0
        %2038 = vmatpush1.xpose.msra.mxu0 0.0
        %2039 = vmatprep.subr.mxu0 0.0
        %2040 = vmatpush1.xpose.msra.mxu0 0.0
        %2041 = vmatprep.subr.mxu0 0.0
        %2042 = vmatpush1.xpose.msra.mxu0 0.0
        %2043 = vmatprep.subr.mxu0 0.0
        %2044 = vmatpush1.xpose.msra.mxu0 0.0
        %2045 = vmatprep.subr.mxu0 0.0
        %2046 = vmatpush1.xpose.msra.mxu0 0.0
        %2047 = vmatprep.subr.mxu0 0.0
        %2048 = vmatpush1.xpose.msra.mxu0 0.0
        %2049 = vmatprep.subr.mxu0 0.0
        %2050 = vmatpush1.xpose.msra.mxu0 0.0
        %2051 = vmatprep.subr.mxu0 0.0
        %2052 = vmatpush1.xpose.msra.mxu0 0.0
        %2053 = vmatprep.subr.mxu0 0.0
        %2054 = vmatpush1.xpose.msra.mxu0 0.0
        %2055 = vmatprep.subr.mxu0 0.0
        %2056 = vmatpush1.xpose.msra.mxu0 0.0
        %2057 = vmatprep.subr.mxu0 0.0
        %2058 = vmatpush1.xpose.msra.mxu0 0.0
        %2059 = vmatprep.subr.mxu0 0.0
        %2060 = vmatpush1.xpose.msra.mxu0 0.0
        %2061 = vmatprep.subr.mxu0 0.0
        %2062 = vmatpush1.xpose.msra.mxu0 0.0
        %2063 = vmatprep.subr.mxu0 0.0
        %2064 = vmatpush1.xpose.msra.mxu0 0.0
        %2065 = vmatprep.subr.mxu0 0.0
        %2066 = vmatpush1.xpose.msra.mxu0 0.0
        %2067 = vmatprep.subr.mxu0 0.0
        %2068 = vmatpush1.xpose.msra.mxu0 0.0
        %2069 = vmatprep.subr.mxu0 0.0
        %2070 = vmatpush1.xpose.msra.mxu0 0.0
        %2071 = vmatprep.subr.mxu0 0.0
        %2072 = vmatpush1.xpose.msra.mxu0 0.0
        %2073 = vmatprep.subr.mxu0 0.0
        %2074 = vmatpush1.xpose.msra.mxu0 0.0
        %2075 = vmatprep.subr.mxu0 0.0
        %2076 = vmatpush1.xpose.msra.mxu0 0.0
        %2077 = vmatprep.subr.mxu0 0.0
        %2078 = vmatpush1.xpose.msra.mxu0 0.0
        %2079 = vmatprep.subr.mxu0 0.0
        %2080 = vmatpush1.xpose.msra.mxu0 0.0
        %2081 = vmatprep.subr.mxu0 0.0
        %2082 = vmatpush1.xpose.msra.mxu0 0.0
        %2083 = vmatprep.mubr.f32.mxu0 0.0
        %2084 = vmatmul.mubr.f32.gmra.mrb[0].mxu0 %v2015
        %v2085 = vpop.f32.mrb[0].mxu0
        %v2086 = vadd.f32 %v711, %v2085
        %v2087 = vpop.f32.mrb[0].mxu0
        %2088 = vdwg.mxu0
        %v2089 = vsel %vm716, %v2086, -inf
        %2090 = vmax.xlane.f32.xlu0 %v2089
        %v2091 = vpop.xlane.xlu0 %2090
        %v2092 = vsub.f32 %v2086, %v2091
        %v2093 = vmul.f32 %v2092, 1.442695
        %v2094 = vpow.pop %v2093
        %v2095 = vsel %vm716, %v2094, 0.0
        %2096 = vadd.xlane.f32.xlu0 %v2095
        %v2097 = vpop.xlane.xlu0 %2096
        %v2098 = vrcp.pop %v2097
        %v2099 = vmul.f32 %v2094, %v2098
        %2100 = vrot.lane.b32.xlu0 %v2000, 64
        %v2101 = vpop.permute.xlu0 %2100
        %v2104 = vsel %vm716, %v2099, 0
        %2106 = vmatprep.subr.mxu0 0.0
        %2107 = vmatpush1.msra.mxu0 %v2101
        %2108 = vmatprep.subr.mxu0 0.0
        %2109 = vmatpush1.msra.mxu0 0.0
        %2110 = vmatprep.subr.mxu0 0.0
        %2111 = vmatpush1.msra.mxu0 0.0
        %2112 = vmatprep.subr.mxu0 0.0
        %2113 = vmatpush1.msra.mxu0 0.0
        %2114 = vmatprep.subr.mxu0 0.0
        %2115 = vmatpush1.msra.mxu0 0.0
        %2116 = vmatprep.subr.mxu0 0.0
        %2117 = vmatpush1.msra.mxu0 0.0
        %2118 = vmatprep.subr.mxu0 0.0
        %2119 = vmatpush1.msra.mxu0 0.0
        %2120 = vmatprep.subr.mxu0 0.0
        %2121 = vmatpush1.msra.mxu0 0.0
        %2122 = vmatprep.subr.mxu0 0.0
        %2123 = vmatpush1.msra.mxu0 0.0
        %2124 = vmatprep.subr.mxu0 0.0
        %2125 = vmatpush1.msra.mxu0 0.0
        %2126 = vmatprep.subr.mxu0 0.0
        %2127 = vmatpush1.msra.mxu0 0.0
        %2128 = vmatprep.subr.mxu0 0.0
        %2129 = vmatpush1.msra.mxu0 0.0
        %2130 = vmatprep.subr.mxu0 0.0
        %2131 = vmatpush1.msra.mxu0 0.0
        %2132 = vmatprep.subr.mxu0 0.0
        %2133 = vmatpush1.msra.mxu0 0.0
        %2134 = vmatprep.subr.mxu0 0.0
        %2135 = vmatpush1.msra.mxu0 0.0
        %2136 = vmatprep.subr.mxu0 0.0
        %2137 = vmatpush1.msra.mxu0 0.0
        %2138 = vmatprep.subr.mxu0 0.0
        %2139 = vmatpush1.msra.mxu0 0.0
        %2140 = vmatprep.subr.mxu0 0.0
        %2141 = vmatpush1.msra.mxu0 0.0
        %2142 = vmatprep.subr.mxu0 0.0
        %2143 = vmatpush1.msra.mxu0 0.0
        %2144 = vmatprep.subr.mxu0 0.0
        %2145 = vmatpush1.msra.mxu0 0.0
        %2146 = vmatprep.subr.mxu0 0.0
        %2147 = vmatpush1.msra.mxu0 0.0
        %2148 = vmatprep.subr.mxu0 0.0
        %2149 = vmatpush1.msra.mxu0 0.0
        %2150 = vmatprep.subr.mxu0 0.0
        %2151 = vmatpush1.msra.mxu0 0.0
        %2152 = vmatprep.subr.mxu0 0.0
        %2153 = vmatpush1.msra.mxu0 0.0
        %2154 = vmatprep.subr.mxu0 0.0
        %2155 = vmatpush1.msra.mxu0 0.0
        %2156 = vmatprep.subr.mxu0 0.0
        %2157 = vmatpush1.msra.mxu0 0.0
        %2158 = vmatprep.subr.mxu0 0.0
        %2159 = vmatpush1.msra.mxu0 0.0
        %2160 = vmatprep.subr.mxu0 0.0
        %2161 = vmatpush1.msra.mxu0 0.0
        %2162 = vmatprep.subr.mxu0 0.0
        %2163 = vmatpush1.msra.mxu0 0.0
        %2164 = vmatprep.subr.mxu0 0.0
        %2165 = vmatpush1.msra.mxu0 0.0
        %2166 = vmatprep.subr.mxu0 0.0
        %2167 = vmatpush1.msra.mxu0 0.0
        %2168 = vmatprep.subr.mxu0 0.0
        %2169 = vmatpush1.msra.mxu0 0.0
        %2170 = vmatprep.mubr.f32.mxu0 0.0
        %2171 = vmatmul.mubr.f32.gmra.mrb[0].mxu0 %v2104
        %v2172 = vpop.f32.mrb[0].mxu0
        %v2173 = vadd.f32 0.0, %v2172
        %v2174 = vpop.f32.mrb[0].mxu0
        %2175 = vdwg.mxu0
        %2176 = vrot.lane.b32.xlu0 %v2010, 120
        %v2177 = vpop.permute.xlu0 %2176
        %2178 = vrot.lane.b32.xlu0 %v2000, 88
        %v2179 = vpop.permute.xlu0 %2178
        %v2180 = vsel %vm716, %v2177, 0
        %v2182 = vsel %vm716, %v2179, 0
        %2184 = vmatprep.subr.mxu0 0.0
        %2185 = vmatpush1.xpose.msra.mxu0 %v2182
        %2186 = vmatprep.subr.mxu0 0.0
        %2187 = vmatpush1.xpose.msra.mxu0 0.0
        %2188 = vmatprep.subr.mxu0 0.0
        %2189 = vmatpush1.xpose.msra.mxu0 0.0
        %2190 = vmatprep.subr.mxu0 0.0
        %2191 = vmatpush1.xpose.msra.mxu0 0.0
        %2192 = vmatprep.subr.mxu0 0.0
        %2193 = vmatpush1.xpose.msra.mxu0 0.0
        %2194 = vmatprep.subr.mxu0 0.0
        %2195 = vmatpush1.xpose.msra.mxu0 0.0
        %2196 = vmatprep.subr.mxu0 0.0
        %2197 = vmatpush1.xpose.msra.mxu0 0.0
        %2198 = vmatprep.subr.mxu0 0.0
        %2199 = vmatpush1.xpose.msra.mxu0 0.0
        %2200 = vmatprep.subr.mxu0 0.0
        %2201 = vmatpush1.xpose.msra.mxu0 0.0
        %2202 = vmatprep.subr.mxu0 0.0
        %2203 = vmatpush1.xpose.msra.mxu0 0.0
        %2204 = vmatprep.subr.mxu0 0.0
        %2205 = vmatpush1.xpose.msra.mxu0 0.0
        %2206 = vmatprep.subr.mxu0 0.0
        %2207 = vmatpush1.xpose.msra.mxu0 0.0
        %2208 = vmatprep.subr.mxu0 0.0
        %2209 = vmatpush1.xpose.msra.mxu0 0.0
        %2210 = vmatprep.subr.mxu0 0.0
        %2211 = vmatpush1.xpose.msra.mxu0 0.0
        %2212 = vmatprep.subr.mxu0 0.0
        %2213 = vmatpush1.xpose.msra.mxu0 0.0
        %2214 = vmatprep.subr.mxu0 0.0
        %2215 = vmatpush1.xpose.msra.mxu0 0.0
        %2216 = vmatprep.subr.mxu0 0.0
        %2217 = vmatpush1.xpose.msra.mxu0 0.0
        %2218 = vmatprep.subr.mxu0 0.0
        %2219 = vmatpush1.xpose.msra.mxu0 0.0
        %2220 = vmatprep.subr.mxu0 0.0
        %2221 = vmatpush1.xpose.msra.mxu0 0.0
        %2222 = vmatprep.subr.mxu0 0.0
        %2223 = vmatpush1.xpose.msra.mxu0 0.0
        %2224 = vmatprep.subr.mxu0 0.0
        %2225 = vmatpush1.xpose.msra.mxu0 0.0
        %2226 = vmatprep.subr.mxu0 0.0
        %2227 = vmatpush1.xpose.msra.mxu0 0.0
        %2228 = vmatprep.subr.mxu0 0.0
        %2229 = vmatpush1.xpose.msra.mxu0 0.0
        %2230 = vmatprep.subr.mxu0 0.0
        %2231 = vmatpush1.xpose.msra.mxu0 0.0
        %2232 = vmatprep.subr.mxu0 0.0
        %2233 = vmatpush1.xpose.msra.mxu0 0.0
        %2234 = vmatprep.subr.mxu0 0.0
        %2235 = vmatpush1.xpose.msra.mxu0 0.0
        %2236 = vmatprep.subr.mxu0 0.0
        %2237 = vmatpush1.xpose.msra.mxu0 0.0
        %2238 = vmatprep.subr.mxu0 0.0
        %2239 = vmatpush1.xpose.msra.mxu0 0.0
        %2240 = vmatprep.subr.mxu0 0.0
        %2241 = vmatpush1.xpose.msra.mxu0 0.0
        %2242 = vmatprep.subr.mxu0 0.0
        %2243 = vmatpush1.xpose.msra.mxu0 0.0
        %2244 = vmatprep.subr.mxu0 0.0
        %2245 = vmatpush1.xpose.msra.mxu0 0.0
        %2246 = vmatprep.subr.mxu0 0.0
        %2247 = vmatpush1.xpose.msra.mxu0 0.0
        %2248 = vmatprep.mubr.f32.mxu0 0.0
        %2249 = vmatmul.mubr.f32.gmra.mrb[0].mxu0 %v2180
        %v2250 = vpop.f32.mrb[0].mxu0
        %v2251 = vadd.f32 %v711, %v2250
        %v2252 = vpop.f32.mrb[0].mxu0
        %2253 = vdwg.mxu0
        %v2254 = vsel %vm716, %v2251, -inf
        %2255 = vmax.xlane.f32.xlu0 %v2254
        %v2256 = vpop.xlane.xlu0 %2255
        %v2257 = vsub.f32 %v2251, %v2256
        %v2258 = vmul.f32 %v2257, 1.442695
        %v2259 = vpow.pop %v2258
        %v2260 = vsel %vm716, %v2259, 0.0
        %2261 = vadd.xlane.f32.xlu0 %v2260
        %v2262 = vpop.xlane.xlu0 %2261
        %v2263 = vrcp.pop %v2262
        %v2264 = vmul.f32 %v2259, %v2263
        %2265 = vrot.lane.b32.xlu0 %v2000, 56
        %v2266 = vpop.permute.xlu0 %2265
        %v2269 = vsel %vm716, %v2264, 0
        %2271 = vmatprep.subr.mxu0 0.0
        %2272 = vmatpush1.msra.mxu0 %v2266
        %2273 = vmatprep.subr.mxu0 0.0
        %2274 = vmatpush1.msra.mxu0 0.0
        %2275 = vmatprep.subr.mxu0 0.0
        %2276 = vmatpush1.msra.mxu0 0.0
        %2277 = vmatprep.subr.mxu0 0.0
        %2278 = vmatpush1.msra.mxu0 0.0
        %2279 = vmatprep.subr.mxu0 0.0
        %2280 = vmatpush1.msra.mxu0 0.0
        %2281 = vmatprep.subr.mxu0 0.0
        %2282 = vmatpush1.msra.mxu0 0.0
        %2283 = vmatprep.subr.mxu0 0.0
        %2284 = vmatpush1.msra.mxu0 0.0
        %2285 = vmatprep.subr.mxu0 0.0
        %2286 = vmatpush1.msra.mxu0 0.0
        %2287 = vmatprep.subr.mxu0 0.0
        %2288 = vmatpush1.msra.mxu0 0.0
        %2289 = vmatprep.subr.mxu0 0.0
        %2290 = vmatpush1.msra.mxu0 0.0
        %2291 = vmatprep.subr.mxu0 0.0
        %2292 = vmatpush1.msra.mxu0 0.0
        %2293 = vmatprep.subr.mxu0 0.0
        %2294 = vmatpush1.msra.mxu0 0.0
        %2295 = vmatprep.subr.mxu0 0.0
        %2296 = vmatpush1.msra.mxu0 0.0
        %2297 = vmatprep.subr.mxu0 0.0
        %2298 = vmatpush1.msra.mxu0 0.0
        %2299 = vmatprep.subr.mxu0 0.0
        %2300 = vmatpush1.msra.mxu0 0.0
        %2301 = vmatprep.subr.mxu0 0.0
        %2302 = vmatpush1.msra.mxu0 0.0
        %2303 = vmatprep.subr.mxu0 0.0
        %2304 = vmatpush1.msra.mxu0 0.0
        %2305 = vmatprep.subr.mxu0 0.0
        %2306 = vmatpush1.msra.mxu0 0.0
        %2307 = vmatprep.subr.mxu0 0.0
        %2308 = vmatpush1.msra.mxu0 0.0
        %2309 = vmatprep.subr.mxu0 0.0
        %2310 = vmatpush1.msra.mxu0 0.0
        %2311 = vmatprep.subr.mxu0 0.0
        %2312 = vmatpush1.msra.mxu0 0.0
        %2313 = vmatprep.subr.mxu0 0.0
        %2314 = vmatpush1.msra.mxu0 0.0
        %2315 = vmatprep.subr.mxu0 0.0
        %2316 = vmatpush1.msra.mxu0 0.0
        %2317 = vmatprep.subr.mxu0 0.0
        %2318 = vmatpush1.msra.mxu0 0.0
        %2319 = vmatprep.subr.mxu0 0.0
        %2320 = vmatpush1.msra.mxu0 0.0
        %2321 = vmatprep.subr.mxu0 0.0
        %2322 = vmatpush1.msra.mxu0 0.0
        %2323 = vmatprep.subr.mxu0 0.0
        %2324 = vmatpush1.msra.mxu0 0.0
        %2325 = vmatprep.subr.mxu0 0.0
        %2326 = vmatpush1.msra.mxu0 0.0
        %2327 = vmatprep.subr.mxu0 0.0
        %2328 = vmatpush1.msra.mxu0 0.0
        %2329 = vmatprep.subr.mxu0 0.0
        %2330 = vmatpush1.msra.mxu0 0.0
        %2331 = vmatprep.subr.mxu0 0.0
        %2332 = vmatpush1.msra.mxu0 0.0
        %2333 = vmatprep.subr.mxu0 0.0
        %2334 = vmatpush1.msra.mxu0 0.0
        %2335 = vmatprep.mubr.f32.mxu0 0.0
        %2336 = vmatmul.mubr.f32.gmra.mrb[0].mxu0 %v2269
        %v2337 = vpop.f32.mrb[0].mxu0
        %v2338 = vadd.f32 0.0, %v2337
        %v2339 = vpop.f32.mrb[0].mxu0
        %2340 = vdwg.mxu0
        %v2342 = vsel %vm716, %v2338, 0
        %2344 = vmatprep.subr.mxu0 0.0
        %2345 = vmatpush1.msra.mxu0 %v2005
        %2346 = vmatprep.subr.mxu0 0.0
        %2347 = vmatpush1.msra.mxu0 0.0
        %2348 = vmatprep.subr.mxu0 0.0
        %2349 = vmatpush1.msra.mxu0 0.0
        %2350 = vmatprep.subr.mxu0 0.0
        %2351 = vmatpush1.msra.mxu0 0.0
        %2352 = vmatprep.subr.mxu0 0.0
        %2353 = vmatpush1.msra.mxu0 0.0
        %2354 = vmatprep.subr.mxu0 0.0
        %2355 = vmatpush1.msra.mxu0 0.0
        %2356 = vmatprep.subr.mxu0 0.0
        %2357 = vmatpush1.msra.mxu0 0.0
        %2358 = vmatprep.subr.mxu0 0.0
        %2359 = vmatpush1.msra.mxu0 0.0
        %2360 = vmatprep.subr.mxu0 0.0
        %2361 = vmatpush1.msra.mxu0 0.0
        %2362 = vmatprep.subr.mxu0 0.0
        %2363 = vmatpush1.msra.mxu0 0.0
        %2364 = vmatprep.subr.mxu0 0.0
        %2365 = vmatpush1.msra.mxu0 0.0
        %2366 = vmatprep.subr.mxu0 0.0
        %2367 = vmatpush1.msra.mxu0 0.0
        %2368 = vmatprep.subr.mxu0 0.0
        %2369 = vmatpush1.msra.mxu0 0.0
        %2370 = vmatprep.subr.mxu0 0.0
        %2371 = vmatpush1.msra.mxu0 0.0
        %2372 = vmatprep.subr.mxu0 0.0
        %2373 = vmatpush1.msra.mxu0 0.0
        %2374 = vmatprep.subr.mxu0 0.0
        %2375 = vmatpush1.msra.mxu0 0.0
        %2376 = vmatprep.subr.mxu0 0.0
        %2377 = vmatpush1.msra.mxu0 0.0
        %2378 = vmatprep.subr.mxu0 0.0
        %2379 = vmatpush1.msra.mxu0 0.0
        %2380 = vmatprep.subr.mxu0 0.0
        %2381 = vmatpush1.msra.mxu0 0.0
        %2382 = vmatprep.subr.mxu0 0.0
        %2383 = vmatpush1.msra.mxu0 0.0
        %2384 = vmatprep.subr.mxu0 0.0
        %2385 = vmatpush1.msra.mxu0 0.0
        %2386 = vmatprep.subr.mxu0 0.0
        %2387 = vmatpush1.msra.mxu0 0.0
        %2388 = vmatprep.subr.mxu0 0.0
        %2389 = vmatpush1.msra.mxu0 0.0
        %2390 = vmatprep.subr.mxu0 0.0
        %2391 = vmatpush1.msra.mxu0 0.0
        %2392 = vmatprep.subr.mxu0 0.0
        %2393 = vmatpush1.msra.mxu0 0.0
        %2394 = vmatprep.subr.mxu0 0.0
        %2395 = vmatpush1.msra.mxu0 0.0
        %2396 = vmatprep.subr.mxu0 0.0
        %2397 = vmatpush1.msra.mxu0 0.0
        %2398 = vmatprep.subr.mxu0 0.0
        %2399 = vmatpush1.msra.mxu0 0.0
        %2400 = vmatprep.subr.mxu0 0.0
        %2401 = vmatpush1.msra.mxu0 0.0
        %2402 = vmatprep.subr.mxu0 0.0
        %2403 = vmatpush1.msra.mxu0 0.0
        %2404 = vmatprep.subr.mxu0 0.0
        %2405 = vmatpush1.msra.mxu0 0.0
        %2406 = vmatprep.subr.mxu0 0.0
        %2407 = vmatpush1.msra.mxu0 0.0
        %2408 = vmatprep.mubr.f32.mxu0 0.0
        %2409 = vmatmul.mubr.f32.gmra.mrb[0].mxu0 %v2342
        %v2410 = vpop.f32.mrb[0].mxu0
        %v2411 = vadd.f32 0.0, %v2410
        %v2412 = vpop.f32.mrb[0].mxu0
        %2413 = vdwg.mxu0
        %v2415 = vsel %vm716, %v2173, 0
        %2417 = vmatprep.subr.mxu0 0.0
        %2418 = vmatpush1.msra.mxu0 %v2004
        %2419 = vmatprep.subr.mxu0 0.0
        %2420 = vmatpush1.msra.mxu0 0.0
        %2421 = vmatprep.subr.mxu0 0.0
        %2422 = vmatpush1.msra.mxu0 0.0
        %2423 = vmatprep.subr.mxu0 0.0
        %2424 = vmatpush1.msra.mxu0 0.0
        %2425 = vmatprep.subr.mxu0 0.0
        %2426 = vmatpush1.msra.mxu0 0.0
        %2427 = vmatprep.subr.mxu0 0.0
        %2428 = vmatpush1.msra.mxu0 0.0
        %2429 = vmatprep.subr.mxu0 0.0
        %2430 = vmatpush1.msra.mxu0 0.0
        %2431 = vmatprep.subr.mxu0 0.0
        %2432 = vmatpush1.msra.mxu0 0.0
        %2433 = vmatprep.subr.mxu0 0.0
        %2434 = vmatpush1.msra.mxu0 0.0
        %2435 = vmatprep.subr.mxu0 0.0
        %2436 = vmatpush1.msra.mxu0 0.0
        %2437 = vmatprep.subr.mxu0 0.0
        %2438 = vmatpush1.msra.mxu0 0.0
        %2439 = vmatprep.subr.mxu0 0.0
        %2440 = vmatpush1.msra.mxu0 0.0
        %2441 = vmatprep.subr.mxu0 0.0
        %2442 = vmatpush1.msra.mxu0 0.0
        %2443 = vmatprep.subr.mxu0 0.0
        %2444 = vmatpush1.msra.mxu0 0.0
        %2445 = vmatprep.subr.mxu0 0.0
        %2446 = vmatpush1.msra.mxu0 0.0
        %2447 = vmatprep.subr.mxu0 0.0
        %2448 = vmatpush1.msra.mxu0 0.0
        %2449 = vmatprep.subr.mxu0 0.0
        %2450 = vmatpush1.msra.mxu0 0.0
        %2451 = vmatprep.subr.mxu0 0.0
        %2452 = vmatpush1.msra.mxu0 0.0
        %2453 = vmatprep.subr.mxu0 0.0
        %2454 = vmatpush1.msra.mxu0 0.0
        %2455 = vmatprep.subr.mxu0 0.0
        %2456 = vmatpush1.msra.mxu0 0.0
        %2457 = vmatprep.subr.mxu0 0.0
        %2458 = vmatpush1.msra.mxu0 0.0
        %2459 = vmatprep.subr.mxu0 0.0
        %2460 = vmatpush1.msra.mxu0 0.0
        %2461 = vmatprep.subr.mxu0 0.0
        %2462 = vmatpush1.msra.mxu0 0.0
        %2463 = vmatprep.subr.mxu0 0.0
        %2464 = vmatpush1.msra.mxu0 0.0
        %2465 = vmatprep.subr.mxu0 0.0
        %2466 = vmatpush1.msra.mxu0 0.0
        %2467 = vmatprep.subr.mxu0 0.0
        %2468 = vmatpush1.msra.mxu0 0.0
        %2469 = vmatprep.subr.mxu0 0.0
        %2470 = vmatpush1.msra.mxu0 0.0
        %2471 = vmatprep.subr.mxu0 0.0
        %2472 = vmatpush1.msra.mxu0 0.0
        %2473 = vmatprep.subr.mxu0 0.0
        %2474 = vmatpush1.msra.mxu0 0.0
        %2475 = vmatprep.subr.mxu0 0.0
        %2476 = vmatpush1.msra.mxu0 0.0
        %2477 = vmatprep.subr.mxu0 0.0
        %2478 = vmatpush1.msra.mxu0 0.0
        %2479 = vmatprep.subr.mxu0 0.0
        %2480 = vmatpush1.msra.mxu0 0.0
        %2481 = vmatprep.mubr.f32.mxu0 0.0
        %2482 = vmatmul.mubr.f32.gmra.mrb[0].mxu0 %v2415
        %v2483 = vpop.f32.mrb[0].mxu0
        %v2484 = vadd.f32 %v2411, %v2483
        %v2485 = vpop.f32.mrb[0].mxu0
        %2486 = vdwg.mxu0
        %2487 = vrot.lane.b32.xlu0 %v2010, 112
        %v2488 = vpop.permute.xlu0 %2487
        %2489 = vrot.lane.b32.xlu0 %v2000, 80
        %v2490 = vpop.permute.xlu0 %2489
        %v2491 = vsel %vm716, %v2488, 0
        %v2493 = vsel %vm716, %v2490, 0
        %2495 = vmatprep.subr.mxu0 0.0
        %2496 = vmatpush1.xpose.msra.mxu0 %v2493
        %2497 = vmatprep.subr.mxu0 0.0
        %2498 = vmatpush1.xpose.msra.mxu0 0.0
        %2499 = vmatprep.subr.mxu0 0.0
        %2500 = vmatpush1.xpose.msra.mxu0 0.0
        %2501 = vmatprep.subr.mxu0 0.0
        %2502 = vmatpush1.xpose.msra.mxu0 0.0
        %2503 = vmatprep.subr.mxu0 0.0
        %2504 = vmatpush1.xpose.msra.mxu0 0.0
        %2505 = vmatprep.subr.mxu0 0.0
        %2506 = vmatpush1.xpose.msra.mxu0 0.0
        %2507 = vmatprep.subr.mxu0 0.0
        %2508 = vmatpush1.xpose.msra.mxu0 0.0
        %2509 = vmatprep.subr.mxu0 0.0
        %2510 = vmatpush1.xpose.msra.mxu0 0.0
        %2511 = vmatprep.subr.mxu0 0.0
        %2512 = vmatpush1.xpose.msra.mxu0 0.0
        %2513 = vmatprep.subr.mxu0 0.0
        %2514 = vmatpush1.xpose.msra.mxu0 0.0
        %2515 = vmatprep.subr.mxu0 0.0
        %2516 = vmatpush1.xpose.msra.mxu0 0.0
        %2517 = vmatprep.subr.mxu0 0.0
        %2518 = vmatpush1.xpose.msra.mxu0 0.0
        %2519 = vmatprep.subr.mxu0 0.0
        %2520 = vmatpush1.xpose.msra.mxu0 0.0
        %2521 = vmatprep.subr.mxu0 0.0
        %2522 = vmatpush1.xpose.msra.mxu0 0.0
        %2523 = vmatprep.subr.mxu0 0.0
        %2524 = vmatpush1.xpose.msra.mxu0 0.0
        %2525 = vmatprep.subr.mxu0 0.0
        %2526 = vmatpush1.xpose.msra.mxu0 0.0
        %2527 = vmatprep.subr.mxu0 0.0
        %2528 = vmatpush1.xpose.msra.mxu0 0.0
        %2529 = vmatprep.subr.mxu0 0.0
        %2530 = vmatpush1.xpose.msra.mxu0 0.0
        %2531 = vmatprep.subr.mxu0 0.0
        %2532 = vmatpush1.xpose.msra.mxu0 0.0
        %2533 = vmatprep.subr.mxu0 0.0
        %2534 = vmatpush1.xpose.msra.mxu0 0.0
        %2535 = vmatprep.subr.mxu0 0.0
        %2536 = vmatpush1.xpose.msra.mxu0 0.0
        %2537 = vmatprep.subr.mxu0 0.0
        %2538 = vmatpush1.xpose.msra.mxu0 0.0
        %2539 = vmatprep.subr.mxu0 0.0
        %2540 = vmatpush1.xpose.msra.mxu0 0.0
        %2541 = vmatprep.subr.mxu0 0.0
        %2542 = vmatpush1.xpose.msra.mxu0 0.0
        %2543 = vmatprep.subr.mxu0 0.0
        %2544 = vmatpush1.xpose.msra.mxu0 0.0
        %2545 = vmatprep.subr.mxu0 0.0
        %2546 = vmatpush1.xpose.msra.mxu0 0.0
        %2547 = vmatprep.subr.mxu0 0.0
        %2548 = vmatpush1.xpose.msra.mxu0 0.0
        %2549 = vmatprep.subr.mxu0 0.0
        %2550 = vmatpush1.xpose.msra.mxu0 0.0
        %2551 = vmatprep.subr.mxu0 0.0
        %2552 = vmatpush1.xpose.msra.mxu0 0.0
        %2553 = vmatprep.subr.mxu0 0.0
        %2554 = vmatpush1.xpose.msra.mxu0 0.0
        %2555 = vmatprep.subr.mxu0 0.0
        %2556 = vmatpush1.xpose.msra.mxu0 0.0
        %2557 = vmatprep.subr.mxu0 0.0
        %2558 = vmatpush1.xpose.msra.mxu0 0.0
        %2559 = vmatprep.mubr.f32.mxu0 0.0
        %2560 = vmatmul.mubr.f32.gmra.mrb[0].mxu0 %v2491
        %v2561 = vpop.f32.mrb[0].mxu0
        %v2562 = vadd.f32 %v711, %v2561
        %v2563 = vpop.f32.mrb[0].mxu0
        %2564 = vdwg.mxu0
        %v2565 = vsel %vm716, %v2562, -inf
        %2566 = vmax.xlane.f32.xlu0 %v2565
        %v2567 = vpop.xlane.xlu0 %2566
        %v2568 = vsub.f32 %v2562, %v2567
        %v2569 = vmul.f32 %v2568, 1.442695
        %v2570 = vpow.pop %v2569
        %v2571 = vsel %vm716, %v2570, 0.0
        %2572 = vadd.xlane.f32.xlu0 %v2571
        %v2573 = vpop.xlane.xlu0 %2572
        %v2574 = vrcp.pop %v2573
        %v2575 = vmul.f32 %v2570, %v2574
        %2576 = vrot.lane.b32.xlu0 %v2000, 48
        %v2577 = vpop.permute.xlu0 %2576
        %v2580 = vsel %vm716, %v2575, 0
        %2582 = vmatprep.subr.mxu0 0.0
        %2583 = vmatpush1.msra.mxu0 %v2577
        %2584 = vmatprep.subr.mxu0 0.0
        %2585 = vmatpush1.msra.mxu0 0.0
        %2586 = vmatprep.subr.mxu0 0.0
        %2587 = vmatpush1.msra.mxu0 0.0
        %2588 = vmatprep.subr.mxu0 0.0
        %2589 = vmatpush1.msra.mxu0 0.0
        %2590 = vmatprep.subr.mxu0 0.0
        %2591 = vmatpush1.msra.mxu0 0.0
        %2592 = vmatprep.subr.mxu0 0.0
        %2593 = vmatpush1.msra.mxu0 0.0
        %2594 = vmatprep.subr.mxu0 0.0
        %2595 = vmatpush1.msra.mxu0 0.0
        %2596 = vmatprep.subr.mxu0 0.0
        %2597 = vmatpush1.msra.mxu0 0.0
        %2598 = vmatprep.subr.mxu0 0.0
        %2599 = vmatpush1.msra.mxu0 0.0
        %2600 = vmatprep.subr.mxu0 0.0
        %2601 = vmatpush1.msra.mxu0 0.0
        %2602 = vmatprep.subr.mxu0 0.0
        %2603 = vmatpush1.msra.mxu0 0.0
        %2604 = vmatprep.subr.mxu0 0.0
        %2605 = vmatpush1.msra.mxu0 0.0
        %2606 = vmatprep.subr.mxu0 0.0
        %2607 = vmatpush1.msra.mxu0 0.0
        %2608 = vmatprep.subr.mxu0 0.0
        %2609 = vmatpush1.msra.mxu0 0.0
        %2610 = vmatprep.subr.mxu0 0.0
        %2611 = vmatpush1.msra.mxu0 0.0
        %2612 = vmatprep.subr.mxu0 0.0
        %2613 = vmatpush1.msra.mxu0 0.0
        %2614 = vmatprep.subr.mxu0 0.0
        %2615 = vmatpush1.msra.mxu0 0.0
        %2616 = vmatprep.subr.mxu0 0.0
        %2617 = vmatpush1.msra.mxu0 0.0
        %2618 = vmatprep.subr.mxu0 0.0
        %2619 = vmatpush1.msra.mxu0 0.0
        %2620 = vmatprep.subr.mxu0 0.0
        %2621 = vmatpush1.msra.mxu0 0.0
        %2622 = vmatprep.subr.mxu0 0.0
        %2623 = vmatpush1.msra.mxu0 0.0
        %2624 = vmatprep.subr.mxu0 0.0
        %2625 = vmatpush1.msra.mxu0 0.0
        %2626 = vmatprep.subr.mxu0 0.0
        %2627 = vmatpush1.msra.mxu0 0.0
        %2628 = vmatprep.subr.mxu0 0.0
        %2629 = vmatpush1.msra.mxu0 0.0
        %2630 = vmatprep.subr.mxu0 0.0
        %2631 = vmatpush1.msra.mxu0 0.0
        %2632 = vmatprep.subr.mxu0 0.0
        %2633 = vmatpush1.msra.mxu0 0.0
        %2634 = vmatprep.subr.mxu0 0.0
        %2635 = vmatpush1.msra.mxu0 0.0
        %2636 = vmatprep.subr.mxu0 0.0
        %2637 = vmatpush1.msra.mxu0 0.0
        %2638 = vmatprep.subr.mxu0 0.0
        %2639 = vmatpush1.msra.mxu0 0.0
        %2640 = vmatprep.subr.mxu0 0.0
        %2641 = vmatpush1.msra.mxu0 0.0
        %2642 = vmatprep.subr.mxu0 0.0
        %2643 = vmatpush1.msra.mxu0 0.0
        %2644 = vmatprep.subr.mxu0 0.0
        %2645 = vmatpush1.msra.mxu0 0.0
        %2646 = vmatprep.mubr.f32.mxu0 0.0
        %2647 = vmatmul.mubr.f32.gmra.mrb[0].mxu0 %v2580
        %v2648 = vpop.f32.mrb[0].mxu0
        %v2649 = vadd.f32 0.0, %v2648
        %v2650 = vpop.f32.mrb[0].mxu0
        %2651 = vdwg.mxu0
        %v2653 = vsel %vm716, %v2649, 0
        %2655 = vmatprep.subr.mxu0 0.0
        %2656 = vmatpush1.msra.mxu0 %v2006
        %2657 = vmatprep.subr.mxu0 0.0
        %2658 = vmatpush1.msra.mxu0 0.0
        %2659 = vmatprep.subr.mxu0 0.0
        %2660 = vmatpush1.msra.mxu0 0.0
        %2661 = vmatprep.subr.mxu0 0.0
        %2662 = vmatpush1.msra.mxu0 0.0
        %2663 = vmatprep.subr.mxu0 0.0
        %2664 = vmatpush1.msra.mxu0 0.0
        %2665 = vmatprep.subr.mxu0 0.0
        %2666 = vmatpush1.msra.mxu0 0.0
        %2667 = vmatprep.subr.mxu0 0.0
        %2668 = vmatpush1.msra.mxu0 0.0
        %2669 = vmatprep.subr.mxu0 0.0
        %2670 = vmatpush1.msra.mxu0 0.0
        %2671 = vmatprep.subr.mxu0 0.0
        %2672 = vmatpush1.msra.mxu0 0.0
        %2673 = vmatprep.subr.mxu0 0.0
        %2674 = vmatpush1.msra.mxu0 0.0
        %2675 = vmatprep.subr.mxu0 0.0
        %2676 = vmatpush1.msra.mxu0 0.0
        %2677 = vmatprep.subr.mxu0 0.0
        %2678 = vmatpush1.msra.mxu0 0.0
        %2679 = vmatprep.subr.mxu0 0.0
        %2680 = vmatpush1.msra.mxu0 0.0
        %2681 = vmatprep.subr.mxu0 0.0
        %2682 = vmatpush1.msra.mxu0 0.0
        %2683 = vmatprep.subr.mxu0 0.0
        %2684 = vmatpush1.msra.mxu0 0.0
        %2685 = vmatprep.subr.mxu0 0.0
        %2686 = vmatpush1.msra.mxu0 0.0
        %2687 = vmatprep.subr.mxu0 0.0
        %2688 = vmatpush1.msra.mxu0 0.0
        %2689 = vmatprep.subr.mxu0 0.0
        %2690 = vmatpush1.msra.mxu0 0.0
        %2691 = vmatprep.subr.mxu0 0.0
        %2692 = vmatpush1.msra.mxu0 0.0
        %2693 = vmatprep.subr.mxu0 0.0
        %2694 = vmatpush1.msra.mxu0 0.0
        %2695 = vmatprep.subr.mxu0 0.0
        %2696 = vmatpush1.msra.mxu0 0.0
        %2697 = vmatprep.subr.mxu0 0.0
        %2698 = vmatpush1.msra.mxu0 0.0
        %2699 = vmatprep.subr.mxu0 0.0
        %2700 = vmatpush1.msra.mxu0 0.0
        %2701 = vmatprep.subr.mxu0 0.0
        %2702 = vmatpush1.msra.mxu0 0.0
        %2703 = vmatprep.subr.mxu0 0.0
        %2704 = vmatpush1.msra.mxu0 0.0
        %2705 = vmatprep.subr.mxu0 0.0
        %2706 = vmatpush1.msra.mxu0 0.0
        %2707 = vmatprep.subr.mxu0 0.0
        %2708 = vmatpush1.msra.mxu0 0.0
        %2709 = vmatprep.subr.mxu0 0.0
        %2710 = vmatpush1.msra.mxu0 0.0
        %2711 = vmatprep.subr.mxu0 0.0
        %2712 = vmatpush1.msra.mxu0 0.0
        %2713 = vmatprep.subr.mxu0 0.0
        %2714 = vmatpush1.msra.mxu0 0.0
        %2715 = vmatprep.subr.mxu0 0.0
        %2716 = vmatpush1.msra.mxu0 0.0
        %2717 = vmatprep.subr.mxu0 0.0
        %2718 = vmatpush1.msra.mxu0 0.0
        %2719 = vmatprep.mubr.f32.mxu0 0.0
        %2720 = vmatmul.mubr.f32.gmra.mrb[0].mxu0 %v2653
        %v2721 = vpop.f32.mrb[0].mxu0
        %v2722 = vadd.f32 0.0, %v2721
        %v2723 = vpop.f32.mrb[0].mxu0
        %2724 = vdwg.mxu0
        %v2725 = vadd.f32 %v2484, %v2722
        %2726 = vrot.lane.b32.xlu0 %v2010, 104
        %v2727 = vpop.permute.xlu0 %2726
        %2728 = vrot.lane.b32.xlu0 %v2000, 72
        %v2729 = vpop.permute.xlu0 %2728
        %v2730 = vsel %vm716, %v2727, 0
        %v2732 = vsel %vm716, %v2729, 0
        %2734 = vmatprep.subr.mxu0 0.0
        %2735 = vmatpush1.xpose.msra.mxu0 %v2732
        %2736 = vmatprep.subr.mxu0 0.0
        %2737 = vmatpush1.xpose.msra.mxu0 0.0
        %2738 = vmatprep.subr.mxu0 0.0
        %2739 = vmatpush1.xpose.msra.mxu0 0.0
        %2740 = vmatprep.subr.mxu0 0.0
        %2741 = vmatpush1.xpose.msra.mxu0 0.0
        %2742 = vmatprep.subr.mxu0 0.0
        %2743 = vmatpush1.xpose.msra.mxu0 0.0
        %2744 = vmatprep.subr.mxu0 0.0
        %2745 = vmatpush1.xpose.msra.mxu0 0.0
        %2746 = vmatprep.subr.mxu0 0.0
        %2747 = vmatpush1.xpose.msra.mxu0 0.0
        %2748 = vmatprep.subr.mxu0 0.0
        %2749 = vmatpush1.xpose.msra.mxu0 0.0
        %2750 = vmatprep.subr.mxu0 0.0
        %2751 = vmatpush1.xpose.msra.mxu0 0.0
        %2752 = vmatprep.subr.mxu0 0.0
        %2753 = vmatpush1.xpose.msra.mxu0 0.0
        %2754 = vmatprep.subr.mxu0 0.0
        %2755 = vmatpush1.xpose.msra.mxu0 0.0
        %2756 = vmatprep.subr.mxu0 0.0
        %2757 = vmatpush1.xpose.msra.mxu0 0.0
        %2758 = vmatprep.subr.mxu0 0.0
        %2759 = vmatpush1.xpose.msra.mxu0 0.0
        %2760 = vmatprep.subr.mxu0 0.0
        %2761 = vmatpush1.xpose.msra.mxu0 0.0
        %2762 = vmatprep.subr.mxu0 0.0
        %2763 = vmatpush1.xpose.msra.mxu0 0.0
        %2764 = vmatprep.subr.mxu0 0.0
        %2765 = vmatpush1.xpose.msra.mxu0 0.0
        %2766 = vmatprep.subr.mxu0 0.0
        %2767 = vmatpush1.xpose.msra.mxu0 0.0
        %2768 = vmatprep.subr.mxu0 0.0
        %2769 = vmatpush1.xpose.msra.mxu0 0.0
        %2770 = vmatprep.subr.mxu0 0.0
        %2771 = vmatpush1.xpose.msra.mxu0 0.0
        %2772 = vmatprep.subr.mxu0 0.0
        %2773 = vmatpush1.xpose.msra.mxu0 0.0
        %2774 = vmatprep.subr.mxu0 0.0
        %2775 = vmatpush1.xpose.msra.mxu0 0.0
        %2776 = vmatprep.subr.mxu0 0.0
        %2777 = vmatpush1.xpose.msra.mxu0 0.0
        %2778 = vmatprep.subr.mxu0 0.0
        %2779 = vmatpush1.xpose.msra.mxu0 0.0
        %2780 = vmatprep.subr.mxu0 0.0
        %2781 = vmatpush1.xpose.msra.mxu0 0.0
        %2782 = vmatprep.subr.mxu0 0.0
        %2783 = vmatpush1.xpose.msra.mxu0 0.0
        %2784 = vmatprep.subr.mxu0 0.0
        %2785 = vmatpush1.xpose.msra.mxu0 0.0
        %2786 = vmatprep.subr.mxu0 0.0
        %2787 = vmatpush1.xpose.msra.mxu0 0.0
        %2788 = vmatprep.subr.mxu0 0.0
        %2789 = vmatpush1.xpose.msra.mxu0 0.0
        %2790 = vmatprep.subr.mxu0 0.0
        %2791 = vmatpush1.xpose.msra.mxu0 0.0
        %2792 = vmatprep.subr.mxu0 0.0
        %2793 = vmatpush1.xpose.msra.mxu0 0.0
        %2794 = vmatprep.subr.mxu0 0.0
        %2795 = vmatpush1.xpose.msra.mxu0 0.0
        %2796 = vmatprep.subr.mxu0 0.0
        %2797 = vmatpush1.xpose.msra.mxu0 0.0
        %2798 = vmatprep.mubr.f32.mxu0 0.0
        %2799 = vmatmul.mubr.f32.gmra.mrb[0].mxu0 %v2730
        %v2800 = vpop.f32.mrb[0].mxu0
        %v2801 = vadd.f32 %v711, %v2800
        %v2802 = vpop.f32.mrb[0].mxu0
        %2803 = vdwg.mxu0
        %v2804 = vsel %vm716, %v2801, -inf
        %2805 = vmax.xlane.f32.xlu0 %v2804
        %v2806 = vpop.xlane.xlu0 %2805
        %v2807 = vsub.f32 %v2801, %v2806
        %v2808 = vmul.f32 %v2807, 1.442695
        %v2809 = vpow.pop %v2808
        %v2810 = vsel %vm716, %v2809, 0.0
        %2811 = vadd.xlane.f32.xlu0 %v2810
        %v2812 = vpop.xlane.xlu0 %2811
        %v2813 = vrcp.pop %v2812
        %v2814 = vmul.f32 %v2809, %v2813
        %2815 = vrot.lane.b32.xlu0 %v2000, 40
        %v2816 = vpop.permute.xlu0 %2815
        %v2819 = vsel %vm716, %v2814, 0
        %2821 = vmatprep.subr.mxu0 0.0
        %2822 = vmatpush1.msra.mxu0 %v2816
        %2823 = vmatprep.subr.mxu0 0.0
        %2824 = vmatpush1.msra.mxu0 0.0
        %2825 = vmatprep.subr.mxu0 0.0
        %2826 = vmatpush1.msra.mxu0 0.0
        %2827 = vmatprep.subr.mxu0 0.0
        %2828 = vmatpush1.msra.mxu0 0.0
        %2829 = vmatprep.subr.mxu0 0.0
        %2830 = vmatpush1.msra.mxu0 0.0
        %2831 = vmatprep.subr.mxu0 0.0
        %2832 = vmatpush1.msra.mxu0 0.0
        %2833 = vmatprep.subr.mxu0 0.0
        %2834 = vmatpush1.msra.mxu0 0.0
        %2835 = vmatprep.subr.mxu0 0.0
        %2836 = vmatpush1.msra.mxu0 0.0
        %2837 = vmatprep.subr.mxu0 0.0
        %2838 = vmatpush1.msra.mxu0 0.0
        %2839 = vmatprep.subr.mxu0 0.0
        %2840 = vmatpush1.msra.mxu0 0.0
        %2841 = vmatprep.subr.mxu0 0.0
        %2842 = vmatpush1.msra.mxu0 0.0
        %2843 = vmatprep.subr.mxu0 0.0
        %2844 = vmatpush1.msra.mxu0 0.0
        %2845 = vmatprep.subr.mxu0 0.0
        %2846 = vmatpush1.msra.mxu0 0.0
        %2847 = vmatprep.subr.mxu0 0.0
        %2848 = vmatpush1.msra.mxu0 0.0
        %2849 = vmatprep.subr.mxu0 0.0
        %2850 = vmatpush1.msra.mxu0 0.0
        %2851 = vmatprep.subr.mxu0 0.0
        %2852 = vmatpush1.msra.mxu0 0.0
        %2853 = vmatprep.subr.mxu0 0.0
        %2854 = vmatpush1.msra.mxu0 0.0
        %2855 = vmatprep.subr.mxu0 0.0
        %2856 = vmatpush1.msra.mxu0 0.0
        %2857 = vmatprep.subr.mxu0 0.0
        %2858 = vmatpush1.msra.mxu0 0.0
        %2859 = vmatprep.subr.mxu0 0.0
        %2860 = vmatpush1.msra.mxu0 0.0
        %2861 = vmatprep.subr.mxu0 0.0
        %2862 = vmatpush1.msra.mxu0 0.0
        %2863 = vmatprep.subr.mxu0 0.0
        %2864 = vmatpush1.msra.mxu0 0.0
        %2865 = vmatprep.subr.mxu0 0.0
        %2866 = vmatpush1.msra.mxu0 0.0
        %2867 = vmatprep.subr.mxu0 0.0
        %2868 = vmatpush1.msra.mxu0 0.0
        %2869 = vmatprep.subr.mxu0 0.0
        %2870 = vmatpush1.msra.mxu0 0.0
        %2871 = vmatprep.subr.mxu0 0.0
        %2872 = vmatpush1.msra.mxu0 0.0
        %2873 = vmatprep.subr.mxu0 0.0
        %2874 = vmatpush1.msra.mxu0 0.0
        %2875 = vmatprep.subr.mxu0 0.0
        %2876 = vmatpush1.msra.mxu0 0.0
        %2877 = vmatprep.subr.mxu0 0.0
        %2878 = vmatpush1.msra.mxu0 0.0
        %2879 = vmatprep.subr.mxu0 0.0
        %2880 = vmatpush1.msra.mxu0 0.0
        %2881 = vmatprep.subr.mxu0 0.0
        %2882 = vmatpush1.msra.mxu0 0.0
        %2883 = vmatprep.subr.mxu0 0.0
        %2884 = vmatpush1.msra.mxu0 0.0
        %2885 = vmatprep.mubr.f32.mxu0 0.0
        %2886 = vmatmul.mubr.f32.gmra.mrb[0].mxu0 %v2819
        %v2887 = vpop.f32.mrb[0].mxu0
        %v2888 = vadd.f32 0.0, %v2887
        %v2889 = vpop.f32.mrb[0].mxu0
        %2890 = vdwg.mxu0
        %v2892 = vsel %vm716, %v2888, 0
        %2894 = vmatprep.subr.mxu0 0.0
        %2895 = vmatpush1.msra.mxu0 %v2007
        %2896 = vmatprep.subr.mxu0 0.0
        %2897 = vmatpush1.msra.mxu0 0.0
        %2898 = vmatprep.subr.mxu0 0.0
        %2899 = vmatpush1.msra.mxu0 0.0
        %2900 = vmatprep.subr.mxu0 0.0
        %2901 = vmatpush1.msra.mxu0 0.0
        %2902 = vmatprep.subr.mxu0 0.0
        %2903 = vmatpush1.msra.mxu0 0.0
        %2904 = vmatprep.subr.mxu0 0.0
        %2905 = vmatpush1.msra.mxu0 0.0
        %2906 = vmatprep.subr.mxu0 0.0
        %2907 = vmatpush1.msra.mxu0 0.0
        %2908 = vmatprep.subr.mxu0 0.0
        %2909 = vmatpush1.msra.mxu0 0.0
        %2910 = vmatprep.subr.mxu0 0.0
        %2911 = vmatpush1.msra.mxu0 0.0
        %2912 = vmatprep.subr.mxu0 0.0
        %2913 = vmatpush1.msra.mxu0 0.0
        %2914 = vmatprep.subr.mxu0 0.0
        %2915 = vmatpush1.msra.mxu0 0.0
        %2916 = vmatprep.subr.mxu0 0.0
        %2917 = vmatpush1.msra.mxu0 0.0
        %2918 = vmatprep.subr.mxu0 0.0
        %2919 = vmatpush1.msra.mxu0 0.0
        %2920 = vmatprep.subr.mxu0 0.0
        %2921 = vmatpush1.msra.mxu0 0.0
        %2922 = vmatprep.subr.mxu0 0.0
        %2923 = vmatpush1.msra.mxu0 0.0
        %2924 = vmatprep.subr.mxu0 0.0
        %2925 = vmatpush1.msra.mxu0 0.0
        %2926 = vmatprep.subr.mxu0 0.0
        %2927 = vmatpush1.msra.mxu0 0.0
        %2928 = vmatprep.subr.mxu0 0.0
        %2929 = vmatpush1.msra.mxu0 0.0
        %2930 = vmatprep.subr.mxu0 0.0
        %2931 = vmatpush1.msra.mxu0 0.0
        %2932 = vmatprep.subr.mxu0 0.0
        %2933 = vmatpush1.msra.mxu0 0.0
        %2934 = vmatprep.subr.mxu0 0.0
        %2935 = vmatpush1.msra.mxu0 0.0
        %2936 = vmatprep.subr.mxu0 0.0
        %2937 = vmatpush1.msra.mxu0 0.0
        %2938 = vmatprep.subr.mxu0 0.0
        %2939 = vmatpush1.msra.mxu0 0.0
        %2940 = vmatprep.subr.mxu0 0.0
        %2941 = vmatpush1.msra.mxu0 0.0
        %2942 = vmatprep.subr.mxu0 0.0
        %2943 = vmatpush1.msra.mxu0 0.0
        %2944 = vmatprep.subr.mxu0 0.0
        %2945 = vmatpush1.msra.mxu0 0.0
        %2946 = vmatprep.subr.mxu0 0.0
        %2947 = vmatpush1.msra.mxu0 0.0
        %2948 = vmatprep.subr.mxu0 0.0
        %2949 = vmatpush1.msra.mxu0 0.0
        %2950 = vmatprep.subr.mxu0 0.0
        %2951 = vmatpush1.msra.mxu0 0.0
        %2952 = vmatprep.subr.mxu0 0.0
        %2953 = vmatpush1.msra.mxu0 0.0
        %2954 = vmatprep.subr.mxu0 0.0
        %2955 = vmatpush1.msra.mxu0 0.0
        %2956 = vmatprep.subr.mxu0 0.0
        %2957 = vmatpush1.msra.mxu0 0.0
        %2958 = vmatprep.mubr.f32.mxu0 0.0
        %2959 = vmatmul.mubr.f32.gmra.mrb[0].mxu0 %v2892
        %v2960 = vpop.f32.mrb[0].mxu0
        %v2961 = vadd.f32 0.0, %v2960
        %v2962 = vpop.f32.mrb[0].mxu0
        %2963 = vdwg.mxu0
        %v2964 = vadd.f32 %v2725, %v2961
        %v2966 = vlaneseq
        %v2967 = vshrl.u32 %v2966, 7
        %v2968 = vsub.s32 0, %v2967
        %v2969 = vrot.slane %v2009, %v2968
        %v2971 = vadd.f32 %v2964, %v2969
        %v2972 = vadd.f32 %v1916, %v2971
        %s2973 = scalar_lea.vmem %s8, 1
        %v2974 = vld [vmem:[%s2973] sm:$0x1]
        %s2975 = scalar_lea.vmem %s9, 1
        %v2976 = vld [vmem:[%s2975] sm:$0x1]
        %v2977 = vsel %vm587, %v2972, 0.0
        %2978 = vadd.xlane.f32.xlu0 %v2977
        %v2979 = vpop.xlane.xlu0 %2978
        %v2980 = vmul.f32 %v2979, %v591
        %v2981 = vsub.f32 %v2972, %v2980
        %v2982 = vmul.f32 %v2981, %v2981
        %v2983 = vsel %vm587, %v2982, 0.0
        %2984 = vadd.xlane.f32.xlu0 %v2983
        %v2985 = vpop.xlane.xlu0 %2984
        %v2986 = vmul.f32 %v2985, %v591
        %v2987 = vadd.f32 %v2986, 1e-12
        %v2988 = vrsqrt.pop %v2987
        %v2989 = vmul.f32 %v2981, %v2988
        %v2991 = vlaneseq
        %v2992 = vshrl.u32 %v2991, 7
        %v2993 = vsub.s32 0, %v2992
        %v2994 = vrot.slane %v2974, %v2993
        %v2996 = vmul.f32 %v2989, %v2994
        %v2998 = vlaneseq
        %v2999 = vshrl.u32 %v2998, 7
        %v3000 = vsub.s32 0, %v2999
        %v3001 = vrot.slane %v2976, %v3000
        %v3003 = vadd.f32 %v2996, %v3001
        %s3004 = scalar_lea.vmem %s10, 32
        %v3005 = vld [vmem:[%s3004] sm:$0xff]
        %v3006 = vld [vmem:[%s3004 + $0x8] sm:$0xff]
        %v3007 = vld [vmem:[%s3004 + $0x10] sm:$0xff]
        %v3008 = vld [vmem:[%s3004 + $0x18] sm:$0xff]
        %s3009 = scalar_lea.vmem %s11, 1
        %v3010 = vld [vmem:[%s3009] sm:$0x1]
        %v3012 = vlaneseq
        %v3013 = vshrl.u32 %v3012, 7
        %v3014 = vsub.s32 0, %v3013
        %v3015 = vrot.slane %v3010, %v3014
        %v3018 = vsel %vm587, %v3003, 0
        %3020 = vmatprep.subr.mxu0 0.0
        %3021 = vmatpush1.msra.mxu0 %v3005
        %3022 = vmatprep.subr.mxu0 0.0
        %3023 = vmatpush1.msra.mxu0 %v3006
        %3024 = vmatprep.subr.mxu0 0.0
        %3025 = vmatpush1.msra.mxu0 %v3007
        %3026 = vmatprep.subr.mxu0 0.0
        %3027 = vmatpush1.msra.mxu0 %v3008
        %3028 = vmatprep.subr.mxu0 0.0
        %3029 = vmatpush1.msra.mxu0 0.0
        %3030 = vmatprep.subr.mxu0 0.0
        %3031 = vmatpush1.msra.mxu0 0.0
        %3032 = vmatprep.subr.mxu0 0.0
        %3033 = vmatpush1.msra.mxu0 0.0
        %3034 = vmatprep.subr.mxu0 0.0
        %3035 = vmatpush1.msra.mxu0 0.0
        %3036 = vmatprep.subr.mxu0 0.0
        %3037 = vmatpush1.msra.mxu0 0.0
        %3038 = vmatprep.subr.mxu0 0.0
        %3039 = vmatpush1.msra.mxu0 0.0
        %3040 = vmatprep.subr.mxu0 0.0
        %3041 = vmatpush1.msra.mxu0 0.0
        %3042 = vmatprep.subr.mxu0 0.0
        %3043 = vmatpush1.msra.mxu0 0.0
        %3044 = vmatprep.subr.mxu0 0.0
        %3045 = vmatpush1.msra.mxu0 0.0
        %3046 = vmatprep.subr.mxu0 0.0
        %3047 = vmatpush1.msra.mxu0 0.0
        %3048 = vmatprep.subr.mxu0 0.0
        %3049 = vmatpush1.msra.mxu0 0.0
        %3050 = vmatprep.subr.mxu0 0.0
        %3051 = vmatpush1.msra.mxu0 0.0
        %3052 = vmatprep.subr.mxu0 0.0
        %3053 = vmatpush1.msra.mxu0 0.0
        %3054 = vmatprep.subr.mxu0 0.0
        %3055 = vmatpush1.msra.mxu0 0.0
        %3056 = vmatprep.subr.mxu0 0.0
        %3057 = vmatpush1.msra.mxu0 0.0
        %3058 = vmatprep.subr.mxu0 0.0
        %3059 = vmatpush1.msra.mxu0 0.0
        %3060 = vmatprep.subr.mxu0 0.0
        %3061 = vmatpush1.msra.mxu0 0.0
        %3062 = vmatprep.subr.mxu0 0.0
        %3063 = vmatpush1.msra.mxu0 0.0
        %3064 = vmatprep.subr.mxu0 0.0
        %3065 = vmatpush1.msra.mxu0 0.0
        %3066 = vmatprep.subr.mxu0 0.0
        %3067 = vmatpush1.msra.mxu0 0.0
        %3068 = vmatprep.subr.mxu0 0.0
        %3069 = vmatpush1.msra.mxu0 0.0
        %3070 = vmatprep.subr.mxu0 0.0
        %3071 = vmatpush1.msra.mxu0 0.0
        %3072 = vmatprep.subr.mxu0 0.0
        %3073 = vmatpush1.msra.mxu0 0.0
        %3074 = vmatprep.subr.mxu0 0.0
        %3075 = vmatpush1.msra.mxu0 0.0
        %3076 = vmatprep.subr.mxu0 0.0
        %3077 = vmatpush1.msra.mxu0 0.0
        %3078 = vmatprep.subr.mxu0 0.0
        %3079 = vmatpush1.msra.mxu0 0.0
        %3080 = vmatprep.subr.mxu0 0.0
        %3081 = vmatpush1.msra.mxu0 0.0
        %3082 = vmatprep.subr.mxu0 0.0
        %3083 = vmatpush1.msra.mxu0 0.0
        %3084 = vmatprep.mubr.f32.mxu0 0.0
        %3085 = vmatmul.mubr.f32.gmra.mrb[0].mxu0 %v3018
        %v3086 = vpop.f32.mrb[0].mxu0
        %v3087 = vadd.f32 %v3015, %v3086
        %v3088 = vpop.f32.mrb[0].mxu0
        %3089 = vdwg.mxu0
        %v3090 = vmul.f32 %v3087, %v3087
        %v3091 = vmul.f32 %v3087, %v3090
        %v3092 = vmul.f32 %v3091, 0.044715
        %v3093 = vadd.f32 %v3087, %v3092
        %v3094 = vmul.f32 %v3093, 0.7978846
        %v3095 = vtanh.pop %v3094
        %v3096 = vadd.f32 %v3095, 1.0
        %v3097 = vmul.f32 %v3096, 0.5
        %v3098 = vmul.f32 %v3087, %v3097
        %s3099 = scalar_lea.vmem %s12, 64
        %v3100 = vld [vmem:[%s3099] sm:$0xff]
        %v3101 = vld [vmem:[%s3099 + $0x8] sm:$0xff]
        %v3102 = vld [vmem:[%s3099 + $0x10] sm:$0xff]
        %v3103 = vld [vmem:[%s3099 + $0x18] sm:$0xff]
        %v3104 = vld [vmem:[%s3099 + $0x20] sm:$0xff]
        %v3105 = vld [vmem:[%s3099 + $0x28] sm:$0xff]
        %v3106 = vld [vmem:[%s3099 + $0x30] sm:$0xff]
        %v3107 = vld [vmem:[%s3099 + $0x38] sm:$0xff]
        %s3108 = scalar_lea.vmem %s13, 1
        %v3109 = vld [vmem:[%s3108] sm:$0x1]
        %v3111 = vlaneseq
        %v3112 = vshrl.u32 %v3111, 7
        %v3113 = vsub.s32 0, %v3112
        %v3114 = vrot.slane %v3109, %v3113
        %v3117 = vsel %vm1813, %v3098, 0
        %3119 = vmatprep.subr.mxu0 0.0
        %3120 = vmatpush1.msra.mxu0 %v3100
        %3121 = vmatprep.subr.mxu0 0.0
        %3122 = vmatpush1.msra.mxu0 %v3101
        %3123 = vmatprep.subr.mxu0 0.0
        %3124 = vmatpush1.msra.mxu0 %v3102
        %3125 = vmatprep.subr.mxu0 0.0
        %3126 = vmatpush1.msra.mxu0 %v3103
        %3127 = vmatprep.subr.mxu0 0.0
        %3128 = vmatpush1.msra.mxu0 %v3104
        %3129 = vmatprep.subr.mxu0 0.0
        %3130 = vmatpush1.msra.mxu0 %v3105
        %3131 = vmatprep.subr.mxu0 0.0
        %3132 = vmatpush1.msra.mxu0 %v3106
        %3133 = vmatprep.subr.mxu0 0.0
        %3134 = vmatpush1.msra.mxu0 %v3107
        %3135 = vmatprep.subr.mxu0 0.0
        %3136 = vmatpush1.msra.mxu0 0.0
        %3137 = vmatprep.subr.mxu0 0.0
        %3138 = vmatpush1.msra.mxu0 0.0
        %3139 = vmatprep.subr.mxu0 0.0
        %3140 = vmatpush1.msra.mxu0 0.0
        %3141 = vmatprep.subr.mxu0 0.0
        %3142 = vmatpush1.msra.mxu0 0.0
        %3143 = vmatprep.subr.mxu0 0.0
        %3144 = vmatpush1.msra.mxu0 0.0
        %3145 = vmatprep.subr.mxu0 0.0
        %3146 = vmatpush1.msra.mxu0 0.0
        %3147 = vmatprep.subr.mxu0 0.0
        %3148 = vmatpush1.msra.mxu0 0.0
        %3149 = vmatprep.subr.mxu0 0.0
        %3150 = vmatpush1.msra.mxu0 0.0
        %3151 = vmatprep.subr.mxu0 0.0
        %3152 = vmatpush1.msra.mxu0 0.0
        %3153 = vmatprep.subr.mxu0 0.0
        %3154 = vmatpush1.msra.mxu0 0.0
        %3155 = vmatprep.subr.mxu0 0.0
        %3156 = vmatpush1.msra.mxu0 0.0
        %3157 = vmatprep.subr.mxu0 0.0
        %3158 = vmatpush1.msra.mxu0 0.0
        %3159 = vmatprep.subr.mxu0 0.0
        %3160 = vmatpush1.msra.mxu0 0.0
        %3161 = vmatprep.subr.mxu0 0.0
        %3162 = vmatpush1.msra.mxu0 0.0
        %3163 = vmatprep.subr.mxu0 0.0
        %3164 = vmatpush1.msra.mxu0 0.0
        %3165 = vmatprep.subr.mxu0 0.0
        %3166 = vmatpush1.msra.mxu0 0.0
        %3167 = vmatprep.subr.mxu0 0.0
        %3168 = vmatpush1.msra.mxu0 0.0
        %3169 = vmatprep.subr.mxu0 0.0
        %3170 = vmatpush1.msra.mxu0 0.0
        %3171 = vmatprep.subr.mxu0 0.0
        %3172 = vmatpush1.msra.mxu0 0.0
        %3173 = vmatprep.subr.mxu0 0.0
        %3174 = vmatpush1.msra.mxu0 0.0
        %3175 = vmatprep.subr.mxu0 0.0
        %3176 = vmatpush1.msra.mxu0 0.0
        %3177 = vmatprep.subr.mxu0 0.0
        %3178 = vmatpush1.msra.mxu0 0.0
        %3179 = vmatprep.subr.mxu0 0.0
        %3180 = vmatpush1.msra.mxu0 0.0
        %3181 = vmatprep.subr.mxu0 0.0
        %3182 = vmatpush1.msra.mxu0 0.0
        %3183 = vmatprep.mubr.f32.mxu0 0.0
        %3184 = vmatmul.mubr.f32.gmra.mrb[0].mxu0 %v3117
        %v3185 = vpop.f32.mrb[0].mxu0
        %v3186 = vadd.f32 %v3114, %v3185
        %v3187 = vpop.f32.mrb[0].mxu0
        %3188 = vdwg.mxu0
        %v3189 = vadd.f32 %v3003, %v3186
        %s3190 = scalar_lea.vmem %s14, 1
        %v3191 = vld [vmem:[%s3190] sm:$0x1]
        %s3192 = scalar_lea.vmem %s15, 1
        %v3193 = vld [vmem:[%s3192] sm:$0x1]
        %v3194 = vsel %vm587, %v3189, 0.0
        %3195 = vadd.xlane.f32.xlu0 %v3194
        %v3196 = vpop.xlane.xlu0 %3195
        %v3197 = vmul.f32 %v3196, %v591
        %v3198 = vsub.f32 %v3189, %v3197
        %v3199 = vmul.f32 %v3198, %v3198
        %v3200 = vsel %vm587, %v3199, 0.0
        %3201 = vadd.xlane.f32.xlu0 %v3200
        %v3202 = vpop.xlane.xlu0 %3201
        %v3203 = vmul.f32 %v3202, %v591
        %v3204 = vadd.f32 %v3203, 1e-12
        %v3205 = vrsqrt.pop %v3204
        %v3206 = vmul.f32 %v3198, %v3205
        %v3208 = vlaneseq
        %v3209 = vshrl.u32 %v3208, 7
        %v3210 = vsub.s32 0, %v3209
        %v3211 = vrot.slane %v3191, %v3210
        %v3213 = vmul.f32 %v3206, %v3211
        %v3215 = vlaneseq
        %v3216 = vshrl.u32 %v3215, 7
        %v3217 = vsub.s32 0, %v3216
        %v3218 = vrot.slane %v3193, %v3217
        %v3220 = vadd.f32 %v3213, %v3218
        %v3221 = vld [vmem:[%s16] sm:$0xff]
        %v3222 = vld [vmem:[%s16 + $0x8] sm:$0xff]
        %v3223 = vld [vmem:[%s16 + $0x10] sm:$0xff]
        %v3224 = vld [vmem:[%s16 + $0x18] sm:$0xff]
        %v3225 = vld [vmem:[%s17] sm:$0x1]
        %v3227 = vsel %vm587, %v3220, 0
        %3229 = vmatprep.subr.mxu0 0.0
        %3230 = vmatpush1.msra.mxu0 %v3221
        %3231 = vmatprep.subr.mxu0 0.0
        %3232 = vmatpush1.msra.mxu0 %v3222
        %3233 = vmatprep.subr.mxu0 0.0
        %3234 = vmatpush1.msra.mxu0 %v3223
        %3235 = vmatprep.subr.mxu0 0.0
        %3236 = vmatpush1.msra.mxu0 %v3224
        %3237 = vmatprep.subr.mxu0 0.0
        %3238 = vmatpush1.msra.mxu0 0.0
        %3239 = vmatprep.subr.mxu0 0.0
        %3240 = vmatpush1.msra.mxu0 0.0
        %3241 = vmatprep.subr.mxu0 0.0
        %3242 = vmatpush1.msra.mxu0 0.0
        %3243 = vmatprep.subr.mxu0 0.0
        %3244 = vmatpush1.msra.mxu0 0.0
        %3245 = vmatprep.subr.mxu0 0.0
        %3246 = vmatpush1.msra.mxu0 0.0
        %3247 = vmatprep.subr.mxu0 0.0
        %3248 = vmatpush1.msra.mxu0 0.0
        %3249 = vmatprep.subr.mxu0 0.0
        %3250 = vmatpush1.msra.mxu0 0.0
        %3251 = vmatprep.subr.mxu0 0.0
        %3252 = vmatpush1.msra.mxu0 0.0
        %3253 = vmatprep.subr.mxu0 0.0
        %3254 = vmatpush1.msra.mxu0 0.0
        %3255 = vmatprep.subr.mxu0 0.0
        %3256 = vmatpush1.msra.mxu0 0.0
        %3257 = vmatprep.subr.mxu0 0.0
        %3258 = vmatpush1.msra.mxu0 0.0
        %3259 = vmatprep.subr.mxu0 0.0
        %3260 = vmatpush1.msra.mxu0 0.0
        %3261 = vmatprep.subr.mxu0 0.0
        %3262 = vmatpush1.msra.mxu0 0.0
        %3263 = vmatprep.subr.mxu0 0.0
        %3264 = vmatpush1.msra.mxu0 0.0
        %3265 = vmatprep.subr.mxu0 0.0
        %3266 = vmatpush1.msra.mxu0 0.0
        %3267 = vmatprep.subr.mxu0 0.0
        %3268 = vmatpush1.msra.mxu0 0.0
        %3269 = vmatprep.subr.mxu0 0.0
        %3270 = vmatpush1.msra.mxu0 0.0
        %3271 = vmatprep.subr.mxu0 0.0
        %3272 = vmatpush1.msra.mxu0 0.0
        %3273 = vmatprep.subr.mxu0 0.0
        %3274 = vmatpush1.msra.mxu0 0.0
        %3275 = vmatprep.subr.mxu0 0.0
        %3276 = vmatpush1.msra.mxu0 0.0
        %3277 = vmatprep.subr.mxu0 0.0
        %3278 = vmatpush1.msra.mxu0 0.0
        %3279 = vmatprep.subr.mxu0 0.0
        %3280 = vmatpush1.msra.mxu0 0.0
        %3281 = vmatprep.subr.mxu0 0.0
        %3282 = vmatpush1.msra.mxu0 0.0
        %3283 = vmatprep.subr.mxu0 0.0
        %3284 = vmatpush1.msra.mxu0 0.0
        %3285 = vmatprep.subr.mxu0 0.0
        %3286 = vmatpush1.msra.mxu0 0.0
        %3287 = vmatprep.subr.mxu0 0.0
        %3288 = vmatpush1.msra.mxu0 0.0
        %3289 = vmatprep.subr.mxu0 0.0
        %3290 = vmatpush1.msra.mxu0 0.0
        %3291 = vmatprep.subr.mxu0 0.0
        %3292 = vmatpush1.msra.mxu0 0.0
        %3293 = vmatprep.mubr.f32.mxu0 0.0
        %3294 = vmatmul.mubr.f32.gmra.mrb[0].mxu0 %v3227
        %v3295 = vpop.f32.mrb[0].mxu0
        %v3296 = vadd.f32 %v3225, %v3295
        %v3297 = vpop.f32.mrb[0].mxu0
        %3298 = vdwg.mxu0
        %v3299 = vtanh.pop %v3296
        %vm3300 = vcmask 253952
        %3301 = vst.msk [vmem:[%s576] sm:$0x1] %vm3300, %v3299
        %s3302 = sand.u32 %s428, 1
        %s3303 = scalar_lea.sflag [#allocation3], %s3302
        %s3304 = sand.u32 %s428, 1
        %s3305 = scalar_lea.vmem [#allocation2], %s3304
        // Predicated region
        $region93: #{vit_bert_overlap.3} parent=91 // pred_check
          %p3306 = pneg %p438
        $region94: #{vit_bert_overlap.3} parent=91 // pred_check_branch
          %3308 = sbr.rel (%p3306) target = $region96
        $region95: #{vit_bert_overlap.3} parent=91 // pred_region
          %s3310 = ssub.s32 16, 16
          %3311 = vsyncadd %s3303, %s3310
          %s3312 = smul.addr %s32, 16
          %s3313 = scalar_lea.hbm %s18, %s3312
          %s3315 = sshll.u32 %s3305, 4
          %s3316 = int_to_ptr.vmem [resolvable:$true] %s3315
          %3318 = dma.vmem_to_hbm [thread:$0]  %s3316, 16, %s3313, %s3303
        $region96: #{vit_bert_overlap.3} parent=91 // pred_fallthru
          _
      $region92: #{vit_bert_overlap.3} parent=5 // pred_fallthru
        _
      %p3319 = scmp.le.s32.totalorder 2, %s27
      // Predicated region
      $region97: #{vit_bert_overlap.3} parent=5 // pred_check
        %p3320 = pneg %p3319
      $region98: #{vit_bert_overlap.3} parent=5 // pred_check_branch
        %3322 = sbr.rel (%p3320) target = $region100
      $region99: #{vit_bert_overlap.3} parent=5 // pred_region
        %s3323 = ssub.s32 %s27, 2
        // Predicated region
        $region101: #{vit_bert_overlap.3} parent=99 // pred_check
          %p3324 = pneg %p444
        $region102: #{vit_bert_overlap.3} parent=99 // pred_check_branch
          %3326 = sbr.rel (%p3324) target = $region104
        $region103: #{vit_bert_overlap.3} parent=99 // pred_region
          %s3327 = sand.u32 %s429, 1
          %s3328 = scalar_lea.sflag [#allocation3], %s3327
          %s3329 = sand.u32 %s429, 1
          %s3330 = scalar_lea.vmem [#allocation2], %s3329
          %3331 = dma.done %s3328, 16
        $region104: #{vit_bert_overlap.3} parent=99 // pred_fallthru
          _
      $region100: #{vit_bert_overlap.3} parent=5 // pred_fallthru
        _
    $region6: #{vit_bert_overlap.3} parent=1 // loop_footer
      %s31 = sadd.s32 1, %s27
    $region7: #{vit_bert_overlap.3} parent=1 // loop_footer_branch
      %26 = sbr.rel target = $region3
    $region8: #{vit_bert_overlap.3} parent=1 // loop_exit
      _
    %3332 = vsyncpa [#allocation3], 1
    %s3333 = scalar_lea.sflag [#allocation3], 1
    %3334 = vsyncpa %s3333, 1

// kernel: vit_bert_overlap.2
$region0: #{vit_bert_overlap.2}
  #allocation0 [shape = 'u32[]', space=smem, size = 0x4, offset = 0x4, fixed_abs, tag = 'smem constant byte address 0x4 - core index']
  #allocation1 [shape = 'u32[144,128]{1,0:T(1,128)}', space=vmem, size = 0x12000, scoped, tag = 'internal scratch']
  %s0 = inlined_call_operand.vmem [shape: f32[2,10,256], index: 0, kind: input, shape index: {}]
  %s1 = inlined_call_operand.vmem [shape: f32[256,32], index: 1, kind: input, shape index: {}]
  %s2 = inlined_call_operand.vmem [shape: f32[1,32], index: 2, kind: input, shape index: {}]
  %s3 = inlined_call_operand.vmem [shape: f32[1,32], index: 3, kind: input, shape index: {}]
  %s4 = inlined_call_operand.vmem [shape: f32[10,32], index: 4, kind: input, shape index: {}]
  %s5 = inlined_call_operand.vmem [shape: f32[2,1,32], index: 5, kind: input, shape index: {}]
  %s6 = inlined_call_operand.vmem [shape: f32[2,1,32], index: 6, kind: input, shape index: {}]
  %s7 = inlined_call_operand.vmem [shape: f32[2,32,96], index: 7, kind: input, shape index: {}]
  %s8 = inlined_call_operand.vmem [shape: f32[2,1,96], index: 8, kind: input, shape index: {}]
  %s9 = inlined_call_operand.vmem [shape: f32[2,32,32], index: 9, kind: input, shape index: {}]
  %s10 = inlined_call_operand.vmem [shape: f32[2,1,32], index: 10, kind: input, shape index: {}]
  %s11 = inlined_call_operand.vmem [shape: f32[2,1,32], index: 11, kind: input, shape index: {}]
  %s12 = inlined_call_operand.vmem [shape: f32[2,1,32], index: 12, kind: input, shape index: {}]
  %s13 = inlined_call_operand.vmem [shape: f32[2,32,64], index: 13, kind: input, shape index: {}]
  %s14 = inlined_call_operand.vmem [shape: f32[2,1,64], index: 14, kind: input, shape index: {}]
  %s15 = inlined_call_operand.vmem [shape: f32[2,64,32], index: 15, kind: input, shape index: {}]
  %s16 = inlined_call_operand.vmem [shape: f32[2,1,32], index: 16, kind: input, shape index: {}]
  %s17 = inlined_call_operand.vmem [shape: f32[1,32], index: 17, kind: input, shape index: {}]
  %s18 = inlined_call_operand.vmem [shape: f32[1,32], index: 18, kind: input, shape index: {}]
  %s19 = inlined_call_operand.vmem [shape: f32[2,10,32], index: 19, kind: output, shape index: {}]
  %s20 = sld [smem:[#allocation0]]
  $region109: #{vit_bert_overlap.2} parent=0
    _
  %s22 = ssub.s32 1, %s20
  %s23 = scalar_select 0, %s22, %s20
  loop: start=0, step=1, limit=4
  $region2: #{vit_bert_overlap.2} parent=0 // loop_pre_header
    _
  $region3: #{vit_bert_overlap.2} parent=0 // loop_header
    %s25 = sphi 0, %s29
    %p26 = scmp.ge.s32.totalorder %s25, 4
    %s35 = sphi 0, %s37
    %s38 = sphi 0, %s35
    %s39 = sphi 0, %s38
    %s55 = sphi 0, %s39
    %s59 = sphi 0, %s59
    %s61 = sphi 0, %s59
    %s62 = sphi 0, %s61
    %s76 = sphi 0, %s62
    %s80 = sphi 0, %s80
    %s82 = sphi 0, %s80
    %s83 = sphi 0, %s82
    %s97 = sphi 0, %s83
    %s101 = sphi 0, %s101
    %s103 = sphi 0, %s101
    %s104 = sphi 0, %s103
    %s118 = sphi 0, %s104
    %s122 = sphi 0, %s122
    %s124 = sphi 0, %s122
    %s125 = sphi 0, %s124
    %s139 = sphi 0, %s125
    %s143 = sphi 0, %s143
    %s145 = sphi 0, %s143
    %s146 = sphi 0, %s145
    %s160 = sphi 0, %s146
    %s164 = sphi 0, %s164
    %s166 = sphi 0, %s164
    %s167 = sphi 0, %s166
    %s181 = sphi 0, %s167
    %s185 = sphi 0, %s185
    %s187 = sphi 0, %s185
    %s188 = sphi 0, %s187
    %s202 = sphi 0, %s188
    %s206 = sphi 0, %s206
    %s208 = sphi 0, %s206
    %s209 = sphi 0, %s208
    %s223 = sphi 0, %s209
    %s227 = sphi 0, %s227
    %s229 = sphi 0, %s227
    %s230 = sphi 0, %s229
    %s244 = sphi 0, %s230
    %s248 = sphi 0, %s248
    %s250 = sphi 0, %s248
    %s251 = sphi 0, %s250
    %s265 = sphi 0, %s251
    %s269 = sphi 0, %s269
    %s271 = sphi 0, %s269
    %s272 = sphi 0, %s271
    %s286 = sphi 0, %s272
    %s290 = sphi 0, %s290
    %s292 = sphi 0, %s290
    %s293 = sphi 0, %s292
    %s307 = sphi 0, %s293
    %s311 = sphi 0, %s311
    %s313 = sphi 0, %s311
    %s314 = sphi 0, %s313
    %s328 = sphi 0, %s314
    %s332 = sphi 0, %s332
    %s334 = sphi 0, %s332
    %s335 = sphi 0, %s334
    %s349 = sphi 0, %s335
    %s353 = sphi 0, %s353
    %s355 = sphi 0, %s353
    %s356 = sphi 0, %s355
    %s370 = sphi 0, %s356
    %s374 = sphi 0, %s374
    %s376 = sphi 0, %s374
    %s377 = sphi 0, %s376
    %s391 = sphi 0, %s377
    %s395 = sphi 0, %s395
    %s397 = sphi 0, %s395
    %s398 = sphi 0, %s397
    %s412 = sphi 0, %s398
    %s416 = sphi 0, %s416
    %s418 = sphi 0, %s416
    %s419 = sphi 0, %s418
    %s433 = sphi 0, %s419
    %s439 = sphi 0, %s441
    %s442 = sphi 0, %s439
    %s443 = sphi 0, %s442
    %s459 = sphi 0, %s443
  $region4: #{vit_bert_overlap.2} parent=0 // loop_header_branch
    %28 = sbr.rel (%p26) target = $region8
  $region5: #{vit_bert_overlap.2} parent=0 // loop_body
    %s30 = ssub.s32 %s25, 1
    %s31 = ssub.s32 %s25, 2
    %s32 = sadd.s32 %s25, 1
    %s33 = ssub.s32 %s25, %s32
    %p34 = scmp.eq.s32.totalorder %s33, 0
    %s36 = sadd.s32 %s35, 1
    %s37 = scalar_select %p34, %s35, %s36
    %p40 = pneg %p34
    %p41 = scmp.eq.s32.totalorder %s25, 1
    %p42 = por %p40, %p41
    %p43 = scmp.ne.s32.totalorder %s35, %s38
    %p44 = scmp.eq.s32.totalorder %s25, 0
    %p45 = por %p43, %p44
    %p46 = scmp.ne.s32.totalorder %s35, %s38
    %p47 = scmp.eq.s32.totalorder %s30, 1
    %p48 = por %p46, %p47
    %p49 = scmp.ne.s32.totalorder %s38, %s39
    %p50 = scmp.eq.s32.totalorder %s30, 0
    %p51 = por %p49, %p50
    %p52 = scmp.ne.s32.totalorder %s38, %s39
    %p53 = scmp.eq.s32.totalorder %s31, 1
    %p54 = por %p52, %p53
    %p56 = scmp.ne.s32.totalorder %s39, %s55
    %p57 = scmp.eq.s32.totalorder %s31, 0
    %p58 = por %p56, %p57
    %s60 = sadd.s32 %s59, 1
    %p63 = scmp.eq.s32.totalorder %s25, 1
    %p64 = scmp.ne.s32.totalorder %s59, %s61
    %p65 = scmp.eq.s32.totalorder %s25, 0
    %p66 = por %p64, %p65
    %p67 = scmp.ne.s32.totalorder %s59, %s61
    %p68 = scmp.eq.s32.totalorder %s30, 1
    %p69 = por %p67, %p68
    %p70 = scmp.ne.s32.totalorder %s61, %s62
    %p71 = scmp.eq.s32.totalorder %s30, 0
    %p72 = por %p70, %p71
    %p73 = scmp.ne.s32.totalorder %s61, %s62
    %p74 = scmp.eq.s32.totalorder %s31, 1
    %p75 = por %p73, %p74
    %p77 = scmp.ne.s32.totalorder %s62, %s76
    %p78 = scmp.eq.s32.totalorder %s31, 0
    %p79 = por %p77, %p78
    %s81 = sadd.s32 %s80, 1
    %p84 = scmp.eq.s32.totalorder %s25, 1
    %p85 = scmp.ne.s32.totalorder %s80, %s82
    %p86 = scmp.eq.s32.totalorder %s25, 0
    %p87 = por %p85, %p86
    %p88 = scmp.ne.s32.totalorder %s80, %s82
    %p89 = scmp.eq.s32.totalorder %s30, 1
    %p90 = por %p88, %p89
    %p91 = scmp.ne.s32.totalorder %s82, %s83
    %p92 = scmp.eq.s32.totalorder %s30, 0
    %p93 = por %p91, %p92
    %p94 = scmp.ne.s32.totalorder %s82, %s83
    %p95 = scmp.eq.s32.totalorder %s31, 1
    %p96 = por %p94, %p95
    %p98 = scmp.ne.s32.totalorder %s83, %s97
    %p99 = scmp.eq.s32.totalorder %s31, 0
    %p100 = por %p98, %p99
    %s102 = sadd.s32 %s101, 1
    %p105 = scmp.eq.s32.totalorder %s25, 1
    %p106 = scmp.ne.s32.totalorder %s101, %s103
    %p107 = scmp.eq.s32.totalorder %s25, 0
    %p108 = por %p106, %p107
    %p109 = scmp.ne.s32.totalorder %s101, %s103
    %p110 = scmp.eq.s32.totalorder %s30, 1
    %p111 = por %p109, %p110
    %p112 = scmp.ne.s32.totalorder %s103, %s104
    %p113 = scmp.eq.s32.totalorder %s30, 0
    %p114 = por %p112, %p113
    %p115 = scmp.ne.s32.totalorder %s103, %s104
    %p116 = scmp.eq.s32.totalorder %s31, 1
    %p117 = por %p115, %p116
    %p119 = scmp.ne.s32.totalorder %s104, %s118
    %p120 = scmp.eq.s32.totalorder %s31, 0
    %p121 = por %p119, %p120
    %s123 = sadd.s32 %s122, 1
    %p126 = scmp.eq.s32.totalorder %s25, 1
    %p127 = scmp.ne.s32.totalorder %s122, %s124
    %p128 = scmp.eq.s32.totalorder %s25, 0
    %p129 = por %p127, %p128
    %p130 = scmp.ne.s32.totalorder %s122, %s124
    %p131 = scmp.eq.s32.totalorder %s30, 1
    %p132 = por %p130, %p131
    %p133 = scmp.ne.s32.totalorder %s124, %s125
    %p134 = scmp.eq.s32.totalorder %s30, 0
    %p135 = por %p133, %p134
    %p136 = scmp.ne.s32.totalorder %s124, %s125
    %p137 = scmp.eq.s32.totalorder %s31, 1
    %p138 = por %p136, %p137
    %p140 = scmp.ne.s32.totalorder %s125, %s139
    %p141 = scmp.eq.s32.totalorder %s31, 0
    %p142 = por %p140, %p141
    %s144 = sadd.s32 %s143, 1
    %p147 = scmp.eq.s32.totalorder %s25, 1
    %p148 = scmp.ne.s32.totalorder %s143, %s145
    %p149 = scmp.eq.s32.totalorder %s25, 0
    %p150 = por %p148, %p149
    %p151 = scmp.ne.s32.totalorder %s143, %s145
    %p152 = scmp.eq.s32.totalorder %s30, 1
    %p153 = por %p151, %p152
    %p154 = scmp.ne.s32.totalorder %s145, %s146
    %p155 = scmp.eq.s32.totalorder %s30, 0
    %p156 = por %p154, %p155
    %p157 = scmp.ne.s32.totalorder %s145, %s146
    %p158 = scmp.eq.s32.totalorder %s31, 1
    %p159 = por %p157, %p158
    %p161 = scmp.ne.s32.totalorder %s146, %s160
    %p162 = scmp.eq.s32.totalorder %s31, 0
    %p163 = por %p161, %p162
    %s165 = sadd.s32 %s164, 1
    %p168 = scmp.eq.s32.totalorder %s25, 1
    %p169 = scmp.ne.s32.totalorder %s164, %s166
    %p170 = scmp.eq.s32.totalorder %s25, 0
    %p171 = por %p169, %p170
    %p172 = scmp.ne.s32.totalorder %s164, %s166
    %p173 = scmp.eq.s32.totalorder %s30, 1
    %p174 = por %p172, %p173
    %p175 = scmp.ne.s32.totalorder %s166, %s167
    %p176 = scmp.eq.s32.totalorder %s30, 0
    %p177 = por %p175, %p176
    %p178 = scmp.ne.s32.totalorder %s166, %s167
    %p179 = scmp.eq.s32.totalorder %s31, 1
    %p180 = por %p178, %p179
    %p182 = scmp.ne.s32.totalorder %s167, %s181
    %p183 = scmp.eq.s32.totalorder %s31, 0
    %p184 = por %p182, %p183
    %s186 = sadd.s32 %s185, 1
    %p189 = scmp.eq.s32.totalorder %s25, 1
    %p190 = scmp.ne.s32.totalorder %s185, %s187
    %p191 = scmp.eq.s32.totalorder %s25, 0
    %p192 = por %p190, %p191
    %p193 = scmp.ne.s32.totalorder %s185, %s187
    %p194 = scmp.eq.s32.totalorder %s30, 1
    %p195 = por %p193, %p194
    %p196 = scmp.ne.s32.totalorder %s187, %s188
    %p197 = scmp.eq.s32.totalorder %s30, 0
    %p198 = por %p196, %p197
    %p199 = scmp.ne.s32.totalorder %s187, %s188
    %p200 = scmp.eq.s32.totalorder %s31, 1
    %p201 = por %p199, %p200
    %p203 = scmp.ne.s32.totalorder %s188, %s202
    %p204 = scmp.eq.s32.totalorder %s31, 0
    %p205 = por %p203, %p204
    %s207 = sadd.s32 %s206, 1
    %p210 = scmp.eq.s32.totalorder %s25, 1
    %p211 = scmp.ne.s32.totalorder %s206, %s208
    %p212 = scmp.eq.s32.totalorder %s25, 0
    %p213 = por %p211, %p212
    %p214 = scmp.ne.s32.totalorder %s206, %s208
    %p215 = scmp.eq.s32.totalorder %s30, 1
    %p216 = por %p214, %p215
    %p217 = scmp.ne.s32.totalorder %s208, %s209
    %p218 = scmp.eq.s32.totalorder %s30, 0
    %p219 = por %p217, %p218
    %p220 = scmp.ne.s32.totalorder %s208, %s209
    %p221 = scmp.eq.s32.totalorder %s31, 1
    %p222 = por %p220, %p221
    %p224 = scmp.ne.s32.totalorder %s209, %s223
    %p225 = scmp.eq.s32.totalorder %s31, 0
    %p226 = por %p224, %p225
    %s228 = sadd.s32 %s227, 1
    %p231 = scmp.eq.s32.totalorder %s25, 1
    %p232 = scmp.ne.s32.totalorder %s227, %s229
    %p233 = scmp.eq.s32.totalorder %s25, 0
    %p234 = por %p232, %p233
    %p235 = scmp.ne.s32.totalorder %s227, %s229
    %p236 = scmp.eq.s32.totalorder %s30, 1
    %p237 = por %p235, %p236
    %p238 = scmp.ne.s32.totalorder %s229, %s230
    %p239 = scmp.eq.s32.totalorder %s30, 0
    %p240 = por %p238, %p239
    %p241 = scmp.ne.s32.totalorder %s229, %s230
    %p242 = scmp.eq.s32.totalorder %s31, 1
    %p243 = por %p241, %p242
    %p245 = scmp.ne.s32.totalorder %s230, %s244
    %p246 = scmp.eq.s32.totalorder %s31, 0
    %p247 = por %p245, %p246
    %s249 = sadd.s32 %s248, 1
    %p252 = scmp.eq.s32.totalorder %s25, 1
    %p253 = scmp.ne.s32.totalorder %s248, %s250
    %p254 = scmp.eq.s32.totalorder %s25, 0
    %p255 = por %p253, %p254
    %p256 = scmp.ne.s32.totalorder %s248, %s250
    %p257 = scmp.eq.s32.totalorder %s30, 1
    %p258 = por %p256, %p257
    %p259 = scmp.ne.s32.totalorder %s250, %s251
    %p260 = scmp.eq.s32.totalorder %s30, 0
    %p261 = por %p259, %p260
    %p262 = scmp.ne.s32.totalorder %s250, %s251
    %p263 = scmp.eq.s32.totalorder %s31, 1
    %p264 = por %p262, %p263
    %p266 = scmp.ne.s32.totalorder %s251, %s265
    %p267 = scmp.eq.s32.totalorder %s31, 0
    %p268 = por %p266, %p267
    %s270 = sadd.s32 %s269, 1
    %p273 = scmp.eq.s32.totalorder %s25, 1
    %p274 = scmp.ne.s32.totalorder %s269, %s271
    %p275 = scmp.eq.s32.totalorder %s25, 0
    %p276 = por %p274, %p275
    %p277 = scmp.ne.s32.totalorder %s269, %s271
    %p278 = scmp.eq.s32.totalorder %s30, 1
    %p279 = por %p277, %p278
    %p280 = scmp.ne.s32.totalorder %s271, %s272
    %p281 = scmp.eq.s32.totalorder %s30, 0
    %p282 = por %p280, %p281
    %p283 = scmp.ne.s32.totalorder %s271, %s272
    %p284 = scmp.eq.s32.totalorder %s31, 1
    %p285 = por %p283, %p284
    %p287 = scmp.ne.s32.totalorder %s272, %s286
    %p288 = scmp.eq.s32.totalorder %s31, 0
    %p289 = por %p287, %p288
    %s291 = sadd.s32 %s290, 1
    %p294 = scmp.eq.s32.totalorder %s25, 1
    %p295 = scmp.ne.s32.totalorder %s290, %s292
    %p296 = scmp.eq.s32.totalorder %s25, 0
    %p297 = por %p295, %p296
    %p298 = scmp.ne.s32.totalorder %s290, %s292
    %p299 = scmp.eq.s32.totalorder %s30, 1
    %p300 = por %p298, %p299
    %p301 = scmp.ne.s32.totalorder %s292, %s293
    %p302 = scmp.eq.s32.totalorder %s30, 0
    %p303 = por %p301, %p302
    %p304 = scmp.ne.s32.totalorder %s292, %s293
    %p305 = scmp.eq.s32.totalorder %s31, 1
    %p306 = por %p304, %p305
    %p308 = scmp.ne.s32.totalorder %s293, %s307
    %p309 = scmp.eq.s32.totalorder %s31, 0
    %p310 = por %p308, %p309
    %s312 = sadd.s32 %s311, 1
    %p315 = scmp.eq.s32.totalorder %s25, 1
    %p316 = scmp.ne.s32.totalorder %s311, %s313
    %p317 = scmp.eq.s32.totalorder %s25, 0
    %p318 = por %p316, %p317
    %p319 = scmp.ne.s32.totalorder %s311, %s313
    %p320 = scmp.eq.s32.totalorder %s30, 1
    %p321 = por %p319, %p320
    %p322 = scmp.ne.s32.totalorder %s313, %s314
    %p323 = scmp.eq.s32.totalorder %s30, 0
    %p324 = por %p322, %p323
    %p325 = scmp.ne.s32.totalorder %s313, %s314
    %p326 = scmp.eq.s32.totalorder %s31, 1
    %p327 = por %p325, %p326
    %p329 = scmp.ne.s32.totalorder %s314, %s328
    %p330 = scmp.eq.s32.totalorder %s31, 0
    %p331 = por %p329, %p330
    %s333 = sadd.s32 %s332, 1
    %p336 = scmp.eq.s32.totalorder %s25, 1
    %p337 = scmp.ne.s32.totalorder %s332, %s334
    %p338 = scmp.eq.s32.totalorder %s25, 0
    %p339 = por %p337, %p338
    %p340 = scmp.ne.s32.totalorder %s332, %s334
    %p341 = scmp.eq.s32.totalorder %s30, 1
    %p342 = por %p340, %p341
    %p343 = scmp.ne.s32.totalorder %s334, %s335
    %p344 = scmp.eq.s32.totalorder %s30, 0
    %p345 = por %p343, %p344
    %p346 = scmp.ne.s32.totalorder %s334, %s335
    %p347 = scmp.eq.s32.totalorder %s31, 1
    %p348 = por %p346, %p347
    %p350 = scmp.ne.s32.totalorder %s335, %s349
    %p351 = scmp.eq.s32.totalorder %s31, 0
    %p352 = por %p350, %p351
    %s354 = sadd.s32 %s353, 1
    %p357 = scmp.eq.s32.totalorder %s25, 1
    %p358 = scmp.ne.s32.totalorder %s353, %s355
    %p359 = scmp.eq.s32.totalorder %s25, 0
    %p360 = por %p358, %p359
    %p361 = scmp.ne.s32.totalorder %s353, %s355
    %p362 = scmp.eq.s32.totalorder %s30, 1
    %p363 = por %p361, %p362
    %p364 = scmp.ne.s32.totalorder %s355, %s356
    %p365 = scmp.eq.s32.totalorder %s30, 0
    %p366 = por %p364, %p365
    %p367 = scmp.ne.s32.totalorder %s355, %s356
    %p368 = scmp.eq.s32.totalorder %s31, 1
    %p369 = por %p367, %p368
    %p371 = scmp.ne.s32.totalorder %s356, %s370
    %p372 = scmp.eq.s32.totalorder %s31, 0
    %p373 = por %p371, %p372
    %s375 = sadd.s32 %s374, 1
    %p378 = scmp.eq.s32.totalorder %s25, 1
    %p379 = scmp.ne.s32.totalorder %s374, %s376
    %p380 = scmp.eq.s32.totalorder %s25, 0
    %p381 = por %p379, %p380
    %p382 = scmp.ne.s32.totalorder %s374, %s376
    %p383 = scmp.eq.s32.totalorder %s30, 1
    %p384 = por %p382, %p383
    %p385 = scmp.ne.s32.totalorder %s376, %s377
    %p386 = scmp.eq.s32.totalorder %s30, 0
    %p387 = por %p385, %p386
    %p388 = scmp.ne.s32.totalorder %s376, %s377
    %p389 = scmp.eq.s32.totalorder %s31, 1
    %p390 = por %p388, %p389
    %p392 = scmp.ne.s32.totalorder %s377, %s391
    %p393 = scmp.eq.s32.totalorder %s31, 0
    %p394 = por %p392, %p393
    %s396 = sadd.s32 %s395, 1
    %p399 = scmp.eq.s32.totalorder %s25, 1
    %p400 = scmp.ne.s32.totalorder %s395, %s397
    %p401 = scmp.eq.s32.totalorder %s25, 0
    %p402 = por %p400, %p401
    %p403 = scmp.ne.s32.totalorder %s395, %s397
    %p404 = scmp.eq.s32.totalorder %s30, 1
    %p405 = por %p403, %p404
    %p406 = scmp.ne.s32.totalorder %s397, %s398
    %p407 = scmp.eq.s32.totalorder %s30, 0
    %p408 = por %p406, %p407
    %p409 = scmp.ne.s32.totalorder %s397, %s398
    %p410 = scmp.eq.s32.totalorder %s31, 1
    %p411 = por %p409, %p410
    %p413 = scmp.ne.s32.totalorder %s398, %s412
    %p414 = scmp.eq.s32.totalorder %s31, 0
    %p415 = por %p413, %p414
    %s417 = sadd.s32 %s416, 1
    %p420 = scmp.eq.s32.totalorder %s25, 1
    %p421 = scmp.ne.s32.totalorder %s416, %s418
    %p422 = scmp.eq.s32.totalorder %s25, 0
    %p423 = por %p421, %p422
    %p424 = scmp.ne.s32.totalorder %s416, %s418
    %p425 = scmp.eq.s32.totalorder %s30, 1
    %p426 = por %p424, %p425
    %p427 = scmp.ne.s32.totalorder %s418, %s419
    %p428 = scmp.eq.s32.totalorder %s30, 0
    %p429 = por %p427, %p428
    %p430 = scmp.ne.s32.totalorder %s418, %s419
    %p431 = scmp.eq.s32.totalorder %s31, 1
    %p432 = por %p430, %p431
    %p434 = scmp.ne.s32.totalorder %s419, %s433
    %p435 = scmp.eq.s32.totalorder %s31, 0
    %p436 = por %p434, %p435
    %s437 = ssub.s32 %s25, %s32
    %p438 = scmp.eq.s32.totalorder %s437, 0
    %s440 = sadd.s32 %s439, 1
    %s441 = scalar_select %p438, %s439, %s440
    %p444 = pneg %p438
    %p445 = scmp.eq.s32.totalorder %s25, 1
    %p446 = por %p444, %p445
    %p447 = scmp.ne.s32.totalorder %s439, %s442
    %p448 = scmp.eq.s32.totalorder %s25, 0
    %p449 = por %p447, %p448
    %p450 = scmp.ne.s32.totalorder %s439, %s442
    %p451 = scmp.eq.s32.totalorder %s30, 1
    %p452 = por %p450, %p451
    %p453 = scmp.ne.s32.totalorder %s442, %s443
    %p454 = scmp.eq.s32.totalorder %s30, 0
    %p455 = por %p453, %p454
    %p456 = scmp.ne.s32.totalorder %s442, %s443
    %p457 = scmp.eq.s32.totalorder %s31, 1
    %p458 = por %p456, %p457
    %p460 = scmp.ne.s32.totalorder %s443, %s459
    %p461 = scmp.eq.s32.totalorder %s31, 0
    %p462 = por %p460, %p461
    %p463 = scmp.le.s32.totalorder 1, %s25
    %p464 = scmp.lt.s32.totalorder %s25, 3
    %p465 = pnand %p463, %p464
    %p466 = pneg %p465
    // Predicated region
    $region9: #{vit_bert_overlap.2} parent=5 // pred_check
      _
    $region10: #{vit_bert_overlap.2} parent=5 // pred_check_branch
      %468 = sbr.rel (%p465) target = $region12
    $region11: #{vit_bert_overlap.2} parent=5 // pred_region
      %s469 = ssub.s32 %s25, 1
      // Predicated region
      $region13: #{vit_bert_overlap.2} parent=11 // pred_check
        %p470 = pneg %p72
      $region14: #{vit_bert_overlap.2} parent=11 // pred_check_branch
        %472 = sbr.rel (%p470) target = $region16
      $region15: #{vit_bert_overlap.2} parent=11 // pred_region
        _
      $region16: #{vit_bert_overlap.2} parent=11 // pred_fallthru
        _
      // Predicated region
      $region17: #{vit_bert_overlap.2} parent=11 // pred_check
        %p473 = pneg %p93
      $region18: #{vit_bert_overlap.2} parent=11 // pred_check_branch
        %475 = sbr.rel (%p473) target = $region20
      $region19: #{vit_bert_overlap.2} parent=11 // pred_region
        _
      $region20: #{vit_bert_overlap.2} parent=11 // pred_fallthru
        _
      // Predicated region
      $region21: #{vit_bert_overlap.2} parent=11 // pred_check
        %p476 = pneg %p114
      $region22: #{vit_bert_overlap.2} parent=11 // pred_check_branch
        %478 = sbr.rel (%p476) target = $region24
      $region23: #{vit_bert_overlap.2} parent=11 // pred_region
        _
      $region24: #{vit_bert_overlap.2} parent=11 // pred_fallthru
        _
      // Predicated region
      $region25: #{vit_bert_overlap.2} parent=11 // pred_check
        %p479 = pneg %p135
      $region26: #{vit_bert_overlap.2} parent=11 // pred_check_branch
        %481 = sbr.rel (%p479) target = $region28
      $region27: #{vit_bert_overlap.2} parent=11 // pred_region
        _
      $region28: #{vit_bert_overlap.2} parent=11 // pred_fallthru
        _
      // Predicated region
      $region29: #{vit_bert_overlap.2} parent=11 // pred_check
        %p482 = pneg %p156
      $region30: #{vit_bert_overlap.2} parent=11 // pred_check_branch
        %484 = sbr.rel (%p482) target = $region32
      $region31: #{vit_bert_overlap.2} parent=11 // pred_region
        _
      $region32: #{vit_bert_overlap.2} parent=11 // pred_fallthru
        _
      // Predicated region
      $region33: #{vit_bert_overlap.2} parent=11 // pred_check
        %p485 = pneg %p177
      $region34: #{vit_bert_overlap.2} parent=11 // pred_check_branch
        %487 = sbr.rel (%p485) target = $region36
      $region35: #{vit_bert_overlap.2} parent=11 // pred_region
        _
      $region36: #{vit_bert_overlap.2} parent=11 // pred_fallthru
        _
      // Predicated region
      $region37: #{vit_bert_overlap.2} parent=11 // pred_check
        %p488 = pneg %p198
      $region38: #{vit_bert_overlap.2} parent=11 // pred_check_branch
        %490 = sbr.rel (%p488) target = $region40
      $region39: #{vit_bert_overlap.2} parent=11 // pred_region
        _
      $region40: #{vit_bert_overlap.2} parent=11 // pred_fallthru
        _
      // Predicated region
      $region41: #{vit_bert_overlap.2} parent=11 // pred_check
        %p491 = pneg %p219
      $region42: #{vit_bert_overlap.2} parent=11 // pred_check_branch
        %493 = sbr.rel (%p491) target = $region44
      $region43: #{vit_bert_overlap.2} parent=11 // pred_region
        _
      $region44: #{vit_bert_overlap.2} parent=11 // pred_fallthru
        _
      // Predicated region
      $region45: #{vit_bert_overlap.2} parent=11 // pred_check
        %p494 = pneg %p240
      $region46: #{vit_bert_overlap.2} parent=11 // pred_check_branch
        %496 = sbr.rel (%p494) target = $region48
      $region47: #{vit_bert_overlap.2} parent=11 // pred_region
        _
      $region48: #{vit_bert_overlap.2} parent=11 // pred_fallthru
        _
      // Predicated region
      $region49: #{vit_bert_overlap.2} parent=11 // pred_check
        %p497 = pneg %p261
      $region50: #{vit_bert_overlap.2} parent=11 // pred_check_branch
        %499 = sbr.rel (%p497) target = $region52
      $region51: #{vit_bert_overlap.2} parent=11 // pred_region
        _
      $region52: #{vit_bert_overlap.2} parent=11 // pred_fallthru
        _
      // Predicated region
      $region53: #{vit_bert_overlap.2} parent=11 // pred_check
        %p500 = pneg %p282
      $region54: #{vit_bert_overlap.2} parent=11 // pred_check_branch
        %502 = sbr.rel (%p500) target = $region56
      $region55: #{vit_bert_overlap.2} parent=11 // pred_region
        _
      $region56: #{vit_bert_overlap.2} parent=11 // pred_fallthru
        _
      // Predicated region
      $region57: #{vit_bert_overlap.2} parent=11 // pred_check
        %p503 = pneg %p303
      $region58: #{vit_bert_overlap.2} parent=11 // pred_check_branch
        %505 = sbr.rel (%p503) target = $region60
      $region59: #{vit_bert_overlap.2} parent=11 // pred_region
        _
      $region60: #{vit_bert_overlap.2} parent=11 // pred_fallthru
        _
      // Predicated region
      $region61: #{vit_bert_overlap.2} parent=11 // pred_check
        %p506 = pneg %p324
      $region62: #{vit_bert_overlap.2} parent=11 // pred_check_branch
        %508 = sbr.rel (%p506) target = $region64
      $region63: #{vit_bert_overlap.2} parent=11 // pred_region
        _
      $region64: #{vit_bert_overlap.2} parent=11 // pred_fallthru
        _
      // Predicated region
      $region65: #{vit_bert_overlap.2} parent=11 // pred_check
        %p509 = pneg %p345
      $region66: #{vit_bert_overlap.2} parent=11 // pred_check_branch
        %511 = sbr.rel (%p509) target = $region68
      $region67: #{vit_bert_overlap.2} parent=11 // pred_region
        _
      $region68: #{vit_bert_overlap.2} parent=11 // pred_fallthru
        _
      // Predicated region
      $region69: #{vit_bert_overlap.2} parent=11 // pred_check
        %p512 = pneg %p366
      $region70: #{vit_bert_overlap.2} parent=11 // pred_check_branch
        %514 = sbr.rel (%p512) target = $region72
      $region71: #{vit_bert_overlap.2} parent=11 // pred_region
        _
      $region72: #{vit_bert_overlap.2} parent=11 // pred_fallthru
        _
      // Predicated region
      $region73: #{vit_bert_overlap.2} parent=11 // pred_check
        %p515 = pneg %p387
      $region74: #{vit_bert_overlap.2} parent=11 // pred_check_branch
        %517 = sbr.rel (%p515) target = $region76
      $region75: #{vit_bert_overlap.2} parent=11 // pred_region
        _
      $region76: #{vit_bert_overlap.2} parent=11 // pred_fallthru
        _
      // Predicated region
      $region77: #{vit_bert_overlap.2} parent=11 // pred_check
        %p518 = pneg %p408
      $region78: #{vit_bert_overlap.2} parent=11 // pred_check_branch
        %520 = sbr.rel (%p518) target = $region80
      $region79: #{vit_bert_overlap.2} parent=11 // pred_region
        _
      $region80: #{vit_bert_overlap.2} parent=11 // pred_fallthru
        _
      // Predicated region
      $region81: #{vit_bert_overlap.2} parent=11 // pred_check
        %p521 = pneg %p429
      $region82: #{vit_bert_overlap.2} parent=11 // pred_check_branch
        %523 = sbr.rel (%p521) target = $region84
      $region83: #{vit_bert_overlap.2} parent=11 // pred_region
        _
      $region84: #{vit_bert_overlap.2} parent=11 // pred_fallthru
        _
    $region12: #{vit_bert_overlap.2} parent=5 // pred_fallthru
      _
    %p524 = scmp.lt.s32.totalorder %s25, 2
    // Predicated region
    $region85: #{vit_bert_overlap.2} parent=5 // pred_check
      %p525 = pneg %p524
    $region86: #{vit_bert_overlap.2} parent=5 // pred_check_branch
      %527 = sbr.rel (%p525) target = $region88
    $region87: #{vit_bert_overlap.2} parent=5 // pred_region
      // Predicated region
      $region89: #{vit_bert_overlap.2} parent=87 // pred_check
        %p528 = pneg %p45
      $region90: #{vit_bert_overlap.2} parent=87 // pred_check_branch
        %530 = sbr.rel (%p528) target = $region92
      $region91: #{vit_bert_overlap.2} parent=87 // pred_region
        %p531 = scmp.lt.s32.totalorder %s25, 1
        %s532 = scalar_select %p531, %s25, 1
        %s533 = smul.addr %s532, 4
        %s534 = smul.addr %s533, 8
        %s535 = scalar_lea.vmem %s0, %s534
      $region92: #{vit_bert_overlap.2} parent=87 // pred_fallthru
        _
    $region88: #{vit_bert_overlap.2} parent=5 // pred_fallthru
      _
    %p536 = scmp.le.s32.totalorder 1, %s25
    %p537 = scmp.lt.s32.totalorder %s25, 3
    %p538 = pnand %p536, %p537
    %p539 = pneg %p538
    // Predicated region
    $region93: #{vit_bert_overlap.2} parent=5 // pred_check
      _
    $region94: #{vit_bert_overlap.2} parent=5 // pred_check_branch
      %541 = sbr.rel (%p538) target = $region96
    $region95: #{vit_bert_overlap.2} parent=5 // pred_region
      %s542 = ssub.s32 %s25, 1
      %p543 = scmp.lt.s32.totalorder %s30, 1
      %s544 = scalar_select %p543, %s30, 1
      %s545 = smul.addr %s544, 4
      %s546 = smul.addr %s545, 8
      %s547 = scalar_lea.vmem %s0, %s546
      %p548 = pneg %p51
      %p549 = pneg %p48
      %p550 = pneg %p72
      %p551 = pneg %p69
      %p552 = pneg %p93
      %p553 = pneg %p90
      %p554 = pneg %p114
      %p555 = pneg %p111
      %p556 = pneg %p135
      %p557 = pneg %p132
      %p558 = pneg %p156
      %p559 = pneg %p153
      %p560 = pneg %p177
      %p561 = pneg %p174
      %p562 = pneg %p198
      %p563 = pneg %p195
      %p564 = pneg %p219
      %p565 = pneg %p216
      %p566 = pneg %p240
      %p567 = pneg %p237
      %p568 = pneg %p261
      %p569 = pneg %p258
      %p570 = pneg %p282
      %p571 = pneg %p279
      %p572 = pneg %p303
      %p573 = pneg %p300
      %p574 = pneg %p324
      %p575 = pneg %p321
      %p576 = pneg %p345
      %p577 = pneg %p342
      %p578 = pneg %p366
      %p579 = pneg %p363
      %p580 = pneg %p387
      %p581 = pneg %p384
      %p582 = pneg %p408
      %p583 = pneg %p405
      %p584 = pneg %p429
      %p585 = pneg %p426
      %p586 = pneg %p455
      %p587 = pneg %p452
      %p588 = scmp.lt.s32.totalorder %s30, 1
      %s589 = scalar_select %p588, %s30, 1
      %s590 = smul.addr %s589, 2
      %s591 = smul.addr %s590, 8
      %s592 = scalar_lea.vmem %s19, %s591
      %p593 = scmp.lt.s32.totalorder %s30, 1
      %s594 = scalar_select %p593, %s30, 1
      %s595 = smul.addr %s594, 4
      %s596 = smul.addr %s595, 8
      %s597 = scalar_lea.vmem %s0, %s596
      %p598 = scmp.lt.s32.totalorder %s30, 1
      %s599 = scalar_select %p598, %s30, 1
      %s600 = smul.addr %s599, 2
      %s601 = smul.addr %s600, 8
      %s602 = scalar_lea.vmem %s19, %s601
      %v603 = vld [vmem:[%s597] sm:$0xff]
      %v604 = vld [vmem:[%s597 + $0x8] sm:$0xff]
      %v605 = vld [vmem:[%s597 + $0x10] sm:$0x3]
      %v606 = vld [vmem:[%s597 + $0x18] sm:$0x3]
      %v607 = vld [vmem:[%s1] sm:$0xff]
      %v608 = vld [vmem:[%s1 + $0x8] sm:$0xff]
      %v609 = vld [vmem:[%s1 + $0x10] sm:$0xff]
      %v610 = vld [vmem:[%s1 + $0x18] sm:$0xff]
      %v611 = vld [vmem:[%s1 + $0x20] sm:$0xff]
      %v612 = vld [vmem:[%s1 + $0x28] sm:$0xff]
      %v613 = vld [vmem:[%s1 + $0x30] sm:$0xff]
      %v614 = vld [vmem:[%s1 + $0x38] sm:$0xff]
      %v615 = vld [vmem:[%s1 + $0x40] sm:$0xff]
      %v616 = vld [vmem:[%s1 + $0x48] sm:$0xff]
      %v617 = vld [vmem:[%s1 + $0x50] sm:$0xff]
      %v618 = vld [vmem:[%s1 + $0x58] sm:$0xff]
      %v619 = vld [vmem:[%s1 + $0x60] sm:$0xff]
      %v620 = vld [vmem:[%s1 + $0x68] sm:$0xff]
      %v621 = vld [vmem:[%s1 + $0x70] sm:$0xff]
      %v622 = vld [vmem:[%s1 + $0x78] sm:$0xff]
      %v623 = vld [vmem:[%s1 + $0x80] sm:$0xff]
      %v624 = vld [vmem:[%s1 + $0x88] sm:$0xff]
      %v625 = vld [vmem:[%s1 + $0x90] sm:$0xff]
      %v626 = vld [vmem:[%s1 + $0x98] sm:$0xff]
      %v627 = vld [vmem:[%s1 + $0xa0] sm:$0xff]
      %v628 = vld [vmem:[%s1 + $0xa8] sm:$0xff]
      %v629 = vld [vmem:[%s1 + $0xb0] sm:$0xff]
      %v630 = vld [vmem:[%s1 + $0xb8] sm:$0xff]
      %v631 = vld [vmem:[%s1 + $0xc0] sm:$0xff]
      %v632 = vld [vmem:[%s1 + $0xc8] sm:$0xff]
      %v633 = vld [vmem:[%s1 + $0xd0] sm:$0xff]
      %v634 = vld [vmem:[%s1 + $0xd8] sm:$0xff]
      %v635 = vld [vmem:[%s1 + $0xe0] sm:$0xff]
      %v636 = vld [vmem:[%s1 + $0xe8] sm:$0xff]
      %v637 = vld [vmem:[%s1 + $0xf0] sm:$0xff]
      %v638 = vld [vmem:[%s1 + $0xf8] sm:$0xff]
      %v639 = vld [vmem:[%s2] sm:$0x1]
      %v641 = vlaneseq
      %v642 = vshrl.u32 %v641, 7
      %v643 = vsub.s32 0, %v642
      %v644 = vrot.slane %v639, %v643
      %646 = vmatprep.subr.mxu0 0.0
      %647 = vmatpush1.msra.mxu0 %v607
      %648 = vmatprep.subr.mxu0 0.0
      %649 = vmatpush1.msra.mxu0 %v608
      %650 = vmatprep.subr.mxu0 0.0
      %651 = vmatpush1.msra.mxu0 %v609
      %652 = vmatprep.subr.mxu0 0.0
      %653 = vmatpush1.msra.mxu0 %v610
      %654 = vmatprep.subr.mxu0 0.0
      %655 = vmatpush1.msra.mxu0 %v611
      %656 = vmatprep.subr.mxu0 0.0
      %657 = vmatpush1.msra.mxu0 %v612
      %658 = vmatprep.subr.mxu0 0.0
      %659 = vmatpush1.msra.mxu0 %v613
      %660 = vmatprep.subr.mxu0 0.0
      %661 = vmatpush1.msra.mxu0 %v614
      %662 = vmatprep.subr.mxu0 0.0
      %663 = vmatpush1.msra.mxu0 %v615
      %664 = vmatprep.subr.mxu0 0.0
      %665 = vmatpush1.msra.mxu0 %v616
      %666 = vmatprep.subr.mxu0 0.0
      %667 = vmatpush1.msra.mxu0 %v617
      %668 = vmatprep.subr.mxu0 0.0
      %669 = vmatpush1.msra.mxu0 %v618
      %670 = vmatprep.subr.mxu0 0.0
      %671 = vmatpush1.msra.mxu0 %v619
      %672 = vmatprep.subr.mxu0 0.0
      %673 = vmatpush1.msra.mxu0 %v620
      %674 = vmatprep.subr.mxu0 0.0
      %675 = vmatpush1.msra.mxu0 %v621
      %676 = vmatprep.subr.mxu0 0.0
      %677 = vmatpush1.msra.mxu0 %v622
      %678 = vmatprep.subr.mxu0 0.0
      %679 = vmatpush1.msra.mxu0 %v623
      %680 = vmatprep.subr.mxu0 0.0
      %681 = vmatpush1.msra.mxu0 %v624
      %682 = vmatprep.subr.mxu0 0.0
      %683 = vmatpush1.msra.mxu0 %v625
      %684 = vmatprep.subr.mxu0 0.0
      %685 = vmatpush1.msra.mxu0 %v626
      %686 = vmatprep.subr.mxu0 0.0
      %687 = vmatpush1.msra.mxu0 %v627
      %688 = vmatprep.subr.mxu0 0.0
      %689 = vmatpush1.msra.mxu0 %v628
      %690 = vmatprep.subr.mxu0 0.0
      %691 = vmatpush1.msra.mxu0 %v629
      %692 = vmatprep.subr.mxu0 0.0
      %693 = vmatpush1.msra.mxu0 %v630
      %694 = vmatprep.subr.mxu0 0.0
      %695 = vmatpush1.msra.mxu0 %v631
      %696 = vmatprep.subr.mxu0 0.0
      %697 = vmatpush1.msra.mxu0 %v632
      %698 = vmatprep.subr.mxu0 0.0
      %699 = vmatpush1.msra.mxu0 %v633
      %700 = vmatprep.subr.mxu0 0.0
      %701 = vmatpush1.msra.mxu0 %v634
      %702 = vmatprep.subr.mxu0 0.0
      %703 = vmatpush1.msra.mxu0 %v635
      %704 = vmatprep.subr.mxu0 0.0
      %705 = vmatpush1.msra.mxu0 %v636
      %706 = vmatprep.subr.mxu0 0.0
      %707 = vmatpush1.msra.mxu0 %v637
      %708 = vmatprep.subr.mxu0 0.0
      %709 = vmatpush1.msra.mxu0 %v638
      %710 = vmatprep.mubr.f32.mxu0 %v604
      %711 = vmatmul.mubr.f32.gmra.mrb[0].mxu0 %v603
      %v712 = vpop.f32.mrb[0].mxu0
      %v713 = vadd.f32 %v644, %v712
      %v714 = vpop.f32.mrb[0].mxu0
      %715 = vmatprep.mubr.f32.mxu0 %v606
      %716 = vmatmul.mubr.f32.gmra.mrb[0].mxu0 %v605
      %v717 = vpop.f32.mrb[0].mxu0
      %v718 = vadd.f32 %v644, %v717
      %v719 = vpop.f32.mrb[0].mxu0
      %720 = vdwg.mxu0
      %v721 = vlaneseq
      %v722 = vshrl.u32 %v721, 7
      %v723 = vadd.s32 %v722, 8
      %vm724 = vcmp.eq.s32.totalorder %v722, 0
      %vm725 = vcmp.eq.s32.totalorder %v723, 0
      %v726 = vld [vmem:[%s3] sm:$0x1]
      %v727 = vsel %vm724, 1, 0
      %v728 = vsel %vm725, 1, 0
      %vm729 = vcmp.eq.s32.totalorder %v727, 1
      %vm730 = vcmp.eq.s32.totalorder %v728, 1
      %v732 = vlaneseq
      %v733 = vshrl.u32 %v732, 7
      %v734 = vsub.s32 0, %v733
      %v735 = vrot.slane %v726, %v734
      %v737 = vsel %vm729, %v735, %v713
      %v738 = vsel %vm730, %v735, %v718
      %v739 = vld [vmem:[%s4] sm:$0xff]
      %v740 = vld [vmem:[%s4 + $0x8] sm:$0x3]
      %v741 = vadd.f32 %v737, %v739
      %v742 = vadd.f32 %v738, %v740
      %v743 = vld [vmem:[%s5] sm:$0x1]
      %v744 = vld [vmem:[%s6] sm:$0x1]
      %vm745 = vcmask 261120
      %v746 = vsel %vm745, %v741, 0.0
      %747 = vadd.xlane.f32.xlu0 %v746
      %v748 = vpop.xlane.xlu0 %747
      %vm749 = vcmask 254976
      %v750 = vsel %vm749, %v742, 0.0
      %751 = vadd.xlane.f32.xlu0 %v750
      %v752 = vpop.xlane.xlu0 %751
      %v753 = vrcp.pop 32.0
      %v754 = vmul.f32 %v748, %v753
      %v755 = vmul.f32 %v752, %v753
      %v756 = vsub.f32 %v741, %v754
      %v757 = vsub.f32 %v742, %v755
      %v758 = vmul.f32 %v756, %v756
      %v759 = vmul.f32 %v757, %v757
      %v760 = vsel %vm745, %v758, 0.0
      %761 = vadd.xlane.f32.xlu0 %v760
      %v762 = vpop.xlane.xlu0 %761
      %v763 = vsel %vm749, %v759, 0.0
      %764 = vadd.xlane.f32.xlu0 %v763
      %v765 = vpop.xlane.xlu0 %764
      %v766 = vmul.f32 %v762, %v753
      %v767 = vmul.f32 %v765, %v753
      %v768 = vadd.f32 %v766, 1e-06
      %v769 = vadd.f32 %v767, 1e-06
      %v770 = vrsqrt.pop %v768
      %v771 = vrsqrt.pop %v769
      %v772 = vmul.f32 %v756, %v770
      %v773 = vmul.f32 %v757, %v771
      %v775 = vlaneseq
      %v776 = vshrl.u32 %v775, 7
      %v777 = vsub.s32 0, %v776
      %v778 = vrot.slane %v743, %v777
      %v780 = vmul.f32 %v772, %v778
      %v781 = vmul.f32 %v773, %v778
      %v783 = vlaneseq
      %v784 = vshrl.u32 %v783, 7
      %v785 = vsub.s32 0, %v784
      %v786 = vrot.slane %v744, %v785
      %v788 = vadd.f32 %v780, %v786
      %v789 = vadd.f32 %v781, %v786
      %v790 = vld [vmem:[%s7] sm:$0xff]
      %v791 = vld [vmem:[%s7 + $0x8] sm:$0xff]
      %v792 = vld [vmem:[%s7 + $0x10] sm:$0xff]
      %v793 = vld [vmem:[%s7 + $0x18] sm:$0xff]
      %v794 = vld [vmem:[%s8] sm:$0x1]
      %v796 = vlaneseq
      %v797 = vshrl.u32 %v796, 7
      %v798 = vsub.s32 0, %v797
      %v799 = vrot.slane %v794, %v798
      %v802 = vsel %vm745, %v788, 0
      %v805 = vsel %vm745, %v789, 0
      %807 = vmatprep.subr.mxu0 0.0
      %808 = vmatpush1.msra.mxu0 %v790
      %809 = vmatprep.subr.mxu0 0.0
      %810 = vmatpush1.msra.mxu0 %v791
      %811 = vmatprep.subr.mxu0 0.0
      %812 = vmatpush1.msra.mxu0 %v792
      %813 = vmatprep.subr.mxu0 0.0
      %814 = vmatpush1.msra.mxu0 %v793
      %815 = vmatprep.subr.mxu0 0.0
      %816 = vmatpush1.msra.mxu0 0.0
      %817 = vmatprep.subr.mxu0 0.0
      %818 = vmatpush1.msra.mxu0 0.0
      %819 = vmatprep.subr.mxu0 0.0
      %820 = vmatpush1.msra.mxu0 0.0
      %821 = vmatprep.subr.mxu0 0.0
      %822 = vmatpush1.msra.mxu0 0.0
      %823 = vmatprep.subr.mxu0 0.0
      %824 = vmatpush1.msra.mxu0 0.0
      %825 = vmatprep.subr.mxu0 0.0
      %826 = vmatpush1.msra.mxu0 0.0
      %827 = vmatprep.subr.mxu0 0.0
      %828 = vmatpush1.msra.mxu0 0.0
      %829 = vmatprep.subr.mxu0 0.0
      %830 = vmatpush1.msra.mxu0 0.0
      %831 = vmatprep.subr.mxu0 0.0
      %832 = vmatpush1.msra.mxu0 0.0
      %833 = vmatprep.subr.mxu0 0.0
      %834 = vmatpush1.msra.mxu0 0.0
      %835 = vmatprep.subr.mxu0 0.0
      %836 = vmatpush1.msra.mxu0 0.0
      %837 = vmatprep.subr.mxu0 0.0
      %838 = vmatpush1.msra.mxu0 0.0
      %839 = vmatprep.subr.mxu0 0.0
      %840 = vmatpush1.msra.mxu0 0.0
      %841 = vmatprep.subr.mxu0 0.0
      %842 = vmatpush1.msra.mxu0 0.0
      %843 = vmatprep.subr.mxu0 0.0
      %844 = vmatpush1.msra.mxu0 0.0
      %845 = vmatprep.subr.mxu0 0.0
      %846 = vmatpush1.msra.mxu0 0.0
      %847 = vmatprep.subr.mxu0 0.0
      %848 = vmatpush1.msra.mxu0 0.0
      %849 = vmatprep.subr.mxu0 0.0
      %850 = vmatpush1.msra.mxu0 0.0
      %851 = vmatprep.subr.mxu0 0.0
      %852 = vmatpush1.msra.mxu0 0.0
      %853 = vmatprep.subr.mxu0 0.0
      %854 = vmatpush1.msra.mxu0 0.0
      %855 = vmatprep.subr.mxu0 0.0
      %856 = vmatpush1.msra.mxu0 0.0
      %857 = vmatprep.subr.mxu0 0.0
      %858 = vmatpush1.msra.mxu0 0.0
      %859 = vmatprep.subr.mxu0 0.0
      %860 = vmatpush1.msra.mxu0 0.0
      %861 = vmatprep.subr.mxu0 0.0
      %862 = vmatpush1.msra.mxu0 0.0
      %863 = vmatprep.subr.mxu0 0.0
      %864 = vmatpush1.msra.mxu0 0.0
      %865 = vmatprep.subr.mxu0 0.0
      %866 = vmatpush1.msra.mxu0 0.0
      %867 = vmatprep.subr.mxu0 0.0
      %868 = vmatpush1.msra.mxu0 0.0
      %869 = vmatprep.subr.mxu0 0.0
      %870 = vmatpush1.msra.mxu0 0.0
      %871 = vmatprep.mubr.f32.mxu0 0.0
      %872 = vmatmul.mubr.f32.gmra.mrb[0].mxu0 %v802
      %v873 = vpop.f32.mrb[0].mxu0
      %v874 = vadd.f32 %v799, %v873
      %v875 = vpop.f32.mrb[0].mxu0
      %876 = vmatprep.mubr.f32.mxu0 0.0
      %877 = vmatmul.mubr.f32.gmra.mrb[0].mxu0 %v805
      %v878 = vpop.f32.mrb[0].mxu0
      %v879 = vadd.f32 %v799, %v878
      %v880 = vpop.f32.mrb[0].mxu0
      %881 = vdwg.mxu0
      %v882 = vld [vmem:[%s9] sm:$0xff]
      %v883 = vld [vmem:[%s9 + $0x8] sm:$0xff]
      %v884 = vld [vmem:[%s9 + $0x10] sm:$0xff]
      %v885 = vld [vmem:[%s9 + $0x18] sm:$0xff]
      %v886 = vld [vmem:[%s10] sm:$0x1]
      %v887 = vmul.f32 %v874, 0.35355338
      %v888 = vmul.f32 %v879, 0.35355338
      %891 = vrot.lane.b32.xlu0 %v874, 96
      %v892 = vpop.permute.xlu0 %891
      %893 = vrot.lane.b32.xlu0 %v879, 96
      %v894 = vpop.permute.xlu0 %893
      %vm895 = vcmask 64512
      %v897 = vsel %vm895, %v887, 0
      %v900 = vsel %vm895, %v888, 0
      %v902 = vsel %vm895, %v892, 0
      %v904 = vsel %vm895, %v894, 0
      %906 = vmatprep.subr.mxu0 0.0
      %907 = vmatpush1.xpose.msra.mxu0 %v902
      %908 = vmatprep.subr.mxu0 0.0
      %909 = vmatpush1.xpose.msra.mxu0 %v904
      %910 = vmatprep.subr.mxu0 0.0
      %911 = vmatpush1.xpose.msra.mxu0 0.0
      %912 = vmatprep.subr.mxu0 0.0
      %913 = vmatpush1.xpose.msra.mxu0 0.0
      %914 = vmatprep.subr.mxu0 0.0
      %915 = vmatpush1.xpose.msra.mxu0 0.0
      %916 = vmatprep.subr.mxu0 0.0
      %917 = vmatpush1.xpose.msra.mxu0 0.0
      %918 = vmatprep.subr.mxu0 0.0
      %919 = vmatpush1.xpose.msra.mxu0 0.0
      %920 = vmatprep.subr.mxu0 0.0
      %921 = vmatpush1.xpose.msra.mxu0 0.0
      %922 = vmatprep.subr.mxu0 0.0
      %923 = vmatpush1.xpose.msra.mxu0 0.0
      %924 = vmatprep.subr.mxu0 0.0
      %925 = vmatpush1.xpose.msra.mxu0 0.0
      %926 = vmatprep.subr.mxu0 0.0
      %927 = vmatpush1.xpose.msra.mxu0 0.0
      %928 = vmatprep.subr.mxu0 0.0
      %929 = vmatpush1.xpose.msra.mxu0 0.0
      %930 = vmatprep.subr.mxu0 0.0
      %931 = vmatpush1.xpose.msra.mxu0 0.0
      %932 = vmatprep.subr.mxu0 0.0
      %933 = vmatpush1.xpose.msra.mxu0 0.0
      %934 = vmatprep.subr.mxu0 0.0
      %935 = vmatpush1.xpose.msra.mxu0 0.0
      %936 = vmatprep.subr.mxu0 0.0
      %937 = vmatpush1.xpose.msra.mxu0 0.0
      %938 = vmatprep.subr.mxu0 0.0
      %939 = vmatpush1.xpose.msra.mxu0 0.0
      %940 = vmatprep.subr.mxu0 0.0
      %941 = vmatpush1.xpose.msra.mxu0 0.0
      %942 = vmatprep.subr.mxu0 0.0
      %943 = vmatpush1.xpose.msra.mxu0 0.0
      %944 = vmatprep.subr.mxu0 0.0
      %945 = vmatpush1.xpose.msra.mxu0 0.0
      %946 = vmatprep.subr.mxu0 0.0
      %947 = vmatpush1.xpose.msra.mxu0 0.0
      %948 = vmatprep.subr.mxu0 0.0
      %949 = vmatpush1.xpose.msra.mxu0 0.0
      %950 = vmatprep.subr.mxu0 0.0
      %951 = vmatpush1.xpose.msra.mxu0 0.0
      %952 = vmatprep.subr.mxu0 0.0
      %953 = vmatpush1.xpose.msra.mxu0 0.0
      %954 = vmatprep.subr.mxu0 0.0
      %955 = vmatpush1.xpose.msra.mxu0 0.0
      %956 = vmatprep.subr.mxu0 0.0
      %957 = vmatpush1.xpose.msra.mxu0 0.0
      %958 = vmatprep.subr.mxu0 0.0
      %959 = vmatpush1.xpose.msra.mxu0 0.0
      %960 = vmatprep.subr.mxu0 0.0
      %961 = vmatpush1.xpose.msra.mxu0 0.0
      %962 = vmatprep.subr.mxu0 0.0
      %963 = vmatpush1.xpose.msra.mxu0 0.0
      %964 = vmatprep.subr.mxu0 0.0
      %965 = vmatpush1.xpose.msra.mxu0 0.0
      %966 = vmatprep.subr.mxu0 0.0
      %967 = vmatpush1.xpose.msra.mxu0 0.0
      %968 = vmatprep.subr.mxu0 0.0
      %969 = vmatpush1.xpose.msra.mxu0 0.0
      %970 = vmatprep.mubr.f32.mxu0 0.0
      %971 = vmatmul.mubr.f32.gmra.mrb[0].mxu0 %v897
      %v972 = vpop.f32.mrb[0].mxu0
      %v973 = vadd.f32 0.0, %v972
      %v974 = vpop.f32.mrb[0].mxu0
      %975 = vmatprep.mubr.f32.mxu0 0.0
      %976 = vmatmul.mubr.f32.gmra.mrb[0].mxu0 %v900
      %v977 = vpop.f32.mrb[0].mxu0
      %v978 = vadd.f32 0.0, %v977
      %v979 = vpop.f32.mrb[0].mxu0
      %980 = vdwg.mxu0
      %vm981 = vcmask 80896
      %v982 = vsel %vm981, %v973, -inf
      %983 = vmax.xlane.f32.xlu0 %v982
      %v984 = vpop.xlane.xlu0 %983
      %vm985 = vcmask 74752
      %v986 = vsel %vm985, %v978, -inf
      %987 = vmax.xlane.f32.xlu0 %v986
      %v988 = vpop.xlane.xlu0 %987
      %v989 = vsub.f32 %v973, %v984
      %v990 = vsub.f32 %v978, %v988
      %v991 = vmul.f32 %v989, 1.442695
      %v992 = vpow.pop %v991
      %v993 = vmul.f32 %v990, 1.442695
      %v994 = vpow.pop %v993
      %v995 = vsel %vm981, %v992, 0.0
      %996 = vadd.xlane.f32.xlu0 %v995
      %v997 = vpop.xlane.xlu0 %996
      %v998 = vsel %vm985, %v994, 0.0
      %999 = vadd.xlane.f32.xlu0 %v998
      %v1000 = vpop.xlane.xlu0 %999
      %v1001 = vrcp.pop %v997
      %v1002 = vrcp.pop %v1000
      %v1003 = vmul.f32 %v992, %v1001
      %v1004 = vmul.f32 %v994, %v1002
      %1005 = vrot.lane.b32.xlu0 %v874, 64
      %v1006 = vpop.permute.xlu0 %1005
      %1007 = vrot.lane.b32.xlu0 %v879, 64
      %v1008 = vpop.permute.xlu0 %1007
      %v1011 = vsel %vm981, %v1003, 0
      %v1014 = vsel %vm981, %v1004, 0
      %vm1016 = vcmask 1041408
      %v1017 = vsel %vm1016, %v1008, 0
      %1019 = vmatprep.subr.mxu0 0.0
      %1020 = vmatpush1.msra.mxu0 %v1006
      %1021 = vmatprep.subr.mxu0 0.0
      %1022 = vmatpush1.msra.mxu0 %v1017
      %1023 = vmatprep.subr.mxu0 0.0
      %1024 = vmatpush1.msra.mxu0 0.0
      %1025 = vmatprep.subr.mxu0 0.0
      %1026 = vmatpush1.msra.mxu0 0.0
      %1027 = vmatprep.subr.mxu0 0.0
      %1028 = vmatpush1.msra.mxu0 0.0
      %1029 = vmatprep.subr.mxu0 0.0
      %1030 = vmatpush1.msra.mxu0 0.0
      %1031 = vmatprep.subr.mxu0 0.0
      %1032 = vmatpush1.msra.mxu0 0.0
      %1033 = vmatprep.subr.mxu0 0.0
      %1034 = vmatpush1.msra.mxu0 0.0
      %1035 = vmatprep.subr.mxu0 0.0
      %1036 = vmatpush1.msra.mxu0 0.0
      %1037 = vmatprep.subr.mxu0 0.0
      %1038 = vmatpush1.msra.mxu0 0.0
      %1039 = vmatprep.subr.mxu0 0.0
      %1040 = vmatpush1.msra.mxu0 0.0
      %1041 = vmatprep.subr.mxu0 0.0
      %1042 = vmatpush1.msra.mxu0 0.0
      %1043 = vmatprep.subr.mxu0 0.0
      %1044 = vmatpush1.msra.mxu0 0.0
      %1045 = vmatprep.subr.mxu0 0.0
      %1046 = vmatpush1.msra.mxu0 0.0
      %1047 = vmatprep.subr.mxu0 0.0
      %1048 = vmatpush1.msra.mxu0 0.0
      %1049 = vmatprep.subr.mxu0 0.0
      %1050 = vmatpush1.msra.mxu0 0.0
      %1051 = vmatprep.subr.mxu0 0.0
      %1052 = vmatpush1.msra.mxu0 0.0
      %1053 = vmatprep.subr.mxu0 0.0
      %1054 = vmatpush1.msra.mxu0 0.0
      %1055 = vmatprep.subr.mxu0 0.0
      %1056 = vmatpush1.msra.mxu0 0.0
      %1057 = vmatprep.subr.mxu0 0.0
      %1058 = vmatpush1.msra.mxu0 0.0
      %1059 = vmatprep.subr.mxu0 0.0
      %1060 = vmatpush1.msra.mxu0 0.0
      %1061 = vmatprep.subr.mxu0 0.0
      %1062 = vmatpush1.msra.mxu0 0.0
      %1063 = vmatprep.subr.mxu0 0.0
      %1064 = vmatpush1.msra.mxu0 0.0
      %1065 = vmatprep.subr.mxu0 0.0
      %1066 = vmatpush1.msra.mxu0 0.0
      %1067 = vmatprep.subr.mxu0 0.0
      %1068 = vmatpush1.msra.mxu0 0.0
      %1069 = vmatprep.subr.mxu0 0.0
      %1070 = vmatpush1.msra.mxu0 0.0
      %1071 = vmatprep.subr.mxu0 0.0
      %1072 = vmatpush1.msra.mxu0 0.0
      %1073 = vmatprep.subr.mxu0 0.0
      %1074 = vmatpush1.msra.mxu0 0.0
      %1075 = vmatprep.subr.mxu0 0.0
      %1076 = vmatpush1.msra.mxu0 0.0
      %1077 = vmatprep.subr.mxu0 0.0
      %1078 = vmatpush1.msra.mxu0 0.0
      %1079 = vmatprep.subr.mxu0 0.0
      %1080 = vmatpush1.msra.mxu0 0.0
      %1081 = vmatprep.subr.mxu0 0.0
      %1082 = vmatpush1.msra.mxu0 0.0
      %1083 = vmatprep.mubr.f32.mxu0 0.0
      %1084 = vmatmul.mubr.f32.gmra.mrb[0].mxu0 %v1011
      %v1085 = vpop.f32.mrb[0].mxu0
      %v1086 = vadd.f32 0.0, %v1085
      %v1087 = vpop.f32.mrb[0].mxu0
      %1088 = vmatprep.mubr.f32.mxu0 0.0
      %1089 = vmatmul.mubr.f32.gmra.mrb[0].mxu0 %v1014
      %v1090 = vpop.f32.mrb[0].mxu0
      %v1091 = vadd.f32 0.0, %v1090
      %v1092 = vpop.f32.mrb[0].mxu0
      %1093 = vdwg.mxu0
      %1094 = vrot.lane.b32.xlu0 %v887, 120
      %v1095 = vpop.permute.xlu0 %1094
      %1096 = vrot.lane.b32.xlu0 %v888, 120
      %v1097 = vpop.permute.xlu0 %1096
      %1098 = vrot.lane.b32.xlu0 %v874, 88
      %v1099 = vpop.permute.xlu0 %1098
      %1100 = vrot.lane.b32.xlu0 %v879, 88
      %v1101 = vpop.permute.xlu0 %1100
      %v1102 = vsel %vm895, %v1095, 0
      %v1104 = vsel %vm895, %v1097, 0
      %v1106 = vsel %vm895, %v1099, 0
      %v1108 = vsel %vm895, %v1101, 0
      %1110 = vmatprep.subr.mxu0 0.0
      %1111 = vmatpush1.xpose.msra.mxu0 %v1106
      %1112 = vmatprep.subr.mxu0 0.0
      %1113 = vmatpush1.xpose.msra.mxu0 %v1108
      %1114 = vmatprep.subr.mxu0 0.0
      %1115 = vmatpush1.xpose.msra.mxu0 0.0
      %1116 = vmatprep.subr.mxu0 0.0
      %1117 = vmatpush1.xpose.msra.mxu0 0.0
      %1118 = vmatprep.subr.mxu0 0.0
      %1119 = vmatpush1.xpose.msra.mxu0 0.0
      %1120 = vmatprep.subr.mxu0 0.0
      %1121 = vmatpush1.xpose.msra.mxu0 0.0
      %1122 = vmatprep.subr.mxu0 0.0
      %1123 = vmatpush1.xpose.msra.mxu0 0.0
      %1124 = vmatprep.subr.mxu0 0.0
      %1125 = vmatpush1.xpose.msra.mxu0 0.0
      %1126 = vmatprep.subr.mxu0 0.0
      %1127 = vmatpush1.xpose.msra.mxu0 0.0
      %1128 = vmatprep.subr.mxu0 0.0
      %1129 = vmatpush1.xpose.msra.mxu0 0.0
      %1130 = vmatprep.subr.mxu0 0.0
      %1131 = vmatpush1.xpose.msra.mxu0 0.0
      %1132 = vmatprep.subr.mxu0 0.0
      %1133 = vmatpush1.xpose.msra.mxu0 0.0
      %1134 = vmatprep.subr.mxu0 0.0
      %1135 = vmatpush1.xpose.msra.mxu0 0.0
      %1136 = vmatprep.subr.mxu0 0.0
      %1137 = vmatpush1.xpose.msra.mxu0 0.0
      %1138 = vmatprep.subr.mxu0 0.0
      %1139 = vmatpush1.xpose.msra.mxu0 0.0
      %1140 = vmatprep.subr.mxu0 0.0
      %1141 = vmatpush1.xpose.msra.mxu0 0.0
      %1142 = vmatprep.subr.mxu0 0.0
      %1143 = vmatpush1.xpose.msra.mxu0 0.0
      %1144 = vmatprep.subr.mxu0 0.0
      %1145 = vmatpush1.xpose.msra.mxu0 0.0
      %1146 = vmatprep.subr.mxu0 0.0
      %1147 = vmatpush1.xpose.msra.mxu0 0.0
      %1148 = vmatprep.subr.mxu0 0.0
      %1149 = vmatpush1.xpose.msra.mxu0 0.0
      %1150 = vmatprep.subr.mxu0 0.0
      %1151 = vmatpush1.xpose.msra.mxu0 0.0
      %1152 = vmatprep.subr.mxu0 0.0
      %1153 = vmatpush1.xpose.msra.mxu0 0.0
      %1154 = vmatprep.subr.mxu0 0.0
      %1155 = vmatpush1.xpose.msra.mxu0 0.0
      %1156 = vmatprep.subr.mxu0 0.0
      %1157 = vmatpush1.xpose.msra.mxu0 0.0
      %1158 = vmatprep.subr.mxu0 0.0
      %1159 = vmatpush1.xpose.msra.mxu0 0.0
      %1160 = vmatprep.subr.mxu0 0.0
      %1161 = vmatpush1.xpose.msra.mxu0 0.0
      %1162 = vmatprep.subr.mxu0 0.0
      %1163 = vmatpush1.xpose.msra.mxu0 0.0
      %1164 = vmatprep.subr.mxu0 0.0
      %1165 = vmatpush1.xpose.msra.mxu0 0.0
      %1166 = vmatprep.subr.mxu0 0.0
      %1167 = vmatpush1.xpose.msra.mxu0 0.0
      %1168 = vmatprep.subr.mxu0 0.0
      %1169 = vmatpush1.xpose.msra.mxu0 0.0
      %1170 = vmatprep.subr.mxu0 0.0
      %1171 = vmatpush1.xpose.msra.mxu0 0.0
      %1172 = vmatprep.subr.mxu0 0.0
      %1173 = vmatpush1.xpose.msra.mxu0 0.0
      %1174 = vmatprep.mubr.f32.mxu0 0.0
      %1175 = vmatmul.mubr.f32.gmra.mrb[0].mxu0 %v1102
      %v1176 = vpop.f32.mrb[0].mxu0
      %v1177 = vadd.f32 0.0, %v1176
      %v1178 = vpop.f32.mrb[0].mxu0
      %1179 = vmatprep.mubr.f32.mxu0 0.0
      %1180 = vmatmul.mubr.f32.gmra.mrb[0].mxu0 %v1104
      %v1181 = vpop.f32.mrb[0].mxu0
      %v1182 = vadd.f32 0.0, %v1181
      %v1183 = vpop.f32.mrb[0].mxu0
      %1184 = vdwg.mxu0
      %v1185 = vsel %vm981, %v1177, -inf
      %1186 = vmax.xlane.f32.xlu0 %v1185
      %v1187 = vpop.xlane.xlu0 %1186
      %v1188 = vsel %vm985, %v1182, -inf
      %1189 = vmax.xlane.f32.xlu0 %v1188
      %v1190 = vpop.xlane.xlu0 %1189
      %v1191 = vsub.f32 %v1177, %v1187
      %v1192 = vsub.f32 %v1182, %v1190
      %v1193 = vmul.f32 %v1191, 1.442695
      %v1194 = vpow.pop %v1193
      %v1195 = vmul.f32 %v1192, 1.442695
      %v1196 = vpow.pop %v1195
      %v1197 = vsel %vm981, %v1194, 0.0
      %1198 = vadd.xlane.f32.xlu0 %v1197
      %v1199 = vpop.xlane.xlu0 %1198
      %v1200 = vsel %vm985, %v1196, 0.0
      %1201 = vadd.xlane.f32.xlu0 %v1200
      %v1202 = vpop.xlane.xlu0 %1201
      %v1203 = vrcp.pop %v1199
      %v1204 = vrcp.pop %v1202
      %v1205 = vmul.f32 %v1194, %v1203
      %v1206 = vmul.f32 %v1196, %v1204
      %1207 = vrot.lane.b32.xlu0 %v874, 56
      %v1208 = vpop.permute.xlu0 %1207
      %1209 = vrot.lane.b32.xlu0 %v879, 56
      %v1210 = vpop.permute.xlu0 %1209
      %v1213 = vsel %vm981, %v1205, 0
      %v1216 = vsel %vm981, %v1206, 0
      %v1218 = vsel %vm1016, %v1210, 0
      %1220 = vmatprep.subr.mxu0 0.0
      %1221 = vmatpush1.msra.mxu0 %v1208
      %1222 = vmatprep.subr.mxu0 0.0
      %1223 = vmatpush1.msra.mxu0 %v1218
      %1224 = vmatprep.subr.mxu0 0.0
      %1225 = vmatpush1.msra.mxu0 0.0
      %1226 = vmatprep.subr.mxu0 0.0
      %1227 = vmatpush1.msra.mxu0 0.0
      %1228 = vmatprep.subr.mxu0 0.0
      %1229 = vmatpush1.msra.mxu0 0.0
      %1230 = vmatprep.subr.mxu0 0.0
      %1231 = vmatpush1.msra.mxu0 0.0
      %1232 = vmatprep.subr.mxu0 0.0
      %1233 = vmatpush1.msra.mxu0 0.0
      %1234 = vmatprep.subr.mxu0 0.0
      %1235 = vmatpush1.msra.mxu0 0.0
      %1236 = vmatprep.subr.mxu0 0.0
      %1237 = vmatpush1.msra.mxu0 0.0
      %1238 = vmatprep.subr.mxu0 0.0
      %1239 = vmatpush1.msra.mxu0 0.0
      %1240 = vmatprep.subr.mxu0 0.0
      %1241 = vmatpush1.msra.mxu0 0.0
      %1242 = vmatprep.subr.mxu0 0.0
      %1243 = vmatpush1.msra.mxu0 0.0
      %1244 = vmatprep.subr.mxu0 0.0
      %1245 = vmatpush1.msra.mxu0 0.0
      %1246 = vmatprep.subr.mxu0 0.0
      %1247 = vmatpush1.msra.mxu0 0.0
      %1248 = vmatprep.subr.mxu0 0.0
      %1249 = vmatpush1.msra.mxu0 0.0
      %1250 = vmatprep.subr.mxu0 0.0
      %1251 = vmatpush1.msra.mxu0 0.0
      %1252 = vmatprep.subr.mxu0 0.0
      %1253 = vmatpush1.msra.mxu0 0.0
      %1254 = vmatprep.subr.mxu0 0.0
      %1255 = vmatpush1.msra.mxu0 0.0
      %1256 = vmatprep.subr.mxu0 0.0
      %1257 = vmatpush1.msra.mxu0 0.0
      %1258 = vmatprep.subr.mxu0 0.0
      %1259 = vmatpush1.msra.mxu0 0.0
      %1260 = vmatprep.subr.mxu0 0.0
      %1261 = vmatpush1.msra.mxu0 0.0
      %1262 = vmatprep.subr.mxu0 0.0
      %1263 = vmatpush1.msra.mxu0 0.0
      %1264 = vmatprep.subr.mxu0 0.0
      %1265 = vmatpush1.msra.mxu0 0.0
      %1266 = vmatprep.subr.mxu0 0.0
      %1267 = vmatpush1.msra.mxu0 0.0
      %1268 = vmatprep.subr.mxu0 0.0
      %1269 = vmatpush1.msra.mxu0 0.0
      %1270 = vmatprep.subr.mxu0 0.0
      %1271 = vmatpush1.msra.mxu0 0.0
      %1272 = vmatprep.subr.mxu0 0.0
      %1273 = vmatpush1.msra.mxu0 0.0
      %1274 = vmatprep.subr.mxu0 0.0
      %1275 = vmatpush1.msra.mxu0 0.0
      %1276 = vmatprep.subr.mxu0 0.0
      %1277 = vmatpush1.msra.mxu0 0.0
      %1278 = vmatprep.subr.mxu0 0.0
      %1279 = vmatpush1.msra.mxu0 0.0
      %1280 = vmatprep.subr.mxu0 0.0
      %1281 = vmatpush1.msra.mxu0 0.0
      %1282 = vmatprep.subr.mxu0 0.0
      %1283 = vmatpush1.msra.mxu0 0.0
      %1284 = vmatprep.mubr.f32.mxu0 0.0
      %1285 = vmatmul.mubr.f32.gmra.mrb[0].mxu0 %v1213
      %v1286 = vpop.f32.mrb[0].mxu0
      %v1287 = vadd.f32 0.0, %v1286
      %v1288 = vpop.f32.mrb[0].mxu0
      %1289 = vmatprep.mubr.f32.mxu0 0.0
      %1290 = vmatmul.mubr.f32.gmra.mrb[0].mxu0 %v1216
      %v1291 = vpop.f32.mrb[0].mxu0
      %v1292 = vadd.f32 0.0, %v1291
      %v1293 = vpop.f32.mrb[0].mxu0
      %1294 = vdwg.mxu0
      %v1296 = vsel %vm895, %v1287, 0
      %v1299 = vsel %vm895, %v1292, 0
      %1301 = vmatprep.subr.mxu0 0.0
      %1302 = vmatpush1.msra.mxu0 %v883
      %1303 = vmatprep.subr.mxu0 0.0
      %1304 = vmatpush1.msra.mxu0 0.0
      %1305 = vmatprep.subr.mxu0 0.0
      %1306 = vmatpush1.msra.mxu0 0.0
      %1307 = vmatprep.subr.mxu0 0.0
      %1308 = vmatpush1.msra.mxu0 0.0
      %1309 = vmatprep.subr.mxu0 0.0
      %1310 = vmatpush1.msra.mxu0 0.0
      %1311 = vmatprep.subr.mxu0 0.0
      %1312 = vmatpush1.msra.mxu0 0.0
      %1313 = vmatprep.subr.mxu0 0.0
      %1314 = vmatpush1.msra.mxu0 0.0
      %1315 = vmatprep.subr.mxu0 0.0
      %1316 = vmatpush1.msra.mxu0 0.0
      %1317 = vmatprep.subr.mxu0 0.0
      %1318 = vmatpush1.msra.mxu0 0.0
      %1319 = vmatprep.subr.mxu0 0.0
      %1320 = vmatpush1.msra.mxu0 0.0
      %1321 = vmatprep.subr.mxu0 0.0
      %1322 = vmatpush1.msra.mxu0 0.0
      %1323 = vmatprep.subr.mxu0 0.0
      %1324 = vmatpush1.msra.mxu0 0.0
      %1325 = vmatprep.subr.mxu0 0.0
      %1326 = vmatpush1.msra.mxu0 0.0
      %1327 = vmatprep.subr.mxu0 0.0
      %1328 = vmatpush1.msra.mxu0 0.0
      %1329 = vmatprep.subr.mxu0 0.0
      %1330 = vmatpush1.msra.mxu0 0.0
      %1331 = vmatprep.subr.mxu0 0.0
      %1332 = vmatpush1.msra.mxu0 0.0
      %1333 = vmatprep.subr.mxu0 0.0
      %1334 = vmatpush1.msra.mxu0 0.0
      %1335 = vmatprep.subr.mxu0 0.0
      %1336 = vmatpush1.msra.mxu0 0.0
      %1337 = vmatprep.subr.mxu0 0.0
      %1338 = vmatpush1.msra.mxu0 0.0
      %1339 = vmatprep.subr.mxu0 0.0
      %1340 = vmatpush1.msra.mxu0 0.0
      %1341 = vmatprep.subr.mxu0 0.0
      %1342 = vmatpush1.msra.mxu0 0.0
      %1343 = vmatprep.subr.mxu0 0.0
      %1344 = vmatpush1.msra.mxu0 0.0
      %1345 = vmatprep.subr.mxu0 0.0
      %1346 = vmatpush1.msra.mxu0 0.0
      %1347 = vmatprep.subr.mxu0 0.0
      %1348 = vmatpush1.msra.mxu0 0.0
      %1349 = vmatprep.subr.mxu0 0.0
      %1350 = vmatpush1.msra.mxu0 0.0
      %1351 = vmatprep.subr.mxu0 0.0
      %1352 = vmatpush1.msra.mxu0 0.0
      %1353 = vmatprep.subr.mxu0 0.0
      %1354 = vmatpush1.msra.mxu0 0.0
      %1355 = vmatprep.subr.mxu0 0.0
      %1356 = vmatpush1.msra.mxu0 0.0
      %1357 = vmatprep.subr.mxu0 0.0
      %1358 = vmatpush1.msra.mxu0 0.0
      %1359 = vmatprep.subr.mxu0 0.0
      %1360 = vmatpush1.msra.mxu0 0.0
      %1361 = vmatprep.subr.mxu0 0.0
      %1362 = vmatpush1.msra.mxu0 0.0
      %1363 = vmatprep.subr.mxu0 0.0
      %1364 = vmatpush1.msra.mxu0 0.0
      %1365 = vmatprep.mubr.f32.mxu0 0.0
      %1366 = vmatmul.mubr.f32.gmra.mrb[0].mxu0 %v1296
      %v1367 = vpop.f32.mrb[0].mxu0
      %v1368 = vadd.f32 0.0, %v1367
      %v1369 = vpop.f32.mrb[0].mxu0
      %1370 = vmatprep.mubr.f32.mxu0 0.0
      %1371 = vmatmul.mubr.f32.gmra.mrb[0].mxu0 %v1299
      %v1372 = vpop.f32.mrb[0].mxu0
      %v1373 = vadd.f32 0.0, %v1372
      %v1374 = vpop.f32.mrb[0].mxu0
      %1375 = vdwg.mxu0
      %v1377 = vsel %vm895, %v1086, 0
      %v1380 = vsel %vm895, %v1091, 0
      %1382 = vmatprep.subr.mxu0 0.0
      %1383 = vmatpush1.msra.mxu0 %v882
      %1384 = vmatprep.subr.mxu0 0.0
      %1385 = vmatpush1.msra.mxu0 0.0
      %1386 = vmatprep.subr.mxu0 0.0
      %1387 = vmatpush1.msra.mxu0 0.0
      %1388 = vmatprep.subr.mxu0 0.0
      %1389 = vmatpush1.msra.mxu0 0.0
      %1390 = vmatprep.subr.mxu0 0.0
      %1391 = vmatpush1.msra.mxu0 0.0
      %1392 = vmatprep.subr.mxu0 0.0
      %1393 = vmatpush1.msra.mxu0 0.0
      %1394 = vmatprep.subr.mxu0 0.0
      %1395 = vmatpush1.msra.mxu0 0.0
      %1396 = vmatprep.subr.mxu0 0.0
      %1397 = vmatpush1.msra.mxu0 0.0
      %1398 = vmatprep.subr.mxu0 0.0
      %1399 = vmatpush1.msra.mxu0 0.0
      %1400 = vmatprep.subr.mxu0 0.0
      %1401 = vmatpush1.msra.mxu0 0.0
      %1402 = vmatprep.subr.mxu0 0.0
      %1403 = vmatpush1.msra.mxu0 0.0
      %1404 = vmatprep.subr.mxu0 0.0
      %1405 = vmatpush1.msra.mxu0 0.0
      %1406 = vmatprep.subr.mxu0 0.0
      %1407 = vmatpush1.msra.mxu0 0.0
      %1408 = vmatprep.subr.mxu0 0.0
      %1409 = vmatpush1.msra.mxu0 0.0
      %1410 = vmatprep.subr.mxu0 0.0
      %1411 = vmatpush1.msra.mxu0 0.0
      %1412 = vmatprep.subr.mxu0 0.0
      %1413 = vmatpush1.msra.mxu0 0.0
      %1414 = vmatprep.subr.mxu0 0.0
      %1415 = vmatpush1.msra.mxu0 0.0
      %1416 = vmatprep.subr.mxu0 0.0
      %1417 = vmatpush1.msra.mxu0 0.0
      %1418 = vmatprep.subr.mxu0 0.0
      %1419 = vmatpush1.msra.mxu0 0.0
      %1420 = vmatprep.subr.mxu0 0.0
      %1421 = vmatpush1.msra.mxu0 0.0
      %1422 = vmatprep.subr.mxu0 0.0
      %1423 = vmatpush1.msra.mxu0 0.0
      %1424 = vmatprep.subr.mxu0 0.0
      %1425 = vmatpush1.msra.mxu0 0.0
      %1426 = vmatprep.subr.mxu0 0.0
      %1427 = vmatpush1.msra.mxu0 0.0
      %1428 = vmatprep.subr.mxu0 0.0
      %1429 = vmatpush1.msra.mxu0 0.0
      %1430 = vmatprep.subr.mxu0 0.0
      %1431 = vmatpush1.msra.mxu0 0.0
      %1432 = vmatprep.subr.mxu0 0.0
      %1433 = vmatpush1.msra.mxu0 0.0
      %1434 = vmatprep.subr.mxu0 0.0
      %1435 = vmatpush1.msra.mxu0 0.0
      %1436 = vmatprep.subr.mxu0 0.0
      %1437 = vmatpush1.msra.mxu0 0.0
      %1438 = vmatprep.subr.mxu0 0.0
      %1439 = vmatpush1.msra.mxu0 0.0
      %1440 = vmatprep.subr.mxu0 0.0
      %1441 = vmatpush1.msra.mxu0 0.0
      %1442 = vmatprep.subr.mxu0 0.0
      %1443 = vmatpush1.msra.mxu0 0.0
      %1444 = vmatprep.subr.mxu0 0.0
      %1445 = vmatpush1.msra.mxu0 0.0
      %1446 = vmatprep.mubr.f32.mxu0 0.0
      %1447 = vmatmul.mubr.f32.gmra.mrb[0].mxu0 %v1377
      %v1448 = vpop.f32.mrb[0].mxu0
      %v1449 = vadd.f32 %v1368, %v1448
      %v1450 = vpop.f32.mrb[0].mxu0
      %1451 = vmatprep.mubr.f32.mxu0 0.0
      %1452 = vmatmul.mubr.f32.gmra.mrb[0].mxu0 %v1380
      %v1453 = vpop.f32.mrb[0].mxu0
      %v1454 = vadd.f32 %v1373, %v1453
      %v1455 = vpop.f32.mrb[0].mxu0
      %1456 = vdwg.mxu0
      %1457 = vrot.lane.b32.xlu0 %v887, 112
      %v1458 = vpop.permute.xlu0 %1457
      %1459 = vrot.lane.b32.xlu0 %v888, 112
      %v1460 = vpop.permute.xlu0 %1459
      %1461 = vrot.lane.b32.xlu0 %v874, 80
      %v1462 = vpop.permute.xlu0 %1461
      %1463 = vrot.lane.b32.xlu0 %v879, 80
      %v1464 = vpop.permute.xlu0 %1463
      %v1465 = vsel %vm895, %v1458, 0
      %v1467 = vsel %vm895, %v1460, 0
      %v1469 = vsel %vm895, %v1462, 0
      %v1471 = vsel %vm895, %v1464, 0
      %1473 = vmatprep.subr.mxu0 0.0
      %1474 = vmatpush1.xpose.msra.mxu0 %v1469
      %1475 = vmatprep.subr.mxu0 0.0
      %1476 = vmatpush1.xpose.msra.mxu0 %v1471
      %1477 = vmatprep.subr.mxu0 0.0
      %1478 = vmatpush1.xpose.msra.mxu0 0.0
      %1479 = vmatprep.subr.mxu0 0.0
      %1480 = vmatpush1.xpose.msra.mxu0 0.0
      %1481 = vmatprep.subr.mxu0 0.0
      %1482 = vmatpush1.xpose.msra.mxu0 0.0
      %1483 = vmatprep.subr.mxu0 0.0
      %1484 = vmatpush1.xpose.msra.mxu0 0.0
      %1485 = vmatprep.subr.mxu0 0.0
      %1486 = vmatpush1.xpose.msra.mxu0 0.0
      %1487 = vmatprep.subr.mxu0 0.0
      %1488 = vmatpush1.xpose.msra.mxu0 0.0
      %1489 = vmatprep.subr.mxu0 0.0
      %1490 = vmatpush1.xpose.msra.mxu0 0.0
      %1491 = vmatprep.subr.mxu0 0.0
      %1492 = vmatpush1.xpose.msra.mxu0 0.0
      %1493 = vmatprep.subr.mxu0 0.0
      %1494 = vmatpush1.xpose.msra.mxu0 0.0
      %1495 = vmatprep.subr.mxu0 0.0
      %1496 = vmatpush1.xpose.msra.mxu0 0.0
      %1497 = vmatprep.subr.mxu0 0.0
      %1498 = vmatpush1.xpose.msra.mxu0 0.0
      %1499 = vmatprep.subr.mxu0 0.0
      %1500 = vmatpush1.xpose.msra.mxu0 0.0
      %1501 = vmatprep.subr.mxu0 0.0
      %1502 = vmatpush1.xpose.msra.mxu0 0.0
      %1503 = vmatprep.subr.mxu0 0.0
      %1504 = vmatpush1.xpose.msra.mxu0 0.0
      %1505 = vmatprep.subr.mxu0 0.0
      %1506 = vmatpush1.xpose.msra.mxu0 0.0
      %1507 = vmatprep.subr.mxu0 0.0
      %1508 = vmatpush1.xpose.msra.mxu0 0.0
      %1509 = vmatprep.subr.mxu0 0.0
      %1510 = vmatpush1.xpose.msra.mxu0 0.0
      %1511 = vmatprep.subr.mxu0 0.0
      %1512 = vmatpush1.xpose.msra.mxu0 0.0
      %1513 = vmatprep.subr.mxu0 0.0
      %1514 = vmatpush1.xpose.msra.mxu0 0.0
      %1515 = vmatprep.subr.mxu0 0.0
      %1516 = vmatpush1.xpose.msra.mxu0 0.0
      %1517 = vmatprep.subr.mxu0 0.0
      %1518 = vmatpush1.xpose.msra.mxu0 0.0
      %1519 = vmatprep.subr.mxu0 0.0
      %1520 = vmatpush1.xpose.msra.mxu0 0.0
      %1521 = vmatprep.subr.mxu0 0.0
      %1522 = vmatpush1.xpose.msra.mxu0 0.0
      %1523 = vmatprep.subr.mxu0 0.0
      %1524 = vmatpush1.xpose.msra.mxu0 0.0
      %1525 = vmatprep.subr.mxu0 0.0
      %1526 = vmatpush1.xpose.msra.mxu0 0.0
      %1527 = vmatprep.subr.mxu0 0.0
      %1528 = vmatpush1.xpose.msra.mxu0 0.0
      %1529 = vmatprep.subr.mxu0 0.0
      %1530 = vmatpush1.xpose.msra.mxu0 0.0
      %1531 = vmatprep.subr.mxu0 0.0
      %1532 = vmatpush1.xpose.msra.mxu0 0.0
      %1533 = vmatprep.subr.mxu0 0.0
      %1534 = vmatpush1.xpose.msra.mxu0 0.0
      %1535 = vmatprep.subr.mxu0 0.0
      %1536 = vmatpush1.xpose.msra.mxu0 0.0
      %1537 = vmatprep.mubr.f32.mxu0 0.0
      %1538 = vmatmul.mubr.f32.gmra.mrb[0].mxu0 %v1465
      %v1539 = vpop.f32.mrb[0].mxu0
      %v1540 = vadd.f32 0.0, %v1539
      %v1541 = vpop.f32.mrb[0].mxu0
      %1542 = vmatprep.mubr.f32.mxu0 0.0
      %1543 = vmatmul.mubr.f32.gmra.mrb[0].mxu0 %v1467
      %v1544 = vpop.f32.mrb[0].mxu0
      %v1545 = vadd.f32 0.0, %v1544
      %v1546 = vpop.f32.mrb[0].mxu0
      %1547 = vdwg.mxu0
      %v1548 = vsel %vm981, %v1540, -inf
      %1549 = vmax.xlane.f32.xlu0 %v1548
      %v1550 = vpop.xlane.xlu0 %1549
      %v1551 = vsel %vm985, %v1545, -inf
      %1552 = vmax.xlane.f32.xlu0 %v1551
      %v1553 = vpop.xlane.xlu0 %1552
      %v1554 = vsub.f32 %v1540, %v1550
      %v1555 = vsub.f32 %v1545, %v1553
      %v1556 = vmul.f32 %v1554, 1.442695
      %v1557 = vpow.pop %v1556
      %v1558 = vmul.f32 %v1555, 1.442695
      %v1559 = vpow.pop %v1558
      %v1560 = vsel %vm981, %v1557, 0.0
      %1561 = vadd.xlane.f32.xlu0 %v1560
      %v1562 = vpop.xlane.xlu0 %1561
      %v1563 = vsel %vm985, %v1559, 0.0
      %1564 = vadd.xlane.f32.xlu0 %v1563
      %v1565 = vpop.xlane.xlu0 %1564
      %v1566 = vrcp.pop %v1562
      %v1567 = vrcp.pop %v1565
      %v1568 = vmul.f32 %v1557, %v1566
      %v1569 = vmul.f32 %v1559, %v1567
      %1570 = vrot.lane.b32.xlu0 %v874, 48
      %v1571 = vpop.permute.xlu0 %1570
      %1572 = vrot.lane.b32.xlu0 %v879, 48
      %v1573 = vpop.permute.xlu0 %1572
      %v1576 = vsel %vm981, %v1568, 0
      %v1579 = vsel %vm981, %v1569, 0
      %v1581 = vsel %vm1016, %v1573, 0
      %1583 = vmatprep.subr.mxu0 0.0
      %1584 = vmatpush1.msra.mxu0 %v1571
      %1585 = vmatprep.subr.mxu0 0.0
      %1586 = vmatpush1.msra.mxu0 %v1581
      %1587 = vmatprep.subr.mxu0 0.0
      %1588 = vmatpush1.msra.mxu0 0.0
      %1589 = vmatprep.subr.mxu0 0.0
      %1590 = vmatpush1.msra.mxu0 0.0
      %1591 = vmatprep.subr.mxu0 0.0
      %1592 = vmatpush1.msra.mxu0 0.0
      %1593 = vmatprep.subr.mxu0 0.0
      %1594 = vmatpush1.msra.mxu0 0.0
      %1595 = vmatprep.subr.mxu0 0.0
      %1596 = vmatpush1.msra.mxu0 0.0
      %1597 = vmatprep.subr.mxu0 0.0
      %1598 = vmatpush1.msra.mxu0 0.0
      %1599 = vmatprep.subr.mxu0 0.0
      %1600 = vmatpush1.msra.mxu0 0.0
      %1601 = vmatprep.subr.mxu0 0.0
      %1602 = vmatpush1.msra.mxu0 0.0
      %1603 = vmatprep.subr.mxu0 0.0
      %1604 = vmatpush1.msra.mxu0 0.0
      %1605 = vmatprep.subr.mxu0 0.0
      %1606 = vmatpush1.msra.mxu0 0.0
      %1607 = vmatprep.subr.mxu0 0.0
      %1608 = vmatpush1.msra.mxu0 0.0
      %1609 = vmatprep.subr.mxu0 0.0
      %1610 = vmatpush1.msra.mxu0 0.0
      %1611 = vmatprep.subr.mxu0 0.0
      %1612 = vmatpush1.msra.mxu0 0.0
      %1613 = vmatprep.subr.mxu0 0.0
      %1614 = vmatpush1.msra.mxu0 0.0
      %1615 = vmatprep.subr.mxu0 0.0
      %1616 = vmatpush1.msra.mxu0 0.0
      %1617 = vmatprep.subr.mxu0 0.0
      %1618 = vmatpush1.msra.mxu0 0.0
      %1619 = vmatprep.subr.mxu0 0.0
      %1620 = vmatpush1.msra.mxu0 0.0
      %1621 = vmatprep.subr.mxu0 0.0
      %1622 = vmatpush1.msra.mxu0 0.0
      %1623 = vmatprep.subr.mxu0 0.0
      %1624 = vmatpush1.msra.mxu0 0.0
      %1625 = vmatprep.subr.mxu0 0.0
      %1626 = vmatpush1.msra.mxu0 0.0
      %1627 = vmatprep.subr.mxu0 0.0
      %1628 = vmatpush1.msra.mxu0 0.0
      %1629 = vmatprep.subr.mxu0 0.0
      %1630 = vmatpush1.msra.mxu0 0.0
      %1631 = vmatprep.subr.mxu0 0.0
      %1632 = vmatpush1.msra.mxu0 0.0
      %1633 = vmatprep.subr.mxu0 0.0
      %1634 = vmatpush1.msra.mxu0 0.0
      %1635 = vmatprep.subr.mxu0 0.0
      %1636 = vmatpush1.msra.mxu0 0.0
      %1637 = vmatprep.subr.mxu0 0.0
      %1638 = vmatpush1.msra.mxu0 0.0
      %1639 = vmatprep.subr.mxu0 0.0
      %1640 = vmatpush1.msra.mxu0 0.0
      %1641 = vmatprep.subr.mxu0 0.0
      %1642 = vmatpush1.msra.mxu0 0.0
      %1643 = vmatprep.subr.mxu0 0.0
      %1644 = vmatpush1.msra.mxu0 0.0
      %1645 = vmatprep.subr.mxu0 0.0
      %1646 = vmatpush1.msra.mxu0 0.0
      %1647 = vmatprep.mubr.f32.mxu0 0.0
      %1648 = vmatmul.mubr.f32.gmra.mrb[0].mxu0 %v1576
      %v1649 = vpop.f32.mrb[0].mxu0
      %v1650 = vadd.f32 0.0, %v1649
      %v1651 = vpop.f32.mrb[0].mxu0
      %1652 = vmatprep.mubr.f32.mxu0 0.0
      %1653 = vmatmul.mubr.f32.gmra.mrb[0].mxu0 %v1579
      %v1654 = vpop.f32.mrb[0].mxu0
      %v1655 = vadd.f32 0.0, %v1654
      %v1656 = vpop.f32.mrb[0].mxu0
      %1657 = vdwg.mxu0
      %v1659 = vsel %vm895, %v1650, 0
      %v1662 = vsel %vm895, %v1655, 0
      %1664 = vmatprep.subr.mxu0 0.0
      %1665 = vmatpush1.msra.mxu0 %v884
      %1666 = vmatprep.subr.mxu0 0.0
      %1667 = vmatpush1.msra.mxu0 0.0
      %1668 = vmatprep.subr.mxu0 0.0
      %1669 = vmatpush1.msra.mxu0 0.0
      %1670 = vmatprep.subr.mxu0 0.0
      %1671 = vmatpush1.msra.mxu0 0.0
      %1672 = vmatprep.subr.mxu0 0.0
      %1673 = vmatpush1.msra.mxu0 0.0
      %1674 = vmatprep.subr.mxu0 0.0
      %1675 = vmatpush1.msra.mxu0 0.0
      %1676 = vmatprep.subr.mxu0 0.0
      %1677 = vmatpush1.msra.mxu0 0.0
      %1678 = vmatprep.subr.mxu0 0.0
      %1679 = vmatpush1.msra.mxu0 0.0
      %1680 = vmatprep.subr.mxu0 0.0
      %1681 = vmatpush1.msra.mxu0 0.0
      %1682 = vmatprep.subr.mxu0 0.0
      %1683 = vmatpush1.msra.mxu0 0.0
      %1684 = vmatprep.subr.mxu0 0.0
      %1685 = vmatpush1.msra.mxu0 0.0
      %1686 = vmatprep.subr.mxu0 0.0
      %1687 = vmatpush1.msra.mxu0 0.0
      %1688 = vmatprep.subr.mxu0 0.0
      %1689 = vmatpush1.msra.mxu0 0.0
      %1690 = vmatprep.subr.mxu0 0.0
      %1691 = vmatpush1.msra.mxu0 0.0
      %1692 = vmatprep.subr.mxu0 0.0
      %1693 = vmatpush1.msra.mxu0 0.0
      %1694 = vmatprep.subr.mxu0 0.0
      %1695 = vmatpush1.msra.mxu0 0.0
      %1696 = vmatprep.subr.mxu0 0.0
      %1697 = vmatpush1.msra.mxu0 0.0
      %1698 = vmatprep.subr.mxu0 0.0
      %1699 = vmatpush1.msra.mxu0 0.0
      %1700 = vmatprep.subr.mxu0 0.0
      %1701 = vmatpush1.msra.mxu0 0.0
      %1702 = vmatprep.subr.mxu0 0.0
      %1703 = vmatpush1.msra.mxu0 0.0
      %1704 = vmatprep.subr.mxu0 0.0
      %1705 = vmatpush1.msra.mxu0 0.0
      %1706 = vmatprep.subr.mxu0 0.0
      %1707 = vmatpush1.msra.mxu0 0.0
      %1708 = vmatprep.subr.mxu0 0.0
      %1709 = vmatpush1.msra.mxu0 0.0
      %1710 = vmatprep.subr.mxu0 0.0
      %1711 = vmatpush1.msra.mxu0 0.0
      %1712 = vmatprep.subr.mxu0 0.0
      %1713 = vmatpush1.msra.mxu0 0.0
      %1714 = vmatprep.subr.mxu0 0.0
      %1715 = vmatpush1.msra.mxu0 0.0
      %1716 = vmatprep.subr.mxu0 0.0
      %1717 = vmatpush1.msra.mxu0 0.0
      %1718 = vmatprep.subr.mxu0 0.0
      %1719 = vmatpush1.msra.mxu0 0.0
      %1720 = vmatprep.subr.mxu0 0.0
      %1721 = vmatpush1.msra.mxu0 0.0
      %1722 = vmatprep.subr.mxu0 0.0
      %1723 = vmatpush1.msra.mxu0 0.0
      %1724 = vmatprep.subr.mxu0 0.0
      %1725 = vmatpush1.msra.mxu0 0.0
      %1726 = vmatprep.subr.mxu0 0.0
      %1727 = vmatpush1.msra.mxu0 0.0
      %1728 = vmatprep.mubr.f32.mxu0 0.0
      %1729 = vmatmul.mubr.f32.gmra.mrb[0].mxu0 %v1659
      %v1730 = vpop.f32.mrb[0].mxu0
      %v1731 = vadd.f32 0.0, %v1730
      %v1732 = vpop.f32.mrb[0].mxu0
      %1733 = vmatprep.mubr.f32.mxu0 0.0
      %1734 = vmatmul.mubr.f32.gmra.mrb[0].mxu0 %v1662
      %v1735 = vpop.f32.mrb[0].mxu0
      %v1736 = vadd.f32 0.0, %v1735
      %v1737 = vpop.f32.mrb[0].mxu0
      %1738 = vdwg.mxu0
      %v1739 = vadd.f32 %v1449, %v1731
      %v1740 = vadd.f32 %v1454, %v1736
      %1741 = vrot.lane.b32.xlu0 %v887, 104
      %v1742 = vpop.permute.xlu0 %1741
      %1743 = vrot.lane.b32.xlu0 %v888, 104
      %v1744 = vpop.permute.xlu0 %1743
      %1745 = vrot.lane.b32.xlu0 %v874, 72
      %v1746 = vpop.permute.xlu0 %1745
      %1747 = vrot.lane.b32.xlu0 %v879, 72
      %v1748 = vpop.permute.xlu0 %1747
      %v1749 = vsel %vm895, %v1742, 0
      %v1751 = vsel %vm895, %v1744, 0
      %v1753 = vsel %vm895, %v1746, 0
      %v1755 = vsel %vm895, %v1748, 0
      %1757 = vmatprep.subr.mxu0 0.0
      %1758 = vmatpush1.xpose.msra.mxu0 %v1753
      %1759 = vmatprep.subr.mxu0 0.0
      %1760 = vmatpush1.xpose.msra.mxu0 %v1755
      %1761 = vmatprep.subr.mxu0 0.0
      %1762 = vmatpush1.xpose.msra.mxu0 0.0
      %1763 = vmatprep.subr.mxu0 0.0
      %1764 = vmatpush1.xpose.msra.mxu0 0.0
      %1765 = vmatprep.subr.mxu0 0.0
      %1766 = vmatpush1.xpose.msra.mxu0 0.0
      %1767 = vmatprep.subr.mxu0 0.0
      %1768 = vmatpush1.xpose.msra.mxu0 0.0
      %1769 = vmatprep.subr.mxu0 0.0
      %1770 = vmatpush1.xpose.msra.mxu0 0.0
      %1771 = vmatprep.subr.mxu0 0.0
      %1772 = vmatpush1.xpose.msra.mxu0 0.0
      %1773 = vmatprep.subr.mxu0 0.0
      %1774 = vmatpush1.xpose.msra.mxu0 0.0
      %1775 = vmatprep.subr.mxu0 0.0
      %1776 = vmatpush1.xpose.msra.mxu0 0.0
      %1777 = vmatprep.subr.mxu0 0.0
      %1778 = vmatpush1.xpose.msra.mxu0 0.0
      %1779 = vmatprep.subr.mxu0 0.0
      %1780 = vmatpush1.xpose.msra.mxu0 0.0
      %1781 = vmatprep.subr.mxu0 0.0
      %1782 = vmatpush1.xpose.msra.mxu0 0.0
      %1783 = vmatprep.subr.mxu0 0.0
      %1784 = vmatpush1.xpose.msra.mxu0 0.0
      %1785 = vmatprep.subr.mxu0 0.0
      %1786 = vmatpush1.xpose.msra.mxu0 0.0
      %1787 = vmatprep.subr.mxu0 0.0
      %1788 = vmatpush1.xpose.msra.mxu0 0.0
      %1789 = vmatprep.subr.mxu0 0.0
      %1790 = vmatpush1.xpose.msra.mxu0 0.0
      %1791 = vmatprep.subr.mxu0 0.0
      %1792 = vmatpush1.xpose.msra.mxu0 0.0
      %1793 = vmatprep.subr.mxu0 0.0
      %1794 = vmatpush1.xpose.msra.mxu0 0.0
      %1795 = vmatprep.subr.mxu0 0.0
      %1796 = vmatpush1.xpose.msra.mxu0 0.0
      %1797 = vmatprep.subr.mxu0 0.0
      %1798 = vmatpush1.xpose.msra.mxu0 0.0
      %1799 = vmatprep.subr.mxu0 0.0
      %1800 = vmatpush1.xpose.msra.mxu0 0.0
      %1801 = vmatprep.subr.mxu0 0.0
      %1802 = vmatpush1.xpose.msra.mxu0 0.0
      %1803 = vmatprep.subr.mxu0 0.0
      %1804 = vmatpush1.xpose.msra.mxu0 0.0
      %1805 = vmatprep.subr.mxu0 0.0
      %1806 = vmatpush1.xpose.msra.mxu0 0.0
      %1807 = vmatprep.subr.mxu0 0.0
      %1808 = vmatpush1.xpose.msra.mxu0 0.0
      %1809 = vmatprep.subr.mxu0 0.0
      %1810 = vmatpush1.xpose.msra.mxu0 0.0
      %1811 = vmatprep.subr.mxu0 0.0
      %1812 = vmatpush1.xpose.msra.mxu0 0.0
      %1813 = vmatprep.subr.mxu0 0.0
      %1814 = vmatpush1.xpose.msra.mxu0 0.0
      %1815 = vmatprep.subr.mxu0 0.0
      %1816 = vmatpush1.xpose.msra.mxu0 0.0
      %1817 = vmatprep.subr.mxu0 0.0
      %1818 = vmatpush1.xpose.msra.mxu0 0.0
      %1819 = vmatprep.subr.mxu0 0.0
      %1820 = vmatpush1.xpose.msra.mxu0 0.0
      %1821 = vmatprep.mubr.f32.mxu0 0.0
      %1822 = vmatmul.mubr.f32.gmra.mrb[0].mxu0 %v1749
      %v1823 = vpop.f32.mrb[0].mxu0
      %v1824 = vadd.f32 0.0, %v1823
      %v1825 = vpop.f32.mrb[0].mxu0
      %1826 = vmatprep.mubr.f32.mxu0 0.0
      %1827 = vmatmul.mubr.f32.gmra.mrb[0].mxu0 %v1751
      %v1828 = vpop.f32.mrb[0].mxu0
      %v1829 = vadd.f32 0.0, %v1828
      %v1830 = vpop.f32.mrb[0].mxu0
      %1831 = vdwg.mxu0
      %v1832 = vsel %vm981, %v1824, -inf
      %1833 = vmax.xlane.f32.xlu0 %v1832
      %v1834 = vpop.xlane.xlu0 %1833
      %v1835 = vsel %vm985, %v1829, -inf
      %1836 = vmax.xlane.f32.xlu0 %v1835
      %v1837 = vpop.xlane.xlu0 %1836
      %v1838 = vsub.f32 %v1824, %v1834
      %v1839 = vsub.f32 %v1829, %v1837
      %v1840 = vmul.f32 %v1838, 1.442695
      %v1841 = vpow.pop %v1840
      %v1842 = vmul.f32 %v1839, 1.442695
      %v1843 = vpow.pop %v1842
      %v1844 = vsel %vm981, %v1841, 0.0
      %1845 = vadd.xlane.f32.xlu0 %v1844
      %v1846 = vpop.xlane.xlu0 %1845
      %v1847 = vsel %vm985, %v1843, 0.0
      %1848 = vadd.xlane.f32.xlu0 %v1847
      %v1849 = vpop.xlane.xlu0 %1848
      %v1850 = vrcp.pop %v1846
      %v1851 = vrcp.pop %v1849
      %v1852 = vmul.f32 %v1841, %v1850
      %v1853 = vmul.f32 %v1843, %v1851
      %1854 = vrot.lane.b32.xlu0 %v874, 40
      %v1855 = vpop.permute.xlu0 %1854
      %1856 = vrot.lane.b32.xlu0 %v879, 40
      %v1857 = vpop.permute.xlu0 %1856
      %v1860 = vsel %vm981, %v1852, 0
      %v1863 = vsel %vm981, %v1853, 0
      %v1865 = vsel %vm1016, %v1857, 0
      %1867 = vmatprep.subr.mxu0 0.0
      %1868 = vmatpush1.msra.mxu0 %v1855
      %1869 = vmatprep.subr.mxu0 0.0
      %1870 = vmatpush1.msra.mxu0 %v1865
      %1871 = vmatprep.subr.mxu0 0.0
      %1872 = vmatpush1.msra.mxu0 0.0
      %1873 = vmatprep.subr.mxu0 0.0
      %1874 = vmatpush1.msra.mxu0 0.0
      %1875 = vmatprep.subr.mxu0 0.0
      %1876 = vmatpush1.msra.mxu0 0.0
      %1877 = vmatprep.subr.mxu0 0.0
      %1878 = vmatpush1.msra.mxu0 0.0
      %1879 = vmatprep.subr.mxu0 0.0
      %1880 = vmatpush1.msra.mxu0 0.0
      %1881 = vmatprep.subr.mxu0 0.0
      %1882 = vmatpush1.msra.mxu0 0.0
      %1883 = vmatprep.subr.mxu0 0.0
      %1884 = vmatpush1.msra.mxu0 0.0
      %1885 = vmatprep.subr.mxu0 0.0
      %1886 = vmatpush1.msra.mxu0 0.0
      %1887 = vmatprep.subr.mxu0 0.0
      %1888 = vmatpush1.msra.mxu0 0.0
      %1889 = vmatprep.subr.mxu0 0.0
      %1890 = vmatpush1.msra.mxu0 0.0
      %1891 = vmatprep.subr.mxu0 0.0
      %1892 = vmatpush1.msra.mxu0 0.0
      %1893 = vmatprep.subr.mxu0 0.0
      %1894 = vmatpush1.msra.mxu0 0.0
      %1895 = vmatprep.subr.mxu0 0.0
      %1896 = vmatpush1.msra.mxu0 0.0
      %1897 = vmatprep.subr.mxu0 0.0
      %1898 = vmatpush1.msra.mxu0 0.0
      %1899 = vmatprep.subr.mxu0 0.0
      %1900 = vmatpush1.msra.mxu0 0.0
      %1901 = vmatprep.subr.mxu0 0.0
      %1902 = vmatpush1.msra.mxu0 0.0
      %1903 = vmatprep.subr.mxu0 0.0
      %1904 = vmatpush1.msra.mxu0 0.0
      %1905 = vmatprep.subr.mxu0 0.0
      %1906 = vmatpush1.msra.mxu0 0.0
      %1907 = vmatprep.subr.mxu0 0.0
      %1908 = vmatpush1.msra.mxu0 0.0
      %1909 = vmatprep.subr.mxu0 0.0
      %1910 = vmatpush1.msra.mxu0 0.0
      %1911 = vmatprep.subr.mxu0 0.0
      %1912 = vmatpush1.msra.mxu0 0.0
      %1913 = vmatprep.subr.mxu0 0.0
      %1914 = vmatpush1.msra.mxu0 0.0
      %1915 = vmatprep.subr.mxu0 0.0
      %1916 = vmatpush1.msra.mxu0 0.0
      %1917 = vmatprep.subr.mxu0 0.0
      %1918 = vmatpush1.msra.mxu0 0.0
      %1919 = vmatprep.subr.mxu0 0.0
      %1920 = vmatpush1.msra.mxu0 0.0
      %1921 = vmatprep.subr.mxu0 0.0
      %1922 = vmatpush1.msra.mxu0 0.0
      %1923 = vmatprep.subr.mxu0 0.0
      %1924 = vmatpush1.msra.mxu0 0.0
      %1925 = vmatprep.subr.mxu0 0.0
      %1926 = vmatpush1.msra.mxu0 0.0
      %1927 = vmatprep.subr.mxu0 0.0
      %1928 = vmatpush1.msra.mxu0 0.0
      %1929 = vmatprep.subr.mxu0 0.0
      %1930 = vmatpush1.msra.mxu0 0.0
      %1931 = vmatprep.mubr.f32.mxu0 0.0
      %1932 = vmatmul.mubr.f32.gmra.mrb[0].mxu0 %v1860
      %v1933 = vpop.f32.mrb[0].mxu0
      %v1934 = vadd.f32 0.0, %v1933
      %v1935 = vpop.f32.mrb[0].mxu0
      %1936 = vmatprep.mubr.f32.mxu0 0.0
      %1937 = vmatmul.mubr.f32.gmra.mrb[0].mxu0 %v1863
      %v1938 = vpop.f32.mrb[0].mxu0
      %v1939 = vadd.f32 0.0, %v1938
      %v1940 = vpop.f32.mrb[0].mxu0
      %1941 = vdwg.mxu0
      %v1943 = vsel %vm895, %v1934, 0
      %v1946 = vsel %vm895, %v1939, 0
      %1948 = vmatprep.subr.mxu0 0.0
      %1949 = vmatpush1.msra.mxu0 %v885
      %1950 = vmatprep.subr.mxu0 0.0
      %1951 = vmatpush1.msra.mxu0 0.0
      %1952 = vmatprep.subr.mxu0 0.0
      %1953 = vmatpush1.msra.mxu0 0.0
      %1954 = vmatprep.subr.mxu0 0.0
      %1955 = vmatpush1.msra.mxu0 0.0
      %1956 = vmatprep.subr.mxu0 0.0
      %1957 = vmatpush1.msra.mxu0 0.0
      %1958 = vmatprep.subr.mxu0 0.0
      %1959 = vmatpush1.msra.mxu0 0.0
      %1960 = vmatprep.subr.mxu0 0.0
      %1961 = vmatpush1.msra.mxu0 0.0
      %1962 = vmatprep.subr.mxu0 0.0
      %1963 = vmatpush1.msra.mxu0 0.0
      %1964 = vmatprep.subr.mxu0 0.0
      %1965 = vmatpush1.msra.mxu0 0.0
      %1966 = vmatprep.subr.mxu0 0.0
      %1967 = vmatpush1.msra.mxu0 0.0
      %1968 = vmatprep.subr.mxu0 0.0
      %1969 = vmatpush1.msra.mxu0 0.0
      %1970 = vmatprep.subr.mxu0 0.0
      %1971 = vmatpush1.msra.mxu0 0.0
      %1972 = vmatprep.subr.mxu0 0.0
      %1973 = vmatpush1.msra.mxu0 0.0
      %1974 = vmatprep.subr.mxu0 0.0
      %1975 = vmatpush1.msra.mxu0 0.0
      %1976 = vmatprep.subr.mxu0 0.0
      %1977 = vmatpush1.msra.mxu0 0.0
      %1978 = vmatprep.subr.mxu0 0.0
      %1979 = vmatpush1.msra.mxu0 0.0
      %1980 = vmatprep.subr.mxu0 0.0
      %1981 = vmatpush1.msra.mxu0 0.0
      %1982 = vmatprep.subr.mxu0 0.0
      %1983 = vmatpush1.msra.mxu0 0.0
      %1984 = vmatprep.subr.mxu0 0.0
      %1985 = vmatpush1.msra.mxu0 0.0
      %1986 = vmatprep.subr.mxu0 0.0
      %1987 = vmatpush1.msra.mxu0 0.0
      %1988 = vmatprep.subr.mxu0 0.0
      %1989 = vmatpush1.msra.mxu0 0.0
      %1990 = vmatprep.subr.mxu0 0.0
      %1991 = vmatpush1.msra.mxu0 0.0
      %1992 = vmatprep.subr.mxu0 0.0
      %1993 = vmatpush1.msra.mxu0 0.0
      %1994 = vmatprep.subr.mxu0 0.0
      %1995 = vmatpush1.msra.mxu0 0.0
      %1996 = vmatprep.subr.mxu0 0.0
      %1997 = vmatpush1.msra.mxu0 0.0
      %1998 = vmatprep.subr.mxu0 0.0
      %1999 = vmatpush1.msra.mxu0 0.0
      %2000 = vmatprep.subr.mxu0 0.0
      %2001 = vmatpush1.msra.mxu0 0.0
      %2002 = vmatprep.subr.mxu0 0.0
      %2003 = vmatpush1.msra.mxu0 0.0
      %2004 = vmatprep.subr.mxu0 0.0
      %2005 = vmatpush1.msra.mxu0 0.0
      %2006 = vmatprep.subr.mxu0 0.0
      %2007 = vmatpush1.msra.mxu0 0.0
      %2008 = vmatprep.subr.mxu0 0.0
      %2009 = vmatpush1.msra.mxu0 0.0
      %2010 = vmatprep.subr.mxu0 0.0
      %2011 = vmatpush1.msra.mxu0 0.0
      %2012 = vmatprep.mubr.f32.mxu0 0.0
      %2013 = vmatmul.mubr.f32.gmra.mrb[0].mxu0 %v1943
      %v2014 = vpop.f32.mrb[0].mxu0
      %v2015 = vadd.f32 0.0, %v2014
      %v2016 = vpop.f32.mrb[0].mxu0
      %2017 = vmatprep.mubr.f32.mxu0 0.0
      %2018 = vmatmul.mubr.f32.gmra.mrb[0].mxu0 %v1946
      %v2019 = vpop.f32.mrb[0].mxu0
      %v2020 = vadd.f32 0.0, %v2019
      %v2021 = vpop.f32.mrb[0].mxu0
      %2022 = vdwg.mxu0
      %v2023 = vadd.f32 %v1739, %v2015
      %v2024 = vadd.f32 %v1740, %v2020
      %v2026 = vlaneseq
      %v2027 = vshrl.u32 %v2026, 7
      %v2028 = vsub.s32 0, %v2027
      %v2029 = vrot.slane %v886, %v2028
      %v2031 = vadd.f32 %v2023, %v2029
      %v2032 = vadd.f32 %v2024, %v2029
      %v2033 = vadd.f32 %v741, %v2031
      %v2034 = vadd.f32 %v742, %v2032
      %v2035 = vld [vmem:[%s11] sm:$0x1]
      %v2036 = vld [vmem:[%s12] sm:$0x1]
      %v2037 = vsel %vm745, %v2033, 0.0
      %2038 = vadd.xlane.f32.xlu0 %v2037
      %v2039 = vpop.xlane.xlu0 %2038
      %v2040 = vsel %vm749, %v2034, 0.0
      %2041 = vadd.xlane.f32.xlu0 %v2040
      %v2042 = vpop.xlane.xlu0 %2041
      %v2043 = vmul.f32 %v2039, %v753
      %v2044 = vmul.f32 %v2042, %v753
      %v2045 = vsub.f32 %v2033, %v2043
      %v2046 = vsub.f32 %v2034, %v2044
      %v2047 = vmul.f32 %v2045, %v2045
      %v2048 = vmul.f32 %v2046, %v2046
      %v2049 = vsel %vm745, %v2047, 0.0
      %2050 = vadd.xlane.f32.xlu0 %v2049
      %v2051 = vpop.xlane.xlu0 %2050
      %v2052 = vsel %vm749, %v2048, 0.0
      %2053 = vadd.xlane.f32.xlu0 %v2052
      %v2054 = vpop.xlane.xlu0 %2053
      %v2055 = vmul.f32 %v2051, %v753
      %v2056 = vmul.f32 %v2054, %v753
      %v2057 = vadd.f32 %v2055, 1e-06
      %v2058 = vadd.f32 %v2056, 1e-06
      %v2059 = vrsqrt.pop %v2057
      %v2060 = vrsqrt.pop %v2058
      %v2061 = vmul.f32 %v2045, %v2059
      %v2062 = vmul.f32 %v2046, %v2060
      %v2064 = vlaneseq
      %v2065 = vshrl.u32 %v2064, 7
      %v2066 = vsub.s32 0, %v2065
      %v2067 = vrot.slane %v2035, %v2066
      %v2069 = vmul.f32 %v2061, %v2067
      %v2070 = vmul.f32 %v2062, %v2067
      %v2072 = vlaneseq
      %v2073 = vshrl.u32 %v2072, 7
      %v2074 = vsub.s32 0, %v2073
      %v2075 = vrot.slane %v2036, %v2074
      %v2077 = vadd.f32 %v2069, %v2075
      %v2078 = vadd.f32 %v2070, %v2075
      %v2079 = vld [vmem:[%s13] sm:$0xff]
      %v2080 = vld [vmem:[%s13 + $0x8] sm:$0xff]
      %v2081 = vld [vmem:[%s13 + $0x10] sm:$0xff]
      %v2082 = vld [vmem:[%s13 + $0x18] sm:$0xff]
      %v2083 = vld [vmem:[%s14] sm:$0x1]
      %v2085 = vlaneseq
      %v2086 = vshrl.u32 %v2085, 7
      %v2087 = vsub.s32 0, %v2086
      %v2088 = vrot.slane %v2083, %v2087
      %v2091 = vsel %vm745, %v2077, 0
      %v2094 = vsel %vm745, %v2078, 0
      %2096 = vmatprep.subr.mxu0 0.0
      %2097 = vmatpush1.msra.mxu0 %v2079
      %2098 = vmatprep.subr.mxu0 0.0
      %2099 = vmatpush1.msra.mxu0 %v2080
      %2100 = vmatprep.subr.mxu0 0.0
      %2101 = vmatpush1.msra.mxu0 %v2081
      %2102 = vmatprep.subr.mxu0 0.0
      %2103 = vmatpush1.msra.mxu0 %v2082
      %2104 = vmatprep.subr.mxu0 0.0
      %2105 = vmatpush1.msra.mxu0 0.0
      %2106 = vmatprep.subr.mxu0 0.0
      %2107 = vmatpush1.msra.mxu0 0.0
      %2108 = vmatprep.subr.mxu0 0.0
      %2109 = vmatpush1.msra.mxu0 0.0
      %2110 = vmatprep.subr.mxu0 0.0
      %2111 = vmatpush1.msra.mxu0 0.0
      %2112 = vmatprep.subr.mxu0 0.0
      %2113 = vmatpush1.msra.mxu0 0.0
      %2114 = vmatprep.subr.mxu0 0.0
      %2115 = vmatpush1.msra.mxu0 0.0
      %2116 = vmatprep.subr.mxu0 0.0
      %2117 = vmatpush1.msra.mxu0 0.0
      %2118 = vmatprep.subr.mxu0 0.0
      %2119 = vmatpush1.msra.mxu0 0.0
      %2120 = vmatprep.subr.mxu0 0.0
      %2121 = vmatpush1.msra.mxu0 0.0
      %2122 = vmatprep.subr.mxu0 0.0
      %2123 = vmatpush1.msra.mxu0 0.0
      %2124 = vmatprep.subr.mxu0 0.0
      %2125 = vmatpush1.msra.mxu0 0.0
      %2126 = vmatprep.subr.mxu0 0.0
      %2127 = vmatpush1.msra.mxu0 0.0
      %2128 = vmatprep.subr.mxu0 0.0
      %2129 = vmatpush1.msra.mxu0 0.0
      %2130 = vmatprep.subr.mxu0 0.0
      %2131 = vmatpush1.msra.mxu0 0.0
      %2132 = vmatprep.subr.mxu0 0.0
      %2133 = vmatpush1.msra.mxu0 0.0
      %2134 = vmatprep.subr.mxu0 0.0
      %2135 = vmatpush1.msra.mxu0 0.0
      %2136 = vmatprep.subr.mxu0 0.0
      %2137 = vmatpush1.msra.mxu0 0.0
      %2138 = vmatprep.subr.mxu0 0.0
      %2139 = vmatpush1.msra.mxu0 0.0
      %2140 = vmatprep.subr.mxu0 0.0
      %2141 = vmatpush1.msra.mxu0 0.0
      %2142 = vmatprep.subr.mxu0 0.0
      %2143 = vmatpush1.msra.mxu0 0.0
      %2144 = vmatprep.subr.mxu0 0.0
      %2145 = vmatpush1.msra.mxu0 0.0
      %2146 = vmatprep.subr.mxu0 0.0
      %2147 = vmatpush1.msra.mxu0 0.0
      %2148 = vmatprep.subr.mxu0 0.0
      %2149 = vmatpush1.msra.mxu0 0.0
      %2150 = vmatprep.subr.mxu0 0.0
      %2151 = vmatpush1.msra.mxu0 0.0
      %2152 = vmatprep.subr.mxu0 0.0
      %2153 = vmatpush1.msra.mxu0 0.0
      %2154 = vmatprep.subr.mxu0 0.0
      %2155 = vmatpush1.msra.mxu0 0.0
      %2156 = vmatprep.subr.mxu0 0.0
      %2157 = vmatpush1.msra.mxu0 0.0
      %2158 = vmatprep.subr.mxu0 0.0
      %2159 = vmatpush1.msra.mxu0 0.0
      %2160 = vmatprep.mubr.f32.mxu0 0.0
      %2161 = vmatmul.mubr.f32.gmra.mrb[0].mxu0 %v2091
      %v2162 = vpop.f32.mrb[0].mxu0
      %v2163 = vadd.f32 %v2088, %v2162
      %v2164 = vpop.f32.mrb[0].mxu0
      %2165 = vmatprep.mubr.f32.mxu0 0.0
      %2166 = vmatmul.mubr.f32.gmra.mrb[0].mxu0 %v2094
      %v2167 = vpop.f32.mrb[0].mxu0
      %v2168 = vadd.f32 %v2088, %v2167
      %v2169 = vpop.f32.mrb[0].mxu0
      %2170 = vdwg.mxu0
      %v2171 = vmul.f32 %v2163, %v2163
      %v2172 = vmul.f32 %v2168, %v2168
      %v2173 = vmul.f32 %v2163, %v2171
      %v2174 = vmul.f32 %v2168, %v2172
      %v2175 = vmul.f32 %v2173, 0.044715
      %v2176 = vmul.f32 %v2174, 0.044715
      %v2177 = vadd.f32 %v2163, %v2175
      %v2178 = vadd.f32 %v2168, %v2176
      %v2179 = vmul.f32 %v2177, 0.7978846
      %v2180 = vmul.f32 %v2178, 0.7978846
      %v2181 = vtanh.pop %v2179
      %v2182 = vtanh.pop %v2180
      %v2183 = vadd.f32 %v2181, 1.0
      %v2184 = vadd.f32 %v2182, 1.0
      %v2185 = vmul.f32 %v2183, 0.5
      %v2186 = vmul.f32 %v2184, 0.5
      %v2187 = vmul.f32 %v2163, %v2185
      %v2188 = vmul.f32 %v2168, %v2186
      %v2189 = vld [vmem:[%s15] sm:$0xff]
      %v2190 = vld [vmem:[%s15 + $0x8] sm:$0xff]
      %v2191 = vld [vmem:[%s15 + $0x10] sm:$0xff]
      %v2192 = vld [vmem:[%s15 + $0x18] sm:$0xff]
      %v2193 = vld [vmem:[%s15 + $0x20] sm:$0xff]
      %v2194 = vld [vmem:[%s15 + $0x28] sm:$0xff]
      %v2195 = vld [vmem:[%s15 + $0x30] sm:$0xff]
      %v2196 = vld [vmem:[%s15 + $0x38] sm:$0xff]
      %vm2197 = vcmask 523264
      %v2199 = vsel %vm2197, %v2187, 0
      %v2202 = vsel %vm2197, %v2188, 0
      %2204 = vmatprep.subr.mxu0 0.0
      %2205 = vmatpush1.msra.mxu0 %v2189
      %2206 = vmatprep.subr.mxu0 0.0
      %2207 = vmatpush1.msra.mxu0 %v2190
      %2208 = vmatprep.subr.mxu0 0.0
      %2209 = vmatpush1.msra.mxu0 %v2191
      %2210 = vmatprep.subr.mxu0 0.0
      %2211 = vmatpush1.msra.mxu0 %v2192
      %2212 = vmatprep.subr.mxu0 0.0
      %2213 = vmatpush1.msra.mxu0 %v2193
      %2214 = vmatprep.subr.mxu0 0.0
      %2215 = vmatpush1.msra.mxu0 %v2194
      %2216 = vmatprep.subr.mxu0 0.0
      %2217 = vmatpush1.msra.mxu0 %v2195
      %2218 = vmatprep.subr.mxu0 0.0
      %2219 = vmatpush1.msra.mxu0 %v2196
      %2220 = vmatprep.subr.mxu0 0.0
      %2221 = vmatpush1.msra.mxu0 0.0
      %2222 = vmatprep.subr.mxu0 0.0
      %2223 = vmatpush1.msra.mxu0 0.0
      %2224 = vmatprep.subr.mxu0 0.0
      %2225 = vmatpush1.msra.mxu0 0.0
      %2226 = vmatprep.subr.mxu0 0.0
      %2227 = vmatpush1.msra.mxu0 0.0
      %2228 = vmatprep.subr.mxu0 0.0
      %2229 = vmatpush1.msra.mxu0 0.0
      %2230 = vmatprep.subr.mxu0 0.0
      %2231 = vmatpush1.msra.mxu0 0.0
      %2232 = vmatprep.subr.mxu0 0.0
      %2233 = vmatpush1.msra.mxu0 0.0
      %2234 = vmatprep.subr.mxu0 0.0
      %2235 = vmatpush1.msra.mxu0 0.0
      %2236 = vmatprep.subr.mxu0 0.0
      %2237 = vmatpush1.msra.mxu0 0.0
      %2238 = vmatprep.subr.mxu0 0.0
      %2239 = vmatpush1.msra.mxu0 0.0
      %2240 = vmatprep.subr.mxu0 0.0
      %2241 = vmatpush1.msra.mxu0 0.0
      %2242 = vmatprep.subr.mxu0 0.0
      %2243 = vmatpush1.msra.mxu0 0.0
      %2244 = vmatprep.subr.mxu0 0.0
      %2245 = vmatpush1.msra.mxu0 0.0
      %2246 = vmatprep.subr.mxu0 0.0
      %2247 = vmatpush1.msra.mxu0 0.0
      %2248 = vmatprep.subr.mxu0 0.0
      %2249 = vmatpush1.msra.mxu0 0.0
      %2250 = vmatprep.subr.mxu0 0.0
      %2251 = vmatpush1.msra.mxu0 0.0
      %2252 = vmatprep.subr.mxu0 0.0
      %2253 = vmatpush1.msra.mxu0 0.0
      %2254 = vmatprep.subr.mxu0 0.0
      %2255 = vmatpush1.msra.mxu0 0.0
      %2256 = vmatprep.subr.mxu0 0.0
      %2257 = vmatpush1.msra.mxu0 0.0
      %2258 = vmatprep.subr.mxu0 0.0
      %2259 = vmatpush1.msra.mxu0 0.0
      %2260 = vmatprep.subr.mxu0 0.0
      %2261 = vmatpush1.msra.mxu0 0.0
      %2262 = vmatprep.subr.mxu0 0.0
      %2263 = vmatpush1.msra.mxu0 0.0
      %2264 = vmatprep.subr.mxu0 0.0
      %2265 = vmatpush1.msra.mxu0 0.0
      %2266 = vmatprep.subr.mxu0 0.0
      %2267 = vmatpush1.msra.mxu0 0.0
      %2268 = vmatprep.mubr.f32.mxu0 0.0
      %2269 = vmatmul.mubr.f32.gmra.mrb[0].mxu0 %v2199
      %v2270 = vpop.f32.mrb[0].mxu0
      %v2271 = vadd.f32 0.0, %v2270
      %v2272 = vpop.f32.mrb[0].mxu0
      %2273 = vmatprep.mubr.f32.mxu0 0.0
      %2274 = vmatmul.mubr.f32.gmra.mrb[0].mxu0 %v2202
      %v2275 = vpop.f32.mrb[0].mxu0
      %v2276 = vadd.f32 0.0, %v2275
      %v2277 = vpop.f32.mrb[0].mxu0
      %2278 = vdwg.mxu0
      %v2279 = vadd.f32 %v2033, %v2271
      %v2280 = vadd.f32 %v2034, %v2276
      %v2281 = vld [vmem:[%s16] sm:$0x1]
      %v2283 = vlaneseq
      %v2284 = vshrl.u32 %v2283, 7
      %v2285 = vsub.s32 0, %v2284
      %v2286 = vrot.slane %v2281, %v2285
      %v2288 = vadd.f32 %v2279, %v2286
      %v2289 = vadd.f32 %v2280, %v2286
      %s2290 = scalar_lea.vmem %s5, 1
      %v2291 = vld [vmem:[%s2290] sm:$0x1]
      %s2292 = scalar_lea.vmem %s6, 1
      %v2293 = vld [vmem:[%s2292] sm:$0x1]
      %v2294 = vsel %vm745, %v2288, 0.0
      %2295 = vadd.xlane.f32.xlu0 %v2294
      %v2296 = vpop.xlane.xlu0 %2295
      %v2297 = vsel %vm749, %v2289, 0.0
      %2298 = vadd.xlane.f32.xlu0 %v2297
      %v2299 = vpop.xlane.xlu0 %2298
      %v2300 = vmul.f32 %v2296, %v753
      %v2301 = vmul.f32 %v2299, %v753
      %v2302 = vsub.f32 %v2288, %v2300
      %v2303 = vsub.f32 %v2289, %v2301
      %v2304 = vmul.f32 %v2302, %v2302
      %v2305 = vmul.f32 %v2303, %v2303
      %v2306 = vsel %vm745, %v2304, 0.0
      %2307 = vadd.xlane.f32.xlu0 %v2306
      %v2308 = vpop.xlane.xlu0 %2307
      %v2309 = vsel %vm749, %v2305, 0.0
      %2310 = vadd.xlane.f32.xlu0 %v2309
      %v2311 = vpop.xlane.xlu0 %2310
      %v2312 = vmul.f32 %v2308, %v753
      %v2313 = vmul.f32 %v2311, %v753
      %v2314 = vadd.f32 %v2312, 1e-06
      %v2315 = vadd.f32 %v2313, 1e-06
      %v2316 = vrsqrt.pop %v2314
      %v2317 = vrsqrt.pop %v2315
      %v2318 = vmul.f32 %v2302, %v2316
      %v2319 = vmul.f32 %v2303, %v2317
      %v2321 = vlaneseq
      %v2322 = vshrl.u32 %v2321, 7
      %v2323 = vsub.s32 0, %v2322
      %v2324 = vrot.slane %v2291, %v2323
      %v2326 = vmul.f32 %v2318, %v2324
      %v2327 = vmul.f32 %v2319, %v2324
      %v2329 = vlaneseq
      %v2330 = vshrl.u32 %v2329, 7
      %v2331 = vsub.s32 0, %v2330
      %v2332 = vrot.slane %v2293, %v2331
      %v2334 = vadd.f32 %v2326, %v2332
      %v2335 = vadd.f32 %v2327, %v2332
      %s2336 = scalar_lea.vmem %s7, 32
      %v2337 = vld [vmem:[%s2336] sm:$0xff]
      %v2338 = vld [vmem:[%s2336 + $0x8] sm:$0xff]
      %v2339 = vld [vmem:[%s2336 + $0x10] sm:$0xff]
      %v2340 = vld [vmem:[%s2336 + $0x18] sm:$0xff]
      %s2341 = scalar_lea.vmem %s8, 1
      %v2342 = vld [vmem:[%s2341] sm:$0x1]
      %v2344 = vlaneseq
      %v2345 = vshrl.u32 %v2344, 7
      %v2346 = vsub.s32 0, %v2345
      %v2347 = vrot.slane %v2342, %v2346
      %v2350 = vsel %vm745, %v2334, 0
      %v2353 = vsel %vm745, %v2335, 0
      %2355 = vmatprep.subr.mxu0 0.0
      %2356 = vmatpush1.msra.mxu0 %v2337
      %2357 = vmatprep.subr.mxu0 0.0
      %2358 = vmatpush1.msra.mxu0 %v2338
      %2359 = vmatprep.subr.mxu0 0.0
      %2360 = vmatpush1.msra.mxu0 %v2339
      %2361 = vmatprep.subr.mxu0 0.0
      %2362 = vmatpush1.msra.mxu0 %v2340
      %2363 = vmatprep.subr.mxu0 0.0
      %2364 = vmatpush1.msra.mxu0 0.0
      %2365 = vmatprep.subr.mxu0 0.0
      %2366 = vmatpush1.msra.mxu0 0.0
      %2367 = vmatprep.subr.mxu0 0.0
      %2368 = vmatpush1.msra.mxu0 0.0
      %2369 = vmatprep.subr.mxu0 0.0
      %2370 = vmatpush1.msra.mxu0 0.0
      %2371 = vmatprep.subr.mxu0 0.0
      %2372 = vmatpush1.msra.mxu0 0.0
      %2373 = vmatprep.subr.mxu0 0.0
      %2374 = vmatpush1.msra.mxu0 0.0
      %2375 = vmatprep.subr.mxu0 0.0
      %2376 = vmatpush1.msra.mxu0 0.0
      %2377 = vmatprep.subr.mxu0 0.0
      %2378 = vmatpush1.msra.mxu0 0.0
      %2379 = vmatprep.subr.mxu0 0.0
      %2380 = vmatpush1.msra.mxu0 0.0
      %2381 = vmatprep.subr.mxu0 0.0
      %2382 = vmatpush1.msra.mxu0 0.0
      %2383 = vmatprep.subr.mxu0 0.0
      %2384 = vmatpush1.msra.mxu0 0.0
      %2385 = vmatprep.subr.mxu0 0.0
      %2386 = vmatpush1.msra.mxu0 0.0
      %2387 = vmatprep.subr.mxu0 0.0
      %2388 = vmatpush1.msra.mxu0 0.0
      %2389 = vmatprep.subr.mxu0 0.0
      %2390 = vmatpush1.msra.mxu0 0.0
      %2391 = vmatprep.subr.mxu0 0.0
      %2392 = vmatpush1.msra.mxu0 0.0
      %2393 = vmatprep.subr.mxu0 0.0
      %2394 = vmatpush1.msra.mxu0 0.0
      %2395 = vmatprep.subr.mxu0 0.0
      %2396 = vmatpush1.msra.mxu0 0.0
      %2397 = vmatprep.subr.mxu0 0.0
      %2398 = vmatpush1.msra.mxu0 0.0
      %2399 = vmatprep.subr.mxu0 0.0
      %2400 = vmatpush1.msra.mxu0 0.0
      %2401 = vmatprep.subr.mxu0 0.0
      %2402 = vmatpush1.msra.mxu0 0.0
      %2403 = vmatprep.subr.mxu0 0.0
      %2404 = vmatpush1.msra.mxu0 0.0
      %2405 = vmatprep.subr.mxu0 0.0
      %2406 = vmatpush1.msra.mxu0 0.0
      %2407 = vmatprep.subr.mxu0 0.0
      %2408 = vmatpush1.msra.mxu0 0.0
      %2409 = vmatprep.subr.mxu0 0.0
      %2410 = vmatpush1.msra.mxu0 0.0
      %2411 = vmatprep.subr.mxu0 0.0
      %2412 = vmatpush1.msra.mxu0 0.0
      %2413 = vmatprep.subr.mxu0 0.0
      %2414 = vmatpush1.msra.mxu0 0.0
      %2415 = vmatprep.subr.mxu0 0.0
      %2416 = vmatpush1.msra.mxu0 0.0
      %2417 = vmatprep.subr.mxu0 0.0
      %2418 = vmatpush1.msra.mxu0 0.0
      %2419 = vmatprep.mubr.f32.mxu0 0.0
      %2420 = vmatmul.mubr.f32.gmra.mrb[0].mxu0 %v2350
      %v2421 = vpop.f32.mrb[0].mxu0
      %v2422 = vadd.f32 %v2347, %v2421
      %v2423 = vpop.f32.mrb[0].mxu0
      %2424 = vmatprep.mubr.f32.mxu0 0.0
      %2425 = vmatmul.mubr.f32.gmra.mrb[0].mxu0 %v2353
      %v2426 = vpop.f32.mrb[0].mxu0
      %v2427 = vadd.f32 %v2347, %v2426
      %v2428 = vpop.f32.mrb[0].mxu0
      %2429 = vdwg.mxu0
      %s2430 = scalar_lea.vmem %s9, 32
      %v2431 = vld [vmem:[%s2430] sm:$0xff]
      %v2432 = vld [vmem:[%s2430 + $0x8] sm:$0xff]
      %v2433 = vld [vmem:[%s2430 + $0x10] sm:$0xff]
      %v2434 = vld [vmem:[%s2430 + $0x18] sm:$0xff]
      %s2435 = scalar_lea.vmem %s10, 1
      %v2436 = vld [vmem:[%s2435] sm:$0x1]
      %v2437 = vmul.f32 %v2422, 0.35355338
      %v2438 = vmul.f32 %v2427, 0.35355338
      %2441 = vrot.lane.b32.xlu0 %v2422, 96
      %v2442 = vpop.permute.xlu0 %2441
      %2443 = vrot.lane.b32.xlu0 %v2427, 96
      %v2444 = vpop.permute.xlu0 %2443
      %v2446 = vsel %vm895, %v2437, 0
      %v2449 = vsel %vm895, %v2438, 0
      %v2451 = vsel %vm895, %v2442, 0
      %v2453 = vsel %vm895, %v2444, 0
      %2455 = vmatprep.subr.mxu0 0.0
      %2456 = vmatpush1.xpose.msra.mxu0 %v2451
      %2457 = vmatprep.subr.mxu0 0.0
      %2458 = vmatpush1.xpose.msra.mxu0 %v2453
      %2459 = vmatprep.subr.mxu0 0.0
      %2460 = vmatpush1.xpose.msra.mxu0 0.0
      %2461 = vmatprep.subr.mxu0 0.0
      %2462 = vmatpush1.xpose.msra.mxu0 0.0
      %2463 = vmatprep.subr.mxu0 0.0
      %2464 = vmatpush1.xpose.msra.mxu0 0.0
      %2465 = vmatprep.subr.mxu0 0.0
      %2466 = vmatpush1.xpose.msra.mxu0 0.0
      %2467 = vmatprep.subr.mxu0 0.0
      %2468 = vmatpush1.xpose.msra.mxu0 0.0
      %2469 = vmatprep.subr.mxu0 0.0
      %2470 = vmatpush1.xpose.msra.mxu0 0.0
      %2471 = vmatprep.subr.mxu0 0.0
      %2472 = vmatpush1.xpose.msra.mxu0 0.0
      %2473 = vmatprep.subr.mxu0 0.0
      %2474 = vmatpush1.xpose.msra.mxu0 0.0
      %2475 = vmatprep.subr.mxu0 0.0
      %2476 = vmatpush1.xpose.msra.mxu0 0.0
      %2477 = vmatprep.subr.mxu0 0.0
      %2478 = vmatpush1.xpose.msra.mxu0 0.0
      %2479 = vmatprep.subr.mxu0 0.0
      %2480 = vmatpush1.xpose.msra.mxu0 0.0
      %2481 = vmatprep.subr.mxu0 0.0
      %2482 = vmatpush1.xpose.msra.mxu0 0.0
      %2483 = vmatprep.subr.mxu0 0.0
      %2484 = vmatpush1.xpose.msra.mxu0 0.0
      %2485 = vmatprep.subr.mxu0 0.0
      %2486 = vmatpush1.xpose.msra.mxu0 0.0
      %2487 = vmatprep.subr.mxu0 0.0
      %2488 = vmatpush1.xpose.msra.mxu0 0.0
      %2489 = vmatprep.subr.mxu0 0.0
      %2490 = vmatpush1.xpose.msra.mxu0 0.0
      %2491 = vmatprep.subr.mxu0 0.0
      %2492 = vmatpush1.xpose.msra.mxu0 0.0
      %2493 = vmatprep.subr.mxu0 0.0
      %2494 = vmatpush1.xpose.msra.mxu0 0.0
      %2495 = vmatprep.subr.mxu0 0.0
      %2496 = vmatpush1.xpose.msra.mxu0 0.0
      %2497 = vmatprep.subr.mxu0 0.0
      %2498 = vmatpush1.xpose.msra.mxu0 0.0
      %2499 = vmatprep.subr.mxu0 0.0
      %2500 = vmatpush1.xpose.msra.mxu0 0.0
      %2501 = vmatprep.subr.mxu0 0.0
      %2502 = vmatpush1.xpose.msra.mxu0 0.0
      %2503 = vmatprep.subr.mxu0 0.0
      %2504 = vmatpush1.xpose.msra.mxu0 0.0
      %2505 = vmatprep.subr.mxu0 0.0
      %2506 = vmatpush1.xpose.msra.mxu0 0.0
      %2507 = vmatprep.subr.mxu0 0.0
      %2508 = vmatpush1.xpose.msra.mxu0 0.0
      %2509 = vmatprep.subr.mxu0 0.0
      %2510 = vmatpush1.xpose.msra.mxu0 0.0
      %2511 = vmatprep.subr.mxu0 0.0
      %2512 = vmatpush1.xpose.msra.mxu0 0.0
      %2513 = vmatprep.subr.mxu0 0.0
      %2514 = vmatpush1.xpose.msra.mxu0 0.0
      %2515 = vmatprep.subr.mxu0 0.0
      %2516 = vmatpush1.xpose.msra.mxu0 0.0
      %2517 = vmatprep.subr.mxu0 0.0
      %2518 = vmatpush1.xpose.msra.mxu0 0.0
      %2519 = vmatprep.mubr.f32.mxu0 0.0
      %2520 = vmatmul.mubr.f32.gmra.mrb[0].mxu0 %v2446
      %v2521 = vpop.f32.mrb[0].mxu0
      %v2522 = vadd.f32 0.0, %v2521
      %v2523 = vpop.f32.mrb[0].mxu0
      %2524 = vmatprep.mubr.f32.mxu0 0.0
      %2525 = vmatmul.mubr.f32.gmra.mrb[0].mxu0 %v2449
      %v2526 = vpop.f32.mrb[0].mxu0
      %v2527 = vadd.f32 0.0, %v2526
      %v2528 = vpop.f32.mrb[0].mxu0
      %2529 = vdwg.mxu0
      %v2530 = vsel %vm981, %v2522, -inf
      %2531 = vmax.xlane.f32.xlu0 %v2530
      %v2532 = vpop.xlane.xlu0 %2531
      %v2533 = vsel %vm985, %v2527, -inf
      %2534 = vmax.xlane.f32.xlu0 %v2533
      %v2535 = vpop.xlane.xlu0 %2534
      %v2536 = vsub.f32 %v2522, %v2532
      %v2537 = vsub.f32 %v2527, %v2535
      %v2538 = vmul.f32 %v2536, 1.442695
      %v2539 = vpow.pop %v2538
      %v2540 = vmul.f32 %v2537, 1.442695
      %v2541 = vpow.pop %v2540
      %v2542 = vsel %vm981, %v2539, 0.0
      %2543 = vadd.xlane.f32.xlu0 %v2542
      %v2544 = vpop.xlane.xlu0 %2543
      %v2545 = vsel %vm985, %v2541, 0.0
      %2546 = vadd.xlane.f32.xlu0 %v2545
      %v2547 = vpop.xlane.xlu0 %2546
      %v2548 = vrcp.pop %v2544
      %v2549 = vrcp.pop %v2547
      %v2550 = vmul.f32 %v2539, %v2548
      %v2551 = vmul.f32 %v2541, %v2549
      %2552 = vrot.lane.b32.xlu0 %v2422, 64
      %v2553 = vpop.permute.xlu0 %2552
      %2554 = vrot.lane.b32.xlu0 %v2427, 64
      %v2555 = vpop.permute.xlu0 %2554
      %v2558 = vsel %vm981, %v2550, 0
      %v2561 = vsel %vm981, %v2551, 0
      %v2563 = vsel %vm1016, %v2555, 0
      %2565 = vmatprep.subr.mxu0 0.0
      %2566 = vmatpush1.msra.mxu0 %v2553
      %2567 = vmatprep.subr.mxu0 0.0
      %2568 = vmatpush1.msra.mxu0 %v2563
      %2569 = vmatprep.subr.mxu0 0.0
      %2570 = vmatpush1.msra.mxu0 0.0
      %2571 = vmatprep.subr.mxu0 0.0
      %2572 = vmatpush1.msra.mxu0 0.0
      %2573 = vmatprep.subr.mxu0 0.0
      %2574 = vmatpush1.msra.mxu0 0.0
      %2575 = vmatprep.subr.mxu0 0.0
      %2576 = vmatpush1.msra.mxu0 0.0
      %2577 = vmatprep.subr.mxu0 0.0
      %2578 = vmatpush1.msra.mxu0 0.0
      %2579 = vmatprep.subr.mxu0 0.0
      %2580 = vmatpush1.msra.mxu0 0.0
      %2581 = vmatprep.subr.mxu0 0.0
      %2582 = vmatpush1.msra.mxu0 0.0
      %2583 = vmatprep.subr.mxu0 0.0
      %2584 = vmatpush1.msra.mxu0 0.0
      %2585 = vmatprep.subr.mxu0 0.0
      %2586 = vmatpush1.msra.mxu0 0.0
      %2587 = vmatprep.subr.mxu0 0.0
      %2588 = vmatpush1.msra.mxu0 0.0
      %2589 = vmatprep.subr.mxu0 0.0
      %2590 = vmatpush1.msra.mxu0 0.0
      %2591 = vmatprep.subr.mxu0 0.0
      %2592 = vmatpush1.msra.mxu0 0.0
      %2593 = vmatprep.subr.mxu0 0.0
      %2594 = vmatpush1.msra.mxu0 0.0
      %2595 = vmatprep.subr.mxu0 0.0
      %2596 = vmatpush1.msra.mxu0 0.0
      %2597 = vmatprep.subr.mxu0 0.0
      %2598 = vmatpush1.msra.mxu0 0.0
      %2599 = vmatprep.subr.mxu0 0.0
      %2600 = vmatpush1.msra.mxu0 0.0
      %2601 = vmatprep.subr.mxu0 0.0
      %2602 = vmatpush1.msra.mxu0 0.0
      %2603 = vmatprep.subr.mxu0 0.0
      %2604 = vmatpush1.msra.mxu0 0.0
      %2605 = vmatprep.subr.mxu0 0.0
      %2606 = vmatpush1.msra.mxu0 0.0
      %2607 = vmatprep.subr.mxu0 0.0
      %2608 = vmatpush1.msra.mxu0 0.0
      %2609 = vmatprep.subr.mxu0 0.0
      %2610 = vmatpush1.msra.mxu0 0.0
      %2611 = vmatprep.subr.mxu0 0.0
      %2612 = vmatpush1.msra.mxu0 0.0
      %2613 = vmatprep.subr.mxu0 0.0
      %2614 = vmatpush1.msra.mxu0 0.0
      %2615 = vmatprep.subr.mxu0 0.0
      %2616 = vmatpush1.msra.mxu0 0.0
      %2617 = vmatprep.subr.mxu0 0.0
      %2618 = vmatpush1.msra.mxu0 0.0
      %2619 = vmatprep.subr.mxu0 0.0
      %2620 = vmatpush1.msra.mxu0 0.0
      %2621 = vmatprep.subr.mxu0 0.0
      %2622 = vmatpush1.msra.mxu0 0.0
      %2623 = vmatprep.subr.mxu0 0.0
      %2624 = vmatpush1.msra.mxu0 0.0
      %2625 = vmatprep.subr.mxu0 0.0
      %2626 = vmatpush1.msra.mxu0 0.0
      %2627 = vmatprep.subr.mxu0 0.0
      %2628 = vmatpush1.msra.mxu0 0.0
      %2629 = vmatprep.mubr.f32.mxu0 0.0
      %2630 = vmatmul.mubr.f32.gmra.mrb[0].mxu0 %v2558
      %v2631 = vpop.f32.mrb[0].mxu0
      %v2632 = vadd.f32 0.0, %v2631
      %v2633 = vpop.f32.mrb[0].mxu0
      %2634 = vmatprep.mubr.f32.mxu0 0.0
      %2635 = vmatmul.mubr.f32.gmra.mrb[0].mxu0 %v2561
      %v2636 = vpop.f32.mrb[0].mxu0
      %v2637 = vadd.f32 0.0, %v2636
      %v2638 = vpop.f32.mrb[0].mxu0
      %2639 = vdwg.mxu0
      %2640 = vrot.lane.b32.xlu0 %v2437, 120
      %v2641 = vpop.permute.xlu0 %2640
      %2642 = vrot.lane.b32.xlu0 %v2438, 120
      %v2643 = vpop.permute.xlu0 %2642
      %2644 = vrot.lane.b32.xlu0 %v2422, 88
      %v2645 = vpop.permute.xlu0 %2644
      %2646 = vrot.lane.b32.xlu0 %v2427, 88
      %v2647 = vpop.permute.xlu0 %2646
      %v2648 = vsel %vm895, %v2641, 0
      %v2650 = vsel %vm895, %v2643, 0
      %v2652 = vsel %vm895, %v2645, 0
      %v2654 = vsel %vm895, %v2647, 0
      %2656 = vmatprep.subr.mxu0 0.0
      %2657 = vmatpush1.xpose.msra.mxu0 %v2652
      %2658 = vmatprep.subr.mxu0 0.0
      %2659 = vmatpush1.xpose.msra.mxu0 %v2654
      %2660 = vmatprep.subr.mxu0 0.0
      %2661 = vmatpush1.xpose.msra.mxu0 0.0
      %2662 = vmatprep.subr.mxu0 0.0
      %2663 = vmatpush1.xpose.msra.mxu0 0.0
      %2664 = vmatprep.subr.mxu0 0.0
      %2665 = vmatpush1.xpose.msra.mxu0 0.0
      %2666 = vmatprep.subr.mxu0 0.0
      %2667 = vmatpush1.xpose.msra.mxu0 0.0
      %2668 = vmatprep.subr.mxu0 0.0
      %2669 = vmatpush1.xpose.msra.mxu0 0.0
      %2670 = vmatprep.subr.mxu0 0.0
      %2671 = vmatpush1.xpose.msra.mxu0 0.0
      %2672 = vmatprep.subr.mxu0 0.0
      %2673 = vmatpush1.xpose.msra.mxu0 0.0
      %2674 = vmatprep.subr.mxu0 0.0
      %2675 = vmatpush1.xpose.msra.mxu0 0.0
      %2676 = vmatprep.subr.mxu0 0.0
      %2677 = vmatpush1.xpose.msra.mxu0 0.0
      %2678 = vmatprep.subr.mxu0 0.0
      %2679 = vmatpush1.xpose.msra.mxu0 0.0
      %2680 = vmatprep.subr.mxu0 0.0
      %2681 = vmatpush1.xpose.msra.mxu0 0.0
      %2682 = vmatprep.subr.mxu0 0.0
      %2683 = vmatpush1.xpose.msra.mxu0 0.0
      %2684 = vmatprep.subr.mxu0 0.0
      %2685 = vmatpush1.xpose.msra.mxu0 0.0
      %2686 = vmatprep.subr.mxu0 0.0
      %2687 = vmatpush1.xpose.msra.mxu0 0.0
      %2688 = vmatprep.subr.mxu0 0.0
      %2689 = vmatpush1.xpose.msra.mxu0 0.0
      %2690 = vmatprep.subr.mxu0 0.0
      %2691 = vmatpush1.xpose.msra.mxu0 0.0
      %2692 = vmatprep.subr.mxu0 0.0
      %2693 = vmatpush1.xpose.msra.mxu0 0.0
      %2694 = vmatprep.subr.mxu0 0.0
      %2695 = vmatpush1.xpose.msra.mxu0 0.0
      %2696 = vmatprep.subr.mxu0 0.0
      %2697 = vmatpush1.xpose.msra.mxu0 0.0
      %2698 = vmatprep.subr.mxu0 0.0
      %2699 = vmatpush1.xpose.msra.mxu0 0.0
      %2700 = vmatprep.subr.mxu0 0.0
      %2701 = vmatpush1.xpose.msra.mxu0 0.0
      %2702 = vmatprep.subr.mxu0 0.0
      %2703 = vmatpush1.xpose.msra.mxu0 0.0
      %2704 = vmatprep.subr.mxu0 0.0
      %2705 = vmatpush1.xpose.msra.mxu0 0.0
      %2706 = vmatprep.subr.mxu0 0.0
      %2707 = vmatpush1.xpose.msra.mxu0 0.0
      %2708 = vmatprep.subr.mxu0 0.0
      %2709 = vmatpush1.xpose.msra.mxu0 0.0
      %2710 = vmatprep.subr.mxu0 0.0
      %2711 = vmatpush1.xpose.msra.mxu0 0.0
      %2712 = vmatprep.subr.mxu0 0.0
      %2713 = vmatpush1.xpose.msra.mxu0 0.0
      %2714 = vmatprep.subr.mxu0 0.0
      %2715 = vmatpush1.xpose.msra.mxu0 0.0
      %2716 = vmatprep.subr.mxu0 0.0
      %2717 = vmatpush1.xpose.msra.mxu0 0.0
      %2718 = vmatprep.subr.mxu0 0.0
      %2719 = vmatpush1.xpose.msra.mxu0 0.0
      %2720 = vmatprep.mubr.f32.mxu0 0.0
      %2721 = vmatmul.mubr.f32.gmra.mrb[0].mxu0 %v2648
      %v2722 = vpop.f32.mrb[0].mxu0
      %v2723 = vadd.f32 0.0, %v2722
      %v2724 = vpop.f32.mrb[0].mxu0
      %2725 = vmatprep.mubr.f32.mxu0 0.0
      %2726 = vmatmul.mubr.f32.gmra.mrb[0].mxu0 %v2650
      %v2727 = vpop.f32.mrb[0].mxu0
      %v2728 = vadd.f32 0.0, %v2727
      %v2729 = vpop.f32.mrb[0].mxu0
      %2730 = vdwg.mxu0
      %v2731 = vsel %vm981, %v2723, -inf
      %2732 = vmax.xlane.f32.xlu0 %v2731
      %v2733 = vpop.xlane.xlu0 %2732
      %v2734 = vsel %vm985, %v2728, -inf
      %2735 = vmax.xlane.f32.xlu0 %v2734
      %v2736 = vpop.xlane.xlu0 %2735
      %v2737 = vsub.f32 %v2723, %v2733
      %v2738 = vsub.f32 %v2728, %v2736
      %v2739 = vmul.f32 %v2737, 1.442695
      %v2740 = vpow.pop %v2739
      %v2741 = vmul.f32 %v2738, 1.442695
      %v2742 = vpow.pop %v2741
      %v2743 = vsel %vm981, %v2740, 0.0
      %2744 = vadd.xlane.f32.xlu0 %v2743
      %v2745 = vpop.xlane.xlu0 %2744
      %v2746 = vsel %vm985, %v2742, 0.0
      %2747 = vadd.xlane.f32.xlu0 %v2746
      %v2748 = vpop.xlane.xlu0 %2747
      %v2749 = vrcp.pop %v2745
      %v2750 = vrcp.pop %v2748
      %v2751 = vmul.f32 %v2740, %v2749
      %v2752 = vmul.f32 %v2742, %v2750
      %2753 = vrot.lane.b32.xlu0 %v2422, 56
      %v2754 = vpop.permute.xlu0 %2753
      %2755 = vrot.lane.b32.xlu0 %v2427, 56
      %v2756 = vpop.permute.xlu0 %2755
      %v2759 = vsel %vm981, %v2751, 0
      %v2762 = vsel %vm981, %v2752, 0
      %v2764 = vsel %vm1016, %v2756, 0
      %2766 = vmatprep.subr.mxu0 0.0
      %2767 = vmatpush1.msra.mxu0 %v2754
      %2768 = vmatprep.subr.mxu0 0.0
      %2769 = vmatpush1.msra.mxu0 %v2764
      %2770 = vmatprep.subr.mxu0 0.0
      %2771 = vmatpush1.msra.mxu0 0.0
      %2772 = vmatprep.subr.mxu0 0.0
      %2773 = vmatpush1.msra.mxu0 0.0
      %2774 = vmatprep.subr.mxu0 0.0
      %2775 = vmatpush1.msra.mxu0 0.0
      %2776 = vmatprep.subr.mxu0 0.0
      %2777 = vmatpush1.msra.mxu0 0.0
      %2778 = vmatprep.subr.mxu0 0.0
      %2779 = vmatpush1.msra.mxu0 0.0
      %2780 = vmatprep.subr.mxu0 0.0
      %2781 = vmatpush1.msra.mxu0 0.0
      %2782 = vmatprep.subr.mxu0 0.0
      %2783 = vmatpush1.msra.mxu0 0.0
      %2784 = vmatprep.subr.mxu0 0.0
      %2785 = vmatpush1.msra.mxu0 0.0
      %2786 = vmatprep.subr.mxu0 0.0
      %2787 = vmatpush1.msra.mxu0 0.0
      %2788 = vmatprep.subr.mxu0 0.0
      %2789 = vmatpush1.msra.mxu0 0.0
      %2790 = vmatprep.subr.mxu0 0.0
      %2791 = vmatpush1.msra.mxu0 0.0
      %2792 = vmatprep.subr.mxu0 0.0
      %2793 = vmatpush1.msra.mxu0 0.0
      %2794 = vmatprep.subr.mxu0 0.0
      %2795 = vmatpush1.msra.mxu0 0.0
      %2796 = vmatprep.subr.mxu0 0.0
      %2797 = vmatpush1.msra.mxu0 0.0
      %2798 = vmatprep.subr.mxu0 0.0
      %2799 = vmatpush1.msra.mxu0 0.0
      %2800 = vmatprep.subr.mxu0 0.0
      %2801 = vmatpush1.msra.mxu0 0.0
      %2802 = vmatprep.subr.mxu0 0.0
      %2803 = vmatpush1.msra.mxu0 0.0
      %2804 = vmatprep.subr.mxu0 0.0
      %2805 = vmatpush1.msra.mxu0 0.0
      %2806 = vmatprep.subr.mxu0 0.0
      %2807 = vmatpush1.msra.mxu0 0.0
      %2808 = vmatprep.subr.mxu0 0.0
      %2809 = vmatpush1.msra.mxu0 0.0
      %2810 = vmatprep.subr.mxu0 0.0
      %2811 = vmatpush1.msra.mxu0 0.0
      %2812 = vmatprep.subr.mxu0 0.0
      %2813 = vmatpush1.msra.mxu0 0.0
      %2814 = vmatprep.subr.mxu0 0.0
      %2815 = vmatpush1.msra.mxu0 0.0
      %2816 = vmatprep.subr.mxu0 0.0
      %2817 = vmatpush1.msra.mxu0 0.0
      %2818 = vmatprep.subr.mxu0 0.0
      %2819 = vmatpush1.msra.mxu0 0.0
      %2820 = vmatprep.subr.mxu0 0.0
      %2821 = vmatpush1.msra.mxu0 0.0
      %2822 = vmatprep.subr.mxu0 0.0
      %2823 = vmatpush1.msra.mxu0 0.0
      %2824 = vmatprep.subr.mxu0 0.0
      %2825 = vmatpush1.msra.mxu0 0.0
      %2826 = vmatprep.subr.mxu0 0.0
      %2827 = vmatpush1.msra.mxu0 0.0
      %2828 = vmatprep.subr.mxu0 0.0
      %2829 = vmatpush1.msra.mxu0 0.0
      %2830 = vmatprep.mubr.f32.mxu0 0.0
      %2831 = vmatmul.mubr.f32.gmra.mrb[0].mxu0 %v2759
      %v2832 = vpop.f32.mrb[0].mxu0
      %v2833 = vadd.f32 0.0, %v2832
      %v2834 = vpop.f32.mrb[0].mxu0
      %2835 = vmatprep.mubr.f32.mxu0 0.0
      %2836 = vmatmul.mubr.f32.gmra.mrb[0].mxu0 %v2762
      %v2837 = vpop.f32.mrb[0].mxu0
      %v2838 = vadd.f32 0.0, %v2837
      %v2839 = vpop.f32.mrb[0].mxu0
      %2840 = vdwg.mxu0
      %v2842 = vsel %vm895, %v2833, 0
      %v2845 = vsel %vm895, %v2838, 0
      %2847 = vmatprep.subr.mxu0 0.0
      %2848 = vmatpush1.msra.mxu0 %v2432
      %2849 = vmatprep.subr.mxu0 0.0
      %2850 = vmatpush1.msra.mxu0 0.0
      %2851 = vmatprep.subr.mxu0 0.0
      %2852 = vmatpush1.msra.mxu0 0.0
      %2853 = vmatprep.subr.mxu0 0.0
      %2854 = vmatpush1.msra.mxu0 0.0
      %2855 = vmatprep.subr.mxu0 0.0
      %2856 = vmatpush1.msra.mxu0 0.0
      %2857 = vmatprep.subr.mxu0 0.0
      %2858 = vmatpush1.msra.mxu0 0.0
      %2859 = vmatprep.subr.mxu0 0.0
      %2860 = vmatpush1.msra.mxu0 0.0
      %2861 = vmatprep.subr.mxu0 0.0
      %2862 = vmatpush1.msra.mxu0 0.0
      %2863 = vmatprep.subr.mxu0 0.0
      %2864 = vmatpush1.msra.mxu0 0.0
      %2865 = vmatprep.subr.mxu0 0.0
      %2866 = vmatpush1.msra.mxu0 0.0
      %2867 = vmatprep.subr.mxu0 0.0
      %2868 = vmatpush1.msra.mxu0 0.0
      %2869 = vmatprep.subr.mxu0 0.0
      %2870 = vmatpush1.msra.mxu0 0.0
      %2871 = vmatprep.subr.mxu0 0.0
      %2872 = vmatpush1.msra.mxu0 0.0
      %2873 = vmatprep.subr.mxu0 0.0
      %2874 = vmatpush1.msra.mxu0 0.0
      %2875 = vmatprep.subr.mxu0 0.0
      %2876 = vmatpush1.msra.mxu0 0.0
      %2877 = vmatprep.subr.mxu0 0.0
      %2878 = vmatpush1.msra.mxu0 0.0
      %2879 = vmatprep.subr.mxu0 0.0
      %2880 = vmatpush1.msra.mxu0 0.0
      %2881 = vmatprep.subr.mxu0 0.0
      %2882 = vmatpush1.msra.mxu0 0.0
      %2883 = vmatprep.subr.mxu0 0.0
      %2884 = vmatpush1.msra.mxu0 0.0
      %2885 = vmatprep.subr.mxu0 0.0
      %2886 = vmatpush1.msra.mxu0 0.0
      %2887 = vmatprep.subr.mxu0 0.0
      %2888 = vmatpush1.msra.mxu0 0.0
      %2889 = vmatprep.subr.mxu0 0.0
      %2890 = vmatpush1.msra.mxu0 0.0
      %2891 = vmatprep.subr.mxu0 0.0
      %2892 = vmatpush1.msra.mxu0 0.0
      %2893 = vmatprep.subr.mxu0 0.0
      %2894 = vmatpush1.msra.mxu0 0.0
      %2895 = vmatprep.subr.mxu0 0.0
      %2896 = vmatpush1.msra.mxu0 0.0
      %2897 = vmatprep.subr.mxu0 0.0
      %2898 = vmatpush1.msra.mxu0 0.0
      %2899 = vmatprep.subr.mxu0 0.0
      %2900 = vmatpush1.msra.mxu0 0.0
      %2901 = vmatprep.subr.mxu0 0.0
      %2902 = vmatpush1.msra.mxu0 0.0
      %2903 = vmatprep.subr.mxu0 0.0
      %2904 = vmatpush1.msra.mxu0 0.0
      %2905 = vmatprep.subr.mxu0 0.0
      %2906 = vmatpush1.msra.mxu0 0.0
      %2907 = vmatprep.subr.mxu0 0.0
      %2908 = vmatpush1.msra.mxu0 0.0
      %2909 = vmatprep.subr.mxu0 0.0
      %2910 = vmatpush1.msra.mxu0 0.0
      %2911 = vmatprep.mubr.f32.mxu0 0.0
      %2912 = vmatmul.mubr.f32.gmra.mrb[0].mxu0 %v2842
      %v2913 = vpop.f32.mrb[0].mxu0
      %v2914 = vadd.f32 0.0, %v2913
      %v2915 = vpop.f32.mrb[0].mxu0
      %2916 = vmatprep.mubr.f32.mxu0 0.0
      %2917 = vmatmul.mubr.f32.gmra.mrb[0].mxu0 %v2845
      %v2918 = vpop.f32.mrb[0].mxu0
      %v2919 = vadd.f32 0.0, %v2918
      %v2920 = vpop.f32.mrb[0].mxu0
      %2921 = vdwg.mxu0
      %v2923 = vsel %vm895, %v2632, 0
      %v2926 = vsel %vm895, %v2637, 0
      %2928 = vmatprep.subr.mxu0 0.0
      %2929 = vmatpush1.msra.mxu0 %v2431
      %2930 = vmatprep.subr.mxu0 0.0
      %2931 = vmatpush1.msra.mxu0 0.0
      %2932 = vmatprep.subr.mxu0 0.0
      %2933 = vmatpush1.msra.mxu0 0.0
      %2934 = vmatprep.subr.mxu0 0.0
      %2935 = vmatpush1.msra.mxu0 0.0
      %2936 = vmatprep.subr.mxu0 0.0
      %2937 = vmatpush1.msra.mxu0 0.0
      %2938 = vmatprep.subr.mxu0 0.0
      %2939 = vmatpush1.msra.mxu0 0.0
      %2940 = vmatprep.subr.mxu0 0.0
      %2941 = vmatpush1.msra.mxu0 0.0
      %2942 = vmatprep.subr.mxu0 0.0
      %2943 = vmatpush1.msra.mxu0 0.0
      %2944 = vmatprep.subr.mxu0 0.0
      %2945 = vmatpush1.msra.mxu0 0.0
      %2946 = vmatprep.subr.mxu0 0.0
      %2947 = vmatpush1.msra.mxu0 0.0
      %2948 = vmatprep.subr.mxu0 0.0
      %2949 = vmatpush1.msra.mxu0 0.0
      %2950 = vmatprep.subr.mxu0 0.0
      %2951 = vmatpush1.msra.mxu0 0.0
      %2952 = vmatprep.subr.mxu0 0.0
      %2953 = vmatpush1.msra.mxu0 0.0
      %2954 = vmatprep.subr.mxu0 0.0
      %2955 = vmatpush1.msra.mxu0 0.0
      %2956 = vmatprep.subr.mxu0 0.0
      %2957 = vmatpush1.msra.mxu0 0.0
      %2958 = vmatprep.subr.mxu0 0.0
      %2959 = vmatpush1.msra.mxu0 0.0
      %2960 = vmatprep.subr.mxu0 0.0
      %2961 = vmatpush1.msra.mxu0 0.0
      %2962 = vmatprep.subr.mxu0 0.0
      %2963 = vmatpush1.msra.mxu0 0.0
      %2964 = vmatprep.subr.mxu0 0.0
      %2965 = vmatpush1.msra.mxu0 0.0
      %2966 = vmatprep.subr.mxu0 0.0
      %2967 = vmatpush1.msra.mxu0 0.0
      %2968 = vmatprep.subr.mxu0 0.0
      %2969 = vmatpush1.msra.mxu0 0.0
      %2970 = vmatprep.subr.mxu0 0.0
      %2971 = vmatpush1.msra.mxu0 0.0
      %2972 = vmatprep.subr.mxu0 0.0
      %2973 = vmatpush1.msra.mxu0 0.0
      %2974 = vmatprep.subr.mxu0 0.0
      %2975 = vmatpush1.msra.mxu0 0.0
      %2976 = vmatprep.subr.mxu0 0.0
      %2977 = vmatpush1.msra.mxu0 0.0
      %2978 = vmatprep.subr.mxu0 0.0
      %2979 = vmatpush1.msra.mxu0 0.0
      %2980 = vmatprep.subr.mxu0 0.0
      %2981 = vmatpush1.msra.mxu0 0.0
      %2982 = vmatprep.subr.mxu0 0.0
      %2983 = vmatpush1.msra.mxu0 0.0
      %2984 = vmatprep.subr.mxu0 0.0
      %2985 = vmatpush1.msra.mxu0 0.0
      %2986 = vmatprep.subr.mxu0 0.0
      %2987 = vmatpush1.msra.mxu0 0.0
      %2988 = vmatprep.subr.mxu0 0.0
      %2989 = vmatpush1.msra.mxu0 0.0
      %2990 = vmatprep.subr.mxu0 0.0
      %2991 = vmatpush1.msra.mxu0 0.0
      %2992 = vmatprep.mubr.f32.mxu0 0.0
      %2993 = vmatmul.mubr.f32.gmra.mrb[0].mxu0 %v2923
      %v2994 = vpop.f32.mrb[0].mxu0
      %v2995 = vadd.f32 %v2914, %v2994
      %v2996 = vpop.f32.mrb[0].mxu0
      %2997 = vmatprep.mubr.f32.mxu0 0.0
      %2998 = vmatmul.mubr.f32.gmra.mrb[0].mxu0 %v2926
      %v2999 = vpop.f32.mrb[0].mxu0
      %v3000 = vadd.f32 %v2919, %v2999
      %v3001 = vpop.f32.mrb[0].mxu0
      %3002 = vdwg.mxu0
      %3003 = vrot.lane.b32.xlu0 %v2437, 112
      %v3004 = vpop.permute.xlu0 %3003
      %3005 = vrot.lane.b32.xlu0 %v2438, 112
      %v3006 = vpop.permute.xlu0 %3005
      %3007 = vrot.lane.b32.xlu0 %v2422, 80
      %v3008 = vpop.permute.xlu0 %3007
      %3009 = vrot.lane.b32.xlu0 %v2427, 80
      %v3010 = vpop.permute.xlu0 %3009
      %v3011 = vsel %vm895, %v3004, 0
      %v3013 = vsel %vm895, %v3006, 0
      %v3015 = vsel %vm895, %v3008, 0
      %v3017 = vsel %vm895, %v3010, 0
      %3019 = vmatprep.subr.mxu0 0.0
      %3020 = vmatpush1.xpose.msra.mxu0 %v3015
      %3021 = vmatprep.subr.mxu0 0.0
      %3022 = vmatpush1.xpose.msra.mxu0 %v3017
      %3023 = vmatprep.subr.mxu0 0.0
      %3024 = vmatpush1.xpose.msra.mxu0 0.0
      %3025 = vmatprep.subr.mxu0 0.0
      %3026 = vmatpush1.xpose.msra.mxu0 0.0
      %3027 = vmatprep.subr.mxu0 0.0
      %3028 = vmatpush1.xpose.msra.mxu0 0.0
      %3029 = vmatprep.subr.mxu0 0.0
      %3030 = vmatpush1.xpose.msra.mxu0 0.0
      %3031 = vmatprep.subr.mxu0 0.0
      %3032 = vmatpush1.xpose.msra.mxu0 0.0
      %3033 = vmatprep.subr.mxu0 0.0
      %3034 = vmatpush1.xpose.msra.mxu0 0.0
      %3035 = vmatprep.subr.mxu0 0.0
      %3036 = vmatpush1.xpose.msra.mxu0 0.0
      %3037 = vmatprep.subr.mxu0 0.0
      %3038 = vmatpush1.xpose.msra.mxu0 0.0
      %3039 = vmatprep.subr.mxu0 0.0
      %3040 = vmatpush1.xpose.msra.mxu0 0.0
      %3041 = vmatprep.subr.mxu0 0.0
      %3042 = vmatpush1.xpose.msra.mxu0 0.0
      %3043 = vmatprep.subr.mxu0 0.0
      %3044 = vmatpush1.xpose.msra.mxu0 0.0
      %3045 = vmatprep.subr.mxu0 0.0
      %3046 = vmatpush1.xpose.msra.mxu0 0.0
      %3047 = vmatprep.subr.mxu0 0.0
      %3048 = vmatpush1.xpose.msra.mxu0 0.0
      %3049 = vmatprep.subr.mxu0 0.0
      %3050 = vmatpush1.xpose.msra.mxu0 0.0
      %3051 = vmatprep.subr.mxu0 0.0
      %3052 = vmatpush1.xpose.msra.mxu0 0.0
      %3053 = vmatprep.subr.mxu0 0.0
      %3054 = vmatpush1.xpose.msra.mxu0 0.0
      %3055 = vmatprep.subr.mxu0 0.0
      %3056 = vmatpush1.xpose.msra.mxu0 0.0
      %3057 = vmatprep.subr.mxu0 0.0
      %3058 = vmatpush1.xpose.msra.mxu0 0.0
      %3059 = vmatprep.subr.mxu0 0.0
      %3060 = vmatpush1.xpose.msra.mxu0 0.0
      %3061 = vmatprep.subr.mxu0 0.0
      %3062 = vmatpush1.xpose.msra.mxu0 0.0
      %3063 = vmatprep.subr.mxu0 0.0
      %3064 = vmatpush1.xpose.msra.mxu0 0.0
      %3065 = vmatprep.subr.mxu0 0.0
      %3066 = vmatpush1.xpose.msra.mxu0 0.0
      %3067 = vmatprep.subr.mxu0 0.0
      %3068 = vmatpush1.xpose.msra.mxu0 0.0
      %3069 = vmatprep.subr.mxu0 0.0
      %3070 = vmatpush1.xpose.msra.mxu0 0.0
      %3071 = vmatprep.subr.mxu0 0.0
      %3072 = vmatpush1.xpose.msra.mxu0 0.0
      %3073 = vmatprep.subr.mxu0 0.0
      %3074 = vmatpush1.xpose.msra.mxu0 0.0
      %3075 = vmatprep.subr.mxu0 0.0
      %3076 = vmatpush1.xpose.msra.mxu0 0.0
      %3077 = vmatprep.subr.mxu0 0.0
      %3078 = vmatpush1.xpose.msra.mxu0 0.0
      %3079 = vmatprep.subr.mxu0 0.0
      %3080 = vmatpush1.xpose.msra.mxu0 0.0
      %3081 = vmatprep.subr.mxu0 0.0
      %3082 = vmatpush1.xpose.msra.mxu0 0.0
      %3083 = vmatprep.mubr.f32.mxu0 0.0
      %3084 = vmatmul.mubr.f32.gmra.mrb[0].mxu0 %v3011
      %v3085 = vpop.f32.mrb[0].mxu0
      %v3086 = vadd.f32 0.0, %v3085
      %v3087 = vpop.f32.mrb[0].mxu0
      %3088 = vmatprep.mubr.f32.mxu0 0.0
      %3089 = vmatmul.mubr.f32.gmra.mrb[0].mxu0 %v3013
      %v3090 = vpop.f32.mrb[0].mxu0
      %v3091 = vadd.f32 0.0, %v3090
      %v3092 = vpop.f32.mrb[0].mxu0
      %3093 = vdwg.mxu0
      %v3094 = vsel %vm981, %v3086, -inf
      %3095 = vmax.xlane.f32.xlu0 %v3094
      %v3096 = vpop.xlane.xlu0 %3095
      %v3097 = vsel %vm985, %v3091, -inf
      %3098 = vmax.xlane.f32.xlu0 %v3097
      %v3099 = vpop.xlane.xlu0 %3098
      %v3100 = vsub.f32 %v3086, %v3096
      %v3101 = vsub.f32 %v3091, %v3099
      %v3102 = vmul.f32 %v3100, 1.442695
      %v3103 = vpow.pop %v3102
      %v3104 = vmul.f32 %v3101, 1.442695
      %v3105 = vpow.pop %v3104
      %v3106 = vsel %vm981, %v3103, 0.0
      %3107 = vadd.xlane.f32.xlu0 %v3106
      %v3108 = vpop.xlane.xlu0 %3107
      %v3109 = vsel %vm985, %v3105, 0.0
      %3110 = vadd.xlane.f32.xlu0 %v3109
      %v3111 = vpop.xlane.xlu0 %3110
      %v3112 = vrcp.pop %v3108
      %v3113 = vrcp.pop %v3111
      %v3114 = vmul.f32 %v3103, %v3112
      %v3115 = vmul.f32 %v3105, %v3113
      %3116 = vrot.lane.b32.xlu0 %v2422, 48
      %v3117 = vpop.permute.xlu0 %3116
      %3118 = vrot.lane.b32.xlu0 %v2427, 48
      %v3119 = vpop.permute.xlu0 %3118
      %v3122 = vsel %vm981, %v3114, 0
      %v3125 = vsel %vm981, %v3115, 0
      %v3127 = vsel %vm1016, %v3119, 0
      %3129 = vmatprep.subr.mxu0 0.0
      %3130 = vmatpush1.msra.mxu0 %v3117
      %3131 = vmatprep.subr.mxu0 0.0
      %3132 = vmatpush1.msra.mxu0 %v3127
      %3133 = vmatprep.subr.mxu0 0.0
      %3134 = vmatpush1.msra.mxu0 0.0
      %3135 = vmatprep.subr.mxu0 0.0
      %3136 = vmatpush1.msra.mxu0 0.0
      %3137 = vmatprep.subr.mxu0 0.0
      %3138 = vmatpush1.msra.mxu0 0.0
      %3139 = vmatprep.subr.mxu0 0.0
      %3140 = vmatpush1.msra.mxu0 0.0
      %3141 = vmatprep.subr.mxu0 0.0
      %3142 = vmatpush1.msra.mxu0 0.0
      %3143 = vmatprep.subr.mxu0 0.0
      %3144 = vmatpush1.msra.mxu0 0.0
      %3145 = vmatprep.subr.mxu0 0.0
      %3146 = vmatpush1.msra.mxu0 0.0
      %3147 = vmatprep.subr.mxu0 0.0
      %3148 = vmatpush1.msra.mxu0 0.0
      %3149 = vmatprep.subr.mxu0 0.0
      %3150 = vmatpush1.msra.mxu0 0.0
      %3151 = vmatprep.subr.mxu0 0.0
      %3152 = vmatpush1.msra.mxu0 0.0
      %3153 = vmatprep.subr.mxu0 0.0
      %3154 = vmatpush1.msra.mxu0 0.0
      %3155 = vmatprep.subr.mxu0 0.0
      %3156 = vmatpush1.msra.mxu0 0.0
      %3157 = vmatprep.subr.mxu0 0.0
      %3158 = vmatpush1.msra.mxu0 0.0
      %3159 = vmatprep.subr.mxu0 0.0
      %3160 = vmatpush1.msra.mxu0 0.0
      %3161 = vmatprep.subr.mxu0 0.0
      %3162 = vmatpush1.msra.mxu0 0.0
      %3163 = vmatprep.subr.mxu0 0.0
      %3164 = vmatpush1.msra.mxu0 0.0
      %3165 = vmatprep.subr.mxu0 0.0
      %3166 = vmatpush1.msra.mxu0 0.0
      %3167 = vmatprep.subr.mxu0 0.0
      %3168 = vmatpush1.msra.mxu0 0.0
      %3169 = vmatprep.subr.mxu0 0.0
      %3170 = vmatpush1.msra.mxu0 0.0
      %3171 = vmatprep.subr.mxu0 0.0
      %3172 = vmatpush1.msra.mxu0 0.0
      %3173 = vmatprep.subr.mxu0 0.0
      %3174 = vmatpush1.msra.mxu0 0.0
      %3175 = vmatprep.subr.mxu0 0.0
      %3176 = vmatpush1.msra.mxu0 0.0
      %3177 = vmatprep.subr.mxu0 0.0
      %3178 = vmatpush1.msra.mxu0 0.0
      %3179 = vmatprep.subr.mxu0 0.0
      %3180 = vmatpush1.msra.mxu0 0.0
      %3181 = vmatprep.subr.mxu0 0.0
      %3182 = vmatpush1.msra.mxu0 0.0
      %3183 = vmatprep.subr.mxu0 0.0
      %3184 = vmatpush1.msra.mxu0 0.0
      %3185 = vmatprep.subr.mxu0 0.0
      %3186 = vmatpush1.msra.mxu0 0.0
      %3187 = vmatprep.subr.mxu0 0.0
      %3188 = vmatpush1.msra.mxu0 0.0
      %3189 = vmatprep.subr.mxu0 0.0
      %3190 = vmatpush1.msra.mxu0 0.0
      %3191 = vmatprep.subr.mxu0 0.0
      %3192 = vmatpush1.msra.mxu0 0.0
      %3193 = vmatprep.mubr.f32.mxu0 0.0
      %3194 = vmatmul.mubr.f32.gmra.mrb[0].mxu0 %v3122
      %v3195 = vpop.f32.mrb[0].mxu0
      %v3196 = vadd.f32 0.0, %v3195
      %v3197 = vpop.f32.mrb[0].mxu0
      %3198 = vmatprep.mubr.f32.mxu0 0.0
      %3199 = vmatmul.mubr.f32.gmra.mrb[0].mxu0 %v3125
      %v3200 = vpop.f32.mrb[0].mxu0
      %v3201 = vadd.f32 0.0, %v3200
      %v3202 = vpop.f32.mrb[0].mxu0
      %3203 = vdwg.mxu0
      %v3205 = vsel %vm895, %v3196, 0
      %v3208 = vsel %vm895, %v3201, 0
      %3210 = vmatprep.subr.mxu0 0.0
      %3211 = vmatpush1.msra.mxu0 %v2433
      %3212 = vmatprep.subr.mxu0 0.0
      %3213 = vmatpush1.msra.mxu0 0.0
      %3214 = vmatprep.subr.mxu0 0.0
      %3215 = vmatpush1.msra.mxu0 0.0
      %3216 = vmatprep.subr.mxu0 0.0
      %3217 = vmatpush1.msra.mxu0 0.0
      %3218 = vmatprep.subr.mxu0 0.0
      %3219 = vmatpush1.msra.mxu0 0.0
      %3220 = vmatprep.subr.mxu0 0.0
      %3221 = vmatpush1.msra.mxu0 0.0
      %3222 = vmatprep.subr.mxu0 0.0
      %3223 = vmatpush1.msra.mxu0 0.0
      %3224 = vmatprep.subr.mxu0 0.0
      %3225 = vmatpush1.msra.mxu0 0.0
      %3226 = vmatprep.subr.mxu0 0.0
      %3227 = vmatpush1.msra.mxu0 0.0
      %3228 = vmatprep.subr.mxu0 0.0
      %3229 = vmatpush1.msra.mxu0 0.0
      %3230 = vmatprep.subr.mxu0 0.0
      %3231 = vmatpush1.msra.mxu0 0.0
      %3232 = vmatprep.subr.mxu0 0.0
      %3233 = vmatpush1.msra.mxu0 0.0
      %3234 = vmatprep.subr.mxu0 0.0
      %3235 = vmatpush1.msra.mxu0 0.0
      %3236 = vmatprep.subr.mxu0 0.0
      %3237 = vmatpush1.msra.mxu0 0.0
      %3238 = vmatprep.subr.mxu0 0.0
      %3239 = vmatpush1.msra.mxu0 0.0
      %3240 = vmatprep.subr.mxu0 0.0
      %3241 = vmatpush1.msra.mxu0 0.0
      %3242 = vmatprep.subr.mxu0 0.0
      %3243 = vmatpush1.msra.mxu0 0.0
      %3244 = vmatprep.subr.mxu0 0.0
      %3245 = vmatpush1.msra.mxu0 0.0
      %3246 = vmatprep.subr.mxu0 0.0
      %3247 = vmatpush1.msra.mxu0 0.0
      %3248 = vmatprep.subr.mxu0 0.0
      %3249 = vmatpush1.msra.mxu0 0.0
      %3250 = vmatprep.subr.mxu0 0.0
      %3251 = vmatpush1.msra.mxu0 0.0
      %3252 = vmatprep.subr.mxu0 0.0
      %3253 = vmatpush1.msra.mxu0 0.0
      %3254 = vmatprep.subr.mxu0 0.0
      %3255 = vmatpush1.msra.mxu0 0.0
      %3256 = vmatprep.subr.mxu0 0.0
      %3257 = vmatpush1.msra.mxu0 0.0
      %3258 = vmatprep.subr.mxu0 0.0
      %3259 = vmatpush1.msra.mxu0 0.0
      %3260 = vmatprep.subr.mxu0 0.0
      %3261 = vmatpush1.msra.mxu0 0.0
      %3262 = vmatprep.subr.mxu0 0.0
      %3263 = vmatpush1.msra.mxu0 0.0
      %3264 = vmatprep.subr.mxu0 0.0
      %3265 = vmatpush1.msra.mxu0 0.0
      %3266 = vmatprep.subr.mxu0 0.0
      %3267 = vmatpush1.msra.mxu0 0.0
      %3268 = vmatprep.subr.mxu0 0.0
      %3269 = vmatpush1.msra.mxu0 0.0
      %3270 = vmatprep.subr.mxu0 0.0
      %3271 = vmatpush1.msra.mxu0 0.0
      %3272 = vmatprep.subr.mxu0 0.0
      %3273 = vmatpush1.msra.mxu0 0.0
      %3274 = vmatprep.mubr.f32.mxu0 0.0
      %3275 = vmatmul.mubr.f32.gmra.mrb[0].mxu0 %v3205
      %v3276 = vpop.f32.mrb[0].mxu0
      %v3277 = vadd.f32 0.0, %v3276
      %v3278 = vpop.f32.mrb[0].mxu0
      %3279 = vmatprep.mubr.f32.mxu0 0.0
      %3280 = vmatmul.mubr.f32.gmra.mrb[0].mxu0 %v3208
      %v3281 = vpop.f32.mrb[0].mxu0
      %v3282 = vadd.f32 0.0, %v3281
      %v3283 = vpop.f32.mrb[0].mxu0
      %3284 = vdwg.mxu0
      %v3285 = vadd.f32 %v2995, %v3277
      %v3286 = vadd.f32 %v3000, %v3282
      %3287 = vrot.lane.b32.xlu0 %v2437, 104
      %v3288 = vpop.permute.xlu0 %3287
      %3289 = vrot.lane.b32.xlu0 %v2438, 104
      %v3290 = vpop.permute.xlu0 %3289
      %3291 = vrot.lane.b32.xlu0 %v2422, 72
      %v3292 = vpop.permute.xlu0 %3291
      %3293 = vrot.lane.b32.xlu0 %v2427, 72
      %v3294 = vpop.permute.xlu0 %3293
      %v3295 = vsel %vm895, %v3288, 0
      %v3297 = vsel %vm895, %v3290, 0
      %v3299 = vsel %vm895, %v3292, 0
      %v3301 = vsel %vm895, %v3294, 0
      %3303 = vmatprep.subr.mxu0 0.0
      %3304 = vmatpush1.xpose.msra.mxu0 %v3299
      %3305 = vmatprep.subr.mxu0 0.0
      %3306 = vmatpush1.xpose.msra.mxu0 %v3301
      %3307 = vmatprep.subr.mxu0 0.0
      %3308 = vmatpush1.xpose.msra.mxu0 0.0
      %3309 = vmatprep.subr.mxu0 0.0
      %3310 = vmatpush1.xpose.msra.mxu0 0.0
      %3311 = vmatprep.subr.mxu0 0.0
      %3312 = vmatpush1.xpose.msra.mxu0 0.0
      %3313 = vmatprep.subr.mxu0 0.0
      %3314 = vmatpush1.xpose.msra.mxu0 0.0
      %3315 = vmatprep.subr.mxu0 0.0
      %3316 = vmatpush1.xpose.msra.mxu0 0.0
      %3317 = vmatprep.subr.mxu0 0.0
      %3318 = vmatpush1.xpose.msra.mxu0 0.0
      %3319 = vmatprep.subr.mxu0 0.0
      %3320 = vmatpush1.xpose.msra.mxu0 0.0
      %3321 = vmatprep.subr.mxu0 0.0
      %3322 = vmatpush1.xpose.msra.mxu0 0.0
      %3323 = vmatprep.subr.mxu0 0.0
      %3324 = vmatpush1.xpose.msra.mxu0 0.0
      %3325 = vmatprep.subr.mxu0 0.0
      %3326 = vmatpush1.xpose.msra.mxu0 0.0
      %3327 = vmatprep.subr.mxu0 0.0
      %3328 = vmatpush1.xpose.msra.mxu0 0.0
      %3329 = vmatprep.subr.mxu0 0.0
      %3330 = vmatpush1.xpose.msra.mxu0 0.0
      %3331 = vmatprep.subr.mxu0 0.0
      %3332 = vmatpush1.xpose.msra.mxu0 0.0
      %3333 = vmatprep.subr.mxu0 0.0
      %3334 = vmatpush1.xpose.msra.mxu0 0.0
      %3335 = vmatprep.subr.mxu0 0.0
      %3336 = vmatpush1.xpose.msra.mxu0 0.0
      %3337 = vmatprep.subr.mxu0 0.0
      %3338 = vmatpush1.xpose.msra.mxu0 0.0
      %3339 = vmatprep.subr.mxu0 0.0
      %3340 = vmatpush1.xpose.msra.mxu0 0.0
      %3341 = vmatprep.subr.mxu0 0.0
      %3342 = vmatpush1.xpose.msra.mxu0 0.0
      %3343 = vmatprep.subr.mxu0 0.0
      %3344 = vmatpush1.xpose.msra.mxu0 0.0
      %3345 = vmatprep.subr.mxu0 0.0
      %3346 = vmatpush1.xpose.msra.mxu0 0.0
      %3347 = vmatprep.subr.mxu0 0.0
      %3348 = vmatpush1.xpose.msra.mxu0 0.0
      %3349 = vmatprep.subr.mxu0 0.0
      %3350 = vmatpush1.xpose.msra.mxu0 0.0
      %3351 = vmatprep.subr.mxu0 0.0
      %3352 = vmatpush1.xpose.msra.mxu0 0.0
      %3353 = vmatprep.subr.mxu0 0.0
      %3354 = vmatpush1.xpose.msra.mxu0 0.0
      %3355 = vmatprep.subr.mxu0 0.0
      %3356 = vmatpush1.xpose.msra.mxu0 0.0
      %3357 = vmatprep.subr.mxu0 0.0
      %3358 = vmatpush1.xpose.msra.mxu0 0.0
      %3359 = vmatprep.subr.mxu0 0.0
      %3360 = vmatpush1.xpose.msra.mxu0 0.0
      %3361 = vmatprep.subr.mxu0 0.0
      %3362 = vmatpush1.xpose.msra.mxu0 0.0
      %3363 = vmatprep.subr.mxu0 0.0
      %3364 = vmatpush1.xpose.msra.mxu0 0.0
      %3365 = vmatprep.subr.mxu0 0.0
      %3366 = vmatpush1.xpose.msra.mxu0 0.0
      %3367 = vmatprep.mubr.f32.mxu0 0.0
      %3368 = vmatmul.mubr.f32.gmra.mrb[0].mxu0 %v3295
      %v3369 = vpop.f32.mrb[0].mxu0
      %v3370 = vadd.f32 0.0, %v3369
      %v3371 = vpop.f32.mrb[0].mxu0
      %3372 = vmatprep.mubr.f32.mxu0 0.0
      %3373 = vmatmul.mubr.f32.gmra.mrb[0].mxu0 %v3297
      %v3374 = vpop.f32.mrb[0].mxu0
      %v3375 = vadd.f32 0.0, %v3374
      %v3376 = vpop.f32.mrb[0].mxu0
      %3377 = vdwg.mxu0
      %v3378 = vsel %vm981, %v3370, -inf
      %3379 = vmax.xlane.f32.xlu0 %v3378
      %v3380 = vpop.xlane.xlu0 %3379
      %v3381 = vsel %vm985, %v3375, -inf
      %3382 = vmax.xlane.f32.xlu0 %v3381
      %v3383 = vpop.xlane.xlu0 %3382
      %v3384 = vsub.f32 %v3370, %v3380
      %v3385 = vsub.f32 %v3375, %v3383
      %v3386 = vmul.f32 %v3384, 1.442695
      %v3387 = vpow.pop %v3386
      %v3388 = vmul.f32 %v3385, 1.442695
      %v3389 = vpow.pop %v3388
      %v3390 = vsel %vm981, %v3387, 0.0
      %3391 = vadd.xlane.f32.xlu0 %v3390
      %v3392 = vpop.xlane.xlu0 %3391
      %v3393 = vsel %vm985, %v3389, 0.0
      %3394 = vadd.xlane.f32.xlu0 %v3393
      %v3395 = vpop.xlane.xlu0 %3394
      %v3396 = vrcp.pop %v3392
      %v3397 = vrcp.pop %v3395
      %v3398 = vmul.f32 %v3387, %v3396
      %v3399 = vmul.f32 %v3389, %v3397
      %3400 = vrot.lane.b32.xlu0 %v2422, 40
      %v3401 = vpop.permute.xlu0 %3400
      %3402 = vrot.lane.b32.xlu0 %v2427, 40
      %v3403 = vpop.permute.xlu0 %3402
      %v3406 = vsel %vm981, %v3398, 0
      %v3409 = vsel %vm981, %v3399, 0
      %v3411 = vsel %vm1016, %v3403, 0
      %3413 = vmatprep.subr.mxu0 0.0
      %3414 = vmatpush1.msra.mxu0 %v3401
      %3415 = vmatprep.subr.mxu0 0.0
      %3416 = vmatpush1.msra.mxu0 %v3411
      %3417 = vmatprep.subr.mxu0 0.0
      %3418 = vmatpush1.msra.mxu0 0.0
      %3419 = vmatprep.subr.mxu0 0.0
      %3420 = vmatpush1.msra.mxu0 0.0
      %3421 = vmatprep.subr.mxu0 0.0
      %3422 = vmatpush1.msra.mxu0 0.0
      %3423 = vmatprep.subr.mxu0 0.0
      %3424 = vmatpush1.msra.mxu0 0.0
      %3425 = vmatprep.subr.mxu0 0.0
      %3426 = vmatpush1.msra.mxu0 0.0
      %3427 = vmatprep.subr.mxu0 0.0
      %3428 = vmatpush1.msra.mxu0 0.0
      %3429 = vmatprep.subr.mxu0 0.0
      %3430 = vmatpush1.msra.mxu0 0.0
      %3431 = vmatprep.subr.mxu0 0.0
      %3432 = vmatpush1.msra.mxu0 0.0
      %3433 = vmatprep.subr.mxu0 0.0
      %3434 = vmatpush1.msra.mxu0 0.0
      %3435 = vmatprep.subr.mxu0 0.0
      %3436 = vmatpush1.msra.mxu0 0.0
      %3437 = vmatprep.subr.mxu0 0.0
      %3438 = vmatpush1.msra.mxu0 0.0
      %3439 = vmatprep.subr.mxu0 0.0
      %3440 = vmatpush1.msra.mxu0 0.0
      %3441 = vmatprep.subr.mxu0 0.0
      %3442 = vmatpush1.msra.mxu0 0.0
      %3443 = vmatprep.subr.mxu0 0.0
      %3444 = vmatpush1.msra.mxu0 0.0
      %3445 = vmatprep.subr.mxu0 0.0
      %3446 = vmatpush1.msra.mxu0 0.0
      %3447 = vmatprep.subr.mxu0 0.0
      %3448 = vmatpush1.msra.mxu0 0.0
      %3449 = vmatprep.subr.mxu0 0.0
      %3450 = vmatpush1.msra.mxu0 0.0
      %3451 = vmatprep.subr.mxu0 0.0
      %3452 = vmatpush1.msra.mxu0 0.0
      %3453 = vmatprep.subr.mxu0 0.0
      %3454 = vmatpush1.msra.mxu0 0.0
      %3455 = vmatprep.subr.mxu0 0.0
      %3456 = vmatpush1.msra.mxu0 0.0
      %3457 = vmatprep.subr.mxu0 0.0
      %3458 = vmatpush1.msra.mxu0 0.0
      %3459 = vmatprep.subr.mxu0 0.0
      %3460 = vmatpush1.msra.mxu0 0.0
      %3461 = vmatprep.subr.mxu0 0.0
      %3462 = vmatpush1.msra.mxu0 0.0
      %3463 = vmatprep.subr.mxu0 0.0
      %3464 = vmatpush1.msra.mxu0 0.0
      %3465 = vmatprep.subr.mxu0 0.0
      %3466 = vmatpush1.msra.mxu0 0.0
      %3467 = vmatprep.subr.mxu0 0.0
      %3468 = vmatpush1.msra.mxu0 0.0
      %3469 = vmatprep.subr.mxu0 0.0
      %3470 = vmatpush1.msra.mxu0 0.0
      %3471 = vmatprep.subr.mxu0 0.0
      %3472 = vmatpush1.msra.mxu0 0.0
      %3473 = vmatprep.subr.mxu0 0.0
      %3474 = vmatpush1.msra.mxu0 0.0
      %3475 = vmatprep.subr.mxu0 0.0
      %3476 = vmatpush1.msra.mxu0 0.0
      %3477 = vmatprep.mubr.f32.mxu0 0.0
      %3478 = vmatmul.mubr.f32.gmra.mrb[0].mxu0 %v3406
      %v3479 = vpop.f32.mrb[0].mxu0
      %v3480 = vadd.f32 0.0, %v3479
      %v3481 = vpop.f32.mrb[0].mxu0
      %3482 = vmatprep.mubr.f32.mxu0 0.0
      %3483 = vmatmul.mubr.f32.gmra.mrb[0].mxu0 %v3409
      %v3484 = vpop.f32.mrb[0].mxu0
      %v3485 = vadd.f32 0.0, %v3484
      %v3486 = vpop.f32.mrb[0].mxu0
      %3487 = vdwg.mxu0
      %v3489 = vsel %vm895, %v3480, 0
      %v3492 = vsel %vm895, %v3485, 0
      %3494 = vmatprep.subr.mxu0 0.0
      %3495 = vmatpush1.msra.mxu0 %v2434
      %3496 = vmatprep.subr.mxu0 0.0
      %3497 = vmatpush1.msra.mxu0 0.0
      %3498 = vmatprep.subr.mxu0 0.0
      %3499 = vmatpush1.msra.mxu0 0.0
      %3500 = vmatprep.subr.mxu0 0.0
      %3501 = vmatpush1.msra.mxu0 0.0
      %3502 = vmatprep.subr.mxu0 0.0
      %3503 = vmatpush1.msra.mxu0 0.0
      %3504 = vmatprep.subr.mxu0 0.0
      %3505 = vmatpush1.msra.mxu0 0.0
      %3506 = vmatprep.subr.mxu0 0.0
      %3507 = vmatpush1.msra.mxu0 0.0
      %3508 = vmatprep.subr.mxu0 0.0
      %3509 = vmatpush1.msra.mxu0 0.0
      %3510 = vmatprep.subr.mxu0 0.0
      %3511 = vmatpush1.msra.mxu0 0.0
      %3512 = vmatprep.subr.mxu0 0.0
      %3513 = vmatpush1.msra.mxu0 0.0
      %3514 = vmatprep.subr.mxu0 0.0
      %3515 = vmatpush1.msra.mxu0 0.0
      %3516 = vmatprep.subr.mxu0 0.0
      %3517 = vmatpush1.msra.mxu0 0.0
      %3518 = vmatprep.subr.mxu0 0.0
      %3519 = vmatpush1.msra.mxu0 0.0
      %3520 = vmatprep.subr.mxu0 0.0
      %3521 = vmatpush1.msra.mxu0 0.0
      %3522 = vmatprep.subr.mxu0 0.0
      %3523 = vmatpush1.msra.mxu0 0.0
      %3524 = vmatprep.subr.mxu0 0.0
      %3525 = vmatpush1.msra.mxu0 0.0
      %3526 = vmatprep.subr.mxu0 0.0
      %3527 = vmatpush1.msra.mxu0 0.0
      %3528 = vmatprep.subr.mxu0 0.0
      %3529 = vmatpush1.msra.mxu0 0.0
      %3530 = vmatprep.subr.mxu0 0.0
      %3531 = vmatpush1.msra.mxu0 0.0
      %3532 = vmatprep.subr.mxu0 0.0
      %3533 = vmatpush1.msra.mxu0 0.0
      %3534 = vmatprep.subr.mxu0 0.0
      %3535 = vmatpush1.msra.mxu0 0.0
      %3536 = vmatprep.subr.mxu0 0.0
      %3537 = vmatpush1.msra.mxu0 0.0
      %3538 = vmatprep.subr.mxu0 0.0
      %3539 = vmatpush1.msra.mxu0 0.0
      %3540 = vmatprep.subr.mxu0 0.0
      %3541 = vmatpush1.msra.mxu0 0.0
      %3542 = vmatprep.subr.mxu0 0.0
      %3543 = vmatpush1.msra.mxu0 0.0
      %3544 = vmatprep.subr.mxu0 0.0
      %3545 = vmatpush1.msra.mxu0 0.0
      %3546 = vmatprep.subr.mxu0 0.0
      %3547 = vmatpush1.msra.mxu0 0.0
      %3548 = vmatprep.subr.mxu0 0.0
      %3549 = vmatpush1.msra.mxu0 0.0
      %3550 = vmatprep.subr.mxu0 0.0
      %3551 = vmatpush1.msra.mxu0 0.0
      %3552 = vmatprep.subr.mxu0 0.0
      %3553 = vmatpush1.msra.mxu0 0.0
      %3554 = vmatprep.subr.mxu0 0.0
      %3555 = vmatpush1.msra.mxu0 0.0
      %3556 = vmatprep.subr.mxu0 0.0
      %3557 = vmatpush1.msra.mxu0 0.0
      %3558 = vmatprep.mubr.f32.mxu0 0.0
      %3559 = vmatmul.mubr.f32.gmra.mrb[0].mxu0 %v3489
      %v3560 = vpop.f32.mrb[0].mxu0
      %v3561 = vadd.f32 0.0, %v3560
      %v3562 = vpop.f32.mrb[0].mxu0
      %3563 = vmatprep.mubr.f32.mxu0 0.0
      %3564 = vmatmul.mubr.f32.gmra.mrb[0].mxu0 %v3492
      %v3565 = vpop.f32.mrb[0].mxu0
      %v3566 = vadd.f32 0.0, %v3565
      %v3567 = vpop.f32.mrb[0].mxu0
      %3568 = vdwg.mxu0
      %v3569 = vadd.f32 %v3285, %v3561
      %v3570 = vadd.f32 %v3286, %v3566
      %v3572 = vlaneseq
      %v3573 = vshrl.u32 %v3572, 7
      %v3574 = vsub.s32 0, %v3573
      %v3575 = vrot.slane %v2436, %v3574
      %v3577 = vadd.f32 %v3569, %v3575
      %v3578 = vadd.f32 %v3570, %v3575
      %v3579 = vadd.f32 %v2288, %v3577
      %v3580 = vadd.f32 %v2289, %v3578
      %s3581 = scalar_lea.vmem %s11, 1
      %v3582 = vld [vmem:[%s3581] sm:$0x1]
      %s3583 = scalar_lea.vmem %s12, 1
      %v3584 = vld [vmem:[%s3583] sm:$0x1]
      %v3585 = vsel %vm745, %v3579, 0.0
      %3586 = vadd.xlane.f32.xlu0 %v3585
      %v3587 = vpop.xlane.xlu0 %3586
      %v3588 = vsel %vm749, %v3580, 0.0
      %3589 = vadd.xlane.f32.xlu0 %v3588
      %v3590 = vpop.xlane.xlu0 %3589
      %v3591 = vmul.f32 %v3587, %v753
      %v3592 = vmul.f32 %v3590, %v753
      %v3593 = vsub.f32 %v3579, %v3591
      %v3594 = vsub.f32 %v3580, %v3592
      %v3595 = vmul.f32 %v3593, %v3593
      %v3596 = vmul.f32 %v3594, %v3594
      %v3597 = vsel %vm745, %v3595, 0.0
      %3598 = vadd.xlane.f32.xlu0 %v3597
      %v3599 = vpop.xlane.xlu0 %3598
      %v3600 = vsel %vm749, %v3596, 0.0
      %3601 = vadd.xlane.f32.xlu0 %v3600
      %v3602 = vpop.xlane.xlu0 %3601
      %v3603 = vmul.f32 %v3599, %v753
      %v3604 = vmul.f32 %v3602, %v753
      %v3605 = vadd.f32 %v3603, 1e-06
      %v3606 = vadd.f32 %v3604, 1e-06
      %v3607 = vrsqrt.pop %v3605
      %v3608 = vrsqrt.pop %v3606
      %v3609 = vmul.f32 %v3593, %v3607
      %v3610 = vmul.f32 %v3594, %v3608
      %v3612 = vlaneseq
      %v3613 = vshrl.u32 %v3612, 7
      %v3614 = vsub.s32 0, %v3613
      %v3615 = vrot.slane %v3582, %v3614
      %v3617 = vmul.f32 %v3609, %v3615
      %v3618 = vmul.f32 %v3610, %v3615
      %v3620 = vlaneseq
      %v3621 = vshrl.u32 %v3620, 7
      %v3622 = vsub.s32 0, %v3621
      %v3623 = vrot.slane %v3584, %v3622
      %v3625 = vadd.f32 %v3617, %v3623
      %v3626 = vadd.f32 %v3618, %v3623
      %s3627 = scalar_lea.vmem %s13, 32
      %v3628 = vld [vmem:[%s3627] sm:$0xff]
      %v3629 = vld [vmem:[%s3627 + $0x8] sm:$0xff]
      %v3630 = vld [vmem:[%s3627 + $0x10] sm:$0xff]
      %v3631 = vld [vmem:[%s3627 + $0x18] sm:$0xff]
      %s3632 = scalar_lea.vmem %s14, 1
      %v3633 = vld [vmem:[%s3632] sm:$0x1]
      %v3635 = vlaneseq
      %v3636 = vshrl.u32 %v3635, 7
      %v3637 = vsub.s32 0, %v3636
      %v3638 = vrot.slane %v3633, %v3637
      %v3641 = vsel %vm745, %v3625, 0
      %v3644 = vsel %vm745, %v3626, 0
      %3646 = vmatprep.subr.mxu0 0.0
      %3647 = vmatpush1.msra.mxu0 %v3628
      %3648 = vmatprep.subr.mxu0 0.0
      %3649 = vmatpush1.msra.mxu0 %v3629
      %3650 = vmatprep.subr.mxu0 0.0
      %3651 = vmatpush1.msra.mxu0 %v3630
      %3652 = vmatprep.subr.mxu0 0.0
      %3653 = vmatpush1.msra.mxu0 %v3631
      %3654 = vmatprep.subr.mxu0 0.0
      %3655 = vmatpush1.msra.mxu0 0.0
      %3656 = vmatprep.subr.mxu0 0.0
      %3657 = vmatpush1.msra.mxu0 0.0
      %3658 = vmatprep.subr.mxu0 0.0
      %3659 = vmatpush1.msra.mxu0 0.0
      %3660 = vmatprep.subr.mxu0 0.0
      %3661 = vmatpush1.msra.mxu0 0.0
      %3662 = vmatprep.subr.mxu0 0.0
      %3663 = vmatpush1.msra.mxu0 0.0
      %3664 = vmatprep.subr.mxu0 0.0
      %3665 = vmatpush1.msra.mxu0 0.0
      %3666 = vmatprep.subr.mxu0 0.0
      %3667 = vmatpush1.msra.mxu0 0.0
      %3668 = vmatprep.subr.mxu0 0.0
      %3669 = vmatpush1.msra.mxu0 0.0
      %3670 = vmatprep.subr.mxu0 0.0
      %3671 = vmatpush1.msra.mxu0 0.0
      %3672 = vmatprep.subr.mxu0 0.0
      %3673 = vmatpush1.msra.mxu0 0.0
      %3674 = vmatprep.subr.mxu0 0.0
      %3675 = vmatpush1.msra.mxu0 0.0
      %3676 = vmatprep.subr.mxu0 0.0
      %3677 = vmatpush1.msra.mxu0 0.0
      %3678 = vmatprep.subr.mxu0 0.0
      %3679 = vmatpush1.msra.mxu0 0.0
      %3680 = vmatprep.subr.mxu0 0.0
      %3681 = vmatpush1.msra.mxu0 0.0
      %3682 = vmatprep.subr.mxu0 0.0
      %3683 = vmatpush1.msra.mxu0 0.0
      %3684 = vmatprep.subr.mxu0 0.0
      %3685 = vmatpush1.msra.mxu0 0.0
      %3686 = vmatprep.subr.mxu0 0.0
      %3687 = vmatpush1.msra.mxu0 0.0
      %3688 = vmatprep.subr.mxu0 0.0
      %3689 = vmatpush1.msra.mxu0 0.0
      %3690 = vmatprep.subr.mxu0 0.0
      %3691 = vmatpush1.msra.mxu0 0.0
      %3692 = vmatprep.subr.mxu0 0.0
      %3693 = vmatpush1.msra.mxu0 0.0
      %3694 = vmatprep.subr.mxu0 0.0
      %3695 = vmatpush1.msra.mxu0 0.0
      %3696 = vmatprep.subr.mxu0 0.0
      %3697 = vmatpush1.msra.mxu0 0.0
      %3698 = vmatprep.subr.mxu0 0.0
      %3699 = vmatpush1.msra.mxu0 0.0
      %3700 = vmatprep.subr.mxu0 0.0
      %3701 = vmatpush1.msra.mxu0 0.0
      %3702 = vmatprep.subr.mxu0 0.0
      %3703 = vmatpush1.msra.mxu0 0.0
      %3704 = vmatprep.subr.mxu0 0.0
      %3705 = vmatpush1.msra.mxu0 0.0
      %3706 = vmatprep.subr.mxu0 0.0
      %3707 = vmatpush1.msra.mxu0 0.0
      %3708 = vmatprep.subr.mxu0 0.0
      %3709 = vmatpush1.msra.mxu0 0.0
      %3710 = vmatprep.mubr.f32.mxu0 0.0
      %3711 = vmatmul.mubr.f32.gmra.mrb[0].mxu0 %v3641
      %v3712 = vpop.f32.mrb[0].mxu0
      %v3713 = vadd.f32 %v3638, %v3712
      %v3714 = vpop.f32.mrb[0].mxu0
      %3715 = vmatprep.mubr.f32.mxu0 0.0
      %3716 = vmatmul.mubr.f32.gmra.mrb[0].mxu0 %v3644
      %v3717 = vpop.f32.mrb[0].mxu0
      %v3718 = vadd.f32 %v3638, %v3717
      %v3719 = vpop.f32.mrb[0].mxu0
      %3720 = vdwg.mxu0
      %v3721 = vmul.f32 %v3713, %v3713
      %v3722 = vmul.f32 %v3718, %v3718
      %v3723 = vmul.f32 %v3713, %v3721
      %v3724 = vmul.f32 %v3718, %v3722
      %v3725 = vmul.f32 %v3723, 0.044715
      %v3726 = vmul.f32 %v3724, 0.044715
      %v3727 = vadd.f32 %v3713, %v3725
      %v3728 = vadd.f32 %v3718, %v3726
      %v3729 = vmul.f32 %v3727, 0.7978846
      %v3730 = vmul.f32 %v3728, 0.7978846
      %v3731 = vtanh.pop %v3729
      %v3732 = vtanh.pop %v3730
      %v3733 = vadd.f32 %v3731, 1.0
      %v3734 = vadd.f32 %v3732, 1.0
      %v3735 = vmul.f32 %v3733, 0.5
      %v3736 = vmul.f32 %v3734, 0.5
      %v3737 = vmul.f32 %v3713, %v3735
      %v3738 = vmul.f32 %v3718, %v3736
      %s3739 = scalar_lea.vmem %s15, 64
      %v3740 = vld [vmem:[%s3739] sm:$0xff]
      %v3741 = vld [vmem:[%s3739 + $0x8] sm:$0xff]
      %v3742 = vld [vmem:[%s3739 + $0x10] sm:$0xff]
      %v3743 = vld [vmem:[%s3739 + $0x18] sm:$0xff]
      %v3744 = vld [vmem:[%s3739 + $0x20] sm:$0xff]
      %v3745 = vld [vmem:[%s3739 + $0x28] sm:$0xff]
      %v3746 = vld [vmem:[%s3739 + $0x30] sm:$0xff]
      %v3747 = vld [vmem:[%s3739 + $0x38] sm:$0xff]
      %v3749 = vsel %vm2197, %v3737, 0
      %v3752 = vsel %vm2197, %v3738, 0
      %3754 = vmatprep.subr.mxu0 0.0
      %3755 = vmatpush1.msra.mxu0 %v3740
      %3756 = vmatprep.subr.mxu0 0.0
      %3757 = vmatpush1.msra.mxu0 %v3741
      %3758 = vmatprep.subr.mxu0 0.0
      %3759 = vmatpush1.msra.mxu0 %v3742
      %3760 = vmatprep.subr.mxu0 0.0
      %3761 = vmatpush1.msra.mxu0 %v3743
      %3762 = vmatprep.subr.mxu0 0.0
      %3763 = vmatpush1.msra.mxu0 %v3744
      %3764 = vmatprep.subr.mxu0 0.0
      %3765 = vmatpush1.msra.mxu0 %v3745
      %3766 = vmatprep.subr.mxu0 0.0
      %3767 = vmatpush1.msra.mxu0 %v3746
      %3768 = vmatprep.subr.mxu0 0.0
      %3769 = vmatpush1.msra.mxu0 %v3747
      %3770 = vmatprep.subr.mxu0 0.0
      %3771 = vmatpush1.msra.mxu0 0.0
      %3772 = vmatprep.subr.mxu0 0.0
      %3773 = vmatpush1.msra.mxu0 0.0
      %3774 = vmatprep.subr.mxu0 0.0
      %3775 = vmatpush1.msra.mxu0 0.0
      %3776 = vmatprep.subr.mxu0 0.0
      %3777 = vmatpush1.msra.mxu0 0.0
      %3778 = vmatprep.subr.mxu0 0.0
      %3779 = vmatpush1.msra.mxu0 0.0
      %3780 = vmatprep.subr.mxu0 0.0
      %3781 = vmatpush1.msra.mxu0 0.0
      %3782 = vmatprep.subr.mxu0 0.0
      %3783 = vmatpush1.msra.mxu0 0.0
      %3784 = vmatprep.subr.mxu0 0.0
      %3785 = vmatpush1.msra.mxu0 0.0
      %3786 = vmatprep.subr.mxu0 0.0
      %3787 = vmatpush1.msra.mxu0 0.0
      %3788 = vmatprep.subr.mxu0 0.0
      %3789 = vmatpush1.msra.mxu0 0.0
      %3790 = vmatprep.subr.mxu0 0.0
      %3791 = vmatpush1.msra.mxu0 0.0
      %3792 = vmatprep.subr.mxu0 0.0
      %3793 = vmatpush1.msra.mxu0 0.0
      %3794 = vmatprep.subr.mxu0 0.0
      %3795 = vmatpush1.msra.mxu0 0.0
      %3796 = vmatprep.subr.mxu0 0.0
      %3797 = vmatpush1.msra.mxu0 0.0
      %3798 = vmatprep.subr.mxu0 0.0
      %3799 = vmatpush1.msra.mxu0 0.0
      %3800 = vmatprep.subr.mxu0 0.0
      %3801 = vmatpush1.msra.mxu0 0.0
      %3802 = vmatprep.subr.mxu0 0.0
      %3803 = vmatpush1.msra.mxu0 0.0
      %3804 = vmatprep.subr.mxu0 0.0
      %3805 = vmatpush1.msra.mxu0 0.0
      %3806 = vmatprep.subr.mxu0 0.0
      %3807 = vmatpush1.msra.mxu0 0.0
      %3808 = vmatprep.subr.mxu0 0.0
      %3809 = vmatpush1.msra.mxu0 0.0
      %3810 = vmatprep.subr.mxu0 0.0
      %3811 = vmatpush1.msra.mxu0 0.0
      %3812 = vmatprep.subr.mxu0 0.0
      %3813 = vmatpush1.msra.mxu0 0.0
      %3814 = vmatprep.subr.mxu0 0.0
      %3815 = vmatpush1.msra.mxu0 0.0
      %3816 = vmatprep.subr.mxu0 0.0
      %3817 = vmatpush1.msra.mxu0 0.0
      %3818 = vmatprep.mubr.f32.mxu0 0.0
      %3819 = vmatmul.mubr.f32.gmra.mrb[0].mxu0 %v3749
      %v3820 = vpop.f32.mrb[0].mxu0
      %v3821 = vadd.f32 0.0, %v3820
      %v3822 = vpop.f32.mrb[0].mxu0
      %3823 = vmatprep.mubr.f32.mxu0 0.0
      %3824 = vmatmul.mubr.f32.gmra.mrb[0].mxu0 %v3752
      %v3825 = vpop.f32.mrb[0].mxu0
      %v3826 = vadd.f32 0.0, %v3825
      %v3827 = vpop.f32.mrb[0].mxu0
      %3828 = vdwg.mxu0
      %v3829 = vadd.f32 %v3579, %v3821
      %v3830 = vadd.f32 %v3580, %v3826
      %s3831 = scalar_lea.vmem %s16, 1
      %v3832 = vld [vmem:[%s3831] sm:$0x1]
      %v3834 = vlaneseq
      %v3835 = vshrl.u32 %v3834, 7
      %v3836 = vsub.s32 0, %v3835
      %v3837 = vrot.slane %v3832, %v3836
      %v3839 = vadd.f32 %v3829, %v3837
      %v3840 = vadd.f32 %v3830, %v3837
      %v3841 = vld [vmem:[%s17] sm:$0x1]
      %v3842 = vld [vmem:[%s18] sm:$0x1]
      %v3843 = vsel %vm745, %v3839, 0.0
      %3844 = vadd.xlane.f32.xlu0 %v3843
      %v3845 = vpop.xlane.xlu0 %3844
      %v3846 = vsel %vm749, %v3840, 0.0
      %3847 = vadd.xlane.f32.xlu0 %v3846
      %v3848 = vpop.xlane.xlu0 %3847
      %v3849 = vmul.f32 %v3845, %v753
      %v3850 = vmul.f32 %v3848, %v753
      %v3851 = vsub.f32 %v3839, %v3849
      %v3852 = vsub.f32 %v3840, %v3850
      %v3853 = vmul.f32 %v3851, %v3851
      %v3854 = vmul.f32 %v3852, %v3852
      %v3855 = vsel %vm745, %v3853, 0.0
      %3856 = vadd.xlane.f32.xlu0 %v3855
      %v3857 = vpop.xlane.xlu0 %3856
      %v3858 = vsel %vm749, %v3854, 0.0
      %3859 = vadd.xlane.f32.xlu0 %v3858
      %v3860 = vpop.xlane.xlu0 %3859
      %v3861 = vmul.f32 %v3857, %v753
      %v3862 = vmul.f32 %v3860, %v753
      %v3863 = vadd.f32 %v3861, 1e-06
      %v3864 = vadd.f32 %v3862, 1e-06
      %v3865 = vrsqrt.pop %v3863
      %v3866 = vrsqrt.pop %v3864
      %v3867 = vmul.f32 %v3851, %v3865
      %v3868 = vmul.f32 %v3852, %v3866
      %v3870 = vlaneseq
      %v3871 = vshrl.u32 %v3870, 7
      %v3872 = vsub.s32 0, %v3871
      %v3873 = vrot.slane %v3841, %v3872
      %v3875 = vmul.f32 %v3867, %v3873
      %v3876 = vmul.f32 %v3868, %v3873
      %v3878 = vlaneseq
      %v3879 = vshrl.u32 %v3878, 7
      %v3880 = vsub.s32 0, %v3879
      %v3881 = vrot.slane %v3842, %v3880
      %v3883 = vadd.f32 %v3875, %v3881
      %v3884 = vadd.f32 %v3876, %v3881
      %3885 = vst.msk [vmem:[%s602] sm:$0xff] %vm745, %v3883
      %3886 = vst.msk [vmem:[%s602 + $0x8] sm:$0x3] %vm749, %v3884
      %p3887 = scmp.lt.s32.totalorder %s30, 1
      %s3888 = scalar_select %p3887, %s30, 1
      %s3889 = smul.addr %s3888, 2
      %s3890 = smul.addr %s3889, 8
      %s3891 = scalar_lea.vmem %s19, %s3890
      // Predicated region
      $region97: #{vit_bert_overlap.2} parent=95 // pred_check
        %p3892 = pneg %p452
      $region98: #{vit_bert_overlap.2} parent=95 // pred_check_branch
        %3894 = sbr.rel (%p3892) target = $region100
      $region99: #{vit_bert_overlap.2} parent=95 // pred_region
        _
      $region100: #{vit_bert_overlap.2} parent=95 // pred_fallthru
        _
    $region96: #{vit_bert_overlap.2} parent=5 // pred_fallthru
      _
    %p3895 = scmp.le.s32.totalorder 2, %s25
    // Predicated region
    $region101: #{vit_bert_overlap.2} parent=5 // pred_check
      %p3896 = pneg %p3895
    $region102: #{vit_bert_overlap.2} parent=5 // pred_check_branch
      %3898 = sbr.rel (%p3896) target = $region104
    $region103: #{vit_bert_overlap.2} parent=5 // pred_region
      %s3899 = ssub.s32 %s25, 2
      // Predicated region
      $region105: #{vit_bert_overlap.2} parent=103 // pred_check
        %p3900 = pneg %p458
      $region106: #{vit_bert_overlap.2} parent=103 // pred_check_branch
        %3902 = sbr.rel (%p3900) target = $region108
      $region107: #{vit_bert_overlap.2} parent=103 // pred_region
        %p3903 = scmp.lt.s32.totalorder %s31, 1
        %s3904 = scalar_select %p3903, %s31, 1
        %s3905 = smul.addr %s3904, 2
        %s3906 = smul.addr %s3905, 8
        %s3907 = scalar_lea.vmem %s19, %s3906
      $region108: #{vit_bert_overlap.2} parent=103 // pred_fallthru
        _
    $region104: #{vit_bert_overlap.2} parent=5 // pred_fallthru
      _
  $region6: #{vit_bert_overlap.2} parent=0 // loop_footer
    %s29 = sadd.s32 1, %s25
  $region7: #{vit_bert_overlap.2} parent=0 // loop_footer_branch
    %24 = sbr.rel target = $region3
  $region8: #{vit_bert_overlap.2} parent=0 // loop_exit
    _

</llo_original>
